<compile_context>
chip_gen: v7x
topology: tpu7x:2x2x1
jax: 0.10.0
libtpu: 0.0.40
codegen_flags: <defaults>
</compile_context>

<pallas_src>
import math
import functools

import jax
import jax.numpy as jnp
from jax.experimental import pallas as pl
from jax.experimental.pallas import tpu as pltpu


_VPAD = 128            # lane padding for the merged v head (v gets cols [npol, npol+3))


# ----------------------------------------------------------------------- math helpers
def _erf(x):
    # Abramowitz & Stegun 7.1.26 rational approximation (|err| <= 1.5e-7);
    # only exp/mul/add/where so it lowers cleanly on Mosaic.
    p = 0.3275911
    a1, a2, a3, a4, a5 = (0.254829592, -0.284496736, 1.421413741,
                          -1.453152027, 1.061405429)
    s = jnp.where(x < 0.0, -1.0, 1.0)
    ax = jnp.abs(x)
    t = 1.0 / (1.0 + p * ax)
    poly = t * (a1 + t * (a2 + t * (a3 + t * (a4 + t * a5))))
    return s * (1.0 - poly * jnp.exp(-ax * ax))


def _gelu(x):
    # exact (erf-based) GELU, matching torch.nn.GELU() default
    return 0.5 * x * (1.0 + _erf(x * 0.7071067811865476))


def _layernorm(z, g, b, eps=1e-5):
    mu = jnp.mean(z, axis=-1, keepdims=True)
    zc = z - mu
    var = jnp.mean(zc * zc, axis=-1, keepdims=True)
    return zc * jax.lax.rsqrt(var + eps) * g + b


def _softmax_rows(y):
    y = y - jnp.max(y, axis=-1, keepdims=True)
    e = jnp.exp(y)
    return e / jnp.sum(e, axis=-1, keepdims=True)


# ------------------------------------------------------------------ fused forward kernel
def _fused_forward_kernel(ids_ref, emb_pe_ref, wqkv_ref, bqkv_ref, wo_ref,
                          w1_ref, b1_ref, w2_ref, vecs_ref, wdec_ref, bdec_ref,
                          whead_ref, bhead_ref, out_ref,
                          *, nlayers, nhead, ntoken, L, B, npol):
    """Whole TransformerModel forward in one kernel.

    Activation rows are flattened (l, b) with b fastest, i.e. row m = l*B + b.
    Packed-slab ref shapes:
      ids      (M, 1) int32
      emb_pe   (ntoken + max_len, E)    rows [0,ntoken)=emb*sqrt(E), then pe
      w_qkv    (nlayers*3*H, E, Dh)     (q|k|v major, head minor; q pre-scaled)
      b_qkv    (nlayers*3*H, 1, Dh)
      w_o      (nlayers*H, Dh, E)
      w1/b1/w2 (nlayers, E, nhid) / (nlayers, 1, nhid) / (nlayers, nhid, E)
      vecs     (nlayers*6, 1, E)        per layer: bo, b2, ln1_g, ln1_b, ln2_g, ln2_b
      w_dec    (1, E), b_dec (1, 1)
      w_heads  (B, npol + 128)          cols [0,npol)=p head, [npol,npol+3)=v head
      b_heads  (1, npol + 128)          padded v cols hold -1e30 (softmax -> 0)
      out      (L, npol + 128)
    """
    f32 = jnp.float32
    M = L * B
    R, E = emb_pe_ref.shape
    H = nhead
    Dh = E // H

    # --- constants generated in-kernel (iota compares on the VPU; no HBM traffic) ----
    ids = ids_ref[...]                                                  # (M, 1) int32
    col_r = jax.lax.broadcasted_iota(jnp.int32, (M, R), 1)
    row_m = jax.lax.broadcasted_iota(jnp.int32, (M, R), 0)
    dpos = row_m - (col_r - ntoken) * B                                 # hit iff 0 <= dpos < B
    one_hot = jnp.logical_or(
        col_r == ids,
        jnp.logical_and(col_r >= ntoken,
                        jnp.logical_and(dpos >= 0, dpos < B))).astype(f32)   # (M, R)
    # gather + sqrt(E) scale + positional add as ONE MXU matmul (emb pre-scaled at pack).
    x = jnp.dot(one_hot, emb_pe_ref[...], preferred_element_type=f32)        # (M, E)

    # block-diagonal attention mask: rows m, m' attend iff m % B == m' % B
    inv_b = 1.0 / B
    rm = jax.lax.broadcasted_iota(jnp.int32, (M, M), 0).astype(f32)
    cm = jax.lax.broadcasted_iota(jnp.int32, (M, M), 1).astype(f32)
    b_row = rm - B * jnp.floor((rm + 0.5) * inv_b)        # exact small ints in f32
    b_col = cm - B * jnp.floor((cm + 0.5) * inv_b)
    bias = jnp.where(b_row == b_col, 0.0, -1e30)                              # (M, M)

    # --- nlayers x post-norm TransformerEncoderLayer (relu FFN), all in vregs/VMEM ----
    for li in range(nlayers):
        vb = li * 6
        bo, b2 = vecs_ref[vb + 0], vecs_ref[vb + 1]
        g1, be1 = vecs_ref[vb + 2], vecs_ref[vb + 3]
        g2, be2 = vecs_ref[vb + 4], vecs_ref[vb + 5]

        # self-attention per head with per-head (E, Dh) weight slabs: no lane slicing
        # of activations; the 1/sqrt(Dh) query scale is folded into wq/bq at pack time.
        attn = None
        for h in range(H):
            iq = (li * 3 + 0) * H + h
            ik = (li * 3 + 1) * H + h
            iv = (li * 3 + 2) * H + h
            q = jnp.dot(x, wqkv_ref[iq], preferred_element_type=f32) + bqkv_ref[iq]
            k = jnp.dot(x, wqkv_ref[ik], preferred_element_type=f32) + bqkv_ref[ik]
            v = jnp.dot(x, wqkv_ref[iv], preferred_element_type=f32) + bqkv_ref[iv]
            s = jax.lax.dot_general(q, k, (((1,), (1,)), ((), ())),
                                    preferred_element_type=f32) + bias        # (M, M)
            prob = _softmax_rows(s)
            o_h = jnp.dot(prob, v, preferred_element_type=f32)                # (M, Dh)
            part = jnp.dot(o_h, wo_ref[li * H + h], preferred_element_type=f32)
            attn = part if attn is None else attn + part
        attn = attn + bo

        x = _layernorm(x + attn, g1, be1)                                     # norm1
        ff = jnp.maximum(jnp.dot(x, w1_ref[li], preferred_element_type=f32)
                         + b1_ref[li], 0.0)
        ff = jnp.dot(ff, w2_ref[li], preferred_element_type=f32) + b2
        x = _layernorm(x + ff, g2, be2)                                       # norm2

    # --- gelu -> decoder Linear(E, 1) -> gelu ------------------------------------------
    a = _gelu(x)
    dec = jnp.sum(a * wdec_ref[...], axis=-1, keepdims=True) + bdec_ref[...]  # (M, 1)
    dec = _gelu(dec)

    # --- Flatten(start_dim=1): (L*B, 1) rows -> (L, B), via constant 0/1 selection
    #     matmuls built from in-kernel iotas (keeps the relayout on the MXU) -----------
    mcol = jax.lax.broadcasted_iota(jnp.int32, (M, B), 0).astype(f32)
    bcol = jax.lax.broadcasted_iota(jnp.int32, (M, B), 1).astype(f32)
    col_sel = (bcol == (mcol - B * jnp.floor((mcol + 0.5) * inv_b))).astype(f32)  # (M, B)
    rl = jax.lax.broadcasted_iota(jnp.int32, (L, M), 0)
    rmm = jax.lax.broadcasted_iota(jnp.int32, (L, M), 1)
    drow = rmm - rl * B
    row_sel = jnp.logical_and(drow >= 0, drow < B).astype(f32)                    # (L, M)
    flat = jnp.dot(row_sel, dec * col_sel, preferred_element_type=f32)            # (L, B)

    # --- fused (p | padded v) heads: one lane-dense (L, npol+128) store ---------------
    logits = jnp.dot(flat, whead_ref[...], preferred_element_type=f32) + bhead_ref[...]
    out_ref[:, :npol] = _softmax_rows(logits[:, :npol])
    # padded v columns carry a -1e30 bias, so exp underflows to exactly 0 and the
    # softmax over the 128-wide block equals the softmax over the 3 real v columns.
    out_ref[:, npol:] = _softmax_rows(logits[:, npol:])


# ------------------------------------------------------------------------- parameters
def make_params(key, *, sinp, ntoken, ninp, nhead, nhid, nlayers, max_len=64):
    """Canonical parameters (Linear weights stored (in, out)); used by the reference."""
    del nhead
    keys = iter(jax.random.split(key, 64))

    def unif(shape, lim):
        return jax.random.uniform(next(keys), shape, jnp.float32, -lim, lim)

    E = ninp
    params = {"embedding": unif((ntoken, E), 0.1)}        # init_weights: U(-0.1, 0.1)

    lim_e = 1.0 / math.sqrt(E)
    lim_h = 1.0 / math.sqrt(nhid)
    lim_s = 1.0 / math.sqrt(sinp)
    layers = []
    for _ in range(nlayers):
        layers.append(dict(
            wqkv=unif((E, 3 * E), lim_e), bqkv=unif((1, 3 * E), lim_e),
            wo=unif((E, E), lim_e),       bo=unif((1, E), lim_e),
            w1=unif((E, nhid), lim_e),    b1=unif((1, nhid), lim_e),
            w2=unif((nhid, E), lim_h),    b2=unif((1, E), lim_h),
            ln1_g=jnp.ones((1, E), jnp.float32), ln1_b=jnp.zeros((1, E), jnp.float32),
            ln2_g=jnp.ones((1, E), jnp.float32), ln2_b=jnp.zeros((1, E), jnp.float32),
        ))
    params["layers"] = layers

    params["w_dec"] = unif((1, E), lim_e)                 # decoder weight (row form)
    params["b_dec"] = jnp.zeros((1, 1), jnp.float32)      # init_weights zeroes it
    params["w_v"] = unif((sinp, 3), lim_s)
    params["b_v"] = unif((1, 3), lim_s)
    params["w_p"] = unif((sinp, 4096), lim_s)
    params["b_p"] = unif((1, 4096), lim_s)

    # PositionalEncoding buffer, same formula as the PyTorch module, stored (max_len, E)
    position = jnp.arange(max_len, dtype=jnp.float32)[:, None]
    div_term = jnp.exp(jnp.arange(0, E, 2, dtype=jnp.float32) * (-math.log(10000.0) / E))
    pe = jnp.zeros((max_len, E), jnp.float32)
    pe = pe.at[:, 0::2].set(jnp.sin(position * div_term))
    pe = pe.at[:, 1::2].set(jnp.cos(position * div_term))
    params["pe"] = pe
    return params


def pack_params(params, *, nhead):
    """ONE-TIME host-side transform of canonical params into the packed slabs the
    fused kernel consumes (13 refs total).  Folds sqrt(E) into the embedding table,
    1/sqrt(Dh) into the q projection, splits qkv/out-proj into per-head slabs, and
    merges the v head into the p head with -1e30 bias padding."""
    emb = params["embedding"]
    ntoken, E = emb.shape
    H = nhead
    Dh = E // H
    qscale = 1.0 / math.sqrt(Dh)
    layers = params["layers"]

    emb_pe = jnp.concatenate([emb * math.sqrt(E), params["pe"]], axis=0)

    wqkv_parts, bqkv_parts, wo_parts = [], [], []
    w1_l, b1_l, w2_l, vec_parts = [], [], [], []
    for lyr in layers:
        for which, sc in ((0, qscale), (1, 1.0), (2, 1.0)):
            for h in range(H):
                c0 = which * E + h * Dh
                wqkv_parts.append(lyr["wqkv"][:, c0:c0 + Dh] * sc)     # (E, Dh)
                bqkv_parts.append(lyr["bqkv"][:, c0:c0 + Dh] * sc)     # (1, Dh)
        for h in range(H):
            wo_parts.append(lyr["wo"][h * Dh:(h + 1) * Dh, :])         # (Dh, E)
        w1_l.append(lyr["w1"]); b1_l.append(lyr["b1"]); w2_l.append(lyr["w2"])
        vec_parts += [lyr["bo"], lyr["b2"], lyr["ln1_g"], lyr["ln1_b"],
                      lyr["ln2_g"], lyr["ln2_b"]]                      # 6 x (1, E)

    sinp, npol = params["w_p"].shape
    nv = params["w_v"].shape[1]
    w_heads = jnp.zeros((sinp, npol + _VPAD), jnp.float32)
    w_heads = w_heads.at[:, :npol].set(params["w_p"])
    w_heads = w_heads.at[:, npol:npol + nv].set(params["w_v"])
    b_heads = jnp.full((1, npol + _VPAD), -1e30, jnp.float32)
    b_heads = b_heads.at[:, :npol].set(params["b_p"])
    b_heads = b_heads.at[:, npol:npol + nv].set(params["b_v"])

    return dict(
        emb_pe=emb_pe,                       # (ntoken + max_len, E)
        w_qkv=jnp.stack(wqkv_parts),         # (nlayers*3*H, E, Dh)
        b_qkv=jnp.stack(bqkv_parts),         # (nlayers*3*H, 1, Dh)
        w_o=jnp.stack(wo_parts),             # (nlayers*H, Dh, E)
        w1=jnp.stack(w1_l),                  # (nlayers, E, nhid)
        b1=jnp.stack(b1_l),                  # (nlayers, 1, nhid)
        w2=jnp.stack(w2_l),                  # (nlayers, nhid, E)
        vecs=jnp.stack(vec_parts),           # (nlayers*6, 1, E)
        w_dec=params["w_dec"],               # (1, E)
        b_dec=params["b_dec"],               # (1, 1)
        w_heads=w_heads,                     # (sinp, npol + 128)
        b_heads=b_heads,                     # (1, npol + 128)
    )


# ---------------------------------------------------------------------------- forward
def transformer_forward(packed, src, *, nhead, ntoken, nv=3):
    """Eval-mode forward of TransformerModel, fused into a single Pallas kernel."""
    L, B = src.shape
    M = L * B
    nlayers = packed["w1"].shape[0]
    nout = packed["w_heads"].shape[1]
    npol = nout - _VPAD

    kernel = functools.partial(_fused_forward_kernel, nlayers=nlayers, nhead=nhead,
                               ntoken=ntoken, L=L, B=B, npol=npol)
    vmem = pl.BlockSpec(memory_space=pltpu.MemorySpace.VMEM)
    args = (src.reshape(M, 1).astype(jnp.int32),
            packed["emb_pe"], packed["w_qkv"], packed["b_qkv"], packed["w_o"],
            packed["w1"], packed["b1"], packed["w2"], packed["vecs"],
            packed["w_dec"], packed["b_dec"], packed["w_heads"], packed["b_heads"])

    # Single invocation (no grid): at these shapes the work is fixed-overhead bound,
    # so one fused kernel beats any split; everything is VMEM-resident.
    out = pl.pallas_call(
        kernel,
        out_shape=jax.ShapeDtypeStruct((L, nout), jnp.float32),
        in_specs=[vmem] * len(args),
        out_specs=vmem,
    )(*args)

    v = out[:, npol:npol + nv]          # (L, 3)
    p = out[:, :npol]                   # (L, 4096)
    return v, p


# ------------------------------------------------------------------- pure-JAX reference
def reference_forward(params, src, *, nhead):
    """Pure-JAX/XLA reference mirroring the PyTorch module (for validation)."""
    L, B = src.shape
    tbl = params["embedding"]
    E = tbl.shape[1]
    H = nhead
    Dh = E // H
    x = tbl[src] * math.sqrt(E) + params["pe"][:L][:, None, :]          # (L, B, E)
    for lyr in params["layers"]:
        qkv = x @ lyr["wqkv"] + lyr["bqkv"]                             # (L, B, 3E)

        def heads(t):                                                   # -> (B, H, L, Dh)
            return t.reshape(L, B, H, Dh).transpose(1, 2, 0, 3)

        q = heads(qkv[..., :E]) / math.sqrt(Dh)
        k = heads(qkv[..., E:2 * E])
        v = heads(qkv[..., 2 * E:])
        s = jnp.einsum("bhld,bhmd->bhlm", q, k)
        o = jnp.einsum("bhlm,bhmd->bhld", _softmax_rows(s), v)
        o = o.transpose(2, 0, 1, 3).reshape(L, B, E)
        x = _layernorm(x + o @ lyr["wo"] + lyr["bo"], lyr["ln1_g"], lyr["ln1_b"])
        ff = jnp.maximum(x @ lyr["w1"] + lyr["b1"], 0.0) @ lyr["w2"] + lyr["b2"]
        x = _layernorm(x + ff, lyr["ln2_g"], lyr["ln2_b"])
    a = _gelu(x)
    flat = _gelu(jnp.sum(a * params["w_dec"][0], axis=-1) + params["b_dec"][0, 0])
    v_out = _softmax_rows(flat @ params["w_v"] + params["b_v"][0])
    p_out = _softmax_rows(flat @ params["w_p"] + params["b_p"][0])
    return v_out, p_out


# ------------------------------------------------------------------------------- main
if __name__ == "__main__":
    # shapes consistent with the module: sinp == dim-1 of src (consumed by the output
    # Linear heads), L == dim-0 of src (rows of the final v/p outputs).
    sinp = 8
    ntoken = 64
    ninp = 32
    nhead = 4
    nhid = 64
    nlayers = 2
    L = 8

    key = jax.random.PRNGKey(0)
    pkey, skey = jax.random.split(key)
    params = make_params(pkey, sinp=sinp, ntoken=ntoken, ninp=ninp,
                         nhead=nhead, nhid=nhid, nlayers=nlayers)
    packed = pack_params(params, nhead=nhead)              # one-time host-side packing
    src = jax.random.randint(skey, (L, sinp), 0, ntoken, dtype=jnp.int32)

    fwd = jax.jit(functools.partial(transformer_forward, nhead=nhead, ntoken=ntoken))
    v_out, p_out = fwd(packed, src)
    jax.block_until_ready((v_out, p_out))

    assert v_out.shape == (L, 3) and p_out.shape == (L, 4096)
    assert bool(jnp.all(jnp.isfinite(v_out))) and bool(jnp.all(jnp.isfinite(p_out)))
    assert bool(jnp.allclose(jnp.sum(v_out, -1), 1.0, atol=1e-4))
    assert bool(jnp.allclose(jnp.sum(p_out, -1), 1.0, atol=1e-3))

    # cross-check the fused kernel against a plain XLA implementation of the module
    v_ref, p_ref = jax.jit(functools.partial(reference_forward, nhead=nhead))(params, src)
    assert float(jnp.max(jnp.abs(v_out - v_ref))) < 2e-2
    assert float(jnp.max(jnp.abs(p_out - p_ref))) < 1e-4

    print("KERNEL_OK")
</pallas_src>

<mosaic_0001>
module attributes {stable_mosaic.version = 11 : i64} {
  func.func @_fused_forward_kernel(%arg0: memref<64x1xi32, #tpu.memory_space<vmem>>, %arg1: memref<128x32xf32, #tpu.memory_space<vmem>>, %arg2: memref<24x32x8xf32, #tpu.memory_space<vmem>>, %arg3: memref<24x1x8xf32, #tpu.memory_space<vmem>>, %arg4: memref<8x8x32xf32, #tpu.memory_space<vmem>>, %arg5: memref<2x32x64xf32, #tpu.memory_space<vmem>>, %arg6: memref<2x1x64xf32, #tpu.memory_space<vmem>>, %arg7: memref<2x64x32xf32, #tpu.memory_space<vmem>>, %arg8: memref<12x1x32xf32, #tpu.memory_space<vmem>>, %arg9: memref<1x32xf32, #tpu.memory_space<vmem>>, %arg10: memref<1x1xf32, #tpu.memory_space<vmem>>, %arg11: memref<8x4224xf32, #tpu.memory_space<vmem>>, %arg12: memref<1x4224xf32, #tpu.memory_space<vmem>>, %arg13: memref<8x4224xf32, #tpu.memory_space<vmem>>) attributes {dimension_semantics = [], scalar_prefetch = 0 : i64, scratch_operands = 0 : i64, tpu.core_type = #tpu.core_type<tc>} {
    %c0 = arith.constant 0 : index
    %c0_0 = arith.constant 0 : index
    %0 = vector.load %arg0[%c0, %c0_0] : memref<64x1xi32, #tpu.memory_space<vmem>>, vector<64x1xi32>
    %1 = tpu.iota {dimensions = array<i32: 1>} : vector<64x128xi32>
    %2 = tpu.iota {dimensions = array<i32: 0>} : vector<64x128xi32>
    %c64_i32 = arith.constant 64 : i32
    %3 = vector.broadcast %c64_i32 : i32 to vector<64x128xi32>
    %4 = arith.subi %1, %3 : vector<64x128xi32>
    %c8_i32 = arith.constant 8 : i32
    %5 = vector.broadcast %c8_i32 : i32 to vector<64x128xi32>
    %6 = arith.muli %4, %5 : vector<64x128xi32>
    %7 = arith.subi %2, %6 : vector<64x128xi32>
    %8 = vector.broadcast %0 : vector<64x1xi32> to vector<64x128xi32>
    %9 = arith.cmpi eq, %1, %8 : vector<64x128xi32>
    %c64_i32_1 = arith.constant 64 : i32
    %10 = vector.broadcast %c64_i32_1 : i32 to vector<64x128xi32>
    %11 = arith.cmpi sge, %1, %10 : vector<64x128xi32>
    %c0_i32 = arith.constant 0 : i32
    %12 = vector.broadcast %c0_i32 : i32 to vector<64x128xi32>
    %13 = arith.cmpi sge, %7, %12 : vector<64x128xi32>
    %c8_i32_2 = arith.constant 8 : i32
    %14 = vector.broadcast %c8_i32_2 : i32 to vector<64x128xi32>
    %15 = arith.cmpi slt, %7, %14 : vector<64x128xi32>
    %16 = arith.andi %13, %15 : vector<64x128xi1>
    %17 = arith.andi %11, %16 : vector<64x128xi1>
    %18 = arith.ori %9, %17 : vector<64x128xi1>
    %19 = arith.extui %18 : vector<64x128xi1> to vector<64x128xi32>
    %20 = arith.sitofp %19 : vector<64x128xi32> to vector<64x128xf32>
    %c0_3 = arith.constant 0 : index
    %c0_4 = arith.constant 0 : index
    %21 = vector.load %arg1[%c0_3, %c0_4] : memref<128x32xf32, #tpu.memory_space<vmem>>, vector<128x32xf32>
    %cst = arith.constant dense<0.000000e+00> : vector<64x32xf32>
    %22 = tpu.matmul %20, %21, %cst {dimension_numbers = #tpu.dot_dimension_numbers<[1], [0], [0], [1], [0, 0, 1, 1], [], []>} : vector<64x128xf32>, vector<128x32xf32>, vector<64x32xf32> -> vector<64x32xf32>
    %23 = tpu.iota {dimensions = array<i32: 0>} : vector<64x64xi32>
    %24 = arith.sitofp %23 : vector<64x64xi32> to vector<64x64xf32>
    %25 = tpu.iota {dimensions = array<i32: 1>} : vector<64x64xi32>
    %26 = arith.sitofp %25 : vector<64x64xi32> to vector<64x64xf32>
    %cst_5 = arith.constant 5.000000e-01 : f32
    %27 = vector.broadcast %cst_5 : f32 to vector<64x64xf32>
    %28 = arith.addf %24, %27 : vector<64x64xf32>
    %cst_6 = arith.constant 1.250000e-01 : f32
    %29 = vector.broadcast %cst_6 : f32 to vector<64x64xf32>
    %30 = arith.mulf %28, %29 : vector<64x64xf32>
    %31 = math.floor %30 : vector<64x64xf32>
    %cst_7 = arith.constant 8.000000e+00 : f32
    %32 = vector.broadcast %cst_7 : f32 to vector<64x64xf32>
    %33 = arith.mulf %32, %31 : vector<64x64xf32>
    %34 = arith.subf %24, %33 : vector<64x64xf32>
    %cst_8 = arith.constant 5.000000e-01 : f32
    %35 = vector.broadcast %cst_8 : f32 to vector<64x64xf32>
    %36 = arith.addf %26, %35 : vector<64x64xf32>
    %cst_9 = arith.constant 1.250000e-01 : f32
    %37 = vector.broadcast %cst_9 : f32 to vector<64x64xf32>
    %38 = arith.mulf %36, %37 : vector<64x64xf32>
    %39 = math.floor %38 : vector<64x64xf32>
    %cst_10 = arith.constant 8.000000e+00 : f32
    %40 = vector.broadcast %cst_10 : f32 to vector<64x64xf32>
    %41 = arith.mulf %40, %39 : vector<64x64xf32>
    %42 = arith.subf %26, %41 : vector<64x64xf32>
    %43 = arith.cmpf oeq, %34, %42 : vector<64x64xf32>
    %cst_11 = arith.constant 0.000000e+00 : f32
    %cst_12 = arith.constant -1.000000e+30 : f32
    %44 = vector.broadcast %cst_11 : f32 to vector<64x64xf32>
    %45 = vector.broadcast %cst_12 : f32 to vector<64x64xf32>
    %46 = arith.select %43, %44, %45 : vector<64x64xi1>, vector<64x64xf32>
    %c0_13 = arith.constant 0 : index
    %c0_14 = arith.constant 0 : index
    %c0_15 = arith.constant 0 : index
    %47 = vector.load %arg8[%c0_13, %c0_14, %c0_15] : memref<12x1x32xf32, #tpu.memory_space<vmem>>, vector<1x1x32xf32>
    %48 = vector.shape_cast %47 : vector<1x1x32xf32> to vector<1x32xf32>
    %c1 = arith.constant 1 : index
    %c0_16 = arith.constant 0 : index
    %c0_17 = arith.constant 0 : index
    %49 = vector.load %arg8[%c1, %c0_16, %c0_17] : memref<12x1x32xf32, #tpu.memory_space<vmem>>, vector<1x1x32xf32>
    %50 = vector.shape_cast %49 : vector<1x1x32xf32> to vector<1x32xf32>
    %c2 = arith.constant 2 : index
    %c0_18 = arith.constant 0 : index
    %c0_19 = arith.constant 0 : index
    %51 = vector.load %arg8[%c2, %c0_18, %c0_19] : memref<12x1x32xf32, #tpu.memory_space<vmem>>, vector<1x1x32xf32>
    %52 = vector.shape_cast %51 : vector<1x1x32xf32> to vector<1x32xf32>
    %c3 = arith.constant 3 : index
    %c0_20 = arith.constant 0 : index
    %c0_21 = arith.constant 0 : index
    %53 = vector.load %arg8[%c3, %c0_20, %c0_21] : memref<12x1x32xf32, #tpu.memory_space<vmem>>, vector<1x1x32xf32>
    %54 = vector.shape_cast %53 : vector<1x1x32xf32> to vector<1x32xf32>
    %c4 = arith.constant 4 : index
    %c0_22 = arith.constant 0 : index
    %c0_23 = arith.constant 0 : index
    %55 = vector.load %arg8[%c4, %c0_22, %c0_23] : memref<12x1x32xf32, #tpu.memory_space<vmem>>, vector<1x1x32xf32>
    %56 = vector.shape_cast %55 : vector<1x1x32xf32> to vector<1x32xf32>
    %c5 = arith.constant 5 : index
    %c0_24 = arith.constant 0 : index
    %c0_25 = arith.constant 0 : index
    %57 = vector.load %arg8[%c5, %c0_24, %c0_25] : memref<12x1x32xf32, #tpu.memory_space<vmem>>, vector<1x1x32xf32>
    %58 = vector.shape_cast %57 : vector<1x1x32xf32> to vector<1x32xf32>
    %c0_26 = arith.constant 0 : index
    %c0_27 = arith.constant 0 : index
    %c0_28 = arith.constant 0 : index
    %59 = vector.load %arg2[%c0_26, %c0_27, %c0_28] : memref<24x32x8xf32, #tpu.memory_space<vmem>>, vector<1x32x8xf32>
    %60 = vector.shape_cast %59 : vector<1x32x8xf32> to vector<32x8xf32>
    %cst_29 = arith.constant dense<0.000000e+00> : vector<64x8xf32>
    %61 = tpu.matmul %22, %60, %cst_29 {dimension_numbers = #tpu.dot_dimension_numbers<[1], [0], [0], [1], [0, 0, 1, 1], [], []>} : vector<64x32xf32>, vector<32x8xf32>, vector<64x8xf32> -> vector<64x8xf32>
    %c0_30 = arith.constant 0 : index
    %c0_31 = arith.constant 0 : index
    %c0_32 = arith.constant 0 : index
    %62 = vector.load %arg3[%c0_30, %c0_31, %c0_32] : memref<24x1x8xf32, #tpu.memory_space<vmem>>, vector<1x1x8xf32>
    %63 = vector.shape_cast %62 : vector<1x1x8xf32> to vector<1x8xf32>
    %64 = vector.broadcast %63 : vector<1x8xf32> to vector<64x8xf32>
    %65 = arith.addf %61, %64 : vector<64x8xf32>
    %c4_33 = arith.constant 4 : index
    %c0_34 = arith.constant 0 : index
    %c0_35 = arith.constant 0 : index
    %66 = vector.load %arg2[%c4_33, %c0_34, %c0_35] : memref<24x32x8xf32, #tpu.memory_space<vmem>>, vector<1x32x8xf32>
    %67 = vector.shape_cast %66 : vector<1x32x8xf32> to vector<32x8xf32>
    %cst_36 = arith.constant dense<0.000000e+00> : vector<64x8xf32>
    %68 = tpu.matmul %22, %67, %cst_36 {dimension_numbers = #tpu.dot_dimension_numbers<[1], [0], [0], [1], [0, 0, 1, 1], [], []>} : vector<64x32xf32>, vector<32x8xf32>, vector<64x8xf32> -> vector<64x8xf32>
    %c4_37 = arith.constant 4 : index
    %c0_38 = arith.constant 0 : index
    %c0_39 = arith.constant 0 : index
    %69 = vector.load %arg3[%c4_37, %c0_38, %c0_39] : memref<24x1x8xf32, #tpu.memory_space<vmem>>, vector<1x1x8xf32>
    %70 = vector.shape_cast %69 : vector<1x1x8xf32> to vector<1x8xf32>
    %71 = vector.broadcast %70 : vector<1x8xf32> to vector<64x8xf32>
    %72 = arith.addf %68, %71 : vector<64x8xf32>
    %c8 = arith.constant 8 : index
    %c0_40 = arith.constant 0 : index
    %c0_41 = arith.constant 0 : index
    %73 = vector.load %arg2[%c8, %c0_40, %c0_41] : memref<24x32x8xf32, #tpu.memory_space<vmem>>, vector<1x32x8xf32>
    %74 = vector.shape_cast %73 : vector<1x32x8xf32> to vector<32x8xf32>
    %cst_42 = arith.constant dense<0.000000e+00> : vector<64x8xf32>
    %75 = tpu.matmul %22, %74, %cst_42 {dimension_numbers = #tpu.dot_dimension_numbers<[1], [0], [0], [1], [0, 0, 1, 1], [], []>} : vector<64x32xf32>, vector<32x8xf32>, vector<64x8xf32> -> vector<64x8xf32>
    %c8_43 = arith.constant 8 : index
    %c0_44 = arith.constant 0 : index
    %c0_45 = arith.constant 0 : index
    %76 = vector.load %arg3[%c8_43, %c0_44, %c0_45] : memref<24x1x8xf32, #tpu.memory_space<vmem>>, vector<1x1x8xf32>
    %77 = vector.shape_cast %76 : vector<1x1x8xf32> to vector<1x8xf32>
    %78 = vector.broadcast %77 : vector<1x8xf32> to vector<64x8xf32>
    %79 = arith.addf %75, %78 : vector<64x8xf32>
    %cst_46 = arith.constant dense<0.000000e+00> : vector<64x64xf32>
    %80 = tpu.matmul %65, %72, %cst_46 {dimension_numbers = #tpu.dot_dimension_numbers<[1], [1], [0], [0], [0, 0, 1, 0], [], []>} : vector<64x8xf32>, vector<64x8xf32>, vector<64x64xf32> -> vector<64x64xf32>
    %81 = arith.addf %80, %46 : vector<64x64xf32>
    %cst_47 = arith.constant dense<0xFF800000> : vector<64xf32>
    %82 = vector.multi_reduction <maximumf>, %81, %cst_47 [1] : vector<64x64xf32> to vector<64xf32>
    %83 = vector.shape_cast %82 : vector<64xf32> to vector<64x1xf32>
    %84 = vector.broadcast %83 : vector<64x1xf32> to vector<64x64xf32>
    %85 = arith.subf %81, %84 : vector<64x64xf32>
    %86 = math.exp %85 : vector<64x64xf32>
    %cst_48 = arith.constant dense<0.000000e+00> : vector<64xf32>
    %87 = vector.multi_reduction <add>, %86, %cst_48 [1] : vector<64x64xf32> to vector<64xf32>
    %88 = vector.shape_cast %87 : vector<64xf32> to vector<64x1xf32>
    %89 = vector.broadcast %88 : vector<64x1xf32> to vector<64x64xf32>
    %90 = arith.divf %86, %89 : vector<64x64xf32>
    %cst_49 = arith.constant dense<0.000000e+00> : vector<64x8xf32>
    %91 = tpu.matmul %90, %79, %cst_49 {dimension_numbers = #tpu.dot_dimension_numbers<[1], [0], [0], [1], [0, 0, 1, 1], [], []>} : vector<64x64xf32>, vector<64x8xf32>, vector<64x8xf32> -> vector<64x8xf32>
    %c0_50 = arith.constant 0 : index
    %c0_51 = arith.constant 0 : index
    %c0_52 = arith.constant 0 : index
    %92 = vector.load %arg4[%c0_50, %c0_51, %c0_52] : memref<8x8x32xf32, #tpu.memory_space<vmem>>, vector<1x8x32xf32>
    %93 = vector.shape_cast %92 : vector<1x8x32xf32> to vector<8x32xf32>
    %cst_53 = arith.constant dense<0.000000e+00> : vector<64x32xf32>
    %94 = tpu.matmul %91, %93, %cst_53 {dimension_numbers = #tpu.dot_dimension_numbers<[1], [0], [0], [1], [0, 0, 1, 1], [], []>} : vector<64x8xf32>, vector<8x32xf32>, vector<64x32xf32> -> vector<64x32xf32>
    %c1_54 = arith.constant 1 : index
    %c0_55 = arith.constant 0 : index
    %c0_56 = arith.constant 0 : index
    %95 = vector.load %arg2[%c1_54, %c0_55, %c0_56] : memref<24x32x8xf32, #tpu.memory_space<vmem>>, vector<1x32x8xf32>
    %96 = vector.shape_cast %95 : vector<1x32x8xf32> to vector<32x8xf32>
    %cst_57 = arith.constant dense<0.000000e+00> : vector<64x8xf32>
    %97 = tpu.matmul %22, %96, %cst_57 {dimension_numbers = #tpu.dot_dimension_numbers<[1], [0], [0], [1], [0, 0, 1, 1], [], []>} : vector<64x32xf32>, vector<32x8xf32>, vector<64x8xf32> -> vector<64x8xf32>
    %c1_58 = arith.constant 1 : index
    %c0_59 = arith.constant 0 : index
    %c0_60 = arith.constant 0 : index
    %98 = vector.load %arg3[%c1_58, %c0_59, %c0_60] : memref<24x1x8xf32, #tpu.memory_space<vmem>>, vector<1x1x8xf32>
    %99 = vector.shape_cast %98 : vector<1x1x8xf32> to vector<1x8xf32>
    %100 = vector.broadcast %99 : vector<1x8xf32> to vector<64x8xf32>
    %101 = arith.addf %97, %100 : vector<64x8xf32>
    %c5_61 = arith.constant 5 : index
    %c0_62 = arith.constant 0 : index
    %c0_63 = arith.constant 0 : index
    %102 = vector.load %arg2[%c5_61, %c0_62, %c0_63] : memref<24x32x8xf32, #tpu.memory_space<vmem>>, vector<1x32x8xf32>
    %103 = vector.shape_cast %102 : vector<1x32x8xf32> to vector<32x8xf32>
    %cst_64 = arith.constant dense<0.000000e+00> : vector<64x8xf32>
    %104 = tpu.matmul %22, %103, %cst_64 {dimension_numbers = #tpu.dot_dimension_numbers<[1], [0], [0], [1], [0, 0, 1, 1], [], []>} : vector<64x32xf32>, vector<32x8xf32>, vector<64x8xf32> -> vector<64x8xf32>
    %c5_65 = arith.constant 5 : index
    %c0_66 = arith.constant 0 : index
    %c0_67 = arith.constant 0 : index
    %105 = vector.load %arg3[%c5_65, %c0_66, %c0_67] : memref<24x1x8xf32, #tpu.memory_space<vmem>>, vector<1x1x8xf32>
    %106 = vector.shape_cast %105 : vector<1x1x8xf32> to vector<1x8xf32>
    %107 = vector.broadcast %106 : vector<1x8xf32> to vector<64x8xf32>
    %108 = arith.addf %104, %107 : vector<64x8xf32>
    %c9 = arith.constant 9 : index
    %c0_68 = arith.constant 0 : index
    %c0_69 = arith.constant 0 : index
    %109 = vector.load %arg2[%c9, %c0_68, %c0_69] : memref<24x32x8xf32, #tpu.memory_space<vmem>>, vector<1x32x8xf32>
    %110 = vector.shape_cast %109 : vector<1x32x8xf32> to vector<32x8xf32>
    %cst_70 = arith.constant dense<0.000000e+00> : vector<64x8xf32>
    %111 = tpu.matmul %22, %110, %cst_70 {dimension_numbers = #tpu.dot_dimension_numbers<[1], [0], [0], [1], [0, 0, 1, 1], [], []>} : vector<64x32xf32>, vector<32x8xf32>, vector<64x8xf32> -> vector<64x8xf32>
    %c9_71 = arith.constant 9 : index
    %c0_72 = arith.constant 0 : index
    %c0_73 = arith.constant 0 : index
    %112 = vector.load %arg3[%c9_71, %c0_72, %c0_73] : memref<24x1x8xf32, #tpu.memory_space<vmem>>, vector<1x1x8xf32>
    %113 = vector.shape_cast %112 : vector<1x1x8xf32> to vector<1x8xf32>
    %114 = vector.broadcast %113 : vector<1x8xf32> to vector<64x8xf32>
    %115 = arith.addf %111, %114 : vector<64x8xf32>
    %cst_74 = arith.constant dense<0.000000e+00> : vector<64x64xf32>
    %116 = tpu.matmul %101, %108, %cst_74 {dimension_numbers = #tpu.dot_dimension_numbers<[1], [1], [0], [0], [0, 0, 1, 0], [], []>} : vector<64x8xf32>, vector<64x8xf32>, vector<64x64xf32> -> vector<64x64xf32>
    %117 = arith.addf %116, %46 : vector<64x64xf32>
    %cst_75 = arith.constant dense<0xFF800000> : vector<64xf32>
    %118 = vector.multi_reduction <maximumf>, %117, %cst_75 [1] : vector<64x64xf32> to vector<64xf32>
    %119 = vector.shape_cast %118 : vector<64xf32> to vector<64x1xf32>
    %120 = vector.broadcast %119 : vector<64x1xf32> to vector<64x64xf32>
    %121 = arith.subf %117, %120 : vector<64x64xf32>
    %122 = math.exp %121 : vector<64x64xf32>
    %cst_76 = arith.constant dense<0.000000e+00> : vector<64xf32>
    %123 = vector.multi_reduction <add>, %122, %cst_76 [1] : vector<64x64xf32> to vector<64xf32>
    %124 = vector.shape_cast %123 : vector<64xf32> to vector<64x1xf32>
    %125 = vector.broadcast %124 : vector<64x1xf32> to vector<64x64xf32>
    %126 = arith.divf %122, %125 : vector<64x64xf32>
    %cst_77 = arith.constant dense<0.000000e+00> : vector<64x8xf32>
    %127 = tpu.matmul %126, %115, %cst_77 {dimension_numbers = #tpu.dot_dimension_numbers<[1], [0], [0], [1], [0, 0, 1, 1], [], []>} : vector<64x64xf32>, vector<64x8xf32>, vector<64x8xf32> -> vector<64x8xf32>
    %c1_78 = arith.constant 1 : index
    %c0_79 = arith.constant 0 : index
    %c0_80 = arith.constant 0 : index
    %128 = vector.load %arg4[%c1_78, %c0_79, %c0_80] : memref<8x8x32xf32, #tpu.memory_space<vmem>>, vector<1x8x32xf32>
    %129 = vector.shape_cast %128 : vector<1x8x32xf32> to vector<8x32xf32>
    %cst_81 = arith.constant dense<0.000000e+00> : vector<64x32xf32>
    %130 = tpu.matmul %127, %129, %cst_81 {dimension_numbers = #tpu.dot_dimension_numbers<[1], [0], [0], [1], [0, 0, 1, 1], [], []>} : vector<64x8xf32>, vector<8x32xf32>, vector<64x32xf32> -> vector<64x32xf32>
    %131 = arith.addf %94, %130 : vector<64x32xf32>
    %c2_82 = arith.constant 2 : index
    %c0_83 = arith.constant 0 : index
    %c0_84 = arith.constant 0 : index
    %132 = vector.load %arg2[%c2_82, %c0_83, %c0_84] : memref<24x32x8xf32, #tpu.memory_space<vmem>>, vector<1x32x8xf32>
    %133 = vector.shape_cast %132 : vector<1x32x8xf32> to vector<32x8xf32>
    %cst_85 = arith.constant dense<0.000000e+00> : vector<64x8xf32>
    %134 = tpu.matmul %22, %133, %cst_85 {dimension_numbers = #tpu.dot_dimension_numbers<[1], [0], [0], [1], [0, 0, 1, 1], [], []>} : vector<64x32xf32>, vector<32x8xf32>, vector<64x8xf32> -> vector<64x8xf32>
    %c2_86 = arith.constant 2 : index
    %c0_87 = arith.constant 0 : index
    %c0_88 = arith.constant 0 : index
    %135 = vector.load %arg3[%c2_86, %c0_87, %c0_88] : memref<24x1x8xf32, #tpu.memory_space<vmem>>, vector<1x1x8xf32>
    %136 = vector.shape_cast %135 : vector<1x1x8xf32> to vector<1x8xf32>
    %137 = vector.broadcast %136 : vector<1x8xf32> to vector<64x8xf32>
    %138 = arith.addf %134, %137 : vector<64x8xf32>
    %c6 = arith.constant 6 : index
    %c0_89 = arith.constant 0 : index
    %c0_90 = arith.constant 0 : index
    %139 = vector.load %arg2[%c6, %c0_89, %c0_90] : memref<24x32x8xf32, #tpu.memory_space<vmem>>, vector<1x32x8xf32>
    %140 = vector.shape_cast %139 : vector<1x32x8xf32> to vector<32x8xf32>
    %cst_91 = arith.constant dense<0.000000e+00> : vector<64x8xf32>
    %141 = tpu.matmul %22, %140, %cst_91 {dimension_numbers = #tpu.dot_dimension_numbers<[1], [0], [0], [1], [0, 0, 1, 1], [], []>} : vector<64x32xf32>, vector<32x8xf32>, vector<64x8xf32> -> vector<64x8xf32>
    %c6_92 = arith.constant 6 : index
    %c0_93 = arith.constant 0 : index
    %c0_94 = arith.constant 0 : index
    %142 = vector.load %arg3[%c6_92, %c0_93, %c0_94] : memref<24x1x8xf32, #tpu.memory_space<vmem>>, vector<1x1x8xf32>
    %143 = vector.shape_cast %142 : vector<1x1x8xf32> to vector<1x8xf32>
    %144 = vector.broadcast %143 : vector<1x8xf32> to vector<64x8xf32>
    %145 = arith.addf %141, %144 : vector<64x8xf32>
    %c10 = arith.constant 10 : index
    %c0_95 = arith.constant 0 : index
    %c0_96 = arith.constant 0 : index
    %146 = vector.load %arg2[%c10, %c0_95, %c0_96] : memref<24x32x8xf32, #tpu.memory_space<vmem>>, vector<1x32x8xf32>
    %147 = vector.shape_cast %146 : vector<1x32x8xf32> to vector<32x8xf32>
    %cst_97 = arith.constant dense<0.000000e+00> : vector<64x8xf32>
    %148 = tpu.matmul %22, %147, %cst_97 {dimension_numbers = #tpu.dot_dimension_numbers<[1], [0], [0], [1], [0, 0, 1, 1], [], []>} : vector<64x32xf32>, vector<32x8xf32>, vector<64x8xf32> -> vector<64x8xf32>
    %c10_98 = arith.constant 10 : index
    %c0_99 = arith.constant 0 : index
    %c0_100 = arith.constant 0 : index
    %149 = vector.load %arg3[%c10_98, %c0_99, %c0_100] : memref<24x1x8xf32, #tpu.memory_space<vmem>>, vector<1x1x8xf32>
    %150 = vector.shape_cast %149 : vector<1x1x8xf32> to vector<1x8xf32>
    %151 = vector.broadcast %150 : vector<1x8xf32> to vector<64x8xf32>
    %152 = arith.addf %148, %151 : vector<64x8xf32>
    %cst_101 = arith.constant dense<0.000000e+00> : vector<64x64xf32>
    %153 = tpu.matmul %138, %145, %cst_101 {dimension_numbers = #tpu.dot_dimension_numbers<[1], [1], [0], [0], [0, 0, 1, 0], [], []>} : vector<64x8xf32>, vector<64x8xf32>, vector<64x64xf32> -> vector<64x64xf32>
    %154 = arith.addf %153, %46 : vector<64x64xf32>
    %cst_102 = arith.constant dense<0xFF800000> : vector<64xf32>
    %155 = vector.multi_reduction <maximumf>, %154, %cst_102 [1] : vector<64x64xf32> to vector<64xf32>
    %156 = vector.shape_cast %155 : vector<64xf32> to vector<64x1xf32>
    %157 = vector.broadcast %156 : vector<64x1xf32> to vector<64x64xf32>
    %158 = arith.subf %154, %157 : vector<64x64xf32>
    %159 = math.exp %158 : vector<64x64xf32>
    %cst_103 = arith.constant dense<0.000000e+00> : vector<64xf32>
    %160 = vector.multi_reduction <add>, %159, %cst_103 [1] : vector<64x64xf32> to vector<64xf32>
    %161 = vector.shape_cast %160 : vector<64xf32> to vector<64x1xf32>
    %162 = vector.broadcast %161 : vector<64x1xf32> to vector<64x64xf32>
    %163 = arith.divf %159, %162 : vector<64x64xf32>
    %cst_104 = arith.constant dense<0.000000e+00> : vector<64x8xf32>
    %164 = tpu.matmul %163, %152, %cst_104 {dimension_numbers = #tpu.dot_dimension_numbers<[1], [0], [0], [1], [0, 0, 1, 1], [], []>} : vector<64x64xf32>, vector<64x8xf32>, vector<64x8xf32> -> vector<64x8xf32>
    %c2_105 = arith.constant 2 : index
    %c0_106 = arith.constant 0 : index
    %c0_107 = arith.constant 0 : index
    %165 = vector.load %arg4[%c2_105, %c0_106, %c0_107] : memref<8x8x32xf32, #tpu.memory_space<vmem>>, vector<1x8x32xf32>
    %166 = vector.shape_cast %165 : vector<1x8x32xf32> to vector<8x32xf32>
    %cst_108 = arith.constant dense<0.000000e+00> : vector<64x32xf32>
    %167 = tpu.matmul %164, %166, %cst_108 {dimension_numbers = #tpu.dot_dimension_numbers<[1], [0], [0], [1], [0, 0, 1, 1], [], []>} : vector<64x8xf32>, vector<8x32xf32>, vector<64x32xf32> -> vector<64x32xf32>
    %168 = arith.addf %131, %167 : vector<64x32xf32>
    %c3_109 = arith.constant 3 : index
    %c0_110 = arith.constant 0 : index
    %c0_111 = arith.constant 0 : index
    %169 = vector.load %arg2[%c3_109, %c0_110, %c0_111] : memref<24x32x8xf32, #tpu.memory_space<vmem>>, vector<1x32x8xf32>
    %170 = vector.shape_cast %169 : vector<1x32x8xf32> to vector<32x8xf32>
    %cst_112 = arith.constant dense<0.000000e+00> : vector<64x8xf32>
    %171 = tpu.matmul %22, %170, %cst_112 {dimension_numbers = #tpu.dot_dimension_numbers<[1], [0], [0], [1], [0, 0, 1, 1], [], []>} : vector<64x32xf32>, vector<32x8xf32>, vector<64x8xf32> -> vector<64x8xf32>
    %c3_113 = arith.constant 3 : index
    %c0_114 = arith.constant 0 : index
    %c0_115 = arith.constant 0 : index
    %172 = vector.load %arg3[%c3_113, %c0_114, %c0_115] : memref<24x1x8xf32, #tpu.memory_space<vmem>>, vector<1x1x8xf32>
    %173 = vector.shape_cast %172 : vector<1x1x8xf32> to vector<1x8xf32>
    %174 = vector.broadcast %173 : vector<1x8xf32> to vector<64x8xf32>
    %175 = arith.addf %171, %174 : vector<64x8xf32>
    %c7 = arith.constant 7 : index
    %c0_116 = arith.constant 0 : index
    %c0_117 = arith.constant 0 : index
    %176 = vector.load %arg2[%c7, %c0_116, %c0_117] : memref<24x32x8xf32, #tpu.memory_space<vmem>>, vector<1x32x8xf32>
    %177 = vector.shape_cast %176 : vector<1x32x8xf32> to vector<32x8xf32>
    %cst_118 = arith.constant dense<0.000000e+00> : vector<64x8xf32>
    %178 = tpu.matmul %22, %177, %cst_118 {dimension_numbers = #tpu.dot_dimension_numbers<[1], [0], [0], [1], [0, 0, 1, 1], [], []>} : vector<64x32xf32>, vector<32x8xf32>, vector<64x8xf32> -> vector<64x8xf32>
    %c7_119 = arith.constant 7 : index
    %c0_120 = arith.constant 0 : index
    %c0_121 = arith.constant 0 : index
    %179 = vector.load %arg3[%c7_119, %c0_120, %c0_121] : memref<24x1x8xf32, #tpu.memory_space<vmem>>, vector<1x1x8xf32>
    %180 = vector.shape_cast %179 : vector<1x1x8xf32> to vector<1x8xf32>
    %181 = vector.broadcast %180 : vector<1x8xf32> to vector<64x8xf32>
    %182 = arith.addf %178, %181 : vector<64x8xf32>
    %c11 = arith.constant 11 : index
    %c0_122 = arith.constant 0 : index
    %c0_123 = arith.constant 0 : index
    %183 = vector.load %arg2[%c11, %c0_122, %c0_123] : memref<24x32x8xf32, #tpu.memory_space<vmem>>, vector<1x32x8xf32>
    %184 = vector.shape_cast %183 : vector<1x32x8xf32> to vector<32x8xf32>
    %cst_124 = arith.constant dense<0.000000e+00> : vector<64x8xf32>
    %185 = tpu.matmul %22, %184, %cst_124 {dimension_numbers = #tpu.dot_dimension_numbers<[1], [0], [0], [1], [0, 0, 1, 1], [], []>} : vector<64x32xf32>, vector<32x8xf32>, vector<64x8xf32> -> vector<64x8xf32>
    %c11_125 = arith.constant 11 : index
    %c0_126 = arith.constant 0 : index
    %c0_127 = arith.constant 0 : index
    %186 = vector.load %arg3[%c11_125, %c0_126, %c0_127] : memref<24x1x8xf32, #tpu.memory_space<vmem>>, vector<1x1x8xf32>
    %187 = vector.shape_cast %186 : vector<1x1x8xf32> to vector<1x8xf32>
    %188 = vector.broadcast %187 : vector<1x8xf32> to vector<64x8xf32>
    %189 = arith.addf %185, %188 : vector<64x8xf32>
    %cst_128 = arith.constant dense<0.000000e+00> : vector<64x64xf32>
    %190 = tpu.matmul %175, %182, %cst_128 {dimension_numbers = #tpu.dot_dimension_numbers<[1], [1], [0], [0], [0, 0, 1, 0], [], []>} : vector<64x8xf32>, vector<64x8xf32>, vector<64x64xf32> -> vector<64x64xf32>
    %191 = arith.addf %190, %46 : vector<64x64xf32>
    %cst_129 = arith.constant dense<0xFF800000> : vector<64xf32>
    %192 = vector.multi_reduction <maximumf>, %191, %cst_129 [1] : vector<64x64xf32> to vector<64xf32>
    %193 = vector.shape_cast %192 : vector<64xf32> to vector<64x1xf32>
    %194 = vector.broadcast %193 : vector<64x1xf32> to vector<64x64xf32>
    %195 = arith.subf %191, %194 : vector<64x64xf32>
    %196 = math.exp %195 : vector<64x64xf32>
    %cst_130 = arith.constant dense<0.000000e+00> : vector<64xf32>
    %197 = vector.multi_reduction <add>, %196, %cst_130 [1] : vector<64x64xf32> to vector<64xf32>
    %198 = vector.shape_cast %197 : vector<64xf32> to vector<64x1xf32>
    %199 = vector.broadcast %198 : vector<64x1xf32> to vector<64x64xf32>
    %200 = arith.divf %196, %199 : vector<64x64xf32>
    %cst_131 = arith.constant dense<0.000000e+00> : vector<64x8xf32>
    %201 = tpu.matmul %200, %189, %cst_131 {dimension_numbers = #tpu.dot_dimension_numbers<[1], [0], [0], [1], [0, 0, 1, 1], [], []>} : vector<64x64xf32>, vector<64x8xf32>, vector<64x8xf32> -> vector<64x8xf32>
    %c3_132 = arith.constant 3 : index
    %c0_133 = arith.constant 0 : index
    %c0_134 = arith.constant 0 : index
    %202 = vector.load %arg4[%c3_132, %c0_133, %c0_134] : memref<8x8x32xf32, #tpu.memory_space<vmem>>, vector<1x8x32xf32>
    %203 = vector.shape_cast %202 : vector<1x8x32xf32> to vector<8x32xf32>
    %cst_135 = arith.constant dense<0.000000e+00> : vector<64x32xf32>
    %204 = tpu.matmul %201, %203, %cst_135 {dimension_numbers = #tpu.dot_dimension_numbers<[1], [0], [0], [1], [0, 0, 1, 1], [], []>} : vector<64x8xf32>, vector<8x32xf32>, vector<64x32xf32> -> vector<64x32xf32>
    %205 = arith.addf %168, %204 : vector<64x32xf32>
    %206 = vector.broadcast %48 : vector<1x32xf32> to vector<64x32xf32>
    %207 = arith.addf %205, %206 : vector<64x32xf32>
    %208 = arith.addf %22, %207 : vector<64x32xf32>
    %cst_136 = arith.constant dense<0.000000e+00> : vector<64xf32>
    %209 = vector.multi_reduction <add>, %208, %cst_136 [1] : vector<64x32xf32> to vector<64xf32>
    %210 = vector.shape_cast %209 : vector<64xf32> to vector<64x1xf32>
    %cst_137 = arith.constant 3.200000e+01 : f32
    %211 = vector.broadcast %cst_137 : f32 to vector<64x1xf32>
    %212 = arith.divf %210, %211 : vector<64x1xf32>
    %213 = vector.broadcast %212 : vector<64x1xf32> to vector<64x32xf32>
    %214 = arith.subf %208, %213 : vector<64x32xf32>
    %215 = arith.mulf %214, %214 : vector<64x32xf32>
    %cst_138 = arith.constant dense<0.000000e+00> : vector<64xf32>
    %216 = vector.multi_reduction <add>, %215, %cst_138 [1] : vector<64x32xf32> to vector<64xf32>
    %217 = vector.shape_cast %216 : vector<64xf32> to vector<64x1xf32>
    %cst_139 = arith.constant 3.200000e+01 : f32
    %218 = vector.broadcast %cst_139 : f32 to vector<64x1xf32>
    %219 = arith.divf %217, %218 : vector<64x1xf32>
    %cst_140 = arith.constant 9.99999974E-6 : f32
    %220 = vector.broadcast %cst_140 : f32 to vector<64x1xf32>
    %221 = arith.addf %219, %220 : vector<64x1xf32>
    %222 = math.rsqrt %221 : vector<64x1xf32>
    %223 = vector.broadcast %222 : vector<64x1xf32> to vector<64x32xf32>
    %224 = arith.mulf %214, %223 : vector<64x32xf32>
    %225 = vector.broadcast %52 : vector<1x32xf32> to vector<64x32xf32>
    %226 = arith.mulf %224, %225 : vector<64x32xf32>
    %227 = vector.broadcast %54 : vector<1x32xf32> to vector<64x32xf32>
    %228 = arith.addf %226, %227 : vector<64x32xf32>
    %c0_141 = arith.constant 0 : index
    %c0_142 = arith.constant 0 : index
    %c0_143 = arith.constant 0 : index
    %229 = vector.load %arg5[%c0_141, %c0_142, %c0_143] : memref<2x32x64xf32, #tpu.memory_space<vmem>>, vector<1x32x64xf32>
    %230 = vector.shape_cast %229 : vector<1x32x64xf32> to vector<32x64xf32>
    %cst_144 = arith.constant dense<0.000000e+00> : vector<64x64xf32>
    %231 = tpu.matmul %228, %230, %cst_144 {dimension_numbers = #tpu.dot_dimension_numbers<[1], [0], [0], [1], [0, 0, 1, 1], [], []>} : vector<64x32xf32>, vector<32x64xf32>, vector<64x64xf32> -> vector<64x64xf32>
    %c0_145 = arith.constant 0 : index
    %c0_146 = arith.constant 0 : index
    %c0_147 = arith.constant 0 : index
    %232 = vector.load %arg6[%c0_145, %c0_146, %c0_147] : memref<2x1x64xf32, #tpu.memory_space<vmem>>, vector<1x1x64xf32>
    %233 = vector.shape_cast %232 : vector<1x1x64xf32> to vector<1x64xf32>
    %234 = vector.broadcast %233 : vector<1x64xf32> to vector<64x64xf32>
    %235 = arith.addf %231, %234 : vector<64x64xf32>
    %cst_148 = arith.constant 0.000000e+00 : f32
    %236 = vector.broadcast %cst_148 : f32 to vector<64x64xf32>
    %237 = arith.maximumf %235, %236 : vector<64x64xf32>
    %c0_149 = arith.constant 0 : index
    %c0_150 = arith.constant 0 : index
    %c0_151 = arith.constant 0 : index
    %238 = vector.load %arg7[%c0_149, %c0_150, %c0_151] : memref<2x64x32xf32, #tpu.memory_space<vmem>>, vector<1x64x32xf32>
    %239 = vector.shape_cast %238 : vector<1x64x32xf32> to vector<64x32xf32>
    %cst_152 = arith.constant dense<0.000000e+00> : vector<64x32xf32>
    %240 = tpu.matmul %237, %239, %cst_152 {dimension_numbers = #tpu.dot_dimension_numbers<[1], [0], [0], [1], [0, 0, 1, 1], [], []>} : vector<64x64xf32>, vector<64x32xf32>, vector<64x32xf32> -> vector<64x32xf32>
    %241 = vector.broadcast %50 : vector<1x32xf32> to vector<64x32xf32>
    %242 = arith.addf %240, %241 : vector<64x32xf32>
    %243 = arith.addf %228, %242 : vector<64x32xf32>
    %cst_153 = arith.constant dense<0.000000e+00> : vector<64xf32>
    %244 = vector.multi_reduction <add>, %243, %cst_153 [1] : vector<64x32xf32> to vector<64xf32>
    %245 = vector.shape_cast %244 : vector<64xf32> to vector<64x1xf32>
    %cst_154 = arith.constant 3.200000e+01 : f32
    %246 = vector.broadcast %cst_154 : f32 to vector<64x1xf32>
    %247 = arith.divf %245, %246 : vector<64x1xf32>
    %248 = vector.broadcast %247 : vector<64x1xf32> to vector<64x32xf32>
    %249 = arith.subf %243, %248 : vector<64x32xf32>
    %250 = arith.mulf %249, %249 : vector<64x32xf32>
    %cst_155 = arith.constant dense<0.000000e+00> : vector<64xf32>
    %251 = vector.multi_reduction <add>, %250, %cst_155 [1] : vector<64x32xf32> to vector<64xf32>
    %252 = vector.shape_cast %251 : vector<64xf32> to vector<64x1xf32>
    %cst_156 = arith.constant 3.200000e+01 : f32
    %253 = vector.broadcast %cst_156 : f32 to vector<64x1xf32>
    %254 = arith.divf %252, %253 : vector<64x1xf32>
    %cst_157 = arith.constant 9.99999974E-6 : f32
    %255 = vector.broadcast %cst_157 : f32 to vector<64x1xf32>
    %256 = arith.addf %254, %255 : vector<64x1xf32>
    %257 = math.rsqrt %256 : vector<64x1xf32>
    %258 = vector.broadcast %257 : vector<64x1xf32> to vector<64x32xf32>
    %259 = arith.mulf %249, %258 : vector<64x32xf32>
    %260 = vector.broadcast %56 : vector<1x32xf32> to vector<64x32xf32>
    %261 = arith.mulf %259, %260 : vector<64x32xf32>
    %262 = vector.broadcast %58 : vector<1x32xf32> to vector<64x32xf32>
    %263 = arith.addf %261, %262 : vector<64x32xf32>
    %c6_158 = arith.constant 6 : index
    %c0_159 = arith.constant 0 : index
    %c0_160 = arith.constant 0 : index
    %264 = vector.load %arg8[%c6_158, %c0_159, %c0_160] : memref<12x1x32xf32, #tpu.memory_space<vmem>>, vector<1x1x32xf32>
    %265 = vector.shape_cast %264 : vector<1x1x32xf32> to vector<1x32xf32>
    %c7_161 = arith.constant 7 : index
    %c0_162 = arith.constant 0 : index
    %c0_163 = arith.constant 0 : index
    %266 = vector.load %arg8[%c7_161, %c0_162, %c0_163] : memref<12x1x32xf32, #tpu.memory_space<vmem>>, vector<1x1x32xf32>
    %267 = vector.shape_cast %266 : vector<1x1x32xf32> to vector<1x32xf32>
    %c8_164 = arith.constant 8 : index
    %c0_165 = arith.constant 0 : index
    %c0_166 = arith.constant 0 : index
    %268 = vector.load %arg8[%c8_164, %c0_165, %c0_166] : memref<12x1x32xf32, #tpu.memory_space<vmem>>, vector<1x1x32xf32>
    %269 = vector.shape_cast %268 : vector<1x1x32xf32> to vector<1x32xf32>
    %c9_167 = arith.constant 9 : index
    %c0_168 = arith.constant 0 : index
    %c0_169 = arith.constant 0 : index
    %270 = vector.load %arg8[%c9_167, %c0_168, %c0_169] : memref<12x1x32xf32, #tpu.memory_space<vmem>>, vector<1x1x32xf32>
    %271 = vector.shape_cast %270 : vector<1x1x32xf32> to vector<1x32xf32>
    %c10_170 = arith.constant 10 : index
    %c0_171 = arith.constant 0 : index
    %c0_172 = arith.constant 0 : index
    %272 = vector.load %arg8[%c10_170, %c0_171, %c0_172] : memref<12x1x32xf32, #tpu.memory_space<vmem>>, vector<1x1x32xf32>
    %273 = vector.shape_cast %272 : vector<1x1x32xf32> to vector<1x32xf32>
    %c11_173 = arith.constant 11 : index
    %c0_174 = arith.constant 0 : index
    %c0_175 = arith.constant 0 : index
    %274 = vector.load %arg8[%c11_173, %c0_174, %c0_175] : memref<12x1x32xf32, #tpu.memory_space<vmem>>, vector<1x1x32xf32>
    %275 = vector.shape_cast %274 : vector<1x1x32xf32> to vector<1x32xf32>
    %c12 = arith.constant 12 : index
    %c0_176 = arith.constant 0 : index
    %c0_177 = arith.constant 0 : index
    %276 = vector.load %arg2[%c12, %c0_176, %c0_177] : memref<24x32x8xf32, #tpu.memory_space<vmem>>, vector<1x32x8xf32>
    %277 = vector.shape_cast %276 : vector<1x32x8xf32> to vector<32x8xf32>
    %cst_178 = arith.constant dense<0.000000e+00> : vector<64x8xf32>
    %278 = tpu.matmul %263, %277, %cst_178 {dimension_numbers = #tpu.dot_dimension_numbers<[1], [0], [0], [1], [0, 0, 1, 1], [], []>} : vector<64x32xf32>, vector<32x8xf32>, vector<64x8xf32> -> vector<64x8xf32>
    %c12_179 = arith.constant 12 : index
    %c0_180 = arith.constant 0 : index
    %c0_181 = arith.constant 0 : index
    %279 = vector.load %arg3[%c12_179, %c0_180, %c0_181] : memref<24x1x8xf32, #tpu.memory_space<vmem>>, vector<1x1x8xf32>
    %280 = vector.shape_cast %279 : vector<1x1x8xf32> to vector<1x8xf32>
    %281 = vector.broadcast %280 : vector<1x8xf32> to vector<64x8xf32>
    %282 = arith.addf %278, %281 : vector<64x8xf32>
    %c16 = arith.constant 16 : index
    %c0_182 = arith.constant 0 : index
    %c0_183 = arith.constant 0 : index
    %283 = vector.load %arg2[%c16, %c0_182, %c0_183] : memref<24x32x8xf32, #tpu.memory_space<vmem>>, vector<1x32x8xf32>
    %284 = vector.shape_cast %283 : vector<1x32x8xf32> to vector<32x8xf32>
    %cst_184 = arith.constant dense<0.000000e+00> : vector<64x8xf32>
    %285 = tpu.matmul %263, %284, %cst_184 {dimension_numbers = #tpu.dot_dimension_numbers<[1], [0], [0], [1], [0, 0, 1, 1], [], []>} : vector<64x32xf32>, vector<32x8xf32>, vector<64x8xf32> -> vector<64x8xf32>
    %c16_185 = arith.constant 16 : index
    %c0_186 = arith.constant 0 : index
    %c0_187 = arith.constant 0 : index
    %286 = vector.load %arg3[%c16_185, %c0_186, %c0_187] : memref<24x1x8xf32, #tpu.memory_space<vmem>>, vector<1x1x8xf32>
    %287 = vector.shape_cast %286 : vector<1x1x8xf32> to vector<1x8xf32>
    %288 = vector.broadcast %287 : vector<1x8xf32> to vector<64x8xf32>
    %289 = arith.addf %285, %288 : vector<64x8xf32>
    %c20 = arith.constant 20 : index
    %c0_188 = arith.constant 0 : index
    %c0_189 = arith.constant 0 : index
    %290 = vector.load %arg2[%c20, %c0_188, %c0_189] : memref<24x32x8xf32, #tpu.memory_space<vmem>>, vector<1x32x8xf32>
    %291 = vector.shape_cast %290 : vector<1x32x8xf32> to vector<32x8xf32>
    %cst_190 = arith.constant dense<0.000000e+00> : vector<64x8xf32>
    %292 = tpu.matmul %263, %291, %cst_190 {dimension_numbers = #tpu.dot_dimension_numbers<[1], [0], [0], [1], [0, 0, 1, 1], [], []>} : vector<64x32xf32>, vector<32x8xf32>, vector<64x8xf32> -> vector<64x8xf32>
    %c20_191 = arith.constant 20 : index
    %c0_192 = arith.constant 0 : index
    %c0_193 = arith.constant 0 : index
    %293 = vector.load %arg3[%c20_191, %c0_192, %c0_193] : memref<24x1x8xf32, #tpu.memory_space<vmem>>, vector<1x1x8xf32>
    %294 = vector.shape_cast %293 : vector<1x1x8xf32> to vector<1x8xf32>
    %295 = vector.broadcast %294 : vector<1x8xf32> to vector<64x8xf32>
    %296 = arith.addf %292, %295 : vector<64x8xf32>
    %cst_194 = arith.constant dense<0.000000e+00> : vector<64x64xf32>
    %297 = tpu.matmul %282, %289, %cst_194 {dimension_numbers = #tpu.dot_dimension_numbers<[1], [1], [0], [0], [0, 0, 1, 0], [], []>} : vector<64x8xf32>, vector<64x8xf32>, vector<64x64xf32> -> vector<64x64xf32>
    %298 = arith.addf %297, %46 : vector<64x64xf32>
    %cst_195 = arith.constant dense<0xFF800000> : vector<64xf32>
    %299 = vector.multi_reduction <maximumf>, %298, %cst_195 [1] : vector<64x64xf32> to vector<64xf32>
    %300 = vector.shape_cast %299 : vector<64xf32> to vector<64x1xf32>
    %301 = vector.broadcast %300 : vector<64x1xf32> to vector<64x64xf32>
    %302 = arith.subf %298, %301 : vector<64x64xf32>
    %303 = math.exp %302 : vector<64x64xf32>
    %cst_196 = arith.constant dense<0.000000e+00> : vector<64xf32>
    %304 = vector.multi_reduction <add>, %303, %cst_196 [1] : vector<64x64xf32> to vector<64xf32>
    %305 = vector.shape_cast %304 : vector<64xf32> to vector<64x1xf32>
    %306 = vector.broadcast %305 : vector<64x1xf32> to vector<64x64xf32>
    %307 = arith.divf %303, %306 : vector<64x64xf32>
    %cst_197 = arith.constant dense<0.000000e+00> : vector<64x8xf32>
    %308 = tpu.matmul %307, %296, %cst_197 {dimension_numbers = #tpu.dot_dimension_numbers<[1], [0], [0], [1], [0, 0, 1, 1], [], []>} : vector<64x64xf32>, vector<64x8xf32>, vector<64x8xf32> -> vector<64x8xf32>
    %c4_198 = arith.constant 4 : index
    %c0_199 = arith.constant 0 : index
    %c0_200 = arith.constant 0 : index
    %309 = vector.load %arg4[%c4_198, %c0_199, %c0_200] : memref<8x8x32xf32, #tpu.memory_space<vmem>>, vector<1x8x32xf32>
    %310 = vector.shape_cast %309 : vector<1x8x32xf32> to vector<8x32xf32>
    %cst_201 = arith.constant dense<0.000000e+00> : vector<64x32xf32>
    %311 = tpu.matmul %308, %310, %cst_201 {dimension_numbers = #tpu.dot_dimension_numbers<[1], [0], [0], [1], [0, 0, 1, 1], [], []>} : vector<64x8xf32>, vector<8x32xf32>, vector<64x32xf32> -> vector<64x32xf32>
    %c13 = arith.constant 13 : index
    %c0_202 = arith.constant 0 : index
    %c0_203 = arith.constant 0 : index
    %312 = vector.load %arg2[%c13, %c0_202, %c0_203] : memref<24x32x8xf32, #tpu.memory_space<vmem>>, vector<1x32x8xf32>
    %313 = vector.shape_cast %312 : vector<1x32x8xf32> to vector<32x8xf32>
    %cst_204 = arith.constant dense<0.000000e+00> : vector<64x8xf32>
    %314 = tpu.matmul %263, %313, %cst_204 {dimension_numbers = #tpu.dot_dimension_numbers<[1], [0], [0], [1], [0, 0, 1, 1], [], []>} : vector<64x32xf32>, vector<32x8xf32>, vector<64x8xf32> -> vector<64x8xf32>
    %c13_205 = arith.constant 13 : index
    %c0_206 = arith.constant 0 : index
    %c0_207 = arith.constant 0 : index
    %315 = vector.load %arg3[%c13_205, %c0_206, %c0_207] : memref<24x1x8xf32, #tpu.memory_space<vmem>>, vector<1x1x8xf32>
    %316 = vector.shape_cast %315 : vector<1x1x8xf32> to vector<1x8xf32>
    %317 = vector.broadcast %316 : vector<1x8xf32> to vector<64x8xf32>
    %318 = arith.addf %314, %317 : vector<64x8xf32>
    %c17 = arith.constant 17 : index
    %c0_208 = arith.constant 0 : index
    %c0_209 = arith.constant 0 : index
    %319 = vector.load %arg2[%c17, %c0_208, %c0_209] : memref<24x32x8xf32, #tpu.memory_space<vmem>>, vector<1x32x8xf32>
    %320 = vector.shape_cast %319 : vector<1x32x8xf32> to vector<32x8xf32>
    %cst_210 = arith.constant dense<0.000000e+00> : vector<64x8xf32>
    %321 = tpu.matmul %263, %320, %cst_210 {dimension_numbers = #tpu.dot_dimension_numbers<[1], [0], [0], [1], [0, 0, 1, 1], [], []>} : vector<64x32xf32>, vector<32x8xf32>, vector<64x8xf32> -> vector<64x8xf32>
    %c17_211 = arith.constant 17 : index
    %c0_212 = arith.constant 0 : index
    %c0_213 = arith.constant 0 : index
    %322 = vector.load %arg3[%c17_211, %c0_212, %c0_213] : memref<24x1x8xf32, #tpu.memory_space<vmem>>, vector<1x1x8xf32>
    %323 = vector.shape_cast %322 : vector<1x1x8xf32> to vector<1x8xf32>
    %324 = vector.broadcast %323 : vector<1x8xf32> to vector<64x8xf32>
    %325 = arith.addf %321, %324 : vector<64x8xf32>
    %c21 = arith.constant 21 : index
    %c0_214 = arith.constant 0 : index
    %c0_215 = arith.constant 0 : index
    %326 = vector.load %arg2[%c21, %c0_214, %c0_215] : memref<24x32x8xf32, #tpu.memory_space<vmem>>, vector<1x32x8xf32>
    %327 = vector.shape_cast %326 : vector<1x32x8xf32> to vector<32x8xf32>
    %cst_216 = arith.constant dense<0.000000e+00> : vector<64x8xf32>
    %328 = tpu.matmul %263, %327, %cst_216 {dimension_numbers = #tpu.dot_dimension_numbers<[1], [0], [0], [1], [0, 0, 1, 1], [], []>} : vector<64x32xf32>, vector<32x8xf32>, vector<64x8xf32> -> vector<64x8xf32>
    %c21_217 = arith.constant 21 : index
    %c0_218 = arith.constant 0 : index
    %c0_219 = arith.constant 0 : index
    %329 = vector.load %arg3[%c21_217, %c0_218, %c0_219] : memref<24x1x8xf32, #tpu.memory_space<vmem>>, vector<1x1x8xf32>
    %330 = vector.shape_cast %329 : vector<1x1x8xf32> to vector<1x8xf32>
    %331 = vector.broadcast %330 : vector<1x8xf32> to vector<64x8xf32>
    %332 = arith.addf %328, %331 : vector<64x8xf32>
    %cst_220 = arith.constant dense<0.000000e+00> : vector<64x64xf32>
    %333 = tpu.matmul %318, %325, %cst_220 {dimension_numbers = #tpu.dot_dimension_numbers<[1], [1], [0], [0], [0, 0, 1, 0], [], []>} : vector<64x8xf32>, vector<64x8xf32>, vector<64x64xf32> -> vector<64x64xf32>
    %334 = arith.addf %333, %46 : vector<64x64xf32>
    %cst_221 = arith.constant dense<0xFF800000> : vector<64xf32>
    %335 = vector.multi_reduction <maximumf>, %334, %cst_221 [1] : vector<64x64xf32> to vector<64xf32>
    %336 = vector.shape_cast %335 : vector<64xf32> to vector<64x1xf32>
    %337 = vector.broadcast %336 : vector<64x1xf32> to vector<64x64xf32>
    %338 = arith.subf %334, %337 : vector<64x64xf32>
    %339 = math.exp %338 : vector<64x64xf32>
    %cst_222 = arith.constant dense<0.000000e+00> : vector<64xf32>
    %340 = vector.multi_reduction <add>, %339, %cst_222 [1] : vector<64x64xf32> to vector<64xf32>
    %341 = vector.shape_cast %340 : vector<64xf32> to vector<64x1xf32>
    %342 = vector.broadcast %341 : vector<64x1xf32> to vector<64x64xf32>
    %343 = arith.divf %339, %342 : vector<64x64xf32>
    %cst_223 = arith.constant dense<0.000000e+00> : vector<64x8xf32>
    %344 = tpu.matmul %343, %332, %cst_223 {dimension_numbers = #tpu.dot_dimension_numbers<[1], [0], [0], [1], [0, 0, 1, 1], [], []>} : vector<64x64xf32>, vector<64x8xf32>, vector<64x8xf32> -> vector<64x8xf32>
    %c5_224 = arith.constant 5 : index
    %c0_225 = arith.constant 0 : index
    %c0_226 = arith.constant 0 : index
    %345 = vector.load %arg4[%c5_224, %c0_225, %c0_226] : memref<8x8x32xf32, #tpu.memory_space<vmem>>, vector<1x8x32xf32>
    %346 = vector.shape_cast %345 : vector<1x8x32xf32> to vector<8x32xf32>
    %cst_227 = arith.constant dense<0.000000e+00> : vector<64x32xf32>
    %347 = tpu.matmul %344, %346, %cst_227 {dimension_numbers = #tpu.dot_dimension_numbers<[1], [0], [0], [1], [0, 0, 1, 1], [], []>} : vector<64x8xf32>, vector<8x32xf32>, vector<64x32xf32> -> vector<64x32xf32>
    %348 = arith.addf %311, %347 : vector<64x32xf32>
    %c14 = arith.constant 14 : index
    %c0_228 = arith.constant 0 : index
    %c0_229 = arith.constant 0 : index
    %349 = vector.load %arg2[%c14, %c0_228, %c0_229] : memref<24x32x8xf32, #tpu.memory_space<vmem>>, vector<1x32x8xf32>
    %350 = vector.shape_cast %349 : vector<1x32x8xf32> to vector<32x8xf32>
    %cst_230 = arith.constant dense<0.000000e+00> : vector<64x8xf32>
    %351 = tpu.matmul %263, %350, %cst_230 {dimension_numbers = #tpu.dot_dimension_numbers<[1], [0], [0], [1], [0, 0, 1, 1], [], []>} : vector<64x32xf32>, vector<32x8xf32>, vector<64x8xf32> -> vector<64x8xf32>
    %c14_231 = arith.constant 14 : index
    %c0_232 = arith.constant 0 : index
    %c0_233 = arith.constant 0 : index
    %352 = vector.load %arg3[%c14_231, %c0_232, %c0_233] : memref<24x1x8xf32, #tpu.memory_space<vmem>>, vector<1x1x8xf32>
    %353 = vector.shape_cast %352 : vector<1x1x8xf32> to vector<1x8xf32>
    %354 = vector.broadcast %353 : vector<1x8xf32> to vector<64x8xf32>
    %355 = arith.addf %351, %354 : vector<64x8xf32>
    %c18 = arith.constant 18 : index
    %c0_234 = arith.constant 0 : index
    %c0_235 = arith.constant 0 : index
    %356 = vector.load %arg2[%c18, %c0_234, %c0_235] : memref<24x32x8xf32, #tpu.memory_space<vmem>>, vector<1x32x8xf32>
    %357 = vector.shape_cast %356 : vector<1x32x8xf32> to vector<32x8xf32>
    %cst_236 = arith.constant dense<0.000000e+00> : vector<64x8xf32>
    %358 = tpu.matmul %263, %357, %cst_236 {dimension_numbers = #tpu.dot_dimension_numbers<[1], [0], [0], [1], [0, 0, 1, 1], [], []>} : vector<64x32xf32>, vector<32x8xf32>, vector<64x8xf32> -> vector<64x8xf32>
    %c18_237 = arith.constant 18 : index
    %c0_238 = arith.constant 0 : index
    %c0_239 = arith.constant 0 : index
    %359 = vector.load %arg3[%c18_237, %c0_238, %c0_239] : memref<24x1x8xf32, #tpu.memory_space<vmem>>, vector<1x1x8xf32>
    %360 = vector.shape_cast %359 : vector<1x1x8xf32> to vector<1x8xf32>
    %361 = vector.broadcast %360 : vector<1x8xf32> to vector<64x8xf32>
    %362 = arith.addf %358, %361 : vector<64x8xf32>
    %c22 = arith.constant 22 : index
    %c0_240 = arith.constant 0 : index
    %c0_241 = arith.constant 0 : index
    %363 = vector.load %arg2[%c22, %c0_240, %c0_241] : memref<24x32x8xf32, #tpu.memory_space<vmem>>, vector<1x32x8xf32>
    %364 = vector.shape_cast %363 : vector<1x32x8xf32> to vector<32x8xf32>
    %cst_242 = arith.constant dense<0.000000e+00> : vector<64x8xf32>
    %365 = tpu.matmul %263, %364, %cst_242 {dimension_numbers = #tpu.dot_dimension_numbers<[1], [0], [0], [1], [0, 0, 1, 1], [], []>} : vector<64x32xf32>, vector<32x8xf32>, vector<64x8xf32> -> vector<64x8xf32>
    %c22_243 = arith.constant 22 : index
    %c0_244 = arith.constant 0 : index
    %c0_245 = arith.constant 0 : index
    %366 = vector.load %arg3[%c22_243, %c0_244, %c0_245] : memref<24x1x8xf32, #tpu.memory_space<vmem>>, vector<1x1x8xf32>
    %367 = vector.shape_cast %366 : vector<1x1x8xf32> to vector<1x8xf32>
    %368 = vector.broadcast %367 : vector<1x8xf32> to vector<64x8xf32>
    %369 = arith.addf %365, %368 : vector<64x8xf32>
    %cst_246 = arith.constant dense<0.000000e+00> : vector<64x64xf32>
    %370 = tpu.matmul %355, %362, %cst_246 {dimension_numbers = #tpu.dot_dimension_numbers<[1], [1], [0], [0], [0, 0, 1, 0], [], []>} : vector<64x8xf32>, vector<64x8xf32>, vector<64x64xf32> -> vector<64x64xf32>
    %371 = arith.addf %370, %46 : vector<64x64xf32>
    %cst_247 = arith.constant dense<0xFF800000> : vector<64xf32>
    %372 = vector.multi_reduction <maximumf>, %371, %cst_247 [1] : vector<64x64xf32> to vector<64xf32>
    %373 = vector.shape_cast %372 : vector<64xf32> to vector<64x1xf32>
    %374 = vector.broadcast %373 : vector<64x1xf32> to vector<64x64xf32>
    %375 = arith.subf %371, %374 : vector<64x64xf32>
    %376 = math.exp %375 : vector<64x64xf32>
    %cst_248 = arith.constant dense<0.000000e+00> : vector<64xf32>
    %377 = vector.multi_reduction <add>, %376, %cst_248 [1] : vector<64x64xf32> to vector<64xf32>
    %378 = vector.shape_cast %377 : vector<64xf32> to vector<64x1xf32>
    %379 = vector.broadcast %378 : vector<64x1xf32> to vector<64x64xf32>
    %380 = arith.divf %376, %379 : vector<64x64xf32>
    %cst_249 = arith.constant dense<0.000000e+00> : vector<64x8xf32>
    %381 = tpu.matmul %380, %369, %cst_249 {dimension_numbers = #tpu.dot_dimension_numbers<[1], [0], [0], [1], [0, 0, 1, 1], [], []>} : vector<64x64xf32>, vector<64x8xf32>, vector<64x8xf32> -> vector<64x8xf32>
    %c6_250 = arith.constant 6 : index
    %c0_251 = arith.constant 0 : index
    %c0_252 = arith.constant 0 : index
    %382 = vector.load %arg4[%c6_250, %c0_251, %c0_252] : memref<8x8x32xf32, #tpu.memory_space<vmem>>, vector<1x8x32xf32>
    %383 = vector.shape_cast %382 : vector<1x8x32xf32> to vector<8x32xf32>
    %cst_253 = arith.constant dense<0.000000e+00> : vector<64x32xf32>
    %384 = tpu.matmul %381, %383, %cst_253 {dimension_numbers = #tpu.dot_dimension_numbers<[1], [0], [0], [1], [0, 0, 1, 1], [], []>} : vector<64x8xf32>, vector<8x32xf32>, vector<64x32xf32> -> vector<64x32xf32>
    %385 = arith.addf %348, %384 : vector<64x32xf32>
    %c15 = arith.constant 15 : index
    %c0_254 = arith.constant 0 : index
    %c0_255 = arith.constant 0 : index
    %386 = vector.load %arg2[%c15, %c0_254, %c0_255] : memref<24x32x8xf32, #tpu.memory_space<vmem>>, vector<1x32x8xf32>
    %387 = vector.shape_cast %386 : vector<1x32x8xf32> to vector<32x8xf32>
    %cst_256 = arith.constant dense<0.000000e+00> : vector<64x8xf32>
    %388 = tpu.matmul %263, %387, %cst_256 {dimension_numbers = #tpu.dot_dimension_numbers<[1], [0], [0], [1], [0, 0, 1, 1], [], []>} : vector<64x32xf32>, vector<32x8xf32>, vector<64x8xf32> -> vector<64x8xf32>
    %c15_257 = arith.constant 15 : index
    %c0_258 = arith.constant 0 : index
    %c0_259 = arith.constant 0 : index
    %389 = vector.load %arg3[%c15_257, %c0_258, %c0_259] : memref<24x1x8xf32, #tpu.memory_space<vmem>>, vector<1x1x8xf32>
    %390 = vector.shape_cast %389 : vector<1x1x8xf32> to vector<1x8xf32>
    %391 = vector.broadcast %390 : vector<1x8xf32> to vector<64x8xf32>
    %392 = arith.addf %388, %391 : vector<64x8xf32>
    %c19 = arith.constant 19 : index
    %c0_260 = arith.constant 0 : index
    %c0_261 = arith.constant 0 : index
    %393 = vector.load %arg2[%c19, %c0_260, %c0_261] : memref<24x32x8xf32, #tpu.memory_space<vmem>>, vector<1x32x8xf32>
    %394 = vector.shape_cast %393 : vector<1x32x8xf32> to vector<32x8xf32>
    %cst_262 = arith.constant dense<0.000000e+00> : vector<64x8xf32>
    %395 = tpu.matmul %263, %394, %cst_262 {dimension_numbers = #tpu.dot_dimension_numbers<[1], [0], [0], [1], [0, 0, 1, 1], [], []>} : vector<64x32xf32>, vector<32x8xf32>, vector<64x8xf32> -> vector<64x8xf32>
    %c19_263 = arith.constant 19 : index
    %c0_264 = arith.constant 0 : index
    %c0_265 = arith.constant 0 : index
    %396 = vector.load %arg3[%c19_263, %c0_264, %c0_265] : memref<24x1x8xf32, #tpu.memory_space<vmem>>, vector<1x1x8xf32>
    %397 = vector.shape_cast %396 : vector<1x1x8xf32> to vector<1x8xf32>
    %398 = vector.broadcast %397 : vector<1x8xf32> to vector<64x8xf32>
    %399 = arith.addf %395, %398 : vector<64x8xf32>
    %c23 = arith.constant 23 : index
    %c0_266 = arith.constant 0 : index
    %c0_267 = arith.constant 0 : index
    %400 = vector.load %arg2[%c23, %c0_266, %c0_267] : memref<24x32x8xf32, #tpu.memory_space<vmem>>, vector<1x32x8xf32>
    %401 = vector.shape_cast %400 : vector<1x32x8xf32> to vector<32x8xf32>
    %cst_268 = arith.constant dense<0.000000e+00> : vector<64x8xf32>
    %402 = tpu.matmul %263, %401, %cst_268 {dimension_numbers = #tpu.dot_dimension_numbers<[1], [0], [0], [1], [0, 0, 1, 1], [], []>} : vector<64x32xf32>, vector<32x8xf32>, vector<64x8xf32> -> vector<64x8xf32>
    %c23_269 = arith.constant 23 : index
    %c0_270 = arith.constant 0 : index
    %c0_271 = arith.constant 0 : index
    %403 = vector.load %arg3[%c23_269, %c0_270, %c0_271] : memref<24x1x8xf32, #tpu.memory_space<vmem>>, vector<1x1x8xf32>
    %404 = vector.shape_cast %403 : vector<1x1x8xf32> to vector<1x8xf32>
    %405 = vector.broadcast %404 : vector<1x8xf32> to vector<64x8xf32>
    %406 = arith.addf %402, %405 : vector<64x8xf32>
    %cst_272 = arith.constant dense<0.000000e+00> : vector<64x64xf32>
    %407 = tpu.matmul %392, %399, %cst_272 {dimension_numbers = #tpu.dot_dimension_numbers<[1], [1], [0], [0], [0, 0, 1, 0], [], []>} : vector<64x8xf32>, vector<64x8xf32>, vector<64x64xf32> -> vector<64x64xf32>
    %408 = arith.addf %407, %46 : vector<64x64xf32>
    %cst_273 = arith.constant dense<0xFF800000> : vector<64xf32>
    %409 = vector.multi_reduction <maximumf>, %408, %cst_273 [1] : vector<64x64xf32> to vector<64xf32>
    %410 = vector.shape_cast %409 : vector<64xf32> to vector<64x1xf32>
    %411 = vector.broadcast %410 : vector<64x1xf32> to vector<64x64xf32>
    %412 = arith.subf %408, %411 : vector<64x64xf32>
    %413 = math.exp %412 : vector<64x64xf32>
    %cst_274 = arith.constant dense<0.000000e+00> : vector<64xf32>
    %414 = vector.multi_reduction <add>, %413, %cst_274 [1] : vector<64x64xf32> to vector<64xf32>
    %415 = vector.shape_cast %414 : vector<64xf32> to vector<64x1xf32>
    %416 = vector.broadcast %415 : vector<64x1xf32> to vector<64x64xf32>
    %417 = arith.divf %413, %416 : vector<64x64xf32>
    %cst_275 = arith.constant dense<0.000000e+00> : vector<64x8xf32>
    %418 = tpu.matmul %417, %406, %cst_275 {dimension_numbers = #tpu.dot_dimension_numbers<[1], [0], [0], [1], [0, 0, 1, 1], [], []>} : vector<64x64xf32>, vector<64x8xf32>, vector<64x8xf32> -> vector<64x8xf32>
    %c7_276 = arith.constant 7 : index
    %c0_277 = arith.constant 0 : index
    %c0_278 = arith.constant 0 : index
    %419 = vector.load %arg4[%c7_276, %c0_277, %c0_278] : memref<8x8x32xf32, #tpu.memory_space<vmem>>, vector<1x8x32xf32>
    %420 = vector.shape_cast %419 : vector<1x8x32xf32> to vector<8x32xf32>
    %cst_279 = arith.constant dense<0.000000e+00> : vector<64x32xf32>
    %421 = tpu.matmul %418, %420, %cst_279 {dimension_numbers = #tpu.dot_dimension_numbers<[1], [0], [0], [1], [0, 0, 1, 1], [], []>} : vector<64x8xf32>, vector<8x32xf32>, vector<64x32xf32> -> vector<64x32xf32>
    %422 = arith.addf %385, %421 : vector<64x32xf32>
    %423 = vector.broadcast %265 : vector<1x32xf32> to vector<64x32xf32>
    %424 = arith.addf %422, %423 : vector<64x32xf32>
    %425 = arith.addf %263, %424 : vector<64x32xf32>
    %cst_280 = arith.constant dense<0.000000e+00> : vector<64xf32>
    %426 = vector.multi_reduction <add>, %425, %cst_280 [1] : vector<64x32xf32> to vector<64xf32>
    %427 = vector.shape_cast %426 : vector<64xf32> to vector<64x1xf32>
    %cst_281 = arith.constant 3.200000e+01 : f32
    %428 = vector.broadcast %cst_281 : f32 to vector<64x1xf32>
    %429 = arith.divf %427, %428 : vector<64x1xf32>
    %430 = vector.broadcast %429 : vector<64x1xf32> to vector<64x32xf32>
    %431 = arith.subf %425, %430 : vector<64x32xf32>
    %432 = arith.mulf %431, %431 : vector<64x32xf32>
    %cst_282 = arith.constant dense<0.000000e+00> : vector<64xf32>
    %433 = vector.multi_reduction <add>, %432, %cst_282 [1] : vector<64x32xf32> to vector<64xf32>
    %434 = vector.shape_cast %433 : vector<64xf32> to vector<64x1xf32>
    %cst_283 = arith.constant 3.200000e+01 : f32
    %435 = vector.broadcast %cst_283 : f32 to vector<64x1xf32>
    %436 = arith.divf %434, %435 : vector<64x1xf32>
    %cst_284 = arith.constant 9.99999974E-6 : f32
    %437 = vector.broadcast %cst_284 : f32 to vector<64x1xf32>
    %438 = arith.addf %436, %437 : vector<64x1xf32>
    %439 = math.rsqrt %438 : vector<64x1xf32>
    %440 = vector.broadcast %439 : vector<64x1xf32> to vector<64x32xf32>
    %441 = arith.mulf %431, %440 : vector<64x32xf32>
    %442 = vector.broadcast %269 : vector<1x32xf32> to vector<64x32xf32>
    %443 = arith.mulf %441, %442 : vector<64x32xf32>
    %444 = vector.broadcast %271 : vector<1x32xf32> to vector<64x32xf32>
    %445 = arith.addf %443, %444 : vector<64x32xf32>
    %c1_285 = arith.constant 1 : index
    %c0_286 = arith.constant 0 : index
    %c0_287 = arith.constant 0 : index
    %446 = vector.load %arg5[%c1_285, %c0_286, %c0_287] : memref<2x32x64xf32, #tpu.memory_space<vmem>>, vector<1x32x64xf32>
    %447 = vector.shape_cast %446 : vector<1x32x64xf32> to vector<32x64xf32>
    %cst_288 = arith.constant dense<0.000000e+00> : vector<64x64xf32>
    %448 = tpu.matmul %445, %447, %cst_288 {dimension_numbers = #tpu.dot_dimension_numbers<[1], [0], [0], [1], [0, 0, 1, 1], [], []>} : vector<64x32xf32>, vector<32x64xf32>, vector<64x64xf32> -> vector<64x64xf32>
    %c1_289 = arith.constant 1 : index
    %c0_290 = arith.constant 0 : index
    %c0_291 = arith.constant 0 : index
    %449 = vector.load %arg6[%c1_289, %c0_290, %c0_291] : memref<2x1x64xf32, #tpu.memory_space<vmem>>, vector<1x1x64xf32>
    %450 = vector.shape_cast %449 : vector<1x1x64xf32> to vector<1x64xf32>
    %451 = vector.broadcast %450 : vector<1x64xf32> to vector<64x64xf32>
    %452 = arith.addf %448, %451 : vector<64x64xf32>
    %cst_292 = arith.constant 0.000000e+00 : f32
    %453 = vector.broadcast %cst_292 : f32 to vector<64x64xf32>
    %454 = arith.maximumf %452, %453 : vector<64x64xf32>
    %c1_293 = arith.constant 1 : index
    %c0_294 = arith.constant 0 : index
    %c0_295 = arith.constant 0 : index
    %455 = vector.load %arg7[%c1_293, %c0_294, %c0_295] : memref<2x64x32xf32, #tpu.memory_space<vmem>>, vector<1x64x32xf32>
    %456 = vector.shape_cast %455 : vector<1x64x32xf32> to vector<64x32xf32>
    %cst_296 = arith.constant dense<0.000000e+00> : vector<64x32xf32>
    %457 = tpu.matmul %454, %456, %cst_296 {dimension_numbers = #tpu.dot_dimension_numbers<[1], [0], [0], [1], [0, 0, 1, 1], [], []>} : vector<64x64xf32>, vector<64x32xf32>, vector<64x32xf32> -> vector<64x32xf32>
    %458 = vector.broadcast %267 : vector<1x32xf32> to vector<64x32xf32>
    %459 = arith.addf %457, %458 : vector<64x32xf32>
    %460 = arith.addf %445, %459 : vector<64x32xf32>
    %cst_297 = arith.constant dense<0.000000e+00> : vector<64xf32>
    %461 = vector.multi_reduction <add>, %460, %cst_297 [1] : vector<64x32xf32> to vector<64xf32>
    %462 = vector.shape_cast %461 : vector<64xf32> to vector<64x1xf32>
    %cst_298 = arith.constant 3.200000e+01 : f32
    %463 = vector.broadcast %cst_298 : f32 to vector<64x1xf32>
    %464 = arith.divf %462, %463 : vector<64x1xf32>
    %465 = vector.broadcast %464 : vector<64x1xf32> to vector<64x32xf32>
    %466 = arith.subf %460, %465 : vector<64x32xf32>
    %467 = arith.mulf %466, %466 : vector<64x32xf32>
    %cst_299 = arith.constant dense<0.000000e+00> : vector<64xf32>
    %468 = vector.multi_reduction <add>, %467, %cst_299 [1] : vector<64x32xf32> to vector<64xf32>
    %469 = vector.shape_cast %468 : vector<64xf32> to vector<64x1xf32>
    %cst_300 = arith.constant 3.200000e+01 : f32
    %470 = vector.broadcast %cst_300 : f32 to vector<64x1xf32>
    %471 = arith.divf %469, %470 : vector<64x1xf32>
    %cst_301 = arith.constant 9.99999974E-6 : f32
    %472 = vector.broadcast %cst_301 : f32 to vector<64x1xf32>
    %473 = arith.addf %471, %472 : vector<64x1xf32>
    %474 = math.rsqrt %473 : vector<64x1xf32>
    %475 = vector.broadcast %474 : vector<64x1xf32> to vector<64x32xf32>
    %476 = arith.mulf %466, %475 : vector<64x32xf32>
    %477 = vector.broadcast %273 : vector<1x32xf32> to vector<64x32xf32>
    %478 = arith.mulf %476, %477 : vector<64x32xf32>
    %479 = vector.broadcast %275 : vector<1x32xf32> to vector<64x32xf32>
    %480 = arith.addf %478, %479 : vector<64x32xf32>
    %cst_302 = arith.constant 5.000000e-01 : f32
    %481 = vector.broadcast %cst_302 : f32 to vector<64x32xf32>
    %482 = arith.mulf %481, %480 : vector<64x32xf32>
    %cst_303 = arith.constant 0.707106769 : f32
    %483 = vector.broadcast %cst_303 : f32 to vector<64x32xf32>
    %484 = arith.mulf %480, %483 : vector<64x32xf32>
    %cst_304 = arith.constant 0.000000e+00 : f32
    %485 = vector.broadcast %cst_304 : f32 to vector<64x32xf32>
    %486 = arith.cmpf olt, %484, %485 : vector<64x32xf32>
    %cst_305 = arith.constant -1.000000e+00 : f32
    %cst_306 = arith.constant 1.000000e+00 : f32
    %487 = vector.broadcast %cst_305 : f32 to vector<64x32xf32>
    %488 = vector.broadcast %cst_306 : f32 to vector<64x32xf32>
    %489 = arith.select %486, %487, %488 : vector<64x32xi1>, vector<64x32xf32>
    %490 = math.absf %484 : vector<64x32xf32>
    %cst_307 = arith.constant 0.327591091 : f32
    %491 = vector.broadcast %cst_307 : f32 to vector<64x32xf32>
    %492 = arith.mulf %491, %490 : vector<64x32xf32>
    %cst_308 = arith.constant 1.000000e+00 : f32
    %493 = vector.broadcast %cst_308 : f32 to vector<64x32xf32>
    %494 = arith.addf %493, %492 : vector<64x32xf32>
    %cst_309 = arith.constant 1.000000e+00 : f32
    %495 = vector.broadcast %cst_309 : f32 to vector<64x32xf32>
    %496 = arith.divf %495, %494 : vector<64x32xf32>
    %cst_310 = arith.constant 1.06140542 : f32
    %497 = vector.broadcast %cst_310 : f32 to vector<64x32xf32>
    %498 = arith.mulf %496, %497 : vector<64x32xf32>
    %cst_311 = arith.constant -1.45315206 : f32
    %499 = vector.broadcast %cst_311 : f32 to vector<64x32xf32>
    %500 = arith.addf %499, %498 : vector<64x32xf32>
    %501 = arith.mulf %496, %500 : vector<64x32xf32>
    %cst_312 = arith.constant 1.42141378 : f32
    %502 = vector.broadcast %cst_312 : f32 to vector<64x32xf32>
    %503 = arith.addf %502, %501 : vector<64x32xf32>
    %504 = arith.mulf %496, %503 : vector<64x32xf32>
    %cst_313 = arith.constant -0.284496725 : f32
    %505 = vector.broadcast %cst_313 : f32 to vector<64x32xf32>
    %506 = arith.addf %505, %504 : vector<64x32xf32>
    %507 = arith.mulf %496, %506 : vector<64x32xf32>
    %cst_314 = arith.constant 0.254829586 : f32
    %508 = vector.broadcast %cst_314 : f32 to vector<64x32xf32>
    %509 = arith.addf %508, %507 : vector<64x32xf32>
    %510 = arith.mulf %496, %509 : vector<64x32xf32>
    %cst_315 = arith.constant 0.000000e+00 : f32
    %511 = vector.broadcast %cst_315 : f32 to vector<64x32xf32>
    %512 = arith.subf %511, %490 : vector<64x32xf32>
    %513 = arith.mulf %512, %490 : vector<64x32xf32>
    %514 = math.exp %513 : vector<64x32xf32>
    %515 = arith.mulf %510, %514 : vector<64x32xf32>
    %cst_316 = arith.constant 1.000000e+00 : f32
    %516 = vector.broadcast %cst_316 : f32 to vector<64x32xf32>
    %517 = arith.subf %516, %515 : vector<64x32xf32>
    %518 = arith.mulf %489, %517 : vector<64x32xf32>
    %cst_317 = arith.constant 1.000000e+00 : f32
    %519 = vector.broadcast %cst_317 : f32 to vector<64x32xf32>
    %520 = arith.addf %519, %518 : vector<64x32xf32>
    %521 = arith.mulf %482, %520 : vector<64x32xf32>
    %c0_318 = arith.constant 0 : index
    %c0_319 = arith.constant 0 : index
    %522 = vector.load %arg9[%c0_318, %c0_319] : memref<1x32xf32, #tpu.memory_space<vmem>>, vector<1x32xf32>
    %523 = vector.broadcast %522 : vector<1x32xf32> to vector<64x32xf32>
    %524 = arith.mulf %521, %523 : vector<64x32xf32>
    %cst_320 = arith.constant dense<0.000000e+00> : vector<64xf32>
    %525 = vector.multi_reduction <add>, %524, %cst_320 [1] : vector<64x32xf32> to vector<64xf32>
    %526 = vector.shape_cast %525 : vector<64xf32> to vector<64x1xf32>
    %c0_321 = arith.constant 0 : index
    %c0_322 = arith.constant 0 : index
    %527 = vector.load %arg10[%c0_321, %c0_322] : memref<1x1xf32, #tpu.memory_space<vmem>>, vector<1x1xf32>
    %528 = vector.broadcast %527 : vector<1x1xf32> to vector<64x1xf32>
    %529 = arith.addf %526, %528 : vector<64x1xf32>
    %cst_323 = arith.constant 5.000000e-01 : f32
    %530 = vector.broadcast %cst_323 : f32 to vector<64x1xf32>
    %531 = arith.mulf %530, %529 : vector<64x1xf32>
    %cst_324 = arith.constant 0.707106769 : f32
    %532 = vector.broadcast %cst_324 : f32 to vector<64x1xf32>
    %533 = arith.mulf %529, %532 : vector<64x1xf32>
    %cst_325 = arith.constant 0.000000e+00 : f32
    %534 = vector.broadcast %cst_325 : f32 to vector<64x1xf32>
    %535 = arith.cmpf olt, %533, %534 : vector<64x1xf32>
    %cst_326 = arith.constant -1.000000e+00 : f32
    %cst_327 = arith.constant 1.000000e+00 : f32
    %536 = vector.broadcast %cst_326 : f32 to vector<64x1xf32>
    %537 = vector.broadcast %cst_327 : f32 to vector<64x1xf32>
    %538 = arith.select %535, %536, %537 : vector<64x1xi1>, vector<64x1xf32>
    %539 = math.absf %533 : vector<64x1xf32>
    %cst_328 = arith.constant 0.327591091 : f32
    %540 = vector.broadcast %cst_328 : f32 to vector<64x1xf32>
    %541 = arith.mulf %540, %539 : vector<64x1xf32>
    %cst_329 = arith.constant 1.000000e+00 : f32
    %542 = vector.broadcast %cst_329 : f32 to vector<64x1xf32>
    %543 = arith.addf %542, %541 : vector<64x1xf32>
    %cst_330 = arith.constant 1.000000e+00 : f32
    %544 = vector.broadcast %cst_330 : f32 to vector<64x1xf32>
    %545 = arith.divf %544, %543 : vector<64x1xf32>
    %cst_331 = arith.constant 1.06140542 : f32
    %546 = vector.broadcast %cst_331 : f32 to vector<64x1xf32>
    %547 = arith.mulf %545, %546 : vector<64x1xf32>
    %cst_332 = arith.constant -1.45315206 : f32
    %548 = vector.broadcast %cst_332 : f32 to vector<64x1xf32>
    %549 = arith.addf %548, %547 : vector<64x1xf32>
    %550 = arith.mulf %545, %549 : vector<64x1xf32>
    %cst_333 = arith.constant 1.42141378 : f32
    %551 = vector.broadcast %cst_333 : f32 to vector<64x1xf32>
    %552 = arith.addf %551, %550 : vector<64x1xf32>
    %553 = arith.mulf %545, %552 : vector<64x1xf32>
    %cst_334 = arith.constant -0.284496725 : f32
    %554 = vector.broadcast %cst_334 : f32 to vector<64x1xf32>
    %555 = arith.addf %554, %553 : vector<64x1xf32>
    %556 = arith.mulf %545, %555 : vector<64x1xf32>
    %cst_335 = arith.constant 0.254829586 : f32
    %557 = vector.broadcast %cst_335 : f32 to vector<64x1xf32>
    %558 = arith.addf %557, %556 : vector<64x1xf32>
    %559 = arith.mulf %545, %558 : vector<64x1xf32>
    %cst_336 = arith.constant 0.000000e+00 : f32
    %560 = vector.broadcast %cst_336 : f32 to vector<64x1xf32>
    %561 = arith.subf %560, %539 : vector<64x1xf32>
    %562 = arith.mulf %561, %539 : vector<64x1xf32>
    %563 = math.exp %562 : vector<64x1xf32>
    %564 = arith.mulf %559, %563 : vector<64x1xf32>
    %cst_337 = arith.constant 1.000000e+00 : f32
    %565 = vector.broadcast %cst_337 : f32 to vector<64x1xf32>
    %566 = arith.subf %565, %564 : vector<64x1xf32>
    %567 = arith.mulf %538, %566 : vector<64x1xf32>
    %cst_338 = arith.constant 1.000000e+00 : f32
    %568 = vector.broadcast %cst_338 : f32 to vector<64x1xf32>
    %569 = arith.addf %568, %567 : vector<64x1xf32>
    %570 = arith.mulf %531, %569 : vector<64x1xf32>
    %571 = tpu.iota {dimensions = array<i32: 0>} : vector<64x8xi32>
    %572 = arith.sitofp %571 : vector<64x8xi32> to vector<64x8xf32>
    %573 = tpu.iota {dimensions = array<i32: 1>} : vector<64x8xi32>
    %574 = arith.sitofp %573 : vector<64x8xi32> to vector<64x8xf32>
    %cst_339 = arith.constant 5.000000e-01 : f32
    %575 = vector.broadcast %cst_339 : f32 to vector<64x8xf32>
    %576 = arith.addf %572, %575 : vector<64x8xf32>
    %cst_340 = arith.constant 1.250000e-01 : f32
    %577 = vector.broadcast %cst_340 : f32 to vector<64x8xf32>
    %578 = arith.mulf %576, %577 : vector<64x8xf32>
    %579 = math.floor %578 : vector<64x8xf32>
    %cst_341 = arith.constant 8.000000e+00 : f32
    %580 = vector.broadcast %cst_341 : f32 to vector<64x8xf32>
    %581 = arith.mulf %580, %579 : vector<64x8xf32>
    %582 = arith.subf %572, %581 : vector<64x8xf32>
    %583 = arith.cmpf oeq, %574, %582 : vector<64x8xf32>
    %584 = arith.extui %583 : vector<64x8xi1> to vector<64x8xi32>
    %585 = arith.sitofp %584 : vector<64x8xi32> to vector<64x8xf32>
    %586 = tpu.iota {dimensions = array<i32: 0>} : vector<8x64xi32>
    %587 = tpu.iota {dimensions = array<i32: 1>} : vector<8x64xi32>
    %c8_i32_342 = arith.constant 8 : i32
    %588 = vector.broadcast %c8_i32_342 : i32 to vector<8x64xi32>
    %589 = arith.muli %586, %588 : vector<8x64xi32>
    %590 = arith.subi %587, %589 : vector<8x64xi32>
    %c0_i32_343 = arith.constant 0 : i32
    %591 = vector.broadcast %c0_i32_343 : i32 to vector<8x64xi32>
    %592 = arith.cmpi sge, %590, %591 : vector<8x64xi32>
    %c8_i32_344 = arith.constant 8 : i32
    %593 = vector.broadcast %c8_i32_344 : i32 to vector<8x64xi32>
    %594 = arith.cmpi slt, %590, %593 : vector<8x64xi32>
    %595 = arith.andi %592, %594 : vector<8x64xi1>
    %596 = arith.extui %595 : vector<8x64xi1> to vector<8x64xi32>
    %597 = arith.sitofp %596 : vector<8x64xi32> to vector<8x64xf32>
    %598 = vector.broadcast %570 : vector<64x1xf32> to vector<64x8xf32>
    %599 = arith.mulf %598, %585 : vector<64x8xf32>
    %cst_345 = arith.constant dense<0.000000e+00> : vector<8x8xf32>
    %600 = tpu.matmul %597, %599, %cst_345 {dimension_numbers = #tpu.dot_dimension_numbers<[1], [0], [0], [1], [0, 0, 1, 1], [], []>} : vector<8x64xf32>, vector<64x8xf32>, vector<8x8xf32> -> vector<8x8xf32>
    %c0_346 = arith.constant 0 : index
    %c0_347 = arith.constant 0 : index
    %601 = vector.load %arg11[%c0_346, %c0_347] : memref<8x4224xf32, #tpu.memory_space<vmem>>, vector<8x4224xf32>
    %cst_348 = arith.constant dense<0.000000e+00> : vector<8x4224xf32>
    %602 = tpu.matmul %600, %601, %cst_348 {dimension_numbers = #tpu.dot_dimension_numbers<[1], [0], [0], [1], [0, 0, 1, 1], [], []>} : vector<8x8xf32>, vector<8x4224xf32>, vector<8x4224xf32> -> vector<8x4224xf32>
    %c0_349 = arith.constant 0 : index
    %c0_350 = arith.constant 0 : index
    %603 = vector.load %arg12[%c0_349, %c0_350] : memref<1x4224xf32, #tpu.memory_space<vmem>>, vector<1x4224xf32>
    %604 = vector.broadcast %603 : vector<1x4224xf32> to vector<8x4224xf32>
    %605 = arith.addf %602, %604 : vector<8x4224xf32>
    %606 = vector.extract_strided_slice %605 {offsets = [0, 0], sizes = [8, 4096], strides = [1, 1]} : vector<8x4224xf32> to vector<8x4096xf32>
    %cst_351 = arith.constant dense<0xFF800000> : vector<8xf32>
    %607 = vector.multi_reduction <maximumf>, %606, %cst_351 [1] : vector<8x4096xf32> to vector<8xf32>
    %608 = vector.shape_cast %607 : vector<8xf32> to vector<8x1xf32>
    %609 = vector.broadcast %608 : vector<8x1xf32> to vector<8x4096xf32>
    %610 = arith.subf %606, %609 : vector<8x4096xf32>
    %611 = math.exp %610 : vector<8x4096xf32>
    %cst_352 = arith.constant dense<0.000000e+00> : vector<8xf32>
    %612 = vector.multi_reduction <add>, %611, %cst_352 [1] : vector<8x4096xf32> to vector<8xf32>
    %613 = vector.shape_cast %612 : vector<8xf32> to vector<8x1xf32>
    %614 = vector.broadcast %613 : vector<8x1xf32> to vector<8x4096xf32>
    %615 = arith.divf %611, %614 : vector<8x4096xf32>
    %c0_353 = arith.constant 0 : index
    %c0_354 = arith.constant 0 : index
    %616 = vector.load %arg13[%c0_353, %c0_354] : memref<8x4224xf32, #tpu.memory_space<vmem>>, vector<8x4096xf32>
    tpu.vector_store %arg13[%c0_353, %c0_354], %615 {strides = array<i32>} : memref<8x4224xf32, #tpu.memory_space<vmem>>, vector<8x4096xf32>,
    %617 = vector.extract_strided_slice %605 {offsets = [0, 4096], sizes = [8, 128], strides = [1, 1]} : vector<8x4224xf32> to vector<8x128xf32>
    %cst_355 = arith.constant dense<0xFF800000> : vector<8xf32>
    %618 = vector.multi_reduction <maximumf>, %617, %cst_355 [1] : vector<8x128xf32> to vector<8xf32>
    %619 = vector.shape_cast %618 : vector<8xf32> to vector<8x1xf32>
    %620 = vector.broadcast %619 : vector<8x1xf32> to vector<8x128xf32>
    %621 = arith.subf %617, %620 : vector<8x128xf32>
    %622 = math.exp %621 : vector<8x128xf32>
    %cst_356 = arith.constant dense<0.000000e+00> : vector<8xf32>
    %623 = vector.multi_reduction <add>, %622, %cst_356 [1] : vector<8x128xf32> to vector<8xf32>
    %624 = vector.shape_cast %623 : vector<8xf32> to vector<8x1xf32>
    %625 = vector.broadcast %624 : vector<8x1xf32> to vector<8x128xf32>
    %626 = arith.divf %622, %625 : vector<8x128xf32>
    %c0_357 = arith.constant 0 : index
    %c4096 = arith.constant 4096 : index
    %627 = vector.load %arg13[%c0_357, %c4096] : memref<8x4224xf32, #tpu.memory_space<vmem>>, vector<8x128xf32>
    tpu.vector_store %arg13[%c0_357, %c4096], %626 {strides = array<i32>} : memref<8x4224xf32, #tpu.memory_space<vmem>>, vector<8x128xf32>,
    return
  }
}

</mosaic_0001>

<llo_original>
// kernel: transformer_forward.1
$region0: #{transformer_forward.1}
  #allocation0 [shape = 'u32[]', space=smem, size = 0x4, offset = 0x4, fixed_abs, tag = 'smem constant byte address 0x4 - core index']
  #allocation1 [shape = 'u32[144,128]{1,0:T(1,128)}', space=vmem, size = 0x12000, scoped, tag = 'internal scratch']
  #allocation2 [shape = 'f32[1,1]{1,0:T(1,128)S(1)}', space=vmem, size = 0x200, scoped, tag = 'scoped memory for transformer_forward.1']
  %s0 = inlined_call_operand.vmem [shape: s32[64,1], index: 0, kind: input, shape index: {}]
  %s1 = inlined_call_operand.vmem [shape: f32[128,32], index: 1, kind: input, shape index: {}]
  %s2 = inlined_call_operand.vmem [shape: f32[24,32,8], index: 2, kind: input, shape index: {}]
  %s3 = inlined_call_operand.vmem [shape: f32[24,1,8], index: 3, kind: input, shape index: {}]
  %s4 = inlined_call_operand.vmem [shape: f32[8,8,32], index: 4, kind: input, shape index: {}]
  %s5 = inlined_call_operand.vmem [shape: f32[2,32,64], index: 5, kind: input, shape index: {}]
  %s6 = inlined_call_operand.vmem [shape: f32[2,1,64], index: 6, kind: input, shape index: {}]
  %s7 = inlined_call_operand.vmem [shape: f32[2,64,32], index: 7, kind: input, shape index: {}]
  %s8 = inlined_call_operand.vmem [shape: f32[12,1,32], index: 8, kind: input, shape index: {}]
  %s9 = inlined_call_operand.vmem [shape: f32[1,32], index: 9, kind: input, shape index: {}]
  %s10 = inlined_call_operand.<no memory space> [shape: f32[1,1], index: 10, kind: input, shape index: {}]
  %s11 = inlined_call_operand.vmem [shape: f32[8,4224], index: 11, kind: input, shape index: {}]
  %s12 = inlined_call_operand.vmem [shape: f32[1,4224], index: 12, kind: input, shape index: {}]
  %s13 = inlined_call_operand.vmem [shape: f32[8,4224], index: 13, kind: output, shape index: {}]
  %s14 = sld [smem:[#allocation0]]
  $region62: #{transformer_forward.1} parent=0
    _
  %s16 = ssub.s32 1, %s14
  %s17 = scalar_select 0, %s16, %s14
  %v18 = vstv %s10
  %19 = vst [vmem:[#allocation2] sm:$0x1] %v18
  // Predicated region
  $region2: #{transformer_forward.1} parent=0 // pred_check
    _
  $region3: #{transformer_forward.1} parent=0 // pred_check_branch
    %21 = sbr.rel (0) target = $region5
  $region4: #{transformer_forward.1} parent=0 // pred_region
    _
  $region5: #{transformer_forward.1} parent=0 // pred_fallthru
    _
  // Predicated region
  $region6: #{transformer_forward.1} parent=0 // pred_check
    _
  $region7: #{transformer_forward.1} parent=0 // pred_check_branch
    %23 = sbr.rel (0) target = $region9
  $region8: #{transformer_forward.1} parent=0 // pred_region
    _
  $region9: #{transformer_forward.1} parent=0 // pred_fallthru
    _
  // Predicated region
  $region10: #{transformer_forward.1} parent=0 // pred_check
    _
  $region11: #{transformer_forward.1} parent=0 // pred_check_branch
    %25 = sbr.rel (0) target = $region13
  $region12: #{transformer_forward.1} parent=0 // pred_region
    _
  $region13: #{transformer_forward.1} parent=0 // pred_fallthru
    _
  // Predicated region
  $region14: #{transformer_forward.1} parent=0 // pred_check
    _
  $region15: #{transformer_forward.1} parent=0 // pred_check_branch
    %27 = sbr.rel (0) target = $region17
  $region16: #{transformer_forward.1} parent=0 // pred_region
    _
  $region17: #{transformer_forward.1} parent=0 // pred_fallthru
    _
  // Predicated region
  $region18: #{transformer_forward.1} parent=0 // pred_check
    _
  $region19: #{transformer_forward.1} parent=0 // pred_check_branch
    %29 = sbr.rel (0) target = $region21
  $region20: #{transformer_forward.1} parent=0 // pred_region
    _
  $region21: #{transformer_forward.1} parent=0 // pred_fallthru
    _
  // Predicated region
  $region22: #{transformer_forward.1} parent=0 // pred_check
    _
  $region23: #{transformer_forward.1} parent=0 // pred_check_branch
    %31 = sbr.rel (0) target = $region25
  $region24: #{transformer_forward.1} parent=0 // pred_region
    _
  $region25: #{transformer_forward.1} parent=0 // pred_fallthru
    _
  // Predicated region
  $region26: #{transformer_forward.1} parent=0 // pred_check
    _
  $region27: #{transformer_forward.1} parent=0 // pred_check_branch
    %33 = sbr.rel (0) target = $region29
  $region28: #{transformer_forward.1} parent=0 // pred_region
    _
  $region29: #{transformer_forward.1} parent=0 // pred_fallthru
    _
  // Predicated region
  $region30: #{transformer_forward.1} parent=0 // pred_check
    _
  $region31: #{transformer_forward.1} parent=0 // pred_check_branch
    %35 = sbr.rel (0) target = $region33
  $region32: #{transformer_forward.1} parent=0 // pred_region
    _
  $region33: #{transformer_forward.1} parent=0 // pred_fallthru
    _
  // Predicated region
  $region34: #{transformer_forward.1} parent=0 // pred_check
    _
  $region35: #{transformer_forward.1} parent=0 // pred_check_branch
    %37 = sbr.rel (0) target = $region37
  $region36: #{transformer_forward.1} parent=0 // pred_region
    _
  $region37: #{transformer_forward.1} parent=0 // pred_fallthru
    _
  // Predicated region
  $region38: #{transformer_forward.1} parent=0 // pred_check
    _
  $region39: #{transformer_forward.1} parent=0 // pred_check_branch
    %39 = sbr.rel (0) target = $region41
  $region40: #{transformer_forward.1} parent=0 // pred_region
    _
  $region41: #{transformer_forward.1} parent=0 // pred_fallthru
    _
  // Predicated region
  $region42: #{transformer_forward.1} parent=0 // pred_check
    _
  $region43: #{transformer_forward.1} parent=0 // pred_check_branch
    %41 = sbr.rel (0) target = $region45
  $region44: #{transformer_forward.1} parent=0 // pred_region
    _
  $region45: #{transformer_forward.1} parent=0 // pred_fallthru
    _
  // Predicated region
  $region46: #{transformer_forward.1} parent=0 // pred_check
    _
  $region47: #{transformer_forward.1} parent=0 // pred_check_branch
    %43 = sbr.rel (0) target = $region49
  $region48: #{transformer_forward.1} parent=0 // pred_region
    _
  $region49: #{transformer_forward.1} parent=0 // pred_fallthru
    _
  // Predicated region
  $region50: #{transformer_forward.1} parent=0 // pred_check
    _
  $region51: #{transformer_forward.1} parent=0 // pred_check_branch
    %45 = sbr.rel (0) target = $region53
  $region52: #{transformer_forward.1} parent=0 // pred_region
    _
  $region53: #{transformer_forward.1} parent=0 // pred_fallthru
    _
  %v46 = vld [vmem:[%s0] sm:$0xff]
  %v47 = vld [vmem:[%s0 + $0x8] sm:$0xff]
  %v48 = vld [vmem:[%s0 + $0x10] sm:$0xff]
  %v49 = vld [vmem:[%s0 + $0x18] sm:$0xff]
  %v50 = vld [vmem:[%s0 + $0x20] sm:$0xff]
  %v51 = vld [vmem:[%s0 + $0x28] sm:$0xff]
  %v52 = vld [vmem:[%s0 + $0x30] sm:$0xff]
  %v53 = vld [vmem:[%s0 + $0x38] sm:$0xff]
  %v54 = vlaneseq
  %v55 = vand.u32 %v54, 127
  %v56 = vlaneseq
  %v57 = vshrl.u32 %v56, 7
  %v58 = vadd.s32 %v57, 8
  %v59 = vadd.s32 %v57, 16
  %v60 = vadd.s32 %v57, 24
  %v61 = vadd.s32 %v57, 32
  %v62 = vadd.s32 %v57, 40
  %v63 = vadd.s32 %v57, 48
  %v64 = vadd.s32 %v57, 56
  %v65 = vsub.s32 %v55, 64
  %v66 = vmul.u32 %v65, 8
  %v67 = vsub.s32 %v57, %v66
  %v68 = vsub.s32 %v58, %v66
  %v69 = vsub.s32 %v59, %v66
  %v70 = vsub.s32 %v60, %v66
  %v71 = vsub.s32 %v61, %v66
  %v72 = vsub.s32 %v62, %v66
  %v73 = vsub.s32 %v63, %v66
  %v74 = vsub.s32 %v64, %v66
  %75 = vset.pattern.permute.xlu0 0
  %76 = vperm.xlu0 %75, %v46
  %v77 = vpop.permute.xlu0 %76
  %78 = vset.pattern.permute.xlu0 0
  %79 = vperm.xlu0 %78, %v47
  %v80 = vpop.permute.xlu0 %79
  %81 = vset.pattern.permute.xlu0 0
  %82 = vperm.xlu0 %81, %v48
  %v83 = vpop.permute.xlu0 %82
  %84 = vset.pattern.permute.xlu0 0
  %85 = vperm.xlu0 %84, %v49
  %v86 = vpop.permute.xlu0 %85
  %87 = vset.pattern.permute.xlu0 0
  %88 = vperm.xlu0 %87, %v50
  %v89 = vpop.permute.xlu0 %88
  %90 = vset.pattern.permute.xlu0 0
  %91 = vperm.xlu0 %90, %v51
  %v92 = vpop.permute.xlu0 %91
  %93 = vset.pattern.permute.xlu0 0
  %94 = vperm.xlu0 %93, %v52
  %v95 = vpop.permute.xlu0 %94
  %96 = vset.pattern.permute.xlu0 0
  %97 = vperm.xlu0 %96, %v53
  %v98 = vpop.permute.xlu0 %97
  %vm99 = vcmp.eq.s32.totalorder %v55, %v77
  %vm100 = vcmp.eq.s32.totalorder %v55, %v80
  %vm101 = vcmp.eq.s32.totalorder %v55, %v83
  %vm102 = vcmp.eq.s32.totalorder %v55, %v86
  %vm103 = vcmp.eq.s32.totalorder %v55, %v89
  %vm104 = vcmp.eq.s32.totalorder %v55, %v92
  %vm105 = vcmp.eq.s32.totalorder %v55, %v95
  %vm106 = vcmp.eq.s32.totalorder %v55, %v98
  %vm107 = vcmp.ge.s32.totalorder %v55, 64
  %vm108 = vcmp.ge.s32.totalorder %v67, 0
  %vm109 = vcmp.ge.s32.totalorder %v68, 0
  %vm110 = vcmp.ge.s32.totalorder %v69, 0
  %vm111 = vcmp.ge.s32.totalorder %v70, 0
  %vm112 = vcmp.ge.s32.totalorder %v71, 0
  %vm113 = vcmp.ge.s32.totalorder %v72, 0
  %vm114 = vcmp.ge.s32.totalorder %v73, 0
  %vm115 = vcmp.ge.s32.totalorder %v74, 0
  %vm116 = vcmp.lt.s32.totalorder %v67, 8
  %vm117 = vcmp.lt.s32.totalorder %v68, 8
  %vm118 = vcmp.lt.s32.totalorder %v69, 8
  %vm119 = vcmp.lt.s32.totalorder %v70, 8
  %vm120 = vcmp.lt.s32.totalorder %v71, 8
  %vm121 = vcmp.lt.s32.totalorder %v72, 8
  %vm122 = vcmp.lt.s32.totalorder %v73, 8
  %vm123 = vcmp.lt.s32.totalorder %v74, 8
  %vm124 = vmand %vm108, %vm116
  %vm125 = vmand %vm109, %vm117
  %vm126 = vmand %vm110, %vm118
  %vm127 = vmand %vm111, %vm119
  %vm128 = vmand %vm112, %vm120
  %vm129 = vmand %vm113, %vm121
  %vm130 = vmand %vm114, %vm122
  %vm131 = vmand %vm115, %vm123
  %vm132 = vmand %vm107, %vm124
  %vm133 = vmand %vm107, %vm125
  %vm134 = vmand %vm107, %vm126
  %vm135 = vmand %vm107, %vm127
  %vm136 = vmand %vm107, %vm128
  %vm137 = vmand %vm107, %vm129
  %vm138 = vmand %vm107, %vm130
  %vm139 = vmand %vm107, %vm131
  %vm140 = vmor %vm99, %vm132
  %vm141 = vmor %vm100, %vm133
  %vm142 = vmor %vm101, %vm134
  %vm143 = vmor %vm102, %vm135
  %vm144 = vmor %vm103, %vm136
  %vm145 = vmor %vm104, %vm137
  %vm146 = vmor %vm105, %vm138
  %vm147 = vmor %vm106, %vm139
  %v148 = vsel %vm140, 1, 0
  %v149 = vsel %vm141, 1, 0
  %v150 = vsel %vm142, 1, 0
  %v151 = vsel %vm143, 1, 0
  %v152 = vsel %vm144, 1, 0
  %v153 = vsel %vm145, 1, 0
  %v154 = vsel %vm146, 1, 0
  %v155 = vsel %vm147, 1, 0
  %v156 = vcvt.s32.f32 %v148
  %v157 = vcvt.s32.f32 %v149
  %v158 = vcvt.s32.f32 %v150
  %v159 = vcvt.s32.f32 %v151
  %v160 = vcvt.s32.f32 %v152
  %v161 = vcvt.s32.f32 %v153
  %v162 = vcvt.s32.f32 %v154
  %v163 = vcvt.s32.f32 %v155
  %v164 = vld [vmem:[%s1] sm:$0xff]
  %v165 = vld [vmem:[%s1 + $0x8] sm:$0xff]
  %v166 = vld [vmem:[%s1 + $0x10] sm:$0xff]
  %v167 = vld [vmem:[%s1 + $0x18] sm:$0xff]
  %v168 = vld [vmem:[%s1 + $0x20] sm:$0xff]
  %v169 = vld [vmem:[%s1 + $0x28] sm:$0xff]
  %v170 = vld [vmem:[%s1 + $0x30] sm:$0xff]
  %v171 = vld [vmem:[%s1 + $0x38] sm:$0xff]
  %v172 = vld [vmem:[%s1 + $0x40] sm:$0xff]
  %v173 = vld [vmem:[%s1 + $0x48] sm:$0xff]
  %v174 = vld [vmem:[%s1 + $0x50] sm:$0xff]
  %v175 = vld [vmem:[%s1 + $0x58] sm:$0xff]
  %v176 = vld [vmem:[%s1 + $0x60] sm:$0xff]
  %v177 = vld [vmem:[%s1 + $0x68] sm:$0xff]
  %v178 = vld [vmem:[%s1 + $0x70] sm:$0xff]
  %v179 = vld [vmem:[%s1 + $0x78] sm:$0xff]
  %180 = vmatprep.subr.mxu0 0.0
  %181 = vmatpush1.msra.mxu0 %v164
  %182 = vmatprep.subr.mxu0 0.0
  %183 = vmatpush1.msra.mxu0 %v165
  %184 = vmatprep.subr.mxu0 0.0
  %185 = vmatpush1.msra.mxu0 %v166
  %186 = vmatprep.subr.mxu0 0.0
  %187 = vmatpush1.msra.mxu0 %v167
  %188 = vmatprep.subr.mxu0 0.0
  %189 = vmatpush1.msra.mxu0 %v168
  %190 = vmatprep.subr.mxu0 0.0
  %191 = vmatpush1.msra.mxu0 %v169
  %192 = vmatprep.subr.mxu0 0.0
  %193 = vmatpush1.msra.mxu0 %v170
  %194 = vmatprep.subr.mxu0 0.0
  %195 = vmatpush1.msra.mxu0 %v171
  %196 = vmatprep.subr.mxu0 0.0
  %197 = vmatpush1.msra.mxu0 %v172
  %198 = vmatprep.subr.mxu0 0.0
  %199 = vmatpush1.msra.mxu0 %v173
  %200 = vmatprep.subr.mxu0 0.0
  %201 = vmatpush1.msra.mxu0 %v174
  %202 = vmatprep.subr.mxu0 0.0
  %203 = vmatpush1.msra.mxu0 %v175
  %204 = vmatprep.subr.mxu0 0.0
  %205 = vmatpush1.msra.mxu0 %v176
  %206 = vmatprep.subr.mxu0 0.0
  %207 = vmatpush1.msra.mxu0 %v177
  %208 = vmatprep.subr.mxu0 0.0
  %209 = vmatpush1.msra.mxu0 %v178
  %210 = vmatprep.subr.mxu0 0.0
  %211 = vmatpush1.msra.mxu0 %v179
  %212 = vmatprep.subr.mxu0 0.0
  %213 = vmatpush1.msra.mxu0 0.0
  %214 = vmatprep.subr.mxu0 0.0
  %215 = vmatpush1.msra.mxu0 0.0
  %216 = vmatprep.subr.mxu0 0.0
  %217 = vmatpush1.msra.mxu0 0.0
  %218 = vmatprep.subr.mxu0 0.0
  %219 = vmatpush1.msra.mxu0 0.0
  %220 = vmatprep.subr.mxu0 0.0
  %221 = vmatpush1.msra.mxu0 0.0
  %222 = vmatprep.subr.mxu0 0.0
  %223 = vmatpush1.msra.mxu0 0.0
  %224 = vmatprep.subr.mxu0 0.0
  %225 = vmatpush1.msra.mxu0 0.0
  %226 = vmatprep.subr.mxu0 0.0
  %227 = vmatpush1.msra.mxu0 0.0
  %228 = vmatprep.subr.mxu0 0.0
  %229 = vmatpush1.msra.mxu0 0.0
  %230 = vmatprep.subr.mxu0 0.0
  %231 = vmatpush1.msra.mxu0 0.0
  %232 = vmatprep.subr.mxu0 0.0
  %233 = vmatpush1.msra.mxu0 0.0
  %234 = vmatprep.subr.mxu0 0.0
  %235 = vmatpush1.msra.mxu0 0.0
  %236 = vmatprep.subr.mxu0 0.0
  %237 = vmatpush1.msra.mxu0 0.0
  %238 = vmatprep.subr.mxu0 0.0
  %239 = vmatpush1.msra.mxu0 0.0
  %240 = vmatprep.subr.mxu0 0.0
  %241 = vmatpush1.msra.mxu0 0.0
  %242 = vmatprep.subr.mxu0 0.0
  %243 = vmatpush1.msra.mxu0 0.0
  %244 = vmatprep.mubr.f32.mxu0 0.0
  %245 = vmatmul.mubr.f32.gmra.mrb[0].mxu0 %v156
  %v246 = vpop.f32.mrb[0].mxu0
  %v247 = vadd.f32 0.0, %v246
  %v248 = vpop.f32.mrb[0].mxu0
  %249 = vmatprep.mubr.f32.mxu0 0.0
  %250 = vmatmul.mubr.f32.gmra.mrb[0].mxu0 %v157
  %v251 = vpop.f32.mrb[0].mxu0
  %v252 = vadd.f32 0.0, %v251
  %v253 = vpop.f32.mrb[0].mxu0
  %254 = vmatprep.mubr.f32.mxu0 0.0
  %255 = vmatmul.mubr.f32.gmra.mrb[0].mxu0 %v158
  %v256 = vpop.f32.mrb[0].mxu0
  %v257 = vadd.f32 0.0, %v256
  %v258 = vpop.f32.mrb[0].mxu0
  %259 = vmatprep.mubr.f32.mxu0 0.0
  %260 = vmatmul.mubr.f32.gmra.mrb[0].mxu0 %v159
  %v261 = vpop.f32.mrb[0].mxu0
  %v262 = vadd.f32 0.0, %v261
  %v263 = vpop.f32.mrb[0].mxu0
  %264 = vmatprep.mubr.f32.mxu0 0.0
  %265 = vmatmul.mubr.f32.gmra.mrb[0].mxu0 %v160
  %v266 = vpop.f32.mrb[0].mxu0
  %v267 = vadd.f32 0.0, %v266
  %v268 = vpop.f32.mrb[0].mxu0
  %269 = vmatprep.mubr.f32.mxu0 0.0
  %270 = vmatmul.mubr.f32.gmra.mrb[0].mxu0 %v161
  %v271 = vpop.f32.mrb[0].mxu0
  %v272 = vadd.f32 0.0, %v271
  %v273 = vpop.f32.mrb[0].mxu0
  %274 = vmatprep.mubr.f32.mxu0 0.0
  %275 = vmatmul.mubr.f32.gmra.mrb[0].mxu0 %v162
  %v276 = vpop.f32.mrb[0].mxu0
  %v277 = vadd.f32 0.0, %v276
  %v278 = vpop.f32.mrb[0].mxu0
  %279 = vmatprep.mubr.f32.mxu0 0.0
  %280 = vmatmul.mubr.f32.gmra.mrb[0].mxu0 %v163
  %v281 = vpop.f32.mrb[0].mxu0
  %v282 = vadd.f32 0.0, %v281
  %v283 = vpop.f32.mrb[0].mxu0
  %284 = vdwg.mxu0
  %v285 = vcvt.s32.f32 %v57
  %v286 = vcvt.s32.f32 %v58
  %v287 = vcvt.s32.f32 %v59
  %v288 = vcvt.s32.f32 %v60
  %v289 = vcvt.s32.f32 %v61
  %v290 = vcvt.s32.f32 %v62
  %v291 = vcvt.s32.f32 %v63
  %v292 = vcvt.s32.f32 %v64
  %v293 = vcvt.s32.f32 %v55
  %v294 = vadd.f32 %v285, 0.5
  %v295 = vadd.f32 %v286, 0.5
  %v296 = vadd.f32 %v287, 0.5
  %v297 = vadd.f32 %v288, 0.5
  %v298 = vadd.f32 %v289, 0.5
  %v299 = vadd.f32 %v290, 0.5
  %v300 = vadd.f32 %v291, 0.5
  %v301 = vadd.f32 %v292, 0.5
  %v302 = vmul.f32 %v294, 0.125
  %v303 = vmul.f32 %v295, 0.125
  %v304 = vmul.f32 %v296, 0.125
  %v305 = vmul.f32 %v297, 0.125
  %v306 = vmul.f32 %v298, 0.125
  %v307 = vmul.f32 %v299, 0.125
  %v308 = vmul.f32 %v300, 0.125
  %v309 = vmul.f32 %v301, 0.125
  %v310 = vfloor.f32 %v302
  %v311 = vfloor.f32 %v303
  %v312 = vfloor.f32 %v304
  %v313 = vfloor.f32 %v305
  %v314 = vfloor.f32 %v306
  %v315 = vfloor.f32 %v307
  %v316 = vfloor.f32 %v308
  %v317 = vfloor.f32 %v309
  %v318 = vmul.f32 %v310, 8.0
  %v319 = vmul.f32 %v311, 8.0
  %v320 = vmul.f32 %v312, 8.0
  %v321 = vmul.f32 %v313, 8.0
  %v322 = vmul.f32 %v314, 8.0
  %v323 = vmul.f32 %v315, 8.0
  %v324 = vmul.f32 %v316, 8.0
  %v325 = vmul.f32 %v317, 8.0
  %v326 = vsub.f32 %v285, %v318
  %v327 = vsub.f32 %v286, %v319
  %v328 = vsub.f32 %v287, %v320
  %v329 = vsub.f32 %v288, %v321
  %v330 = vsub.f32 %v289, %v322
  %v331 = vsub.f32 %v290, %v323
  %v332 = vsub.f32 %v291, %v324
  %v333 = vsub.f32 %v292, %v325
  %v334 = vadd.f32 %v293, 0.5
  %v335 = vmul.f32 %v334, 0.125
  %v336 = vfloor.f32 %v335
  %v337 = vmul.f32 %v336, 8.0
  %v338 = vsub.f32 %v293, %v337
  %vm339 = vcmp.eq.f32.partialorder %v326, %v338
  %vm340 = vcmp.eq.f32.partialorder %v327, %v338
  %vm341 = vcmp.eq.f32.partialorder %v328, %v338
  %vm342 = vcmp.eq.f32.partialorder %v329, %v338
  %vm343 = vcmp.eq.f32.partialorder %v330, %v338
  %vm344 = vcmp.eq.f32.partialorder %v331, %v338
  %vm345 = vcmp.eq.f32.partialorder %v332, %v338
  %vm346 = vcmp.eq.f32.partialorder %v333, %v338
  %v347 = vsel %vm339, 0.0, -1e+30
  %v348 = vsel %vm340, 0.0, -1e+30
  %v349 = vsel %vm341, 0.0, -1e+30
  %v350 = vsel %vm342, 0.0, -1e+30
  %v351 = vsel %vm343, 0.0, -1e+30
  %v352 = vsel %vm344, 0.0, -1e+30
  %v353 = vsel %vm345, 0.0, -1e+30
  %v354 = vsel %vm346, 0.0, -1e+30
  %v355 = vld [vmem:[%s8] sm:$0x1]
  %s356 = scalar_lea.vmem %s8, 1
  %v357 = vld [vmem:[%s356] sm:$0x1]
  %s358 = scalar_lea.vmem %s8, 2
  %v359 = vld [vmem:[%s358] sm:$0x1]
  %s360 = scalar_lea.vmem %s8, 3
  %v361 = vld [vmem:[%s360] sm:$0x1]
  %s362 = scalar_lea.vmem %s8, 4
  %v363 = vld [vmem:[%s362] sm:$0x1]
  %s364 = scalar_lea.vmem %s8, 5
  %v365 = vld [vmem:[%s364] sm:$0x1]
  %v366 = vld [vmem:[%s2] sm:$0xff]
  %v367 = vld [vmem:[%s2 + $0x8] sm:$0xff]
  %v368 = vld [vmem:[%s2 + $0x10] sm:$0xff]
  %v369 = vld [vmem:[%s2 + $0x18] sm:$0xff]
  %v370 = vld [vmem:[%s3] sm:$0x1]
  %v372 = vlaneseq
  %v373 = vshrl.u32 %v372, 7
  %v374 = vsub.s32 0, %v373
  %v375 = vrot.slane %v370, %v374
  %vm377 = vcmask 261120
  %v379 = vsel %vm377, %v247, 0
  %v382 = vsel %vm377, %v252, 0
  %v385 = vsel %vm377, %v257, 0
  %v388 = vsel %vm377, %v262, 0
  %v391 = vsel %vm377, %v267, 0
  %v394 = vsel %vm377, %v272, 0
  %v397 = vsel %vm377, %v277, 0
  %v400 = vsel %vm377, %v282, 0
  %402 = vmatprep.subr.mxu0 0.0
  %403 = vmatpush1.msra.mxu0 %v366
  %404 = vmatprep.subr.mxu0 0.0
  %405 = vmatpush1.msra.mxu0 %v367
  %406 = vmatprep.subr.mxu0 0.0
  %407 = vmatpush1.msra.mxu0 %v368
  %408 = vmatprep.subr.mxu0 0.0
  %409 = vmatpush1.msra.mxu0 %v369
  %410 = vmatprep.subr.mxu0 0.0
  %411 = vmatpush1.msra.mxu0 0.0
  %412 = vmatprep.subr.mxu0 0.0
  %413 = vmatpush1.msra.mxu0 0.0
  %414 = vmatprep.subr.mxu0 0.0
  %415 = vmatpush1.msra.mxu0 0.0
  %416 = vmatprep.subr.mxu0 0.0
  %417 = vmatpush1.msra.mxu0 0.0
  %418 = vmatprep.subr.mxu0 0.0
  %419 = vmatpush1.msra.mxu0 0.0
  %420 = vmatprep.subr.mxu0 0.0
  %421 = vmatpush1.msra.mxu0 0.0
  %422 = vmatprep.subr.mxu0 0.0
  %423 = vmatpush1.msra.mxu0 0.0
  %424 = vmatprep.subr.mxu0 0.0
  %425 = vmatpush1.msra.mxu0 0.0
  %426 = vmatprep.subr.mxu0 0.0
  %427 = vmatpush1.msra.mxu0 0.0
  %428 = vmatprep.subr.mxu0 0.0
  %429 = vmatpush1.msra.mxu0 0.0
  %430 = vmatprep.subr.mxu0 0.0
  %431 = vmatpush1.msra.mxu0 0.0
  %432 = vmatprep.subr.mxu0 0.0
  %433 = vmatpush1.msra.mxu0 0.0
  %434 = vmatprep.subr.mxu0 0.0
  %435 = vmatpush1.msra.mxu0 0.0
  %436 = vmatprep.subr.mxu0 0.0
  %437 = vmatpush1.msra.mxu0 0.0
  %438 = vmatprep.subr.mxu0 0.0
  %439 = vmatpush1.msra.mxu0 0.0
  %440 = vmatprep.subr.mxu0 0.0
  %441 = vmatpush1.msra.mxu0 0.0
  %442 = vmatprep.subr.mxu0 0.0
  %443 = vmatpush1.msra.mxu0 0.0
  %444 = vmatprep.subr.mxu0 0.0
  %445 = vmatpush1.msra.mxu0 0.0
  %446 = vmatprep.subr.mxu0 0.0
  %447 = vmatpush1.msra.mxu0 0.0
  %448 = vmatprep.subr.mxu0 0.0
  %449 = vmatpush1.msra.mxu0 0.0
  %450 = vmatprep.subr.mxu0 0.0
  %451 = vmatpush1.msra.mxu0 0.0
  %452 = vmatprep.subr.mxu0 0.0
  %453 = vmatpush1.msra.mxu0 0.0
  %454 = vmatprep.subr.mxu0 0.0
  %455 = vmatpush1.msra.mxu0 0.0
  %456 = vmatprep.subr.mxu0 0.0
  %457 = vmatpush1.msra.mxu0 0.0
  %458 = vmatprep.subr.mxu0 0.0
  %459 = vmatpush1.msra.mxu0 0.0
  %460 = vmatprep.subr.mxu0 0.0
  %461 = vmatpush1.msra.mxu0 0.0
  %462 = vmatprep.subr.mxu0 0.0
  %463 = vmatpush1.msra.mxu0 0.0
  %464 = vmatprep.subr.mxu0 0.0
  %465 = vmatpush1.msra.mxu0 0.0
  %466 = vmatprep.mubr.f32.mxu0 0.0
  %467 = vmatmul.mubr.f32.gmra.mrb[0].mxu0 %v379
  %v468 = vpop.f32.mrb[0].mxu0
  %v469 = vadd.f32 %v375, %v468
  %v470 = vpop.f32.mrb[0].mxu0
  %471 = vmatprep.mubr.f32.mxu0 0.0
  %472 = vmatmul.mubr.f32.gmra.mrb[0].mxu0 %v382
  %v473 = vpop.f32.mrb[0].mxu0
  %v474 = vadd.f32 %v375, %v473
  %v475 = vpop.f32.mrb[0].mxu0
  %476 = vmatprep.mubr.f32.mxu0 0.0
  %477 = vmatmul.mubr.f32.gmra.mrb[0].mxu0 %v385
  %v478 = vpop.f32.mrb[0].mxu0
  %v479 = vadd.f32 %v375, %v478
  %v480 = vpop.f32.mrb[0].mxu0
  %481 = vmatprep.mubr.f32.mxu0 0.0
  %482 = vmatmul.mubr.f32.gmra.mrb[0].mxu0 %v388
  %v483 = vpop.f32.mrb[0].mxu0
  %v484 = vadd.f32 %v375, %v483
  %v485 = vpop.f32.mrb[0].mxu0
  %486 = vmatprep.mubr.f32.mxu0 0.0
  %487 = vmatmul.mubr.f32.gmra.mrb[0].mxu0 %v391
  %v488 = vpop.f32.mrb[0].mxu0
  %v489 = vadd.f32 %v375, %v488
  %v490 = vpop.f32.mrb[0].mxu0
  %491 = vmatprep.mubr.f32.mxu0 0.0
  %492 = vmatmul.mubr.f32.gmra.mrb[0].mxu0 %v394
  %v493 = vpop.f32.mrb[0].mxu0
  %v494 = vadd.f32 %v375, %v493
  %v495 = vpop.f32.mrb[0].mxu0
  %496 = vmatprep.mubr.f32.mxu0 0.0
  %497 = vmatmul.mubr.f32.gmra.mrb[0].mxu0 %v397
  %v498 = vpop.f32.mrb[0].mxu0
  %v499 = vadd.f32 %v375, %v498
  %v500 = vpop.f32.mrb[0].mxu0
  %501 = vmatprep.mubr.f32.mxu0 0.0
  %502 = vmatmul.mubr.f32.gmra.mrb[0].mxu0 %v400
  %v503 = vpop.f32.mrb[0].mxu0
  %v504 = vadd.f32 %v375, %v503
  %v505 = vpop.f32.mrb[0].mxu0
  %506 = vdwg.mxu0
  %s507 = scalar_lea.vmem %s2, 128
  %v508 = vld [vmem:[%s507] sm:$0xff]
  %v509 = vld [vmem:[%s507 + $0x8] sm:$0xff]
  %v510 = vld [vmem:[%s507 + $0x10] sm:$0xff]
  %v511 = vld [vmem:[%s507 + $0x18] sm:$0xff]
  %s512 = scalar_lea.vmem %s3, 4
  %v513 = vld [vmem:[%s512] sm:$0x1]
  %v515 = vlaneseq
  %v516 = vshrl.u32 %v515, 7
  %v517 = vsub.s32 0, %v516
  %v518 = vrot.slane %v513, %v517
  %520 = vmatprep.subr.mxu0 0.0
  %521 = vmatpush1.msra.mxu0 %v508
  %522 = vmatprep.subr.mxu0 0.0
  %523 = vmatpush1.msra.mxu0 %v509
  %524 = vmatprep.subr.mxu0 0.0
  %525 = vmatpush1.msra.mxu0 %v510
  %526 = vmatprep.subr.mxu0 0.0
  %527 = vmatpush1.msra.mxu0 %v511
  %528 = vmatprep.subr.mxu0 0.0
  %529 = vmatpush1.msra.mxu0 0.0
  %530 = vmatprep.subr.mxu0 0.0
  %531 = vmatpush1.msra.mxu0 0.0
  %532 = vmatprep.subr.mxu0 0.0
  %533 = vmatpush1.msra.mxu0 0.0
  %534 = vmatprep.subr.mxu0 0.0
  %535 = vmatpush1.msra.mxu0 0.0
  %536 = vmatprep.subr.mxu0 0.0
  %537 = vmatpush1.msra.mxu0 0.0
  %538 = vmatprep.subr.mxu0 0.0
  %539 = vmatpush1.msra.mxu0 0.0
  %540 = vmatprep.subr.mxu0 0.0
  %541 = vmatpush1.msra.mxu0 0.0
  %542 = vmatprep.subr.mxu0 0.0
  %543 = vmatpush1.msra.mxu0 0.0
  %544 = vmatprep.subr.mxu0 0.0
  %545 = vmatpush1.msra.mxu0 0.0
  %546 = vmatprep.subr.mxu0 0.0
  %547 = vmatpush1.msra.mxu0 0.0
  %548 = vmatprep.subr.mxu0 0.0
  %549 = vmatpush1.msra.mxu0 0.0
  %550 = vmatprep.subr.mxu0 0.0
  %551 = vmatpush1.msra.mxu0 0.0
  %552 = vmatprep.subr.mxu0 0.0
  %553 = vmatpush1.msra.mxu0 0.0
  %554 = vmatprep.subr.mxu0 0.0
  %555 = vmatpush1.msra.mxu0 0.0
  %556 = vmatprep.subr.mxu0 0.0
  %557 = vmatpush1.msra.mxu0 0.0
  %558 = vmatprep.subr.mxu0 0.0
  %559 = vmatpush1.msra.mxu0 0.0
  %560 = vmatprep.subr.mxu0 0.0
  %561 = vmatpush1.msra.mxu0 0.0
  %562 = vmatprep.subr.mxu0 0.0
  %563 = vmatpush1.msra.mxu0 0.0
  %564 = vmatprep.subr.mxu0 0.0
  %565 = vmatpush1.msra.mxu0 0.0
  %566 = vmatprep.subr.mxu0 0.0
  %567 = vmatpush1.msra.mxu0 0.0
  %568 = vmatprep.subr.mxu0 0.0
  %569 = vmatpush1.msra.mxu0 0.0
  %570 = vmatprep.subr.mxu0 0.0
  %571 = vmatpush1.msra.mxu0 0.0
  %572 = vmatprep.subr.mxu0 0.0
  %573 = vmatpush1.msra.mxu0 0.0
  %574 = vmatprep.subr.mxu0 0.0
  %575 = vmatpush1.msra.mxu0 0.0
  %576 = vmatprep.subr.mxu0 0.0
  %577 = vmatpush1.msra.mxu0 0.0
  %578 = vmatprep.subr.mxu0 0.0
  %579 = vmatpush1.msra.mxu0 0.0
  %580 = vmatprep.subr.mxu0 0.0
  %581 = vmatpush1.msra.mxu0 0.0
  %582 = vmatprep.subr.mxu0 0.0
  %583 = vmatpush1.msra.mxu0 0.0
  %584 = vmatprep.mubr.f32.mxu0 0.0
  %585 = vmatmul.mubr.f32.gmra.mrb[0].mxu0 %v379
  %v586 = vpop.f32.mrb[0].mxu0
  %v587 = vadd.f32 %v518, %v586
  %v588 = vpop.f32.mrb[0].mxu0
  %589 = vmatprep.mubr.f32.mxu0 0.0
  %590 = vmatmul.mubr.f32.gmra.mrb[0].mxu0 %v382
  %v591 = vpop.f32.mrb[0].mxu0
  %v592 = vadd.f32 %v518, %v591
  %v593 = vpop.f32.mrb[0].mxu0
  %594 = vmatprep.mubr.f32.mxu0 0.0
  %595 = vmatmul.mubr.f32.gmra.mrb[0].mxu0 %v385
  %v596 = vpop.f32.mrb[0].mxu0
  %v597 = vadd.f32 %v518, %v596
  %v598 = vpop.f32.mrb[0].mxu0
  %599 = vmatprep.mubr.f32.mxu0 0.0
  %600 = vmatmul.mubr.f32.gmra.mrb[0].mxu0 %v388
  %v601 = vpop.f32.mrb[0].mxu0
  %v602 = vadd.f32 %v518, %v601
  %v603 = vpop.f32.mrb[0].mxu0
  %604 = vmatprep.mubr.f32.mxu0 0.0
  %605 = vmatmul.mubr.f32.gmra.mrb[0].mxu0 %v391
  %v606 = vpop.f32.mrb[0].mxu0
  %v607 = vadd.f32 %v518, %v606
  %v608 = vpop.f32.mrb[0].mxu0
  %609 = vmatprep.mubr.f32.mxu0 0.0
  %610 = vmatmul.mubr.f32.gmra.mrb[0].mxu0 %v394
  %v611 = vpop.f32.mrb[0].mxu0
  %v612 = vadd.f32 %v518, %v611
  %v613 = vpop.f32.mrb[0].mxu0
  %614 = vmatprep.mubr.f32.mxu0 0.0
  %615 = vmatmul.mubr.f32.gmra.mrb[0].mxu0 %v397
  %v616 = vpop.f32.mrb[0].mxu0
  %v617 = vadd.f32 %v518, %v616
  %v618 = vpop.f32.mrb[0].mxu0
  %619 = vmatprep.mubr.f32.mxu0 0.0
  %620 = vmatmul.mubr.f32.gmra.mrb[0].mxu0 %v400
  %v621 = vpop.f32.mrb[0].mxu0
  %v622 = vadd.f32 %v518, %v621
  %v623 = vpop.f32.mrb[0].mxu0
  %624 = vdwg.mxu0
  %s625 = scalar_lea.vmem %s2, 256
  %v626 = vld [vmem:[%s625] sm:$0xff]
  %v627 = vld [vmem:[%s625 + $0x8] sm:$0xff]
  %v628 = vld [vmem:[%s625 + $0x10] sm:$0xff]
  %v629 = vld [vmem:[%s625 + $0x18] sm:$0xff]
  %s630 = scalar_lea.vmem %s3, 8
  %v631 = vld [vmem:[%s630] sm:$0x1]
  %v633 = vlaneseq
  %v634 = vshrl.u32 %v633, 7
  %v635 = vsub.s32 0, %v634
  %v636 = vrot.slane %v631, %v635
  %638 = vmatprep.subr.mxu0 0.0
  %639 = vmatpush1.msra.mxu0 %v626
  %640 = vmatprep.subr.mxu0 0.0
  %641 = vmatpush1.msra.mxu0 %v627
  %642 = vmatprep.subr.mxu0 0.0
  %643 = vmatpush1.msra.mxu0 %v628
  %644 = vmatprep.subr.mxu0 0.0
  %645 = vmatpush1.msra.mxu0 %v629
  %646 = vmatprep.subr.mxu0 0.0
  %647 = vmatpush1.msra.mxu0 0.0
  %648 = vmatprep.subr.mxu0 0.0
  %649 = vmatpush1.msra.mxu0 0.0
  %650 = vmatprep.subr.mxu0 0.0
  %651 = vmatpush1.msra.mxu0 0.0
  %652 = vmatprep.subr.mxu0 0.0
  %653 = vmatpush1.msra.mxu0 0.0
  %654 = vmatprep.subr.mxu0 0.0
  %655 = vmatpush1.msra.mxu0 0.0
  %656 = vmatprep.subr.mxu0 0.0
  %657 = vmatpush1.msra.mxu0 0.0
  %658 = vmatprep.subr.mxu0 0.0
  %659 = vmatpush1.msra.mxu0 0.0
  %660 = vmatprep.subr.mxu0 0.0
  %661 = vmatpush1.msra.mxu0 0.0
  %662 = vmatprep.subr.mxu0 0.0
  %663 = vmatpush1.msra.mxu0 0.0
  %664 = vmatprep.subr.mxu0 0.0
  %665 = vmatpush1.msra.mxu0 0.0
  %666 = vmatprep.subr.mxu0 0.0
  %667 = vmatpush1.msra.mxu0 0.0
  %668 = vmatprep.subr.mxu0 0.0
  %669 = vmatpush1.msra.mxu0 0.0
  %670 = vmatprep.subr.mxu0 0.0
  %671 = vmatpush1.msra.mxu0 0.0
  %672 = vmatprep.subr.mxu0 0.0
  %673 = vmatpush1.msra.mxu0 0.0
  %674 = vmatprep.subr.mxu0 0.0
  %675 = vmatpush1.msra.mxu0 0.0
  %676 = vmatprep.subr.mxu0 0.0
  %677 = vmatpush1.msra.mxu0 0.0
  %678 = vmatprep.subr.mxu0 0.0
  %679 = vmatpush1.msra.mxu0 0.0
  %680 = vmatprep.subr.mxu0 0.0
  %681 = vmatpush1.msra.mxu0 0.0
  %682 = vmatprep.subr.mxu0 0.0
  %683 = vmatpush1.msra.mxu0 0.0
  %684 = vmatprep.subr.mxu0 0.0
  %685 = vmatpush1.msra.mxu0 0.0
  %686 = vmatprep.subr.mxu0 0.0
  %687 = vmatpush1.msra.mxu0 0.0
  %688 = vmatprep.subr.mxu0 0.0
  %689 = vmatpush1.msra.mxu0 0.0
  %690 = vmatprep.subr.mxu0 0.0
  %691 = vmatpush1.msra.mxu0 0.0
  %692 = vmatprep.subr.mxu0 0.0
  %693 = vmatpush1.msra.mxu0 0.0
  %694 = vmatprep.subr.mxu0 0.0
  %695 = vmatpush1.msra.mxu0 0.0
  %696 = vmatprep.subr.mxu0 0.0
  %697 = vmatpush1.msra.mxu0 0.0
  %698 = vmatprep.subr.mxu0 0.0
  %699 = vmatpush1.msra.mxu0 0.0
  %700 = vmatprep.subr.mxu0 0.0
  %701 = vmatpush1.msra.mxu0 0.0
  %702 = vmatprep.mubr.f32.mxu0 0.0
  %703 = vmatmul.mubr.f32.gmra.mrb[0].mxu0 %v379
  %v704 = vpop.f32.mrb[0].mxu0
  %v705 = vadd.f32 %v636, %v704
  %v706 = vpop.f32.mrb[0].mxu0
  %707 = vmatprep.mubr.f32.mxu0 0.0
  %708 = vmatmul.mubr.f32.gmra.mrb[0].mxu0 %v382
  %v709 = vpop.f32.mrb[0].mxu0
  %v710 = vadd.f32 %v636, %v709
  %v711 = vpop.f32.mrb[0].mxu0
  %712 = vmatprep.mubr.f32.mxu0 0.0
  %713 = vmatmul.mubr.f32.gmra.mrb[0].mxu0 %v385
  %v714 = vpop.f32.mrb[0].mxu0
  %v715 = vadd.f32 %v636, %v714
  %v716 = vpop.f32.mrb[0].mxu0
  %717 = vmatprep.mubr.f32.mxu0 0.0
  %718 = vmatmul.mubr.f32.gmra.mrb[0].mxu0 %v388
  %v719 = vpop.f32.mrb[0].mxu0
  %v720 = vadd.f32 %v636, %v719
  %v721 = vpop.f32.mrb[0].mxu0
  %722 = vmatprep.mubr.f32.mxu0 0.0
  %723 = vmatmul.mubr.f32.gmra.mrb[0].mxu0 %v391
  %v724 = vpop.f32.mrb[0].mxu0
  %v725 = vadd.f32 %v636, %v724
  %v726 = vpop.f32.mrb[0].mxu0
  %727 = vmatprep.mubr.f32.mxu0 0.0
  %728 = vmatmul.mubr.f32.gmra.mrb[0].mxu0 %v394
  %v729 = vpop.f32.mrb[0].mxu0
  %v730 = vadd.f32 %v636, %v729
  %v731 = vpop.f32.mrb[0].mxu0
  %732 = vmatprep.mubr.f32.mxu0 0.0
  %733 = vmatmul.mubr.f32.gmra.mrb[0].mxu0 %v397
  %v734 = vpop.f32.mrb[0].mxu0
  %v735 = vadd.f32 %v636, %v734
  %v736 = vpop.f32.mrb[0].mxu0
  %737 = vmatprep.mubr.f32.mxu0 0.0
  %738 = vmatmul.mubr.f32.gmra.mrb[0].mxu0 %v400
  %v739 = vpop.f32.mrb[0].mxu0
  %v740 = vadd.f32 %v636, %v739
  %v741 = vpop.f32.mrb[0].mxu0
  %742 = vdwg.mxu0
  %vm743 = vcmask 64512
  %v745 = vsel %vm743, %v469, 0
  %v748 = vsel %vm743, %v474, 0
  %v751 = vsel %vm743, %v479, 0
  %v754 = vsel %vm743, %v484, 0
  %v757 = vsel %vm743, %v489, 0
  %v760 = vsel %vm743, %v494, 0
  %v763 = vsel %vm743, %v499, 0
  %v766 = vsel %vm743, %v504, 0
  %v769 = vsel %vm743, %v587, 0
  %v772 = vsel %vm743, %v592, 0
  %v775 = vsel %vm743, %v597, 0
  %v778 = vsel %vm743, %v602, 0
  %v781 = vsel %vm743, %v607, 0
  %v784 = vsel %vm743, %v612, 0
  %v787 = vsel %vm743, %v617, 0
  %v790 = vsel %vm743, %v622, 0
  %792 = vmatprep.subr.mxu0 0.0
  %793 = vmatpush1.xpose.msra.mxu0 %v769
  %794 = vmatprep.subr.mxu0 0.0
  %795 = vmatpush1.xpose.msra.mxu0 %v772
  %796 = vmatprep.subr.mxu0 0.0
  %797 = vmatpush1.xpose.msra.mxu0 %v775
  %798 = vmatprep.subr.mxu0 0.0
  %799 = vmatpush1.xpose.msra.mxu0 %v778
  %800 = vmatprep.subr.mxu0 0.0
  %801 = vmatpush1.xpose.msra.mxu0 %v781
  %802 = vmatprep.subr.mxu0 0.0
  %803 = vmatpush1.xpose.msra.mxu0 %v784
  %804 = vmatprep.subr.mxu0 0.0
  %805 = vmatpush1.xpose.msra.mxu0 %v787
  %806 = vmatprep.subr.mxu0 0.0
  %807 = vmatpush1.xpose.msra.mxu0 %v790
  %808 = vmatprep.subr.mxu0 0.0
  %809 = vmatpush1.xpose.msra.mxu0 0.0
  %810 = vmatprep.subr.mxu0 0.0
  %811 = vmatpush1.xpose.msra.mxu0 0.0
  %812 = vmatprep.subr.mxu0 0.0
  %813 = vmatpush1.xpose.msra.mxu0 0.0
  %814 = vmatprep.subr.mxu0 0.0
  %815 = vmatpush1.xpose.msra.mxu0 0.0
  %816 = vmatprep.subr.mxu0 0.0
  %817 = vmatpush1.xpose.msra.mxu0 0.0
  %818 = vmatprep.subr.mxu0 0.0
  %819 = vmatpush1.xpose.msra.mxu0 0.0
  %820 = vmatprep.subr.mxu0 0.0
  %821 = vmatpush1.xpose.msra.mxu0 0.0
  %822 = vmatprep.subr.mxu0 0.0
  %823 = vmatpush1.xpose.msra.mxu0 0.0
  %824 = vmatprep.subr.mxu0 0.0
  %825 = vmatpush1.xpose.msra.mxu0 0.0
  %826 = vmatprep.subr.mxu0 0.0
  %827 = vmatpush1.xpose.msra.mxu0 0.0
  %828 = vmatprep.subr.mxu0 0.0
  %829 = vmatpush1.xpose.msra.mxu0 0.0
  %830 = vmatprep.subr.mxu0 0.0
  %831 = vmatpush1.xpose.msra.mxu0 0.0
  %832 = vmatprep.subr.mxu0 0.0
  %833 = vmatpush1.xpose.msra.mxu0 0.0
  %834 = vmatprep.subr.mxu0 0.0
  %835 = vmatpush1.xpose.msra.mxu0 0.0
  %836 = vmatprep.subr.mxu0 0.0
  %837 = vmatpush1.xpose.msra.mxu0 0.0
  %838 = vmatprep.subr.mxu0 0.0
  %839 = vmatpush1.xpose.msra.mxu0 0.0
  %840 = vmatprep.subr.mxu0 0.0
  %841 = vmatpush1.xpose.msra.mxu0 0.0
  %842 = vmatprep.subr.mxu0 0.0
  %843 = vmatpush1.xpose.msra.mxu0 0.0
  %844 = vmatprep.subr.mxu0 0.0
  %845 = vmatpush1.xpose.msra.mxu0 0.0
  %846 = vmatprep.subr.mxu0 0.0
  %847 = vmatpush1.xpose.msra.mxu0 0.0
  %848 = vmatprep.subr.mxu0 0.0
  %849 = vmatpush1.xpose.msra.mxu0 0.0
  %850 = vmatprep.subr.mxu0 0.0
  %851 = vmatpush1.xpose.msra.mxu0 0.0
  %852 = vmatprep.subr.mxu0 0.0
  %853 = vmatpush1.xpose.msra.mxu0 0.0
  %854 = vmatprep.subr.mxu0 0.0
  %855 = vmatpush1.xpose.msra.mxu0 0.0
  %856 = vmatprep.mubr.f32.mxu0 0.0
  %857 = vmatmul.mubr.f32.gmra.mrb[0].mxu0 %v745
  %v858 = vpop.f32.mrb[0].mxu0
  %v859 = vadd.f32 %v347, %v858
  %v860 = vpop.f32.mrb[0].mxu0
  %861 = vmatprep.mubr.f32.mxu0 0.0
  %862 = vmatmul.mubr.f32.gmra.mrb[0].mxu0 %v748
  %v863 = vpop.f32.mrb[0].mxu0
  %v864 = vadd.f32 %v348, %v863
  %v865 = vpop.f32.mrb[0].mxu0
  %866 = vmatprep.mubr.f32.mxu0 0.0
  %867 = vmatmul.mubr.f32.gmra.mrb[0].mxu0 %v751
  %v868 = vpop.f32.mrb[0].mxu0
  %v869 = vadd.f32 %v349, %v868
  %v870 = vpop.f32.mrb[0].mxu0
  %871 = vmatprep.mubr.f32.mxu0 0.0
  %872 = vmatmul.mubr.f32.gmra.mrb[0].mxu0 %v754
  %v873 = vpop.f32.mrb[0].mxu0
  %v874 = vadd.f32 %v350, %v873
  %v875 = vpop.f32.mrb[0].mxu0
  %876 = vmatprep.mubr.f32.mxu0 0.0
  %877 = vmatmul.mubr.f32.gmra.mrb[0].mxu0 %v757
  %v878 = vpop.f32.mrb[0].mxu0
  %v879 = vadd.f32 %v351, %v878
  %v880 = vpop.f32.mrb[0].mxu0
  %881 = vmatprep.mubr.f32.mxu0 0.0
  %882 = vmatmul.mubr.f32.gmra.mrb[0].mxu0 %v760
  %v883 = vpop.f32.mrb[0].mxu0
  %v884 = vadd.f32 %v352, %v883
  %v885 = vpop.f32.mrb[0].mxu0
  %886 = vmatprep.mubr.f32.mxu0 0.0
  %887 = vmatmul.mubr.f32.gmra.mrb[0].mxu0 %v763
  %v888 = vpop.f32.mrb[0].mxu0
  %v889 = vadd.f32 %v353, %v888
  %v890 = vpop.f32.mrb[0].mxu0
  %891 = vmatprep.mubr.f32.mxu0 0.0
  %892 = vmatmul.mubr.f32.gmra.mrb[0].mxu0 %v766
  %v893 = vpop.f32.mrb[0].mxu0
  %v894 = vadd.f32 %v354, %v893
  %v895 = vpop.f32.mrb[0].mxu0
  %896 = vdwg.mxu0
  %vm897 = vcmask 523264
  %v898 = vsel %vm897, %v859, -inf
  %899 = vmax.xlane.f32.xlu0 %v898
  %v900 = vpop.xlane.xlu0 %899
  %v901 = vsel %vm897, %v864, -inf
  %902 = vmax.xlane.f32.xlu0 %v901
  %v903 = vpop.xlane.xlu0 %902
  %v904 = vsel %vm897, %v869, -inf
  %905 = vmax.xlane.f32.xlu0 %v904
  %v906 = vpop.xlane.xlu0 %905
  %v907 = vsel %vm897, %v874, -inf
  %908 = vmax.xlane.f32.xlu0 %v907
  %v909 = vpop.xlane.xlu0 %908
  %v910 = vsel %vm897, %v879, -inf
  %911 = vmax.xlane.f32.xlu0 %v910
  %v912 = vpop.xlane.xlu0 %911
  %v913 = vsel %vm897, %v884, -inf
  %914 = vmax.xlane.f32.xlu0 %v913
  %v915 = vpop.xlane.xlu0 %914
  %v916 = vsel %vm897, %v889, -inf
  %917 = vmax.xlane.f32.xlu0 %v916
  %v918 = vpop.xlane.xlu0 %917
  %v919 = vsel %vm897, %v894, -inf
  %920 = vmax.xlane.f32.xlu0 %v919
  %v921 = vpop.xlane.xlu0 %920
  %v922 = vsub.f32 %v859, %v900
  %v923 = vsub.f32 %v864, %v903
  %v924 = vsub.f32 %v869, %v906
  %v925 = vsub.f32 %v874, %v909
  %v926 = vsub.f32 %v879, %v912
  %v927 = vsub.f32 %v884, %v915
  %v928 = vsub.f32 %v889, %v918
  %v929 = vsub.f32 %v894, %v921
  %v930 = vmul.f32 %v922, 1.442695
  %v931 = vpow.pop %v930
  %v932 = vmul.f32 %v923, 1.442695
  %v933 = vpow.pop %v932
  %v934 = vmul.f32 %v924, 1.442695
  %v935 = vpow.pop %v934
  %v936 = vmul.f32 %v925, 1.442695
  %v937 = vpow.pop %v936
  %v938 = vmul.f32 %v926, 1.442695
  %v939 = vpow.pop %v938
  %v940 = vmul.f32 %v927, 1.442695
  %v941 = vpow.pop %v940
  %v942 = vmul.f32 %v928, 1.442695
  %v943 = vpow.pop %v942
  %v944 = vmul.f32 %v929, 1.442695
  %v945 = vpow.pop %v944
  %v946 = vsel %vm897, %v931, 0.0
  %947 = vadd.xlane.f32.xlu0 %v946
  %v948 = vpop.xlane.xlu0 %947
  %v949 = vsel %vm897, %v933, 0.0
  %950 = vadd.xlane.f32.xlu0 %v949
  %v951 = vpop.xlane.xlu0 %950
  %v952 = vsel %vm897, %v935, 0.0
  %953 = vadd.xlane.f32.xlu0 %v952
  %v954 = vpop.xlane.xlu0 %953
  %v955 = vsel %vm897, %v937, 0.0
  %956 = vadd.xlane.f32.xlu0 %v955
  %v957 = vpop.xlane.xlu0 %956
  %v958 = vsel %vm897, %v939, 0.0
  %959 = vadd.xlane.f32.xlu0 %v958
  %v960 = vpop.xlane.xlu0 %959
  %v961 = vsel %vm897, %v941, 0.0
  %962 = vadd.xlane.f32.xlu0 %v961
  %v963 = vpop.xlane.xlu0 %962
  %v964 = vsel %vm897, %v943, 0.0
  %965 = vadd.xlane.f32.xlu0 %v964
  %v966 = vpop.xlane.xlu0 %965
  %v967 = vsel %vm897, %v945, 0.0
  %968 = vadd.xlane.f32.xlu0 %v967
  %v969 = vpop.xlane.xlu0 %968
  %v970 = vrcp.pop %v948
  %v971 = vmul.f32 %v931, %v970
  %v972 = vrcp.pop %v951
  %v973 = vmul.f32 %v933, %v972
  %v974 = vrcp.pop %v954
  %v975 = vmul.f32 %v935, %v974
  %v976 = vrcp.pop %v957
  %v977 = vmul.f32 %v937, %v976
  %v978 = vrcp.pop %v960
  %v979 = vmul.f32 %v939, %v978
  %v980 = vrcp.pop %v963
  %v981 = vmul.f32 %v941, %v980
  %v982 = vrcp.pop %v966
  %v983 = vmul.f32 %v943, %v982
  %v984 = vrcp.pop %v969
  %v985 = vmul.f32 %v945, %v984
  %v987 = vsel %vm897, %v971, 0
  %v990 = vsel %vm897, %v973, 0
  %v993 = vsel %vm897, %v975, 0
  %v996 = vsel %vm897, %v977, 0
  %v999 = vsel %vm897, %v979, 0
  %v1002 = vsel %vm897, %v981, 0
  %v1005 = vsel %vm897, %v983, 0
  %v1008 = vsel %vm897, %v985, 0
  %1010 = vmatprep.subr.mxu0 0.0
  %1011 = vmatpush1.msra.mxu0 %v705
  %1012 = vmatprep.subr.mxu0 0.0
  %1013 = vmatpush1.msra.mxu0 %v710
  %1014 = vmatprep.subr.mxu0 0.0
  %1015 = vmatpush1.msra.mxu0 %v715
  %1016 = vmatprep.subr.mxu0 0.0
  %1017 = vmatpush1.msra.mxu0 %v720
  %1018 = vmatprep.subr.mxu0 0.0
  %1019 = vmatpush1.msra.mxu0 %v725
  %1020 = vmatprep.subr.mxu0 0.0
  %1021 = vmatpush1.msra.mxu0 %v730
  %1022 = vmatprep.subr.mxu0 0.0
  %1023 = vmatpush1.msra.mxu0 %v735
  %1024 = vmatprep.subr.mxu0 0.0
  %1025 = vmatpush1.msra.mxu0 %v740
  %1026 = vmatprep.subr.mxu0 0.0
  %1027 = vmatpush1.msra.mxu0 0.0
  %1028 = vmatprep.subr.mxu0 0.0
  %1029 = vmatpush1.msra.mxu0 0.0
  %1030 = vmatprep.subr.mxu0 0.0
  %1031 = vmatpush1.msra.mxu0 0.0
  %1032 = vmatprep.subr.mxu0 0.0
  %1033 = vmatpush1.msra.mxu0 0.0
  %1034 = vmatprep.subr.mxu0 0.0
  %1035 = vmatpush1.msra.mxu0 0.0
  %1036 = vmatprep.subr.mxu0 0.0
  %1037 = vmatpush1.msra.mxu0 0.0
  %1038 = vmatprep.subr.mxu0 0.0
  %1039 = vmatpush1.msra.mxu0 0.0
  %1040 = vmatprep.subr.mxu0 0.0
  %1041 = vmatpush1.msra.mxu0 0.0
  %1042 = vmatprep.subr.mxu0 0.0
  %1043 = vmatpush1.msra.mxu0 0.0
  %1044 = vmatprep.subr.mxu0 0.0
  %1045 = vmatpush1.msra.mxu0 0.0
  %1046 = vmatprep.subr.mxu0 0.0
  %1047 = vmatpush1.msra.mxu0 0.0
  %1048 = vmatprep.subr.mxu0 0.0
  %1049 = vmatpush1.msra.mxu0 0.0
  %1050 = vmatprep.subr.mxu0 0.0
  %1051 = vmatpush1.msra.mxu0 0.0
  %1052 = vmatprep.subr.mxu0 0.0
  %1053 = vmatpush1.msra.mxu0 0.0
  %1054 = vmatprep.subr.mxu0 0.0
  %1055 = vmatpush1.msra.mxu0 0.0
  %1056 = vmatprep.subr.mxu0 0.0
  %1057 = vmatpush1.msra.mxu0 0.0
  %1058 = vmatprep.subr.mxu0 0.0
  %1059 = vmatpush1.msra.mxu0 0.0
  %1060 = vmatprep.subr.mxu0 0.0
  %1061 = vmatpush1.msra.mxu0 0.0
  %1062 = vmatprep.subr.mxu0 0.0
  %1063 = vmatpush1.msra.mxu0 0.0
  %1064 = vmatprep.subr.mxu0 0.0
  %1065 = vmatpush1.msra.mxu0 0.0
  %1066 = vmatprep.subr.mxu0 0.0
  %1067 = vmatpush1.msra.mxu0 0.0
  %1068 = vmatprep.subr.mxu0 0.0
  %1069 = vmatpush1.msra.mxu0 0.0
  %1070 = vmatprep.subr.mxu0 0.0
  %1071 = vmatpush1.msra.mxu0 0.0
  %1072 = vmatprep.subr.mxu0 0.0
  %1073 = vmatpush1.msra.mxu0 0.0
  %1074 = vmatprep.mubr.f32.mxu0 0.0
  %1075 = vmatmul.mubr.f32.gmra.mrb[0].mxu0 %v987
  %v1076 = vpop.f32.mrb[0].mxu0
  %v1077 = vadd.f32 0.0, %v1076
  %v1078 = vpop.f32.mrb[0].mxu0
  %1079 = vmatprep.mubr.f32.mxu0 0.0
  %1080 = vmatmul.mubr.f32.gmra.mrb[0].mxu0 %v990
  %v1081 = vpop.f32.mrb[0].mxu0
  %v1082 = vadd.f32 0.0, %v1081
  %v1083 = vpop.f32.mrb[0].mxu0
  %1084 = vmatprep.mubr.f32.mxu0 0.0
  %1085 = vmatmul.mubr.f32.gmra.mrb[0].mxu0 %v993
  %v1086 = vpop.f32.mrb[0].mxu0
  %v1087 = vadd.f32 0.0, %v1086
  %v1088 = vpop.f32.mrb[0].mxu0
  %1089 = vmatprep.mubr.f32.mxu0 0.0
  %1090 = vmatmul.mubr.f32.gmra.mrb[0].mxu0 %v996
  %v1091 = vpop.f32.mrb[0].mxu0
  %v1092 = vadd.f32 0.0, %v1091
  %v1093 = vpop.f32.mrb[0].mxu0
  %1094 = vmatprep.mubr.f32.mxu0 0.0
  %1095 = vmatmul.mubr.f32.gmra.mrb[0].mxu0 %v999
  %v1096 = vpop.f32.mrb[0].mxu0
  %v1097 = vadd.f32 0.0, %v1096
  %v1098 = vpop.f32.mrb[0].mxu0
  %1099 = vmatprep.mubr.f32.mxu0 0.0
  %1100 = vmatmul.mubr.f32.gmra.mrb[0].mxu0 %v1002
  %v1101 = vpop.f32.mrb[0].mxu0
  %v1102 = vadd.f32 0.0, %v1101
  %v1103 = vpop.f32.mrb[0].mxu0
  %1104 = vmatprep.mubr.f32.mxu0 0.0
  %1105 = vmatmul.mubr.f32.gmra.mrb[0].mxu0 %v1005
  %v1106 = vpop.f32.mrb[0].mxu0
  %v1107 = vadd.f32 0.0, %v1106
  %v1108 = vpop.f32.mrb[0].mxu0
  %1109 = vmatprep.mubr.f32.mxu0 0.0
  %1110 = vmatmul.mubr.f32.gmra.mrb[0].mxu0 %v1008
  %v1111 = vpop.f32.mrb[0].mxu0
  %v1112 = vadd.f32 0.0, %v1111
  %v1113 = vpop.f32.mrb[0].mxu0
  %1114 = vdwg.mxu0
  %v1115 = vld [vmem:[%s4] sm:$0xff]
  %s1116 = scalar_lea.vmem %s2, 32
  %v1117 = vld [vmem:[%s1116] sm:$0xff]
  %v1118 = vld [vmem:[%s1116 + $0x8] sm:$0xff]
  %v1119 = vld [vmem:[%s1116 + $0x10] sm:$0xff]
  %v1120 = vld [vmem:[%s1116 + $0x18] sm:$0xff]
  %s1121 = scalar_lea.vmem %s3, 1
  %v1122 = vld [vmem:[%s1121] sm:$0x1]
  %v1124 = vlaneseq
  %v1125 = vshrl.u32 %v1124, 7
  %v1126 = vsub.s32 0, %v1125
  %v1127 = vrot.slane %v1122, %v1126
  %1129 = vmatprep.subr.mxu0 0.0
  %1130 = vmatpush1.msra.mxu0 %v1117
  %1131 = vmatprep.subr.mxu0 0.0
  %1132 = vmatpush1.msra.mxu0 %v1118
  %1133 = vmatprep.subr.mxu0 0.0
  %1134 = vmatpush1.msra.mxu0 %v1119
  %1135 = vmatprep.subr.mxu0 0.0
  %1136 = vmatpush1.msra.mxu0 %v1120
  %1137 = vmatprep.subr.mxu0 0.0
  %1138 = vmatpush1.msra.mxu0 0.0
  %1139 = vmatprep.subr.mxu0 0.0
  %1140 = vmatpush1.msra.mxu0 0.0
  %1141 = vmatprep.subr.mxu0 0.0
  %1142 = vmatpush1.msra.mxu0 0.0
  %1143 = vmatprep.subr.mxu0 0.0
  %1144 = vmatpush1.msra.mxu0 0.0
  %1145 = vmatprep.subr.mxu0 0.0
  %1146 = vmatpush1.msra.mxu0 0.0
  %1147 = vmatprep.subr.mxu0 0.0
  %1148 = vmatpush1.msra.mxu0 0.0
  %1149 = vmatprep.subr.mxu0 0.0
  %1150 = vmatpush1.msra.mxu0 0.0
  %1151 = vmatprep.subr.mxu0 0.0
  %1152 = vmatpush1.msra.mxu0 0.0
  %1153 = vmatprep.subr.mxu0 0.0
  %1154 = vmatpush1.msra.mxu0 0.0
  %1155 = vmatprep.subr.mxu0 0.0
  %1156 = vmatpush1.msra.mxu0 0.0
  %1157 = vmatprep.subr.mxu0 0.0
  %1158 = vmatpush1.msra.mxu0 0.0
  %1159 = vmatprep.subr.mxu0 0.0
  %1160 = vmatpush1.msra.mxu0 0.0
  %1161 = vmatprep.subr.mxu0 0.0
  %1162 = vmatpush1.msra.mxu0 0.0
  %1163 = vmatprep.subr.mxu0 0.0
  %1164 = vmatpush1.msra.mxu0 0.0
  %1165 = vmatprep.subr.mxu0 0.0
  %1166 = vmatpush1.msra.mxu0 0.0
  %1167 = vmatprep.subr.mxu0 0.0
  %1168 = vmatpush1.msra.mxu0 0.0
  %1169 = vmatprep.subr.mxu0 0.0
  %1170 = vmatpush1.msra.mxu0 0.0
  %1171 = vmatprep.subr.mxu0 0.0
  %1172 = vmatpush1.msra.mxu0 0.0
  %1173 = vmatprep.subr.mxu0 0.0
  %1174 = vmatpush1.msra.mxu0 0.0
  %1175 = vmatprep.subr.mxu0 0.0
  %1176 = vmatpush1.msra.mxu0 0.0
  %1177 = vmatprep.subr.mxu0 0.0
  %1178 = vmatpush1.msra.mxu0 0.0
  %1179 = vmatprep.subr.mxu0 0.0
  %1180 = vmatpush1.msra.mxu0 0.0
  %1181 = vmatprep.subr.mxu0 0.0
  %1182 = vmatpush1.msra.mxu0 0.0
  %1183 = vmatprep.subr.mxu0 0.0
  %1184 = vmatpush1.msra.mxu0 0.0
  %1185 = vmatprep.subr.mxu0 0.0
  %1186 = vmatpush1.msra.mxu0 0.0
  %1187 = vmatprep.subr.mxu0 0.0
  %1188 = vmatpush1.msra.mxu0 0.0
  %1189 = vmatprep.subr.mxu0 0.0
  %1190 = vmatpush1.msra.mxu0 0.0
  %1191 = vmatprep.subr.mxu0 0.0
  %1192 = vmatpush1.msra.mxu0 0.0
  %1193 = vmatprep.mubr.f32.mxu0 0.0
  %1194 = vmatmul.mubr.f32.gmra.mrb[0].mxu0 %v379
  %v1195 = vpop.f32.mrb[0].mxu0
  %v1196 = vadd.f32 %v1127, %v1195
  %v1197 = vpop.f32.mrb[0].mxu0
  %1198 = vmatprep.mubr.f32.mxu0 0.0
  %1199 = vmatmul.mubr.f32.gmra.mrb[0].mxu0 %v382
  %v1200 = vpop.f32.mrb[0].mxu0
  %v1201 = vadd.f32 %v1127, %v1200
  %v1202 = vpop.f32.mrb[0].mxu0
  %1203 = vmatprep.mubr.f32.mxu0 0.0
  %1204 = vmatmul.mubr.f32.gmra.mrb[0].mxu0 %v385
  %v1205 = vpop.f32.mrb[0].mxu0
  %v1206 = vadd.f32 %v1127, %v1205
  %v1207 = vpop.f32.mrb[0].mxu0
  %1208 = vmatprep.mubr.f32.mxu0 0.0
  %1209 = vmatmul.mubr.f32.gmra.mrb[0].mxu0 %v388
  %v1210 = vpop.f32.mrb[0].mxu0
  %v1211 = vadd.f32 %v1127, %v1210
  %v1212 = vpop.f32.mrb[0].mxu0
  %1213 = vmatprep.mubr.f32.mxu0 0.0
  %1214 = vmatmul.mubr.f32.gmra.mrb[0].mxu0 %v391
  %v1215 = vpop.f32.mrb[0].mxu0
  %v1216 = vadd.f32 %v1127, %v1215
  %v1217 = vpop.f32.mrb[0].mxu0
  %1218 = vmatprep.mubr.f32.mxu0 0.0
  %1219 = vmatmul.mubr.f32.gmra.mrb[0].mxu0 %v394
  %v1220 = vpop.f32.mrb[0].mxu0
  %v1221 = vadd.f32 %v1127, %v1220
  %v1222 = vpop.f32.mrb[0].mxu0
  %1223 = vmatprep.mubr.f32.mxu0 0.0
  %1224 = vmatmul.mubr.f32.gmra.mrb[0].mxu0 %v397
  %v1225 = vpop.f32.mrb[0].mxu0
  %v1226 = vadd.f32 %v1127, %v1225
  %v1227 = vpop.f32.mrb[0].mxu0
  %1228 = vmatprep.mubr.f32.mxu0 0.0
  %1229 = vmatmul.mubr.f32.gmra.mrb[0].mxu0 %v400
  %v1230 = vpop.f32.mrb[0].mxu0
  %v1231 = vadd.f32 %v1127, %v1230
  %v1232 = vpop.f32.mrb[0].mxu0
  %1233 = vdwg.mxu0
  %s1234 = scalar_lea.vmem %s2, 160
  %v1235 = vld [vmem:[%s1234] sm:$0xff]
  %v1236 = vld [vmem:[%s1234 + $0x8] sm:$0xff]
  %v1237 = vld [vmem:[%s1234 + $0x10] sm:$0xff]
  %v1238 = vld [vmem:[%s1234 + $0x18] sm:$0xff]
  %s1239 = scalar_lea.vmem %s3, 5
  %v1240 = vld [vmem:[%s1239] sm:$0x1]
  %v1242 = vlaneseq
  %v1243 = vshrl.u32 %v1242, 7
  %v1244 = vsub.s32 0, %v1243
  %v1245 = vrot.slane %v1240, %v1244
  %1247 = vmatprep.subr.mxu0 0.0
  %1248 = vmatpush1.msra.mxu0 %v1235
  %1249 = vmatprep.subr.mxu0 0.0
  %1250 = vmatpush1.msra.mxu0 %v1236
  %1251 = vmatprep.subr.mxu0 0.0
  %1252 = vmatpush1.msra.mxu0 %v1237
  %1253 = vmatprep.subr.mxu0 0.0
  %1254 = vmatpush1.msra.mxu0 %v1238
  %1255 = vmatprep.subr.mxu0 0.0
  %1256 = vmatpush1.msra.mxu0 0.0
  %1257 = vmatprep.subr.mxu0 0.0
  %1258 = vmatpush1.msra.mxu0 0.0
  %1259 = vmatprep.subr.mxu0 0.0
  %1260 = vmatpush1.msra.mxu0 0.0
  %1261 = vmatprep.subr.mxu0 0.0
  %1262 = vmatpush1.msra.mxu0 0.0
  %1263 = vmatprep.subr.mxu0 0.0
  %1264 = vmatpush1.msra.mxu0 0.0
  %1265 = vmatprep.subr.mxu0 0.0
  %1266 = vmatpush1.msra.mxu0 0.0
  %1267 = vmatprep.subr.mxu0 0.0
  %1268 = vmatpush1.msra.mxu0 0.0
  %1269 = vmatprep.subr.mxu0 0.0
  %1270 = vmatpush1.msra.mxu0 0.0
  %1271 = vmatprep.subr.mxu0 0.0
  %1272 = vmatpush1.msra.mxu0 0.0
  %1273 = vmatprep.subr.mxu0 0.0
  %1274 = vmatpush1.msra.mxu0 0.0
  %1275 = vmatprep.subr.mxu0 0.0
  %1276 = vmatpush1.msra.mxu0 0.0
  %1277 = vmatprep.subr.mxu0 0.0
  %1278 = vmatpush1.msra.mxu0 0.0
  %1279 = vmatprep.subr.mxu0 0.0
  %1280 = vmatpush1.msra.mxu0 0.0
  %1281 = vmatprep.subr.mxu0 0.0
  %1282 = vmatpush1.msra.mxu0 0.0
  %1283 = vmatprep.subr.mxu0 0.0
  %1284 = vmatpush1.msra.mxu0 0.0
  %1285 = vmatprep.subr.mxu0 0.0
  %1286 = vmatpush1.msra.mxu0 0.0
  %1287 = vmatprep.subr.mxu0 0.0
  %1288 = vmatpush1.msra.mxu0 0.0
  %1289 = vmatprep.subr.mxu0 0.0
  %1290 = vmatpush1.msra.mxu0 0.0
  %1291 = vmatprep.subr.mxu0 0.0
  %1292 = vmatpush1.msra.mxu0 0.0
  %1293 = vmatprep.subr.mxu0 0.0
  %1294 = vmatpush1.msra.mxu0 0.0
  %1295 = vmatprep.subr.mxu0 0.0
  %1296 = vmatpush1.msra.mxu0 0.0
  %1297 = vmatprep.subr.mxu0 0.0
  %1298 = vmatpush1.msra.mxu0 0.0
  %1299 = vmatprep.subr.mxu0 0.0
  %1300 = vmatpush1.msra.mxu0 0.0
  %1301 = vmatprep.subr.mxu0 0.0
  %1302 = vmatpush1.msra.mxu0 0.0
  %1303 = vmatprep.subr.mxu0 0.0
  %1304 = vmatpush1.msra.mxu0 0.0
  %1305 = vmatprep.subr.mxu0 0.0
  %1306 = vmatpush1.msra.mxu0 0.0
  %1307 = vmatprep.subr.mxu0 0.0
  %1308 = vmatpush1.msra.mxu0 0.0
  %1309 = vmatprep.subr.mxu0 0.0
  %1310 = vmatpush1.msra.mxu0 0.0
  %1311 = vmatprep.mubr.f32.mxu0 0.0
  %1312 = vmatmul.mubr.f32.gmra.mrb[0].mxu0 %v379
  %v1313 = vpop.f32.mrb[0].mxu0
  %v1314 = vadd.f32 %v1245, %v1313
  %v1315 = vpop.f32.mrb[0].mxu0
  %1316 = vmatprep.mubr.f32.mxu0 0.0
  %1317 = vmatmul.mubr.f32.gmra.mrb[0].mxu0 %v382
  %v1318 = vpop.f32.mrb[0].mxu0
  %v1319 = vadd.f32 %v1245, %v1318
  %v1320 = vpop.f32.mrb[0].mxu0
  %1321 = vmatprep.mubr.f32.mxu0 0.0
  %1322 = vmatmul.mubr.f32.gmra.mrb[0].mxu0 %v385
  %v1323 = vpop.f32.mrb[0].mxu0
  %v1324 = vadd.f32 %v1245, %v1323
  %v1325 = vpop.f32.mrb[0].mxu0
  %1326 = vmatprep.mubr.f32.mxu0 0.0
  %1327 = vmatmul.mubr.f32.gmra.mrb[0].mxu0 %v388
  %v1328 = vpop.f32.mrb[0].mxu0
  %v1329 = vadd.f32 %v1245, %v1328
  %v1330 = vpop.f32.mrb[0].mxu0
  %1331 = vmatprep.mubr.f32.mxu0 0.0
  %1332 = vmatmul.mubr.f32.gmra.mrb[0].mxu0 %v391
  %v1333 = vpop.f32.mrb[0].mxu0
  %v1334 = vadd.f32 %v1245, %v1333
  %v1335 = vpop.f32.mrb[0].mxu0
  %1336 = vmatprep.mubr.f32.mxu0 0.0
  %1337 = vmatmul.mubr.f32.gmra.mrb[0].mxu0 %v394
  %v1338 = vpop.f32.mrb[0].mxu0
  %v1339 = vadd.f32 %v1245, %v1338
  %v1340 = vpop.f32.mrb[0].mxu0
  %1341 = vmatprep.mubr.f32.mxu0 0.0
  %1342 = vmatmul.mubr.f32.gmra.mrb[0].mxu0 %v397
  %v1343 = vpop.f32.mrb[0].mxu0
  %v1344 = vadd.f32 %v1245, %v1343
  %v1345 = vpop.f32.mrb[0].mxu0
  %1346 = vmatprep.mubr.f32.mxu0 0.0
  %1347 = vmatmul.mubr.f32.gmra.mrb[0].mxu0 %v400
  %v1348 = vpop.f32.mrb[0].mxu0
  %v1349 = vadd.f32 %v1245, %v1348
  %v1350 = vpop.f32.mrb[0].mxu0
  %1351 = vdwg.mxu0
  %s1352 = scalar_lea.vmem %s2, 288
  %v1353 = vld [vmem:[%s1352] sm:$0xff]
  %v1354 = vld [vmem:[%s1352 + $0x8] sm:$0xff]
  %v1355 = vld [vmem:[%s1352 + $0x10] sm:$0xff]
  %v1356 = vld [vmem:[%s1352 + $0x18] sm:$0xff]
  %s1357 = scalar_lea.vmem %s3, 9
  %v1358 = vld [vmem:[%s1357] sm:$0x1]
  %v1360 = vlaneseq
  %v1361 = vshrl.u32 %v1360, 7
  %v1362 = vsub.s32 0, %v1361
  %v1363 = vrot.slane %v1358, %v1362
  %1365 = vmatprep.subr.mxu0 0.0
  %1366 = vmatpush1.msra.mxu0 %v1353
  %1367 = vmatprep.subr.mxu0 0.0
  %1368 = vmatpush1.msra.mxu0 %v1354
  %1369 = vmatprep.subr.mxu0 0.0
  %1370 = vmatpush1.msra.mxu0 %v1355
  %1371 = vmatprep.subr.mxu0 0.0
  %1372 = vmatpush1.msra.mxu0 %v1356
  %1373 = vmatprep.subr.mxu0 0.0
  %1374 = vmatpush1.msra.mxu0 0.0
  %1375 = vmatprep.subr.mxu0 0.0
  %1376 = vmatpush1.msra.mxu0 0.0
  %1377 = vmatprep.subr.mxu0 0.0
  %1378 = vmatpush1.msra.mxu0 0.0
  %1379 = vmatprep.subr.mxu0 0.0
  %1380 = vmatpush1.msra.mxu0 0.0
  %1381 = vmatprep.subr.mxu0 0.0
  %1382 = vmatpush1.msra.mxu0 0.0
  %1383 = vmatprep.subr.mxu0 0.0
  %1384 = vmatpush1.msra.mxu0 0.0
  %1385 = vmatprep.subr.mxu0 0.0
  %1386 = vmatpush1.msra.mxu0 0.0
  %1387 = vmatprep.subr.mxu0 0.0
  %1388 = vmatpush1.msra.mxu0 0.0
  %1389 = vmatprep.subr.mxu0 0.0
  %1390 = vmatpush1.msra.mxu0 0.0
  %1391 = vmatprep.subr.mxu0 0.0
  %1392 = vmatpush1.msra.mxu0 0.0
  %1393 = vmatprep.subr.mxu0 0.0
  %1394 = vmatpush1.msra.mxu0 0.0
  %1395 = vmatprep.subr.mxu0 0.0
  %1396 = vmatpush1.msra.mxu0 0.0
  %1397 = vmatprep.subr.mxu0 0.0
  %1398 = vmatpush1.msra.mxu0 0.0
  %1399 = vmatprep.subr.mxu0 0.0
  %1400 = vmatpush1.msra.mxu0 0.0
  %1401 = vmatprep.subr.mxu0 0.0
  %1402 = vmatpush1.msra.mxu0 0.0
  %1403 = vmatprep.subr.mxu0 0.0
  %1404 = vmatpush1.msra.mxu0 0.0
  %1405 = vmatprep.subr.mxu0 0.0
  %1406 = vmatpush1.msra.mxu0 0.0
  %1407 = vmatprep.subr.mxu0 0.0
  %1408 = vmatpush1.msra.mxu0 0.0
  %1409 = vmatprep.subr.mxu0 0.0
  %1410 = vmatpush1.msra.mxu0 0.0
  %1411 = vmatprep.subr.mxu0 0.0
  %1412 = vmatpush1.msra.mxu0 0.0
  %1413 = vmatprep.subr.mxu0 0.0
  %1414 = vmatpush1.msra.mxu0 0.0
  %1415 = vmatprep.subr.mxu0 0.0
  %1416 = vmatpush1.msra.mxu0 0.0
  %1417 = vmatprep.subr.mxu0 0.0
  %1418 = vmatpush1.msra.mxu0 0.0
  %1419 = vmatprep.subr.mxu0 0.0
  %1420 = vmatpush1.msra.mxu0 0.0
  %1421 = vmatprep.subr.mxu0 0.0
  %1422 = vmatpush1.msra.mxu0 0.0
  %1423 = vmatprep.subr.mxu0 0.0
  %1424 = vmatpush1.msra.mxu0 0.0
  %1425 = vmatprep.subr.mxu0 0.0
  %1426 = vmatpush1.msra.mxu0 0.0
  %1427 = vmatprep.subr.mxu0 0.0
  %1428 = vmatpush1.msra.mxu0 0.0
  %1429 = vmatprep.mubr.f32.mxu0 0.0
  %1430 = vmatmul.mubr.f32.gmra.mrb[0].mxu0 %v379
  %v1431 = vpop.f32.mrb[0].mxu0
  %v1432 = vadd.f32 %v1363, %v1431
  %v1433 = vpop.f32.mrb[0].mxu0
  %1434 = vmatprep.mubr.f32.mxu0 0.0
  %1435 = vmatmul.mubr.f32.gmra.mrb[0].mxu0 %v382
  %v1436 = vpop.f32.mrb[0].mxu0
  %v1437 = vadd.f32 %v1363, %v1436
  %v1438 = vpop.f32.mrb[0].mxu0
  %1439 = vmatprep.mubr.f32.mxu0 0.0
  %1440 = vmatmul.mubr.f32.gmra.mrb[0].mxu0 %v385
  %v1441 = vpop.f32.mrb[0].mxu0
  %v1442 = vadd.f32 %v1363, %v1441
  %v1443 = vpop.f32.mrb[0].mxu0
  %1444 = vmatprep.mubr.f32.mxu0 0.0
  %1445 = vmatmul.mubr.f32.gmra.mrb[0].mxu0 %v388
  %v1446 = vpop.f32.mrb[0].mxu0
  %v1447 = vadd.f32 %v1363, %v1446
  %v1448 = vpop.f32.mrb[0].mxu0
  %1449 = vmatprep.mubr.f32.mxu0 0.0
  %1450 = vmatmul.mubr.f32.gmra.mrb[0].mxu0 %v391
  %v1451 = vpop.f32.mrb[0].mxu0
  %v1452 = vadd.f32 %v1363, %v1451
  %v1453 = vpop.f32.mrb[0].mxu0
  %1454 = vmatprep.mubr.f32.mxu0 0.0
  %1455 = vmatmul.mubr.f32.gmra.mrb[0].mxu0 %v394
  %v1456 = vpop.f32.mrb[0].mxu0
  %v1457 = vadd.f32 %v1363, %v1456
  %v1458 = vpop.f32.mrb[0].mxu0
  %1459 = vmatprep.mubr.f32.mxu0 0.0
  %1460 = vmatmul.mubr.f32.gmra.mrb[0].mxu0 %v397
  %v1461 = vpop.f32.mrb[0].mxu0
  %v1462 = vadd.f32 %v1363, %v1461
  %v1463 = vpop.f32.mrb[0].mxu0
  %1464 = vmatprep.mubr.f32.mxu0 0.0
  %1465 = vmatmul.mubr.f32.gmra.mrb[0].mxu0 %v400
  %v1466 = vpop.f32.mrb[0].mxu0
  %v1467 = vadd.f32 %v1363, %v1466
  %v1468 = vpop.f32.mrb[0].mxu0
  %1469 = vdwg.mxu0
  %v1471 = vsel %vm743, %v1196, 0
  %v1474 = vsel %vm743, %v1201, 0
  %v1477 = vsel %vm743, %v1206, 0
  %v1480 = vsel %vm743, %v1211, 0
  %v1483 = vsel %vm743, %v1216, 0
  %v1486 = vsel %vm743, %v1221, 0
  %v1489 = vsel %vm743, %v1226, 0
  %v1492 = vsel %vm743, %v1231, 0
  %v1495 = vsel %vm743, %v1314, 0
  %v1498 = vsel %vm743, %v1319, 0
  %v1501 = vsel %vm743, %v1324, 0
  %v1504 = vsel %vm743, %v1329, 0
  %v1507 = vsel %vm743, %v1334, 0
  %v1510 = vsel %vm743, %v1339, 0
  %v1513 = vsel %vm743, %v1344, 0
  %v1516 = vsel %vm743, %v1349, 0
  %1518 = vmatprep.subr.mxu0 0.0
  %1519 = vmatpush1.xpose.msra.mxu0 %v1495
  %1520 = vmatprep.subr.mxu0 0.0
  %1521 = vmatpush1.xpose.msra.mxu0 %v1498
  %1522 = vmatprep.subr.mxu0 0.0
  %1523 = vmatpush1.xpose.msra.mxu0 %v1501
  %1524 = vmatprep.subr.mxu0 0.0
  %1525 = vmatpush1.xpose.msra.mxu0 %v1504
  %1526 = vmatprep.subr.mxu0 0.0
  %1527 = vmatpush1.xpose.msra.mxu0 %v1507
  %1528 = vmatprep.subr.mxu0 0.0
  %1529 = vmatpush1.xpose.msra.mxu0 %v1510
  %1530 = vmatprep.subr.mxu0 0.0
  %1531 = vmatpush1.xpose.msra.mxu0 %v1513
  %1532 = vmatprep.subr.mxu0 0.0
  %1533 = vmatpush1.xpose.msra.mxu0 %v1516
  %1534 = vmatprep.subr.mxu0 0.0
  %1535 = vmatpush1.xpose.msra.mxu0 0.0
  %1536 = vmatprep.subr.mxu0 0.0
  %1537 = vmatpush1.xpose.msra.mxu0 0.0
  %1538 = vmatprep.subr.mxu0 0.0
  %1539 = vmatpush1.xpose.msra.mxu0 0.0
  %1540 = vmatprep.subr.mxu0 0.0
  %1541 = vmatpush1.xpose.msra.mxu0 0.0
  %1542 = vmatprep.subr.mxu0 0.0
  %1543 = vmatpush1.xpose.msra.mxu0 0.0
  %1544 = vmatprep.subr.mxu0 0.0
  %1545 = vmatpush1.xpose.msra.mxu0 0.0
  %1546 = vmatprep.subr.mxu0 0.0
  %1547 = vmatpush1.xpose.msra.mxu0 0.0
  %1548 = vmatprep.subr.mxu0 0.0
  %1549 = vmatpush1.xpose.msra.mxu0 0.0
  %1550 = vmatprep.subr.mxu0 0.0
  %1551 = vmatpush1.xpose.msra.mxu0 0.0
  %1552 = vmatprep.subr.mxu0 0.0
  %1553 = vmatpush1.xpose.msra.mxu0 0.0
  %1554 = vmatprep.subr.mxu0 0.0
  %1555 = vmatpush1.xpose.msra.mxu0 0.0
  %1556 = vmatprep.subr.mxu0 0.0
  %1557 = vmatpush1.xpose.msra.mxu0 0.0
  %1558 = vmatprep.subr.mxu0 0.0
  %1559 = vmatpush1.xpose.msra.mxu0 0.0
  %1560 = vmatprep.subr.mxu0 0.0
  %1561 = vmatpush1.xpose.msra.mxu0 0.0
  %1562 = vmatprep.subr.mxu0 0.0
  %1563 = vmatpush1.xpose.msra.mxu0 0.0
  %1564 = vmatprep.subr.mxu0 0.0
  %1565 = vmatpush1.xpose.msra.mxu0 0.0
  %1566 = vmatprep.subr.mxu0 0.0
  %1567 = vmatpush1.xpose.msra.mxu0 0.0
  %1568 = vmatprep.subr.mxu0 0.0
  %1569 = vmatpush1.xpose.msra.mxu0 0.0
  %1570 = vmatprep.subr.mxu0 0.0
  %1571 = vmatpush1.xpose.msra.mxu0 0.0
  %1572 = vmatprep.subr.mxu0 0.0
  %1573 = vmatpush1.xpose.msra.mxu0 0.0
  %1574 = vmatprep.subr.mxu0 0.0
  %1575 = vmatpush1.xpose.msra.mxu0 0.0
  %1576 = vmatprep.subr.mxu0 0.0
  %1577 = vmatpush1.xpose.msra.mxu0 0.0
  %1578 = vmatprep.subr.mxu0 0.0
  %1579 = vmatpush1.xpose.msra.mxu0 0.0
  %1580 = vmatprep.subr.mxu0 0.0
  %1581 = vmatpush1.xpose.msra.mxu0 0.0
  %1582 = vmatprep.mubr.f32.mxu0 0.0
  %1583 = vmatmul.mubr.f32.gmra.mrb[0].mxu0 %v1471
  %v1584 = vpop.f32.mrb[0].mxu0
  %v1585 = vadd.f32 %v347, %v1584
  %v1586 = vpop.f32.mrb[0].mxu0
  %1587 = vmatprep.mubr.f32.mxu0 0.0
  %1588 = vmatmul.mubr.f32.gmra.mrb[0].mxu0 %v1474
  %v1589 = vpop.f32.mrb[0].mxu0
  %v1590 = vadd.f32 %v348, %v1589
  %v1591 = vpop.f32.mrb[0].mxu0
  %1592 = vmatprep.mubr.f32.mxu0 0.0
  %1593 = vmatmul.mubr.f32.gmra.mrb[0].mxu0 %v1477
  %v1594 = vpop.f32.mrb[0].mxu0
  %v1595 = vadd.f32 %v349, %v1594
  %v1596 = vpop.f32.mrb[0].mxu0
  %1597 = vmatprep.mubr.f32.mxu0 0.0
  %1598 = vmatmul.mubr.f32.gmra.mrb[0].mxu0 %v1480
  %v1599 = vpop.f32.mrb[0].mxu0
  %v1600 = vadd.f32 %v350, %v1599
  %v1601 = vpop.f32.mrb[0].mxu0
  %1602 = vmatprep.mubr.f32.mxu0 0.0
  %1603 = vmatmul.mubr.f32.gmra.mrb[0].mxu0 %v1483
  %v1604 = vpop.f32.mrb[0].mxu0
  %v1605 = vadd.f32 %v351, %v1604
  %v1606 = vpop.f32.mrb[0].mxu0
  %1607 = vmatprep.mubr.f32.mxu0 0.0
  %1608 = vmatmul.mubr.f32.gmra.mrb[0].mxu0 %v1486
  %v1609 = vpop.f32.mrb[0].mxu0
  %v1610 = vadd.f32 %v352, %v1609
  %v1611 = vpop.f32.mrb[0].mxu0
  %1612 = vmatprep.mubr.f32.mxu0 0.0
  %1613 = vmatmul.mubr.f32.gmra.mrb[0].mxu0 %v1489
  %v1614 = vpop.f32.mrb[0].mxu0
  %v1615 = vadd.f32 %v353, %v1614
  %v1616 = vpop.f32.mrb[0].mxu0
  %1617 = vmatprep.mubr.f32.mxu0 0.0
  %1618 = vmatmul.mubr.f32.gmra.mrb[0].mxu0 %v1492
  %v1619 = vpop.f32.mrb[0].mxu0
  %v1620 = vadd.f32 %v354, %v1619
  %v1621 = vpop.f32.mrb[0].mxu0
  %1622 = vdwg.mxu0
  %v1623 = vsel %vm897, %v1585, -inf
  %1624 = vmax.xlane.f32.xlu0 %v1623
  %v1625 = vpop.xlane.xlu0 %1624
  %v1626 = vsel %vm897, %v1590, -inf
  %1627 = vmax.xlane.f32.xlu0 %v1626
  %v1628 = vpop.xlane.xlu0 %1627
  %v1629 = vsel %vm897, %v1595, -inf
  %1630 = vmax.xlane.f32.xlu0 %v1629
  %v1631 = vpop.xlane.xlu0 %1630
  %v1632 = vsel %vm897, %v1600, -inf
  %1633 = vmax.xlane.f32.xlu0 %v1632
  %v1634 = vpop.xlane.xlu0 %1633
  %v1635 = vsel %vm897, %v1605, -inf
  %1636 = vmax.xlane.f32.xlu0 %v1635
  %v1637 = vpop.xlane.xlu0 %1636
  %v1638 = vsel %vm897, %v1610, -inf
  %1639 = vmax.xlane.f32.xlu0 %v1638
  %v1640 = vpop.xlane.xlu0 %1639
  %v1641 = vsel %vm897, %v1615, -inf
  %1642 = vmax.xlane.f32.xlu0 %v1641
  %v1643 = vpop.xlane.xlu0 %1642
  %v1644 = vsel %vm897, %v1620, -inf
  %1645 = vmax.xlane.f32.xlu0 %v1644
  %v1646 = vpop.xlane.xlu0 %1645
  %v1647 = vsub.f32 %v1585, %v1625
  %v1648 = vsub.f32 %v1590, %v1628
  %v1649 = vsub.f32 %v1595, %v1631
  %v1650 = vsub.f32 %v1600, %v1634
  %v1651 = vsub.f32 %v1605, %v1637
  %v1652 = vsub.f32 %v1610, %v1640
  %v1653 = vsub.f32 %v1615, %v1643
  %v1654 = vsub.f32 %v1620, %v1646
  %v1655 = vmul.f32 %v1647, 1.442695
  %v1656 = vpow.pop %v1655
  %v1657 = vmul.f32 %v1648, 1.442695
  %v1658 = vpow.pop %v1657
  %v1659 = vmul.f32 %v1649, 1.442695
  %v1660 = vpow.pop %v1659
  %v1661 = vmul.f32 %v1650, 1.442695
  %v1662 = vpow.pop %v1661
  %v1663 = vmul.f32 %v1651, 1.442695
  %v1664 = vpow.pop %v1663
  %v1665 = vmul.f32 %v1652, 1.442695
  %v1666 = vpow.pop %v1665
  %v1667 = vmul.f32 %v1653, 1.442695
  %v1668 = vpow.pop %v1667
  %v1669 = vmul.f32 %v1654, 1.442695
  %v1670 = vpow.pop %v1669
  %v1671 = vsel %vm897, %v1656, 0.0
  %1672 = vadd.xlane.f32.xlu0 %v1671
  %v1673 = vpop.xlane.xlu0 %1672
  %v1674 = vsel %vm897, %v1658, 0.0
  %1675 = vadd.xlane.f32.xlu0 %v1674
  %v1676 = vpop.xlane.xlu0 %1675
  %v1677 = vsel %vm897, %v1660, 0.0
  %1678 = vadd.xlane.f32.xlu0 %v1677
  %v1679 = vpop.xlane.xlu0 %1678
  %v1680 = vsel %vm897, %v1662, 0.0
  %1681 = vadd.xlane.f32.xlu0 %v1680
  %v1682 = vpop.xlane.xlu0 %1681
  %v1683 = vsel %vm897, %v1664, 0.0
  %1684 = vadd.xlane.f32.xlu0 %v1683
  %v1685 = vpop.xlane.xlu0 %1684
  %v1686 = vsel %vm897, %v1666, 0.0
  %1687 = vadd.xlane.f32.xlu0 %v1686
  %v1688 = vpop.xlane.xlu0 %1687
  %v1689 = vsel %vm897, %v1668, 0.0
  %1690 = vadd.xlane.f32.xlu0 %v1689
  %v1691 = vpop.xlane.xlu0 %1690
  %v1692 = vsel %vm897, %v1670, 0.0
  %1693 = vadd.xlane.f32.xlu0 %v1692
  %v1694 = vpop.xlane.xlu0 %1693
  %v1695 = vrcp.pop %v1673
  %v1696 = vmul.f32 %v1656, %v1695
  %v1697 = vrcp.pop %v1676
  %v1698 = vmul.f32 %v1658, %v1697
  %v1699 = vrcp.pop %v1679
  %v1700 = vmul.f32 %v1660, %v1699
  %v1701 = vrcp.pop %v1682
  %v1702 = vmul.f32 %v1662, %v1701
  %v1703 = vrcp.pop %v1685
  %v1704 = vmul.f32 %v1664, %v1703
  %v1705 = vrcp.pop %v1688
  %v1706 = vmul.f32 %v1666, %v1705
  %v1707 = vrcp.pop %v1691
  %v1708 = vmul.f32 %v1668, %v1707
  %v1709 = vrcp.pop %v1694
  %v1710 = vmul.f32 %v1670, %v1709
  %v1712 = vsel %vm897, %v1696, 0
  %v1715 = vsel %vm897, %v1698, 0
  %v1718 = vsel %vm897, %v1700, 0
  %v1721 = vsel %vm897, %v1702, 0
  %v1724 = vsel %vm897, %v1704, 0
  %v1727 = vsel %vm897, %v1706, 0
  %v1730 = vsel %vm897, %v1708, 0
  %v1733 = vsel %vm897, %v1710, 0
  %1735 = vmatprep.subr.mxu0 0.0
  %1736 = vmatpush1.msra.mxu0 %v1432
  %1737 = vmatprep.subr.mxu0 0.0
  %1738 = vmatpush1.msra.mxu0 %v1437
  %1739 = vmatprep.subr.mxu0 0.0
  %1740 = vmatpush1.msra.mxu0 %v1442
  %1741 = vmatprep.subr.mxu0 0.0
  %1742 = vmatpush1.msra.mxu0 %v1447
  %1743 = vmatprep.subr.mxu0 0.0
  %1744 = vmatpush1.msra.mxu0 %v1452
  %1745 = vmatprep.subr.mxu0 0.0
  %1746 = vmatpush1.msra.mxu0 %v1457
  %1747 = vmatprep.subr.mxu0 0.0
  %1748 = vmatpush1.msra.mxu0 %v1462
  %1749 = vmatprep.subr.mxu0 0.0
  %1750 = vmatpush1.msra.mxu0 %v1467
  %1751 = vmatprep.subr.mxu0 0.0
  %1752 = vmatpush1.msra.mxu0 0.0
  %1753 = vmatprep.subr.mxu0 0.0
  %1754 = vmatpush1.msra.mxu0 0.0
  %1755 = vmatprep.subr.mxu0 0.0
  %1756 = vmatpush1.msra.mxu0 0.0
  %1757 = vmatprep.subr.mxu0 0.0
  %1758 = vmatpush1.msra.mxu0 0.0
  %1759 = vmatprep.subr.mxu0 0.0
  %1760 = vmatpush1.msra.mxu0 0.0
  %1761 = vmatprep.subr.mxu0 0.0
  %1762 = vmatpush1.msra.mxu0 0.0
  %1763 = vmatprep.subr.mxu0 0.0
  %1764 = vmatpush1.msra.mxu0 0.0
  %1765 = vmatprep.subr.mxu0 0.0
  %1766 = vmatpush1.msra.mxu0 0.0
  %1767 = vmatprep.subr.mxu0 0.0
  %1768 = vmatpush1.msra.mxu0 0.0
  %1769 = vmatprep.subr.mxu0 0.0
  %1770 = vmatpush1.msra.mxu0 0.0
  %1771 = vmatprep.subr.mxu0 0.0
  %1772 = vmatpush1.msra.mxu0 0.0
  %1773 = vmatprep.subr.mxu0 0.0
  %1774 = vmatpush1.msra.mxu0 0.0
  %1775 = vmatprep.subr.mxu0 0.0
  %1776 = vmatpush1.msra.mxu0 0.0
  %1777 = vmatprep.subr.mxu0 0.0
  %1778 = vmatpush1.msra.mxu0 0.0
  %1779 = vmatprep.subr.mxu0 0.0
  %1780 = vmatpush1.msra.mxu0 0.0
  %1781 = vmatprep.subr.mxu0 0.0
  %1782 = vmatpush1.msra.mxu0 0.0
  %1783 = vmatprep.subr.mxu0 0.0
  %1784 = vmatpush1.msra.mxu0 0.0
  %1785 = vmatprep.subr.mxu0 0.0
  %1786 = vmatpush1.msra.mxu0 0.0
  %1787 = vmatprep.subr.mxu0 0.0
  %1788 = vmatpush1.msra.mxu0 0.0
  %1789 = vmatprep.subr.mxu0 0.0
  %1790 = vmatpush1.msra.mxu0 0.0
  %1791 = vmatprep.subr.mxu0 0.0
  %1792 = vmatpush1.msra.mxu0 0.0
  %1793 = vmatprep.subr.mxu0 0.0
  %1794 = vmatpush1.msra.mxu0 0.0
  %1795 = vmatprep.subr.mxu0 0.0
  %1796 = vmatpush1.msra.mxu0 0.0
  %1797 = vmatprep.subr.mxu0 0.0
  %1798 = vmatpush1.msra.mxu0 0.0
  %1799 = vmatprep.mubr.f32.mxu0 0.0
  %1800 = vmatmul.mubr.f32.gmra.mrb[0].mxu0 %v1712
  %v1801 = vpop.f32.mrb[0].mxu0
  %v1802 = vadd.f32 0.0, %v1801
  %v1803 = vpop.f32.mrb[0].mxu0
  %1804 = vmatprep.mubr.f32.mxu0 0.0
  %1805 = vmatmul.mubr.f32.gmra.mrb[0].mxu0 %v1715
  %v1806 = vpop.f32.mrb[0].mxu0
  %v1807 = vadd.f32 0.0, %v1806
  %v1808 = vpop.f32.mrb[0].mxu0
  %1809 = vmatprep.mubr.f32.mxu0 0.0
  %1810 = vmatmul.mubr.f32.gmra.mrb[0].mxu0 %v1718
  %v1811 = vpop.f32.mrb[0].mxu0
  %v1812 = vadd.f32 0.0, %v1811
  %v1813 = vpop.f32.mrb[0].mxu0
  %1814 = vmatprep.mubr.f32.mxu0 0.0
  %1815 = vmatmul.mubr.f32.gmra.mrb[0].mxu0 %v1721
  %v1816 = vpop.f32.mrb[0].mxu0
  %v1817 = vadd.f32 0.0, %v1816
  %v1818 = vpop.f32.mrb[0].mxu0
  %1819 = vmatprep.mubr.f32.mxu0 0.0
  %1820 = vmatmul.mubr.f32.gmra.mrb[0].mxu0 %v1724
  %v1821 = vpop.f32.mrb[0].mxu0
  %v1822 = vadd.f32 0.0, %v1821
  %v1823 = vpop.f32.mrb[0].mxu0
  %1824 = vmatprep.mubr.f32.mxu0 0.0
  %1825 = vmatmul.mubr.f32.gmra.mrb[0].mxu0 %v1727
  %v1826 = vpop.f32.mrb[0].mxu0
  %v1827 = vadd.f32 0.0, %v1826
  %v1828 = vpop.f32.mrb[0].mxu0
  %1829 = vmatprep.mubr.f32.mxu0 0.0
  %1830 = vmatmul.mubr.f32.gmra.mrb[0].mxu0 %v1730
  %v1831 = vpop.f32.mrb[0].mxu0
  %v1832 = vadd.f32 0.0, %v1831
  %v1833 = vpop.f32.mrb[0].mxu0
  %1834 = vmatprep.mubr.f32.mxu0 0.0
  %1835 = vmatmul.mubr.f32.gmra.mrb[0].mxu0 %v1733
  %v1836 = vpop.f32.mrb[0].mxu0
  %v1837 = vadd.f32 0.0, %v1836
  %v1838 = vpop.f32.mrb[0].mxu0
  %1839 = vdwg.mxu0
  %s1840 = scalar_lea.vmem %s4, 8
  %v1841 = vld [vmem:[%s1840] sm:$0xff]
  %v1843 = vsel %vm743, %v1802, 0
  %v1846 = vsel %vm743, %v1807, 0
  %v1849 = vsel %vm743, %v1812, 0
  %v1852 = vsel %vm743, %v1817, 0
  %v1855 = vsel %vm743, %v1822, 0
  %v1858 = vsel %vm743, %v1827, 0
  %v1861 = vsel %vm743, %v1832, 0
  %v1864 = vsel %vm743, %v1837, 0
  %1866 = vmatprep.subr.mxu0 0.0
  %1867 = vmatpush1.msra.mxu0 %v1841
  %1868 = vmatprep.subr.mxu0 0.0
  %1869 = vmatpush1.msra.mxu0 0.0
  %1870 = vmatprep.subr.mxu0 0.0
  %1871 = vmatpush1.msra.mxu0 0.0
  %1872 = vmatprep.subr.mxu0 0.0
  %1873 = vmatpush1.msra.mxu0 0.0
  %1874 = vmatprep.subr.mxu0 0.0
  %1875 = vmatpush1.msra.mxu0 0.0
  %1876 = vmatprep.subr.mxu0 0.0
  %1877 = vmatpush1.msra.mxu0 0.0
  %1878 = vmatprep.subr.mxu0 0.0
  %1879 = vmatpush1.msra.mxu0 0.0
  %1880 = vmatprep.subr.mxu0 0.0
  %1881 = vmatpush1.msra.mxu0 0.0
  %1882 = vmatprep.subr.mxu0 0.0
  %1883 = vmatpush1.msra.mxu0 0.0
  %1884 = vmatprep.subr.mxu0 0.0
  %1885 = vmatpush1.msra.mxu0 0.0
  %1886 = vmatprep.subr.mxu0 0.0
  %1887 = vmatpush1.msra.mxu0 0.0
  %1888 = vmatprep.subr.mxu0 0.0
  %1889 = vmatpush1.msra.mxu0 0.0
  %1890 = vmatprep.subr.mxu0 0.0
  %1891 = vmatpush1.msra.mxu0 0.0
  %1892 = vmatprep.subr.mxu0 0.0
  %1893 = vmatpush1.msra.mxu0 0.0
  %1894 = vmatprep.subr.mxu0 0.0
  %1895 = vmatpush1.msra.mxu0 0.0
  %1896 = vmatprep.subr.mxu0 0.0
  %1897 = vmatpush1.msra.mxu0 0.0
  %1898 = vmatprep.subr.mxu0 0.0
  %1899 = vmatpush1.msra.mxu0 0.0
  %1900 = vmatprep.subr.mxu0 0.0
  %1901 = vmatpush1.msra.mxu0 0.0
  %1902 = vmatprep.subr.mxu0 0.0
  %1903 = vmatpush1.msra.mxu0 0.0
  %1904 = vmatprep.subr.mxu0 0.0
  %1905 = vmatpush1.msra.mxu0 0.0
  %1906 = vmatprep.subr.mxu0 0.0
  %1907 = vmatpush1.msra.mxu0 0.0
  %1908 = vmatprep.subr.mxu0 0.0
  %1909 = vmatpush1.msra.mxu0 0.0
  %1910 = vmatprep.subr.mxu0 0.0
  %1911 = vmatpush1.msra.mxu0 0.0
  %1912 = vmatprep.subr.mxu0 0.0
  %1913 = vmatpush1.msra.mxu0 0.0
  %1914 = vmatprep.subr.mxu0 0.0
  %1915 = vmatpush1.msra.mxu0 0.0
  %1916 = vmatprep.subr.mxu0 0.0
  %1917 = vmatpush1.msra.mxu0 0.0
  %1918 = vmatprep.subr.mxu0 0.0
  %1919 = vmatpush1.msra.mxu0 0.0
  %1920 = vmatprep.subr.mxu0 0.0
  %1921 = vmatpush1.msra.mxu0 0.0
  %1922 = vmatprep.subr.mxu0 0.0
  %1923 = vmatpush1.msra.mxu0 0.0
  %1924 = vmatprep.subr.mxu0 0.0
  %1925 = vmatpush1.msra.mxu0 0.0
  %1926 = vmatprep.subr.mxu0 0.0
  %1927 = vmatpush1.msra.mxu0 0.0
  %1928 = vmatprep.subr.mxu0 0.0
  %1929 = vmatpush1.msra.mxu0 0.0
  %1930 = vmatprep.mubr.f32.mxu0 0.0
  %1931 = vmatmul.mubr.f32.gmra.mrb[0].mxu0 %v1843
  %v1932 = vpop.f32.mrb[0].mxu0
  %v1933 = vadd.f32 0.0, %v1932
  %v1934 = vpop.f32.mrb[0].mxu0
  %1935 = vmatprep.mubr.f32.mxu0 0.0
  %1936 = vmatmul.mubr.f32.gmra.mrb[0].mxu0 %v1846
  %v1937 = vpop.f32.mrb[0].mxu0
  %v1938 = vadd.f32 0.0, %v1937
  %v1939 = vpop.f32.mrb[0].mxu0
  %1940 = vmatprep.mubr.f32.mxu0 0.0
  %1941 = vmatmul.mubr.f32.gmra.mrb[0].mxu0 %v1849
  %v1942 = vpop.f32.mrb[0].mxu0
  %v1943 = vadd.f32 0.0, %v1942
  %v1944 = vpop.f32.mrb[0].mxu0
  %1945 = vmatprep.mubr.f32.mxu0 0.0
  %1946 = vmatmul.mubr.f32.gmra.mrb[0].mxu0 %v1852
  %v1947 = vpop.f32.mrb[0].mxu0
  %v1948 = vadd.f32 0.0, %v1947
  %v1949 = vpop.f32.mrb[0].mxu0
  %1950 = vmatprep.mubr.f32.mxu0 0.0
  %1951 = vmatmul.mubr.f32.gmra.mrb[0].mxu0 %v1855
  %v1952 = vpop.f32.mrb[0].mxu0
  %v1953 = vadd.f32 0.0, %v1952
  %v1954 = vpop.f32.mrb[0].mxu0
  %1955 = vmatprep.mubr.f32.mxu0 0.0
  %1956 = vmatmul.mubr.f32.gmra.mrb[0].mxu0 %v1858
  %v1957 = vpop.f32.mrb[0].mxu0
  %v1958 = vadd.f32 0.0, %v1957
  %v1959 = vpop.f32.mrb[0].mxu0
  %1960 = vmatprep.mubr.f32.mxu0 0.0
  %1961 = vmatmul.mubr.f32.gmra.mrb[0].mxu0 %v1861
  %v1962 = vpop.f32.mrb[0].mxu0
  %v1963 = vadd.f32 0.0, %v1962
  %v1964 = vpop.f32.mrb[0].mxu0
  %1965 = vmatprep.mubr.f32.mxu0 0.0
  %1966 = vmatmul.mubr.f32.gmra.mrb[0].mxu0 %v1864
  %v1967 = vpop.f32.mrb[0].mxu0
  %v1968 = vadd.f32 0.0, %v1967
  %v1969 = vpop.f32.mrb[0].mxu0
  %1970 = vdwg.mxu0
  %v1972 = vsel %vm743, %v1077, 0
  %v1975 = vsel %vm743, %v1082, 0
  %v1978 = vsel %vm743, %v1087, 0
  %v1981 = vsel %vm743, %v1092, 0
  %v1984 = vsel %vm743, %v1097, 0
  %v1987 = vsel %vm743, %v1102, 0
  %v1990 = vsel %vm743, %v1107, 0
  %v1993 = vsel %vm743, %v1112, 0
  %1995 = vmatprep.subr.mxu0 0.0
  %1996 = vmatpush1.msra.mxu0 %v1115
  %1997 = vmatprep.subr.mxu0 0.0
  %1998 = vmatpush1.msra.mxu0 0.0
  %1999 = vmatprep.subr.mxu0 0.0
  %2000 = vmatpush1.msra.mxu0 0.0
  %2001 = vmatprep.subr.mxu0 0.0
  %2002 = vmatpush1.msra.mxu0 0.0
  %2003 = vmatprep.subr.mxu0 0.0
  %2004 = vmatpush1.msra.mxu0 0.0
  %2005 = vmatprep.subr.mxu0 0.0
  %2006 = vmatpush1.msra.mxu0 0.0
  %2007 = vmatprep.subr.mxu0 0.0
  %2008 = vmatpush1.msra.mxu0 0.0
  %2009 = vmatprep.subr.mxu0 0.0
  %2010 = vmatpush1.msra.mxu0 0.0
  %2011 = vmatprep.subr.mxu0 0.0
  %2012 = vmatpush1.msra.mxu0 0.0
  %2013 = vmatprep.subr.mxu0 0.0
  %2014 = vmatpush1.msra.mxu0 0.0
  %2015 = vmatprep.subr.mxu0 0.0
  %2016 = vmatpush1.msra.mxu0 0.0
  %2017 = vmatprep.subr.mxu0 0.0
  %2018 = vmatpush1.msra.mxu0 0.0
  %2019 = vmatprep.subr.mxu0 0.0
  %2020 = vmatpush1.msra.mxu0 0.0
  %2021 = vmatprep.subr.mxu0 0.0
  %2022 = vmatpush1.msra.mxu0 0.0
  %2023 = vmatprep.subr.mxu0 0.0
  %2024 = vmatpush1.msra.mxu0 0.0
  %2025 = vmatprep.subr.mxu0 0.0
  %2026 = vmatpush1.msra.mxu0 0.0
  %2027 = vmatprep.subr.mxu0 0.0
  %2028 = vmatpush1.msra.mxu0 0.0
  %2029 = vmatprep.subr.mxu0 0.0
  %2030 = vmatpush1.msra.mxu0 0.0
  %2031 = vmatprep.subr.mxu0 0.0
  %2032 = vmatpush1.msra.mxu0 0.0
  %2033 = vmatprep.subr.mxu0 0.0
  %2034 = vmatpush1.msra.mxu0 0.0
  %2035 = vmatprep.subr.mxu0 0.0
  %2036 = vmatpush1.msra.mxu0 0.0
  %2037 = vmatprep.subr.mxu0 0.0
  %2038 = vmatpush1.msra.mxu0 0.0
  %2039 = vmatprep.subr.mxu0 0.0
  %2040 = vmatpush1.msra.mxu0 0.0
  %2041 = vmatprep.subr.mxu0 0.0
  %2042 = vmatpush1.msra.mxu0 0.0
  %2043 = vmatprep.subr.mxu0 0.0
  %2044 = vmatpush1.msra.mxu0 0.0
  %2045 = vmatprep.subr.mxu0 0.0
  %2046 = vmatpush1.msra.mxu0 0.0
  %2047 = vmatprep.subr.mxu0 0.0
  %2048 = vmatpush1.msra.mxu0 0.0
  %2049 = vmatprep.subr.mxu0 0.0
  %2050 = vmatpush1.msra.mxu0 0.0
  %2051 = vmatprep.subr.mxu0 0.0
  %2052 = vmatpush1.msra.mxu0 0.0
  %2053 = vmatprep.subr.mxu0 0.0
  %2054 = vmatpush1.msra.mxu0 0.0
  %2055 = vmatprep.subr.mxu0 0.0
  %2056 = vmatpush1.msra.mxu0 0.0
  %2057 = vmatprep.subr.mxu0 0.0
  %2058 = vmatpush1.msra.mxu0 0.0
  %2059 = vmatprep.mubr.f32.mxu0 0.0
  %2060 = vmatmul.mubr.f32.gmra.mrb[0].mxu0 %v1972
  %v2061 = vpop.f32.mrb[0].mxu0
  %v2062 = vadd.f32 %v1933, %v2061
  %v2063 = vpop.f32.mrb[0].mxu0
  %2064 = vmatprep.mubr.f32.mxu0 0.0
  %2065 = vmatmul.mubr.f32.gmra.mrb[0].mxu0 %v1975
  %v2066 = vpop.f32.mrb[0].mxu0
  %v2067 = vadd.f32 %v1938, %v2066
  %v2068 = vpop.f32.mrb[0].mxu0
  %2069 = vmatprep.mubr.f32.mxu0 0.0
  %2070 = vmatmul.mubr.f32.gmra.mrb[0].mxu0 %v1978
  %v2071 = vpop.f32.mrb[0].mxu0
  %v2072 = vadd.f32 %v1943, %v2071
  %v2073 = vpop.f32.mrb[0].mxu0
  %2074 = vmatprep.mubr.f32.mxu0 0.0
  %2075 = vmatmul.mubr.f32.gmra.mrb[0].mxu0 %v1981
  %v2076 = vpop.f32.mrb[0].mxu0
  %v2077 = vadd.f32 %v1948, %v2076
  %v2078 = vpop.f32.mrb[0].mxu0
  %2079 = vmatprep.mubr.f32.mxu0 0.0
  %2080 = vmatmul.mubr.f32.gmra.mrb[0].mxu0 %v1984
  %v2081 = vpop.f32.mrb[0].mxu0
  %v2082 = vadd.f32 %v1953, %v2081
  %v2083 = vpop.f32.mrb[0].mxu0
  %2084 = vmatprep.mubr.f32.mxu0 0.0
  %2085 = vmatmul.mubr.f32.gmra.mrb[0].mxu0 %v1987
  %v2086 = vpop.f32.mrb[0].mxu0
  %v2087 = vadd.f32 %v1958, %v2086
  %v2088 = vpop.f32.mrb[0].mxu0
  %2089 = vmatprep.mubr.f32.mxu0 0.0
  %2090 = vmatmul.mubr.f32.gmra.mrb[0].mxu0 %v1990
  %v2091 = vpop.f32.mrb[0].mxu0
  %v2092 = vadd.f32 %v1963, %v2091
  %v2093 = vpop.f32.mrb[0].mxu0
  %2094 = vmatprep.mubr.f32.mxu0 0.0
  %2095 = vmatmul.mubr.f32.gmra.mrb[0].mxu0 %v1993
  %v2096 = vpop.f32.mrb[0].mxu0
  %v2097 = vadd.f32 %v1968, %v2096
  %v2098 = vpop.f32.mrb[0].mxu0
  %2099 = vdwg.mxu0
  %s2100 = scalar_lea.vmem %s2, 64
  %v2101 = vld [vmem:[%s2100] sm:$0xff]
  %v2102 = vld [vmem:[%s2100 + $0x8] sm:$0xff]
  %v2103 = vld [vmem:[%s2100 + $0x10] sm:$0xff]
  %v2104 = vld [vmem:[%s2100 + $0x18] sm:$0xff]
  %s2105 = scalar_lea.vmem %s3, 2
  %v2106 = vld [vmem:[%s2105] sm:$0x1]
  %v2108 = vlaneseq
  %v2109 = vshrl.u32 %v2108, 7
  %v2110 = vsub.s32 0, %v2109
  %v2111 = vrot.slane %v2106, %v2110
  %2113 = vmatprep.subr.mxu0 0.0
  %2114 = vmatpush1.msra.mxu0 %v2101
  %2115 = vmatprep.subr.mxu0 0.0
  %2116 = vmatpush1.msra.mxu0 %v2102
  %2117 = vmatprep.subr.mxu0 0.0
  %2118 = vmatpush1.msra.mxu0 %v2103
  %2119 = vmatprep.subr.mxu0 0.0
  %2120 = vmatpush1.msra.mxu0 %v2104
  %2121 = vmatprep.subr.mxu0 0.0
  %2122 = vmatpush1.msra.mxu0 0.0
  %2123 = vmatprep.subr.mxu0 0.0
  %2124 = vmatpush1.msra.mxu0 0.0
  %2125 = vmatprep.subr.mxu0 0.0
  %2126 = vmatpush1.msra.mxu0 0.0
  %2127 = vmatprep.subr.mxu0 0.0
  %2128 = vmatpush1.msra.mxu0 0.0
  %2129 = vmatprep.subr.mxu0 0.0
  %2130 = vmatpush1.msra.mxu0 0.0
  %2131 = vmatprep.subr.mxu0 0.0
  %2132 = vmatpush1.msra.mxu0 0.0
  %2133 = vmatprep.subr.mxu0 0.0
  %2134 = vmatpush1.msra.mxu0 0.0
  %2135 = vmatprep.subr.mxu0 0.0
  %2136 = vmatpush1.msra.mxu0 0.0
  %2137 = vmatprep.subr.mxu0 0.0
  %2138 = vmatpush1.msra.mxu0 0.0
  %2139 = vmatprep.subr.mxu0 0.0
  %2140 = vmatpush1.msra.mxu0 0.0
  %2141 = vmatprep.subr.mxu0 0.0
  %2142 = vmatpush1.msra.mxu0 0.0
  %2143 = vmatprep.subr.mxu0 0.0
  %2144 = vmatpush1.msra.mxu0 0.0
  %2145 = vmatprep.subr.mxu0 0.0
  %2146 = vmatpush1.msra.mxu0 0.0
  %2147 = vmatprep.subr.mxu0 0.0
  %2148 = vmatpush1.msra.mxu0 0.0
  %2149 = vmatprep.subr.mxu0 0.0
  %2150 = vmatpush1.msra.mxu0 0.0
  %2151 = vmatprep.subr.mxu0 0.0
  %2152 = vmatpush1.msra.mxu0 0.0
  %2153 = vmatprep.subr.mxu0 0.0
  %2154 = vmatpush1.msra.mxu0 0.0
  %2155 = vmatprep.subr.mxu0 0.0
  %2156 = vmatpush1.msra.mxu0 0.0
  %2157 = vmatprep.subr.mxu0 0.0
  %2158 = vmatpush1.msra.mxu0 0.0
  %2159 = vmatprep.subr.mxu0 0.0
  %2160 = vmatpush1.msra.mxu0 0.0
  %2161 = vmatprep.subr.mxu0 0.0
  %2162 = vmatpush1.msra.mxu0 0.0
  %2163 = vmatprep.subr.mxu0 0.0
  %2164 = vmatpush1.msra.mxu0 0.0
  %2165 = vmatprep.subr.mxu0 0.0
  %2166 = vmatpush1.msra.mxu0 0.0
  %2167 = vmatprep.subr.mxu0 0.0
  %2168 = vmatpush1.msra.mxu0 0.0
  %2169 = vmatprep.subr.mxu0 0.0
  %2170 = vmatpush1.msra.mxu0 0.0
  %2171 = vmatprep.subr.mxu0 0.0
  %2172 = vmatpush1.msra.mxu0 0.0
  %2173 = vmatprep.subr.mxu0 0.0
  %2174 = vmatpush1.msra.mxu0 0.0
  %2175 = vmatprep.subr.mxu0 0.0
  %2176 = vmatpush1.msra.mxu0 0.0
  %2177 = vmatprep.mubr.f32.mxu0 0.0
  %2178 = vmatmul.mubr.f32.gmra.mrb[0].mxu0 %v379
  %v2179 = vpop.f32.mrb[0].mxu0
  %v2180 = vadd.f32 %v2111, %v2179
  %v2181 = vpop.f32.mrb[0].mxu0
  %2182 = vmatprep.mubr.f32.mxu0 0.0
  %2183 = vmatmul.mubr.f32.gmra.mrb[0].mxu0 %v382
  %v2184 = vpop.f32.mrb[0].mxu0
  %v2185 = vadd.f32 %v2111, %v2184
  %v2186 = vpop.f32.mrb[0].mxu0
  %2187 = vmatprep.mubr.f32.mxu0 0.0
  %2188 = vmatmul.mubr.f32.gmra.mrb[0].mxu0 %v385
  %v2189 = vpop.f32.mrb[0].mxu0
  %v2190 = vadd.f32 %v2111, %v2189
  %v2191 = vpop.f32.mrb[0].mxu0
  %2192 = vmatprep.mubr.f32.mxu0 0.0
  %2193 = vmatmul.mubr.f32.gmra.mrb[0].mxu0 %v388
  %v2194 = vpop.f32.mrb[0].mxu0
  %v2195 = vadd.f32 %v2111, %v2194
  %v2196 = vpop.f32.mrb[0].mxu0
  %2197 = vmatprep.mubr.f32.mxu0 0.0
  %2198 = vmatmul.mubr.f32.gmra.mrb[0].mxu0 %v391
  %v2199 = vpop.f32.mrb[0].mxu0
  %v2200 = vadd.f32 %v2111, %v2199
  %v2201 = vpop.f32.mrb[0].mxu0
  %2202 = vmatprep.mubr.f32.mxu0 0.0
  %2203 = vmatmul.mubr.f32.gmra.mrb[0].mxu0 %v394
  %v2204 = vpop.f32.mrb[0].mxu0
  %v2205 = vadd.f32 %v2111, %v2204
  %v2206 = vpop.f32.mrb[0].mxu0
  %2207 = vmatprep.mubr.f32.mxu0 0.0
  %2208 = vmatmul.mubr.f32.gmra.mrb[0].mxu0 %v397
  %v2209 = vpop.f32.mrb[0].mxu0
  %v2210 = vadd.f32 %v2111, %v2209
  %v2211 = vpop.f32.mrb[0].mxu0
  %2212 = vmatprep.mubr.f32.mxu0 0.0
  %2213 = vmatmul.mubr.f32.gmra.mrb[0].mxu0 %v400
  %v2214 = vpop.f32.mrb[0].mxu0
  %v2215 = vadd.f32 %v2111, %v2214
  %v2216 = vpop.f32.mrb[0].mxu0
  %2217 = vdwg.mxu0
  %s2218 = scalar_lea.vmem %s2, 192
  %v2219 = vld [vmem:[%s2218] sm:$0xff]
  %v2220 = vld [vmem:[%s2218 + $0x8] sm:$0xff]
  %v2221 = vld [vmem:[%s2218 + $0x10] sm:$0xff]
  %v2222 = vld [vmem:[%s2218 + $0x18] sm:$0xff]
  %s2223 = scalar_lea.vmem %s3, 6
  %v2224 = vld [vmem:[%s2223] sm:$0x1]
  %v2226 = vlaneseq
  %v2227 = vshrl.u32 %v2226, 7
  %v2228 = vsub.s32 0, %v2227
  %v2229 = vrot.slane %v2224, %v2228
  %2231 = vmatprep.subr.mxu0 0.0
  %2232 = vmatpush1.msra.mxu0 %v2219
  %2233 = vmatprep.subr.mxu0 0.0
  %2234 = vmatpush1.msra.mxu0 %v2220
  %2235 = vmatprep.subr.mxu0 0.0
  %2236 = vmatpush1.msra.mxu0 %v2221
  %2237 = vmatprep.subr.mxu0 0.0
  %2238 = vmatpush1.msra.mxu0 %v2222
  %2239 = vmatprep.subr.mxu0 0.0
  %2240 = vmatpush1.msra.mxu0 0.0
  %2241 = vmatprep.subr.mxu0 0.0
  %2242 = vmatpush1.msra.mxu0 0.0
  %2243 = vmatprep.subr.mxu0 0.0
  %2244 = vmatpush1.msra.mxu0 0.0
  %2245 = vmatprep.subr.mxu0 0.0
  %2246 = vmatpush1.msra.mxu0 0.0
  %2247 = vmatprep.subr.mxu0 0.0
  %2248 = vmatpush1.msra.mxu0 0.0
  %2249 = vmatprep.subr.mxu0 0.0
  %2250 = vmatpush1.msra.mxu0 0.0
  %2251 = vmatprep.subr.mxu0 0.0
  %2252 = vmatpush1.msra.mxu0 0.0
  %2253 = vmatprep.subr.mxu0 0.0
  %2254 = vmatpush1.msra.mxu0 0.0
  %2255 = vmatprep.subr.mxu0 0.0
  %2256 = vmatpush1.msra.mxu0 0.0
  %2257 = vmatprep.subr.mxu0 0.0
  %2258 = vmatpush1.msra.mxu0 0.0
  %2259 = vmatprep.subr.mxu0 0.0
  %2260 = vmatpush1.msra.mxu0 0.0
  %2261 = vmatprep.subr.mxu0 0.0
  %2262 = vmatpush1.msra.mxu0 0.0
  %2263 = vmatprep.subr.mxu0 0.0
  %2264 = vmatpush1.msra.mxu0 0.0
  %2265 = vmatprep.subr.mxu0 0.0
  %2266 = vmatpush1.msra.mxu0 0.0
  %2267 = vmatprep.subr.mxu0 0.0
  %2268 = vmatpush1.msra.mxu0 0.0
  %2269 = vmatprep.subr.mxu0 0.0
  %2270 = vmatpush1.msra.mxu0 0.0
  %2271 = vmatprep.subr.mxu0 0.0
  %2272 = vmatpush1.msra.mxu0 0.0
  %2273 = vmatprep.subr.mxu0 0.0
  %2274 = vmatpush1.msra.mxu0 0.0
  %2275 = vmatprep.subr.mxu0 0.0
  %2276 = vmatpush1.msra.mxu0 0.0
  %2277 = vmatprep.subr.mxu0 0.0
  %2278 = vmatpush1.msra.mxu0 0.0
  %2279 = vmatprep.subr.mxu0 0.0
  %2280 = vmatpush1.msra.mxu0 0.0
  %2281 = vmatprep.subr.mxu0 0.0
  %2282 = vmatpush1.msra.mxu0 0.0
  %2283 = vmatprep.subr.mxu0 0.0
  %2284 = vmatpush1.msra.mxu0 0.0
  %2285 = vmatprep.subr.mxu0 0.0
  %2286 = vmatpush1.msra.mxu0 0.0
  %2287 = vmatprep.subr.mxu0 0.0
  %2288 = vmatpush1.msra.mxu0 0.0
  %2289 = vmatprep.subr.mxu0 0.0
  %2290 = vmatpush1.msra.mxu0 0.0
  %2291 = vmatprep.subr.mxu0 0.0
  %2292 = vmatpush1.msra.mxu0 0.0
  %2293 = vmatprep.subr.mxu0 0.0
  %2294 = vmatpush1.msra.mxu0 0.0
  %2295 = vmatprep.mubr.f32.mxu0 0.0
  %2296 = vmatmul.mubr.f32.gmra.mrb[0].mxu0 %v379
  %v2297 = vpop.f32.mrb[0].mxu0
  %v2298 = vadd.f32 %v2229, %v2297
  %v2299 = vpop.f32.mrb[0].mxu0
  %2300 = vmatprep.mubr.f32.mxu0 0.0
  %2301 = vmatmul.mubr.f32.gmra.mrb[0].mxu0 %v382
  %v2302 = vpop.f32.mrb[0].mxu0
  %v2303 = vadd.f32 %v2229, %v2302
  %v2304 = vpop.f32.mrb[0].mxu0
  %2305 = vmatprep.mubr.f32.mxu0 0.0
  %2306 = vmatmul.mubr.f32.gmra.mrb[0].mxu0 %v385
  %v2307 = vpop.f32.mrb[0].mxu0
  %v2308 = vadd.f32 %v2229, %v2307
  %v2309 = vpop.f32.mrb[0].mxu0
  %2310 = vmatprep.mubr.f32.mxu0 0.0
  %2311 = vmatmul.mubr.f32.gmra.mrb[0].mxu0 %v388
  %v2312 = vpop.f32.mrb[0].mxu0
  %v2313 = vadd.f32 %v2229, %v2312
  %v2314 = vpop.f32.mrb[0].mxu0
  %2315 = vmatprep.mubr.f32.mxu0 0.0
  %2316 = vmatmul.mubr.f32.gmra.mrb[0].mxu0 %v391
  %v2317 = vpop.f32.mrb[0].mxu0
  %v2318 = vadd.f32 %v2229, %v2317
  %v2319 = vpop.f32.mrb[0].mxu0
  %2320 = vmatprep.mubr.f32.mxu0 0.0
  %2321 = vmatmul.mubr.f32.gmra.mrb[0].mxu0 %v394
  %v2322 = vpop.f32.mrb[0].mxu0
  %v2323 = vadd.f32 %v2229, %v2322
  %v2324 = vpop.f32.mrb[0].mxu0
  %2325 = vmatprep.mubr.f32.mxu0 0.0
  %2326 = vmatmul.mubr.f32.gmra.mrb[0].mxu0 %v397
  %v2327 = vpop.f32.mrb[0].mxu0
  %v2328 = vadd.f32 %v2229, %v2327
  %v2329 = vpop.f32.mrb[0].mxu0
  %2330 = vmatprep.mubr.f32.mxu0 0.0
  %2331 = vmatmul.mubr.f32.gmra.mrb[0].mxu0 %v400
  %v2332 = vpop.f32.mrb[0].mxu0
  %v2333 = vadd.f32 %v2229, %v2332
  %v2334 = vpop.f32.mrb[0].mxu0
  %2335 = vdwg.mxu0
  %s2336 = scalar_lea.vmem %s2, 320
  %v2337 = vld [vmem:[%s2336] sm:$0xff]
  %v2338 = vld [vmem:[%s2336 + $0x8] sm:$0xff]
  %v2339 = vld [vmem:[%s2336 + $0x10] sm:$0xff]
  %v2340 = vld [vmem:[%s2336 + $0x18] sm:$0xff]
  %s2341 = scalar_lea.vmem %s3, 10
  %v2342 = vld [vmem:[%s2341] sm:$0x1]
  %v2344 = vlaneseq
  %v2345 = vshrl.u32 %v2344, 7
  %v2346 = vsub.s32 0, %v2345
  %v2347 = vrot.slane %v2342, %v2346
  %2349 = vmatprep.subr.mxu0 0.0
  %2350 = vmatpush1.msra.mxu0 %v2337
  %2351 = vmatprep.subr.mxu0 0.0
  %2352 = vmatpush1.msra.mxu0 %v2338
  %2353 = vmatprep.subr.mxu0 0.0
  %2354 = vmatpush1.msra.mxu0 %v2339
  %2355 = vmatprep.subr.mxu0 0.0
  %2356 = vmatpush1.msra.mxu0 %v2340
  %2357 = vmatprep.subr.mxu0 0.0
  %2358 = vmatpush1.msra.mxu0 0.0
  %2359 = vmatprep.subr.mxu0 0.0
  %2360 = vmatpush1.msra.mxu0 0.0
  %2361 = vmatprep.subr.mxu0 0.0
  %2362 = vmatpush1.msra.mxu0 0.0
  %2363 = vmatprep.subr.mxu0 0.0
  %2364 = vmatpush1.msra.mxu0 0.0
  %2365 = vmatprep.subr.mxu0 0.0
  %2366 = vmatpush1.msra.mxu0 0.0
  %2367 = vmatprep.subr.mxu0 0.0
  %2368 = vmatpush1.msra.mxu0 0.0
  %2369 = vmatprep.subr.mxu0 0.0
  %2370 = vmatpush1.msra.mxu0 0.0
  %2371 = vmatprep.subr.mxu0 0.0
  %2372 = vmatpush1.msra.mxu0 0.0
  %2373 = vmatprep.subr.mxu0 0.0
  %2374 = vmatpush1.msra.mxu0 0.0
  %2375 = vmatprep.subr.mxu0 0.0
  %2376 = vmatpush1.msra.mxu0 0.0
  %2377 = vmatprep.subr.mxu0 0.0
  %2378 = vmatpush1.msra.mxu0 0.0
  %2379 = vmatprep.subr.mxu0 0.0
  %2380 = vmatpush1.msra.mxu0 0.0
  %2381 = vmatprep.subr.mxu0 0.0
  %2382 = vmatpush1.msra.mxu0 0.0
  %2383 = vmatprep.subr.mxu0 0.0
  %2384 = vmatpush1.msra.mxu0 0.0
  %2385 = vmatprep.subr.mxu0 0.0
  %2386 = vmatpush1.msra.mxu0 0.0
  %2387 = vmatprep.subr.mxu0 0.0
  %2388 = vmatpush1.msra.mxu0 0.0
  %2389 = vmatprep.subr.mxu0 0.0
  %2390 = vmatpush1.msra.mxu0 0.0
  %2391 = vmatprep.subr.mxu0 0.0
  %2392 = vmatpush1.msra.mxu0 0.0
  %2393 = vmatprep.subr.mxu0 0.0
  %2394 = vmatpush1.msra.mxu0 0.0
  %2395 = vmatprep.subr.mxu0 0.0
  %2396 = vmatpush1.msra.mxu0 0.0
  %2397 = vmatprep.subr.mxu0 0.0
  %2398 = vmatpush1.msra.mxu0 0.0
  %2399 = vmatprep.subr.mxu0 0.0
  %2400 = vmatpush1.msra.mxu0 0.0
  %2401 = vmatprep.subr.mxu0 0.0
  %2402 = vmatpush1.msra.mxu0 0.0
  %2403 = vmatprep.subr.mxu0 0.0
  %2404 = vmatpush1.msra.mxu0 0.0
  %2405 = vmatprep.subr.mxu0 0.0
  %2406 = vmatpush1.msra.mxu0 0.0
  %2407 = vmatprep.subr.mxu0 0.0
  %2408 = vmatpush1.msra.mxu0 0.0
  %2409 = vmatprep.subr.mxu0 0.0
  %2410 = vmatpush1.msra.mxu0 0.0
  %2411 = vmatprep.subr.mxu0 0.0
  %2412 = vmatpush1.msra.mxu0 0.0
  %2413 = vmatprep.mubr.f32.mxu0 0.0
  %2414 = vmatmul.mubr.f32.gmra.mrb[0].mxu0 %v379
  %v2415 = vpop.f32.mrb[0].mxu0
  %v2416 = vadd.f32 %v2347, %v2415
  %v2417 = vpop.f32.mrb[0].mxu0
  %2418 = vmatprep.mubr.f32.mxu0 0.0
  %2419 = vmatmul.mubr.f32.gmra.mrb[0].mxu0 %v382
  %v2420 = vpop.f32.mrb[0].mxu0
  %v2421 = vadd.f32 %v2347, %v2420
  %v2422 = vpop.f32.mrb[0].mxu0
  %2423 = vmatprep.mubr.f32.mxu0 0.0
  %2424 = vmatmul.mubr.f32.gmra.mrb[0].mxu0 %v385
  %v2425 = vpop.f32.mrb[0].mxu0
  %v2426 = vadd.f32 %v2347, %v2425
  %v2427 = vpop.f32.mrb[0].mxu0
  %2428 = vmatprep.mubr.f32.mxu0 0.0
  %2429 = vmatmul.mubr.f32.gmra.mrb[0].mxu0 %v388
  %v2430 = vpop.f32.mrb[0].mxu0
  %v2431 = vadd.f32 %v2347, %v2430
  %v2432 = vpop.f32.mrb[0].mxu0
  %2433 = vmatprep.mubr.f32.mxu0 0.0
  %2434 = vmatmul.mubr.f32.gmra.mrb[0].mxu0 %v391
  %v2435 = vpop.f32.mrb[0].mxu0
  %v2436 = vadd.f32 %v2347, %v2435
  %v2437 = vpop.f32.mrb[0].mxu0
  %2438 = vmatprep.mubr.f32.mxu0 0.0
  %2439 = vmatmul.mubr.f32.gmra.mrb[0].mxu0 %v394
  %v2440 = vpop.f32.mrb[0].mxu0
  %v2441 = vadd.f32 %v2347, %v2440
  %v2442 = vpop.f32.mrb[0].mxu0
  %2443 = vmatprep.mubr.f32.mxu0 0.0
  %2444 = vmatmul.mubr.f32.gmra.mrb[0].mxu0 %v397
  %v2445 = vpop.f32.mrb[0].mxu0
  %v2446 = vadd.f32 %v2347, %v2445
  %v2447 = vpop.f32.mrb[0].mxu0
  %2448 = vmatprep.mubr.f32.mxu0 0.0
  %2449 = vmatmul.mubr.f32.gmra.mrb[0].mxu0 %v400
  %v2450 = vpop.f32.mrb[0].mxu0
  %v2451 = vadd.f32 %v2347, %v2450
  %v2452 = vpop.f32.mrb[0].mxu0
  %2453 = vdwg.mxu0
  %v2455 = vsel %vm743, %v2180, 0
  %v2458 = vsel %vm743, %v2185, 0
  %v2461 = vsel %vm743, %v2190, 0
  %v2464 = vsel %vm743, %v2195, 0
  %v2467 = vsel %vm743, %v2200, 0
  %v2470 = vsel %vm743, %v2205, 0
  %v2473 = vsel %vm743, %v2210, 0
  %v2476 = vsel %vm743, %v2215, 0
  %v2479 = vsel %vm743, %v2298, 0
  %v2482 = vsel %vm743, %v2303, 0
  %v2485 = vsel %vm743, %v2308, 0
  %v2488 = vsel %vm743, %v2313, 0
  %v2491 = vsel %vm743, %v2318, 0
  %v2494 = vsel %vm743, %v2323, 0
  %v2497 = vsel %vm743, %v2328, 0
  %v2500 = vsel %vm743, %v2333, 0
  %2502 = vmatprep.subr.mxu0 0.0
  %2503 = vmatpush1.xpose.msra.mxu0 %v2479
  %2504 = vmatprep.subr.mxu0 0.0
  %2505 = vmatpush1.xpose.msra.mxu0 %v2482
  %2506 = vmatprep.subr.mxu0 0.0
  %2507 = vmatpush1.xpose.msra.mxu0 %v2485
  %2508 = vmatprep.subr.mxu0 0.0
  %2509 = vmatpush1.xpose.msra.mxu0 %v2488
  %2510 = vmatprep.subr.mxu0 0.0
  %2511 = vmatpush1.xpose.msra.mxu0 %v2491
  %2512 = vmatprep.subr.mxu0 0.0
  %2513 = vmatpush1.xpose.msra.mxu0 %v2494
  %2514 = vmatprep.subr.mxu0 0.0
  %2515 = vmatpush1.xpose.msra.mxu0 %v2497
  %2516 = vmatprep.subr.mxu0 0.0
  %2517 = vmatpush1.xpose.msra.mxu0 %v2500
  %2518 = vmatprep.subr.mxu0 0.0
  %2519 = vmatpush1.xpose.msra.mxu0 0.0
  %2520 = vmatprep.subr.mxu0 0.0
  %2521 = vmatpush1.xpose.msra.mxu0 0.0
  %2522 = vmatprep.subr.mxu0 0.0
  %2523 = vmatpush1.xpose.msra.mxu0 0.0
  %2524 = vmatprep.subr.mxu0 0.0
  %2525 = vmatpush1.xpose.msra.mxu0 0.0
  %2526 = vmatprep.subr.mxu0 0.0
  %2527 = vmatpush1.xpose.msra.mxu0 0.0
  %2528 = vmatprep.subr.mxu0 0.0
  %2529 = vmatpush1.xpose.msra.mxu0 0.0
  %2530 = vmatprep.subr.mxu0 0.0
  %2531 = vmatpush1.xpose.msra.mxu0 0.0
  %2532 = vmatprep.subr.mxu0 0.0
  %2533 = vmatpush1.xpose.msra.mxu0 0.0
  %2534 = vmatprep.subr.mxu0 0.0
  %2535 = vmatpush1.xpose.msra.mxu0 0.0
  %2536 = vmatprep.subr.mxu0 0.0
  %2537 = vmatpush1.xpose.msra.mxu0 0.0
  %2538 = vmatprep.subr.mxu0 0.0
  %2539 = vmatpush1.xpose.msra.mxu0 0.0
  %2540 = vmatprep.subr.mxu0 0.0
  %2541 = vmatpush1.xpose.msra.mxu0 0.0
  %2542 = vmatprep.subr.mxu0 0.0
  %2543 = vmatpush1.xpose.msra.mxu0 0.0
  %2544 = vmatprep.subr.mxu0 0.0
  %2545 = vmatpush1.xpose.msra.mxu0 0.0
  %2546 = vmatprep.subr.mxu0 0.0
  %2547 = vmatpush1.xpose.msra.mxu0 0.0
  %2548 = vmatprep.subr.mxu0 0.0
  %2549 = vmatpush1.xpose.msra.mxu0 0.0
  %2550 = vmatprep.subr.mxu0 0.0
  %2551 = vmatpush1.xpose.msra.mxu0 0.0
  %2552 = vmatprep.subr.mxu0 0.0
  %2553 = vmatpush1.xpose.msra.mxu0 0.0
  %2554 = vmatprep.subr.mxu0 0.0
  %2555 = vmatpush1.xpose.msra.mxu0 0.0
  %2556 = vmatprep.subr.mxu0 0.0
  %2557 = vmatpush1.xpose.msra.mxu0 0.0
  %2558 = vmatprep.subr.mxu0 0.0
  %2559 = vmatpush1.xpose.msra.mxu0 0.0
  %2560 = vmatprep.subr.mxu0 0.0
  %2561 = vmatpush1.xpose.msra.mxu0 0.0
  %2562 = vmatprep.subr.mxu0 0.0
  %2563 = vmatpush1.xpose.msra.mxu0 0.0
  %2564 = vmatprep.subr.mxu0 0.0
  %2565 = vmatpush1.xpose.msra.mxu0 0.0
  %2566 = vmatprep.mubr.f32.mxu0 0.0
  %2567 = vmatmul.mubr.f32.gmra.mrb[0].mxu0 %v2455
  %v2568 = vpop.f32.mrb[0].mxu0
  %v2569 = vadd.f32 %v347, %v2568
  %v2570 = vpop.f32.mrb[0].mxu0
  %2571 = vmatprep.mubr.f32.mxu0 0.0
  %2572 = vmatmul.mubr.f32.gmra.mrb[0].mxu0 %v2458
  %v2573 = vpop.f32.mrb[0].mxu0
  %v2574 = vadd.f32 %v348, %v2573
  %v2575 = vpop.f32.mrb[0].mxu0
  %2576 = vmatprep.mubr.f32.mxu0 0.0
  %2577 = vmatmul.mubr.f32.gmra.mrb[0].mxu0 %v2461
  %v2578 = vpop.f32.mrb[0].mxu0
  %v2579 = vadd.f32 %v349, %v2578
  %v2580 = vpop.f32.mrb[0].mxu0
  %2581 = vmatprep.mubr.f32.mxu0 0.0
  %2582 = vmatmul.mubr.f32.gmra.mrb[0].mxu0 %v2464
  %v2583 = vpop.f32.mrb[0].mxu0
  %v2584 = vadd.f32 %v350, %v2583
  %v2585 = vpop.f32.mrb[0].mxu0
  %2586 = vmatprep.mubr.f32.mxu0 0.0
  %2587 = vmatmul.mubr.f32.gmra.mrb[0].mxu0 %v2467
  %v2588 = vpop.f32.mrb[0].mxu0
  %v2589 = vadd.f32 %v351, %v2588
  %v2590 = vpop.f32.mrb[0].mxu0
  %2591 = vmatprep.mubr.f32.mxu0 0.0
  %2592 = vmatmul.mubr.f32.gmra.mrb[0].mxu0 %v2470
  %v2593 = vpop.f32.mrb[0].mxu0
  %v2594 = vadd.f32 %v352, %v2593
  %v2595 = vpop.f32.mrb[0].mxu0
  %2596 = vmatprep.mubr.f32.mxu0 0.0
  %2597 = vmatmul.mubr.f32.gmra.mrb[0].mxu0 %v2473
  %v2598 = vpop.f32.mrb[0].mxu0
  %v2599 = vadd.f32 %v353, %v2598
  %v2600 = vpop.f32.mrb[0].mxu0
  %2601 = vmatprep.mubr.f32.mxu0 0.0
  %2602 = vmatmul.mubr.f32.gmra.mrb[0].mxu0 %v2476
  %v2603 = vpop.f32.mrb[0].mxu0
  %v2604 = vadd.f32 %v354, %v2603
  %v2605 = vpop.f32.mrb[0].mxu0
  %2606 = vdwg.mxu0
  %v2607 = vsel %vm897, %v2569, -inf
  %2608 = vmax.xlane.f32.xlu0 %v2607
  %v2609 = vpop.xlane.xlu0 %2608
  %v2610 = vsel %vm897, %v2574, -inf
  %2611 = vmax.xlane.f32.xlu0 %v2610
  %v2612 = vpop.xlane.xlu0 %2611
  %v2613 = vsel %vm897, %v2579, -inf
  %2614 = vmax.xlane.f32.xlu0 %v2613
  %v2615 = vpop.xlane.xlu0 %2614
  %v2616 = vsel %vm897, %v2584, -inf
  %2617 = vmax.xlane.f32.xlu0 %v2616
  %v2618 = vpop.xlane.xlu0 %2617
  %v2619 = vsel %vm897, %v2589, -inf
  %2620 = vmax.xlane.f32.xlu0 %v2619
  %v2621 = vpop.xlane.xlu0 %2620
  %v2622 = vsel %vm897, %v2594, -inf
  %2623 = vmax.xlane.f32.xlu0 %v2622
  %v2624 = vpop.xlane.xlu0 %2623
  %v2625 = vsel %vm897, %v2599, -inf
  %2626 = vmax.xlane.f32.xlu0 %v2625
  %v2627 = vpop.xlane.xlu0 %2626
  %v2628 = vsel %vm897, %v2604, -inf
  %2629 = vmax.xlane.f32.xlu0 %v2628
  %v2630 = vpop.xlane.xlu0 %2629
  %v2631 = vsub.f32 %v2569, %v2609
  %v2632 = vsub.f32 %v2574, %v2612
  %v2633 = vsub.f32 %v2579, %v2615
  %v2634 = vsub.f32 %v2584, %v2618
  %v2635 = vsub.f32 %v2589, %v2621
  %v2636 = vsub.f32 %v2594, %v2624
  %v2637 = vsub.f32 %v2599, %v2627
  %v2638 = vsub.f32 %v2604, %v2630
  %v2639 = vmul.f32 %v2631, 1.442695
  %v2640 = vpow.pop %v2639
  %v2641 = vmul.f32 %v2632, 1.442695
  %v2642 = vpow.pop %v2641
  %v2643 = vmul.f32 %v2633, 1.442695
  %v2644 = vpow.pop %v2643
  %v2645 = vmul.f32 %v2634, 1.442695
  %v2646 = vpow.pop %v2645
  %v2647 = vmul.f32 %v2635, 1.442695
  %v2648 = vpow.pop %v2647
  %v2649 = vmul.f32 %v2636, 1.442695
  %v2650 = vpow.pop %v2649
  %v2651 = vmul.f32 %v2637, 1.442695
  %v2652 = vpow.pop %v2651
  %v2653 = vmul.f32 %v2638, 1.442695
  %v2654 = vpow.pop %v2653
  %v2655 = vsel %vm897, %v2640, 0.0
  %2656 = vadd.xlane.f32.xlu0 %v2655
  %v2657 = vpop.xlane.xlu0 %2656
  %v2658 = vsel %vm897, %v2642, 0.0
  %2659 = vadd.xlane.f32.xlu0 %v2658
  %v2660 = vpop.xlane.xlu0 %2659
  %v2661 = vsel %vm897, %v2644, 0.0
  %2662 = vadd.xlane.f32.xlu0 %v2661
  %v2663 = vpop.xlane.xlu0 %2662
  %v2664 = vsel %vm897, %v2646, 0.0
  %2665 = vadd.xlane.f32.xlu0 %v2664
  %v2666 = vpop.xlane.xlu0 %2665
  %v2667 = vsel %vm897, %v2648, 0.0
  %2668 = vadd.xlane.f32.xlu0 %v2667
  %v2669 = vpop.xlane.xlu0 %2668
  %v2670 = vsel %vm897, %v2650, 0.0
  %2671 = vadd.xlane.f32.xlu0 %v2670
  %v2672 = vpop.xlane.xlu0 %2671
  %v2673 = vsel %vm897, %v2652, 0.0
  %2674 = vadd.xlane.f32.xlu0 %v2673
  %v2675 = vpop.xlane.xlu0 %2674
  %v2676 = vsel %vm897, %v2654, 0.0
  %2677 = vadd.xlane.f32.xlu0 %v2676
  %v2678 = vpop.xlane.xlu0 %2677
  %v2679 = vrcp.pop %v2657
  %v2680 = vmul.f32 %v2640, %v2679
  %v2681 = vrcp.pop %v2660
  %v2682 = vmul.f32 %v2642, %v2681
  %v2683 = vrcp.pop %v2663
  %v2684 = vmul.f32 %v2644, %v2683
  %v2685 = vrcp.pop %v2666
  %v2686 = vmul.f32 %v2646, %v2685
  %v2687 = vrcp.pop %v2669
  %v2688 = vmul.f32 %v2648, %v2687
  %v2689 = vrcp.pop %v2672
  %v2690 = vmul.f32 %v2650, %v2689
  %v2691 = vrcp.pop %v2675
  %v2692 = vmul.f32 %v2652, %v2691
  %v2693 = vrcp.pop %v2678
  %v2694 = vmul.f32 %v2654, %v2693
  %v2696 = vsel %vm897, %v2680, 0
  %v2699 = vsel %vm897, %v2682, 0
  %v2702 = vsel %vm897, %v2684, 0
  %v2705 = vsel %vm897, %v2686, 0
  %v2708 = vsel %vm897, %v2688, 0
  %v2711 = vsel %vm897, %v2690, 0
  %v2714 = vsel %vm897, %v2692, 0
  %v2717 = vsel %vm897, %v2694, 0
  %2719 = vmatprep.subr.mxu0 0.0
  %2720 = vmatpush1.msra.mxu0 %v2416
  %2721 = vmatprep.subr.mxu0 0.0
  %2722 = vmatpush1.msra.mxu0 %v2421
  %2723 = vmatprep.subr.mxu0 0.0
  %2724 = vmatpush1.msra.mxu0 %v2426
  %2725 = vmatprep.subr.mxu0 0.0
  %2726 = vmatpush1.msra.mxu0 %v2431
  %2727 = vmatprep.subr.mxu0 0.0
  %2728 = vmatpush1.msra.mxu0 %v2436
  %2729 = vmatprep.subr.mxu0 0.0
  %2730 = vmatpush1.msra.mxu0 %v2441
  %2731 = vmatprep.subr.mxu0 0.0
  %2732 = vmatpush1.msra.mxu0 %v2446
  %2733 = vmatprep.subr.mxu0 0.0
  %2734 = vmatpush1.msra.mxu0 %v2451
  %2735 = vmatprep.subr.mxu0 0.0
  %2736 = vmatpush1.msra.mxu0 0.0
  %2737 = vmatprep.subr.mxu0 0.0
  %2738 = vmatpush1.msra.mxu0 0.0
  %2739 = vmatprep.subr.mxu0 0.0
  %2740 = vmatpush1.msra.mxu0 0.0
  %2741 = vmatprep.subr.mxu0 0.0
  %2742 = vmatpush1.msra.mxu0 0.0
  %2743 = vmatprep.subr.mxu0 0.0
  %2744 = vmatpush1.msra.mxu0 0.0
  %2745 = vmatprep.subr.mxu0 0.0
  %2746 = vmatpush1.msra.mxu0 0.0
  %2747 = vmatprep.subr.mxu0 0.0
  %2748 = vmatpush1.msra.mxu0 0.0
  %2749 = vmatprep.subr.mxu0 0.0
  %2750 = vmatpush1.msra.mxu0 0.0
  %2751 = vmatprep.subr.mxu0 0.0
  %2752 = vmatpush1.msra.mxu0 0.0
  %2753 = vmatprep.subr.mxu0 0.0
  %2754 = vmatpush1.msra.mxu0 0.0
  %2755 = vmatprep.subr.mxu0 0.0
  %2756 = vmatpush1.msra.mxu0 0.0
  %2757 = vmatprep.subr.mxu0 0.0
  %2758 = vmatpush1.msra.mxu0 0.0
  %2759 = vmatprep.subr.mxu0 0.0
  %2760 = vmatpush1.msra.mxu0 0.0
  %2761 = vmatprep.subr.mxu0 0.0
  %2762 = vmatpush1.msra.mxu0 0.0
  %2763 = vmatprep.subr.mxu0 0.0
  %2764 = vmatpush1.msra.mxu0 0.0
  %2765 = vmatprep.subr.mxu0 0.0
  %2766 = vmatpush1.msra.mxu0 0.0
  %2767 = vmatprep.subr.mxu0 0.0
  %2768 = vmatpush1.msra.mxu0 0.0
  %2769 = vmatprep.subr.mxu0 0.0
  %2770 = vmatpush1.msra.mxu0 0.0
  %2771 = vmatprep.subr.mxu0 0.0
  %2772 = vmatpush1.msra.mxu0 0.0
  %2773 = vmatprep.subr.mxu0 0.0
  %2774 = vmatpush1.msra.mxu0 0.0
  %2775 = vmatprep.subr.mxu0 0.0
  %2776 = vmatpush1.msra.mxu0 0.0
  %2777 = vmatprep.subr.mxu0 0.0
  %2778 = vmatpush1.msra.mxu0 0.0
  %2779 = vmatprep.subr.mxu0 0.0
  %2780 = vmatpush1.msra.mxu0 0.0
  %2781 = vmatprep.subr.mxu0 0.0
  %2782 = vmatpush1.msra.mxu0 0.0
  %2783 = vmatprep.mubr.f32.mxu0 0.0
  %2784 = vmatmul.mubr.f32.gmra.mrb[0].mxu0 %v2696
  %v2785 = vpop.f32.mrb[0].mxu0
  %v2786 = vadd.f32 0.0, %v2785
  %v2787 = vpop.f32.mrb[0].mxu0
  %2788 = vmatprep.mubr.f32.mxu0 0.0
  %2789 = vmatmul.mubr.f32.gmra.mrb[0].mxu0 %v2699
  %v2790 = vpop.f32.mrb[0].mxu0
  %v2791 = vadd.f32 0.0, %v2790
  %v2792 = vpop.f32.mrb[0].mxu0
  %2793 = vmatprep.mubr.f32.mxu0 0.0
  %2794 = vmatmul.mubr.f32.gmra.mrb[0].mxu0 %v2702
  %v2795 = vpop.f32.mrb[0].mxu0
  %v2796 = vadd.f32 0.0, %v2795
  %v2797 = vpop.f32.mrb[0].mxu0
  %2798 = vmatprep.mubr.f32.mxu0 0.0
  %2799 = vmatmul.mubr.f32.gmra.mrb[0].mxu0 %v2705
  %v2800 = vpop.f32.mrb[0].mxu0
  %v2801 = vadd.f32 0.0, %v2800
  %v2802 = vpop.f32.mrb[0].mxu0
  %2803 = vmatprep.mubr.f32.mxu0 0.0
  %2804 = vmatmul.mubr.f32.gmra.mrb[0].mxu0 %v2708
  %v2805 = vpop.f32.mrb[0].mxu0
  %v2806 = vadd.f32 0.0, %v2805
  %v2807 = vpop.f32.mrb[0].mxu0
  %2808 = vmatprep.mubr.f32.mxu0 0.0
  %2809 = vmatmul.mubr.f32.gmra.mrb[0].mxu0 %v2711
  %v2810 = vpop.f32.mrb[0].mxu0
  %v2811 = vadd.f32 0.0, %v2810
  %v2812 = vpop.f32.mrb[0].mxu0
  %2813 = vmatprep.mubr.f32.mxu0 0.0
  %2814 = vmatmul.mubr.f32.gmra.mrb[0].mxu0 %v2714
  %v2815 = vpop.f32.mrb[0].mxu0
  %v2816 = vadd.f32 0.0, %v2815
  %v2817 = vpop.f32.mrb[0].mxu0
  %2818 = vmatprep.mubr.f32.mxu0 0.0
  %2819 = vmatmul.mubr.f32.gmra.mrb[0].mxu0 %v2717
  %v2820 = vpop.f32.mrb[0].mxu0
  %v2821 = vadd.f32 0.0, %v2820
  %v2822 = vpop.f32.mrb[0].mxu0
  %2823 = vdwg.mxu0
  %s2824 = scalar_lea.vmem %s4, 16
  %v2825 = vld [vmem:[%s2824] sm:$0xff]
  %v2827 = vsel %vm743, %v2786, 0
  %v2830 = vsel %vm743, %v2791, 0
  %v2833 = vsel %vm743, %v2796, 0
  %v2836 = vsel %vm743, %v2801, 0
  %v2839 = vsel %vm743, %v2806, 0
  %v2842 = vsel %vm743, %v2811, 0
  %v2845 = vsel %vm743, %v2816, 0
  %v2848 = vsel %vm743, %v2821, 0
  %2850 = vmatprep.subr.mxu0 0.0
  %2851 = vmatpush1.msra.mxu0 %v2825
  %2852 = vmatprep.subr.mxu0 0.0
  %2853 = vmatpush1.msra.mxu0 0.0
  %2854 = vmatprep.subr.mxu0 0.0
  %2855 = vmatpush1.msra.mxu0 0.0
  %2856 = vmatprep.subr.mxu0 0.0
  %2857 = vmatpush1.msra.mxu0 0.0
  %2858 = vmatprep.subr.mxu0 0.0
  %2859 = vmatpush1.msra.mxu0 0.0
  %2860 = vmatprep.subr.mxu0 0.0
  %2861 = vmatpush1.msra.mxu0 0.0
  %2862 = vmatprep.subr.mxu0 0.0
  %2863 = vmatpush1.msra.mxu0 0.0
  %2864 = vmatprep.subr.mxu0 0.0
  %2865 = vmatpush1.msra.mxu0 0.0
  %2866 = vmatprep.subr.mxu0 0.0
  %2867 = vmatpush1.msra.mxu0 0.0
  %2868 = vmatprep.subr.mxu0 0.0
  %2869 = vmatpush1.msra.mxu0 0.0
  %2870 = vmatprep.subr.mxu0 0.0
  %2871 = vmatpush1.msra.mxu0 0.0
  %2872 = vmatprep.subr.mxu0 0.0
  %2873 = vmatpush1.msra.mxu0 0.0
  %2874 = vmatprep.subr.mxu0 0.0
  %2875 = vmatpush1.msra.mxu0 0.0
  %2876 = vmatprep.subr.mxu0 0.0
  %2877 = vmatpush1.msra.mxu0 0.0
  %2878 = vmatprep.subr.mxu0 0.0
  %2879 = vmatpush1.msra.mxu0 0.0
  %2880 = vmatprep.subr.mxu0 0.0
  %2881 = vmatpush1.msra.mxu0 0.0
  %2882 = vmatprep.subr.mxu0 0.0
  %2883 = vmatpush1.msra.mxu0 0.0
  %2884 = vmatprep.subr.mxu0 0.0
  %2885 = vmatpush1.msra.mxu0 0.0
  %2886 = vmatprep.subr.mxu0 0.0
  %2887 = vmatpush1.msra.mxu0 0.0
  %2888 = vmatprep.subr.mxu0 0.0
  %2889 = vmatpush1.msra.mxu0 0.0
  %2890 = vmatprep.subr.mxu0 0.0
  %2891 = vmatpush1.msra.mxu0 0.0
  %2892 = vmatprep.subr.mxu0 0.0
  %2893 = vmatpush1.msra.mxu0 0.0
  %2894 = vmatprep.subr.mxu0 0.0
  %2895 = vmatpush1.msra.mxu0 0.0
  %2896 = vmatprep.subr.mxu0 0.0
  %2897 = vmatpush1.msra.mxu0 0.0
  %2898 = vmatprep.subr.mxu0 0.0
  %2899 = vmatpush1.msra.mxu0 0.0
  %2900 = vmatprep.subr.mxu0 0.0
  %2901 = vmatpush1.msra.mxu0 0.0
  %2902 = vmatprep.subr.mxu0 0.0
  %2903 = vmatpush1.msra.mxu0 0.0
  %2904 = vmatprep.subr.mxu0 0.0
  %2905 = vmatpush1.msra.mxu0 0.0
  %2906 = vmatprep.subr.mxu0 0.0
  %2907 = vmatpush1.msra.mxu0 0.0
  %2908 = vmatprep.subr.mxu0 0.0
  %2909 = vmatpush1.msra.mxu0 0.0
  %2910 = vmatprep.subr.mxu0 0.0
  %2911 = vmatpush1.msra.mxu0 0.0
  %2912 = vmatprep.subr.mxu0 0.0
  %2913 = vmatpush1.msra.mxu0 0.0
  %2914 = vmatprep.mubr.f32.mxu0 0.0
  %2915 = vmatmul.mubr.f32.gmra.mrb[0].mxu0 %v2827
  %v2916 = vpop.f32.mrb[0].mxu0
  %v2917 = vadd.f32 0.0, %v2916
  %v2918 = vpop.f32.mrb[0].mxu0
  %2919 = vmatprep.mubr.f32.mxu0 0.0
  %2920 = vmatmul.mubr.f32.gmra.mrb[0].mxu0 %v2830
  %v2921 = vpop.f32.mrb[0].mxu0
  %v2922 = vadd.f32 0.0, %v2921
  %v2923 = vpop.f32.mrb[0].mxu0
  %2924 = vmatprep.mubr.f32.mxu0 0.0
  %2925 = vmatmul.mubr.f32.gmra.mrb[0].mxu0 %v2833
  %v2926 = vpop.f32.mrb[0].mxu0
  %v2927 = vadd.f32 0.0, %v2926
  %v2928 = vpop.f32.mrb[0].mxu0
  %2929 = vmatprep.mubr.f32.mxu0 0.0
  %2930 = vmatmul.mubr.f32.gmra.mrb[0].mxu0 %v2836
  %v2931 = vpop.f32.mrb[0].mxu0
  %v2932 = vadd.f32 0.0, %v2931
  %v2933 = vpop.f32.mrb[0].mxu0
  %2934 = vmatprep.mubr.f32.mxu0 0.0
  %2935 = vmatmul.mubr.f32.gmra.mrb[0].mxu0 %v2839
  %v2936 = vpop.f32.mrb[0].mxu0
  %v2937 = vadd.f32 0.0, %v2936
  %v2938 = vpop.f32.mrb[0].mxu0
  %2939 = vmatprep.mubr.f32.mxu0 0.0
  %2940 = vmatmul.mubr.f32.gmra.mrb[0].mxu0 %v2842
  %v2941 = vpop.f32.mrb[0].mxu0
  %v2942 = vadd.f32 0.0, %v2941
  %v2943 = vpop.f32.mrb[0].mxu0
  %2944 = vmatprep.mubr.f32.mxu0 0.0
  %2945 = vmatmul.mubr.f32.gmra.mrb[0].mxu0 %v2845
  %v2946 = vpop.f32.mrb[0].mxu0
  %v2947 = vadd.f32 0.0, %v2946
  %v2948 = vpop.f32.mrb[0].mxu0
  %2949 = vmatprep.mubr.f32.mxu0 0.0
  %2950 = vmatmul.mubr.f32.gmra.mrb[0].mxu0 %v2848
  %v2951 = vpop.f32.mrb[0].mxu0
  %v2952 = vadd.f32 0.0, %v2951
  %v2953 = vpop.f32.mrb[0].mxu0
  %2954 = vdwg.mxu0
  %v2955 = vadd.f32 %v2062, %v2917
  %v2956 = vadd.f32 %v2067, %v2922
  %v2957 = vadd.f32 %v2072, %v2927
  %v2958 = vadd.f32 %v2077, %v2932
  %v2959 = vadd.f32 %v2082, %v2937
  %v2960 = vadd.f32 %v2087, %v2942
  %v2961 = vadd.f32 %v2092, %v2947
  %v2962 = vadd.f32 %v2097, %v2952
  %s2963 = scalar_lea.vmem %s2, 96
  %v2964 = vld [vmem:[%s2963] sm:$0xff]
  %v2965 = vld [vmem:[%s2963 + $0x8] sm:$0xff]
  %v2966 = vld [vmem:[%s2963 + $0x10] sm:$0xff]
  %v2967 = vld [vmem:[%s2963 + $0x18] sm:$0xff]
  %s2968 = scalar_lea.vmem %s3, 3
  %v2969 = vld [vmem:[%s2968] sm:$0x1]
  %v2971 = vlaneseq
  %v2972 = vshrl.u32 %v2971, 7
  %v2973 = vsub.s32 0, %v2972
  %v2974 = vrot.slane %v2969, %v2973
  %2976 = vmatprep.subr.mxu0 0.0
  %2977 = vmatpush1.msra.mxu0 %v2964
  %2978 = vmatprep.subr.mxu0 0.0
  %2979 = vmatpush1.msra.mxu0 %v2965
  %2980 = vmatprep.subr.mxu0 0.0
  %2981 = vmatpush1.msra.mxu0 %v2966
  %2982 = vmatprep.subr.mxu0 0.0
  %2983 = vmatpush1.msra.mxu0 %v2967
  %2984 = vmatprep.subr.mxu0 0.0
  %2985 = vmatpush1.msra.mxu0 0.0
  %2986 = vmatprep.subr.mxu0 0.0
  %2987 = vmatpush1.msra.mxu0 0.0
  %2988 = vmatprep.subr.mxu0 0.0
  %2989 = vmatpush1.msra.mxu0 0.0
  %2990 = vmatprep.subr.mxu0 0.0
  %2991 = vmatpush1.msra.mxu0 0.0
  %2992 = vmatprep.subr.mxu0 0.0
  %2993 = vmatpush1.msra.mxu0 0.0
  %2994 = vmatprep.subr.mxu0 0.0
  %2995 = vmatpush1.msra.mxu0 0.0
  %2996 = vmatprep.subr.mxu0 0.0
  %2997 = vmatpush1.msra.mxu0 0.0
  %2998 = vmatprep.subr.mxu0 0.0
  %2999 = vmatpush1.msra.mxu0 0.0
  %3000 = vmatprep.subr.mxu0 0.0
  %3001 = vmatpush1.msra.mxu0 0.0
  %3002 = vmatprep.subr.mxu0 0.0
  %3003 = vmatpush1.msra.mxu0 0.0
  %3004 = vmatprep.subr.mxu0 0.0
  %3005 = vmatpush1.msra.mxu0 0.0
  %3006 = vmatprep.subr.mxu0 0.0
  %3007 = vmatpush1.msra.mxu0 0.0
  %3008 = vmatprep.subr.mxu0 0.0
  %3009 = vmatpush1.msra.mxu0 0.0
  %3010 = vmatprep.subr.mxu0 0.0
  %3011 = vmatpush1.msra.mxu0 0.0
  %3012 = vmatprep.subr.mxu0 0.0
  %3013 = vmatpush1.msra.mxu0 0.0
  %3014 = vmatprep.subr.mxu0 0.0
  %3015 = vmatpush1.msra.mxu0 0.0
  %3016 = vmatprep.subr.mxu0 0.0
  %3017 = vmatpush1.msra.mxu0 0.0
  %3018 = vmatprep.subr.mxu0 0.0
  %3019 = vmatpush1.msra.mxu0 0.0
  %3020 = vmatprep.subr.mxu0 0.0
  %3021 = vmatpush1.msra.mxu0 0.0
  %3022 = vmatprep.subr.mxu0 0.0
  %3023 = vmatpush1.msra.mxu0 0.0
  %3024 = vmatprep.subr.mxu0 0.0
  %3025 = vmatpush1.msra.mxu0 0.0
  %3026 = vmatprep.subr.mxu0 0.0
  %3027 = vmatpush1.msra.mxu0 0.0
  %3028 = vmatprep.subr.mxu0 0.0
  %3029 = vmatpush1.msra.mxu0 0.0
  %3030 = vmatprep.subr.mxu0 0.0
  %3031 = vmatpush1.msra.mxu0 0.0
  %3032 = vmatprep.subr.mxu0 0.0
  %3033 = vmatpush1.msra.mxu0 0.0
  %3034 = vmatprep.subr.mxu0 0.0
  %3035 = vmatpush1.msra.mxu0 0.0
  %3036 = vmatprep.subr.mxu0 0.0
  %3037 = vmatpush1.msra.mxu0 0.0
  %3038 = vmatprep.subr.mxu0 0.0
  %3039 = vmatpush1.msra.mxu0 0.0
  %3040 = vmatprep.mubr.f32.mxu0 0.0
  %3041 = vmatmul.mubr.f32.gmra.mrb[0].mxu0 %v379
  %v3042 = vpop.f32.mrb[0].mxu0
  %v3043 = vadd.f32 %v2974, %v3042
  %v3044 = vpop.f32.mrb[0].mxu0
  %3045 = vmatprep.mubr.f32.mxu0 0.0
  %3046 = vmatmul.mubr.f32.gmra.mrb[0].mxu0 %v382
  %v3047 = vpop.f32.mrb[0].mxu0
  %v3048 = vadd.f32 %v2974, %v3047
  %v3049 = vpop.f32.mrb[0].mxu0
  %3050 = vmatprep.mubr.f32.mxu0 0.0
  %3051 = vmatmul.mubr.f32.gmra.mrb[0].mxu0 %v385
  %v3052 = vpop.f32.mrb[0].mxu0
  %v3053 = vadd.f32 %v2974, %v3052
  %v3054 = vpop.f32.mrb[0].mxu0
  %3055 = vmatprep.mubr.f32.mxu0 0.0
  %3056 = vmatmul.mubr.f32.gmra.mrb[0].mxu0 %v388
  %v3057 = vpop.f32.mrb[0].mxu0
  %v3058 = vadd.f32 %v2974, %v3057
  %v3059 = vpop.f32.mrb[0].mxu0
  %3060 = vmatprep.mubr.f32.mxu0 0.0
  %3061 = vmatmul.mubr.f32.gmra.mrb[0].mxu0 %v391
  %v3062 = vpop.f32.mrb[0].mxu0
  %v3063 = vadd.f32 %v2974, %v3062
  %v3064 = vpop.f32.mrb[0].mxu0
  %3065 = vmatprep.mubr.f32.mxu0 0.0
  %3066 = vmatmul.mubr.f32.gmra.mrb[0].mxu0 %v394
  %v3067 = vpop.f32.mrb[0].mxu0
  %v3068 = vadd.f32 %v2974, %v3067
  %v3069 = vpop.f32.mrb[0].mxu0
  %3070 = vmatprep.mubr.f32.mxu0 0.0
  %3071 = vmatmul.mubr.f32.gmra.mrb[0].mxu0 %v397
  %v3072 = vpop.f32.mrb[0].mxu0
  %v3073 = vadd.f32 %v2974, %v3072
  %v3074 = vpop.f32.mrb[0].mxu0
  %3075 = vmatprep.mubr.f32.mxu0 0.0
  %3076 = vmatmul.mubr.f32.gmra.mrb[0].mxu0 %v400
  %v3077 = vpop.f32.mrb[0].mxu0
  %v3078 = vadd.f32 %v2974, %v3077
  %v3079 = vpop.f32.mrb[0].mxu0
  %3080 = vdwg.mxu0
  %s3081 = scalar_lea.vmem %s2, 224
  %v3082 = vld [vmem:[%s3081] sm:$0xff]
  %v3083 = vld [vmem:[%s3081 + $0x8] sm:$0xff]
  %v3084 = vld [vmem:[%s3081 + $0x10] sm:$0xff]
  %v3085 = vld [vmem:[%s3081 + $0x18] sm:$0xff]
  %s3086 = scalar_lea.vmem %s3, 7
  %v3087 = vld [vmem:[%s3086] sm:$0x1]
  %v3089 = vlaneseq
  %v3090 = vshrl.u32 %v3089, 7
  %v3091 = vsub.s32 0, %v3090
  %v3092 = vrot.slane %v3087, %v3091
  %3094 = vmatprep.subr.mxu0 0.0
  %3095 = vmatpush1.msra.mxu0 %v3082
  %3096 = vmatprep.subr.mxu0 0.0
  %3097 = vmatpush1.msra.mxu0 %v3083
  %3098 = vmatprep.subr.mxu0 0.0
  %3099 = vmatpush1.msra.mxu0 %v3084
  %3100 = vmatprep.subr.mxu0 0.0
  %3101 = vmatpush1.msra.mxu0 %v3085
  %3102 = vmatprep.subr.mxu0 0.0
  %3103 = vmatpush1.msra.mxu0 0.0
  %3104 = vmatprep.subr.mxu0 0.0
  %3105 = vmatpush1.msra.mxu0 0.0
  %3106 = vmatprep.subr.mxu0 0.0
  %3107 = vmatpush1.msra.mxu0 0.0
  %3108 = vmatprep.subr.mxu0 0.0
  %3109 = vmatpush1.msra.mxu0 0.0
  %3110 = vmatprep.subr.mxu0 0.0
  %3111 = vmatpush1.msra.mxu0 0.0
  %3112 = vmatprep.subr.mxu0 0.0
  %3113 = vmatpush1.msra.mxu0 0.0
  %3114 = vmatprep.subr.mxu0 0.0
  %3115 = vmatpush1.msra.mxu0 0.0
  %3116 = vmatprep.subr.mxu0 0.0
  %3117 = vmatpush1.msra.mxu0 0.0
  %3118 = vmatprep.subr.mxu0 0.0
  %3119 = vmatpush1.msra.mxu0 0.0
  %3120 = vmatprep.subr.mxu0 0.0
  %3121 = vmatpush1.msra.mxu0 0.0
  %3122 = vmatprep.subr.mxu0 0.0
  %3123 = vmatpush1.msra.mxu0 0.0
  %3124 = vmatprep.subr.mxu0 0.0
  %3125 = vmatpush1.msra.mxu0 0.0
  %3126 = vmatprep.subr.mxu0 0.0
  %3127 = vmatpush1.msra.mxu0 0.0
  %3128 = vmatprep.subr.mxu0 0.0
  %3129 = vmatpush1.msra.mxu0 0.0
  %3130 = vmatprep.subr.mxu0 0.0
  %3131 = vmatpush1.msra.mxu0 0.0
  %3132 = vmatprep.subr.mxu0 0.0
  %3133 = vmatpush1.msra.mxu0 0.0
  %3134 = vmatprep.subr.mxu0 0.0
  %3135 = vmatpush1.msra.mxu0 0.0
  %3136 = vmatprep.subr.mxu0 0.0
  %3137 = vmatpush1.msra.mxu0 0.0
  %3138 = vmatprep.subr.mxu0 0.0
  %3139 = vmatpush1.msra.mxu0 0.0
  %3140 = vmatprep.subr.mxu0 0.0
  %3141 = vmatpush1.msra.mxu0 0.0
  %3142 = vmatprep.subr.mxu0 0.0
  %3143 = vmatpush1.msra.mxu0 0.0
  %3144 = vmatprep.subr.mxu0 0.0
  %3145 = vmatpush1.msra.mxu0 0.0
  %3146 = vmatprep.subr.mxu0 0.0
  %3147 = vmatpush1.msra.mxu0 0.0
  %3148 = vmatprep.subr.mxu0 0.0
  %3149 = vmatpush1.msra.mxu0 0.0
  %3150 = vmatprep.subr.mxu0 0.0
  %3151 = vmatpush1.msra.mxu0 0.0
  %3152 = vmatprep.subr.mxu0 0.0
  %3153 = vmatpush1.msra.mxu0 0.0
  %3154 = vmatprep.subr.mxu0 0.0
  %3155 = vmatpush1.msra.mxu0 0.0
  %3156 = vmatprep.subr.mxu0 0.0
  %3157 = vmatpush1.msra.mxu0 0.0
  %3158 = vmatprep.mubr.f32.mxu0 0.0
  %3159 = vmatmul.mubr.f32.gmra.mrb[0].mxu0 %v379
  %v3160 = vpop.f32.mrb[0].mxu0
  %v3161 = vadd.f32 %v3092, %v3160
  %v3162 = vpop.f32.mrb[0].mxu0
  %3163 = vmatprep.mubr.f32.mxu0 0.0
  %3164 = vmatmul.mubr.f32.gmra.mrb[0].mxu0 %v382
  %v3165 = vpop.f32.mrb[0].mxu0
  %v3166 = vadd.f32 %v3092, %v3165
  %v3167 = vpop.f32.mrb[0].mxu0
  %3168 = vmatprep.mubr.f32.mxu0 0.0
  %3169 = vmatmul.mubr.f32.gmra.mrb[0].mxu0 %v385
  %v3170 = vpop.f32.mrb[0].mxu0
  %v3171 = vadd.f32 %v3092, %v3170
  %v3172 = vpop.f32.mrb[0].mxu0
  %3173 = vmatprep.mubr.f32.mxu0 0.0
  %3174 = vmatmul.mubr.f32.gmra.mrb[0].mxu0 %v388
  %v3175 = vpop.f32.mrb[0].mxu0
  %v3176 = vadd.f32 %v3092, %v3175
  %v3177 = vpop.f32.mrb[0].mxu0
  %3178 = vmatprep.mubr.f32.mxu0 0.0
  %3179 = vmatmul.mubr.f32.gmra.mrb[0].mxu0 %v391
  %v3180 = vpop.f32.mrb[0].mxu0
  %v3181 = vadd.f32 %v3092, %v3180
  %v3182 = vpop.f32.mrb[0].mxu0
  %3183 = vmatprep.mubr.f32.mxu0 0.0
  %3184 = vmatmul.mubr.f32.gmra.mrb[0].mxu0 %v394
  %v3185 = vpop.f32.mrb[0].mxu0
  %v3186 = vadd.f32 %v3092, %v3185
  %v3187 = vpop.f32.mrb[0].mxu0
  %3188 = vmatprep.mubr.f32.mxu0 0.0
  %3189 = vmatmul.mubr.f32.gmra.mrb[0].mxu0 %v397
  %v3190 = vpop.f32.mrb[0].mxu0
  %v3191 = vadd.f32 %v3092, %v3190
  %v3192 = vpop.f32.mrb[0].mxu0
  %3193 = vmatprep.mubr.f32.mxu0 0.0
  %3194 = vmatmul.mubr.f32.gmra.mrb[0].mxu0 %v400
  %v3195 = vpop.f32.mrb[0].mxu0
  %v3196 = vadd.f32 %v3092, %v3195
  %v3197 = vpop.f32.mrb[0].mxu0
  %3198 = vdwg.mxu0
  %s3199 = scalar_lea.vmem %s2, 352
  %v3200 = vld [vmem:[%s3199] sm:$0xff]
  %v3201 = vld [vmem:[%s3199 + $0x8] sm:$0xff]
  %v3202 = vld [vmem:[%s3199 + $0x10] sm:$0xff]
  %v3203 = vld [vmem:[%s3199 + $0x18] sm:$0xff]
  %s3204 = scalar_lea.vmem %s3, 11
  %v3205 = vld [vmem:[%s3204] sm:$0x1]
  %v3207 = vlaneseq
  %v3208 = vshrl.u32 %v3207, 7
  %v3209 = vsub.s32 0, %v3208
  %v3210 = vrot.slane %v3205, %v3209
  %3212 = vmatprep.subr.mxu0 0.0
  %3213 = vmatpush1.msra.mxu0 %v3200
  %3214 = vmatprep.subr.mxu0 0.0
  %3215 = vmatpush1.msra.mxu0 %v3201
  %3216 = vmatprep.subr.mxu0 0.0
  %3217 = vmatpush1.msra.mxu0 %v3202
  %3218 = vmatprep.subr.mxu0 0.0
  %3219 = vmatpush1.msra.mxu0 %v3203
  %3220 = vmatprep.subr.mxu0 0.0
  %3221 = vmatpush1.msra.mxu0 0.0
  %3222 = vmatprep.subr.mxu0 0.0
  %3223 = vmatpush1.msra.mxu0 0.0
  %3224 = vmatprep.subr.mxu0 0.0
  %3225 = vmatpush1.msra.mxu0 0.0
  %3226 = vmatprep.subr.mxu0 0.0
  %3227 = vmatpush1.msra.mxu0 0.0
  %3228 = vmatprep.subr.mxu0 0.0
  %3229 = vmatpush1.msra.mxu0 0.0
  %3230 = vmatprep.subr.mxu0 0.0
  %3231 = vmatpush1.msra.mxu0 0.0
  %3232 = vmatprep.subr.mxu0 0.0
  %3233 = vmatpush1.msra.mxu0 0.0
  %3234 = vmatprep.subr.mxu0 0.0
  %3235 = vmatpush1.msra.mxu0 0.0
  %3236 = vmatprep.subr.mxu0 0.0
  %3237 = vmatpush1.msra.mxu0 0.0
  %3238 = vmatprep.subr.mxu0 0.0
  %3239 = vmatpush1.msra.mxu0 0.0
  %3240 = vmatprep.subr.mxu0 0.0
  %3241 = vmatpush1.msra.mxu0 0.0
  %3242 = vmatprep.subr.mxu0 0.0
  %3243 = vmatpush1.msra.mxu0 0.0
  %3244 = vmatprep.subr.mxu0 0.0
  %3245 = vmatpush1.msra.mxu0 0.0
  %3246 = vmatprep.subr.mxu0 0.0
  %3247 = vmatpush1.msra.mxu0 0.0
  %3248 = vmatprep.subr.mxu0 0.0
  %3249 = vmatpush1.msra.mxu0 0.0
  %3250 = vmatprep.subr.mxu0 0.0
  %3251 = vmatpush1.msra.mxu0 0.0
  %3252 = vmatprep.subr.mxu0 0.0
  %3253 = vmatpush1.msra.mxu0 0.0
  %3254 = vmatprep.subr.mxu0 0.0
  %3255 = vmatpush1.msra.mxu0 0.0
  %3256 = vmatprep.subr.mxu0 0.0
  %3257 = vmatpush1.msra.mxu0 0.0
  %3258 = vmatprep.subr.mxu0 0.0
  %3259 = vmatpush1.msra.mxu0 0.0
  %3260 = vmatprep.subr.mxu0 0.0
  %3261 = vmatpush1.msra.mxu0 0.0
  %3262 = vmatprep.subr.mxu0 0.0
  %3263 = vmatpush1.msra.mxu0 0.0
  %3264 = vmatprep.subr.mxu0 0.0
  %3265 = vmatpush1.msra.mxu0 0.0
  %3266 = vmatprep.subr.mxu0 0.0
  %3267 = vmatpush1.msra.mxu0 0.0
  %3268 = vmatprep.subr.mxu0 0.0
  %3269 = vmatpush1.msra.mxu0 0.0
  %3270 = vmatprep.subr.mxu0 0.0
  %3271 = vmatpush1.msra.mxu0 0.0
  %3272 = vmatprep.subr.mxu0 0.0
  %3273 = vmatpush1.msra.mxu0 0.0
  %3274 = vmatprep.subr.mxu0 0.0
  %3275 = vmatpush1.msra.mxu0 0.0
  %3276 = vmatprep.mubr.f32.mxu0 0.0
  %3277 = vmatmul.mubr.f32.gmra.mrb[0].mxu0 %v379
  %v3278 = vpop.f32.mrb[0].mxu0
  %v3279 = vadd.f32 %v3210, %v3278
  %v3280 = vpop.f32.mrb[0].mxu0
  %3281 = vmatprep.mubr.f32.mxu0 0.0
  %3282 = vmatmul.mubr.f32.gmra.mrb[0].mxu0 %v382
  %v3283 = vpop.f32.mrb[0].mxu0
  %v3284 = vadd.f32 %v3210, %v3283
  %v3285 = vpop.f32.mrb[0].mxu0
  %3286 = vmatprep.mubr.f32.mxu0 0.0
  %3287 = vmatmul.mubr.f32.gmra.mrb[0].mxu0 %v385
  %v3288 = vpop.f32.mrb[0].mxu0
  %v3289 = vadd.f32 %v3210, %v3288
  %v3290 = vpop.f32.mrb[0].mxu0
  %3291 = vmatprep.mubr.f32.mxu0 0.0
  %3292 = vmatmul.mubr.f32.gmra.mrb[0].mxu0 %v388
  %v3293 = vpop.f32.mrb[0].mxu0
  %v3294 = vadd.f32 %v3210, %v3293
  %v3295 = vpop.f32.mrb[0].mxu0
  %3296 = vmatprep.mubr.f32.mxu0 0.0
  %3297 = vmatmul.mubr.f32.gmra.mrb[0].mxu0 %v391
  %v3298 = vpop.f32.mrb[0].mxu0
  %v3299 = vadd.f32 %v3210, %v3298
  %v3300 = vpop.f32.mrb[0].mxu0
  %3301 = vmatprep.mubr.f32.mxu0 0.0
  %3302 = vmatmul.mubr.f32.gmra.mrb[0].mxu0 %v394
  %v3303 = vpop.f32.mrb[0].mxu0
  %v3304 = vadd.f32 %v3210, %v3303
  %v3305 = vpop.f32.mrb[0].mxu0
  %3306 = vmatprep.mubr.f32.mxu0 0.0
  %3307 = vmatmul.mubr.f32.gmra.mrb[0].mxu0 %v397
  %v3308 = vpop.f32.mrb[0].mxu0
  %v3309 = vadd.f32 %v3210, %v3308
  %v3310 = vpop.f32.mrb[0].mxu0
  %3311 = vmatprep.mubr.f32.mxu0 0.0
  %3312 = vmatmul.mubr.f32.gmra.mrb[0].mxu0 %v400
  %v3313 = vpop.f32.mrb[0].mxu0
  %v3314 = vadd.f32 %v3210, %v3313
  %v3315 = vpop.f32.mrb[0].mxu0
  %3316 = vdwg.mxu0
  %v3318 = vsel %vm743, %v3043, 0
  %v3321 = vsel %vm743, %v3048, 0
  %v3324 = vsel %vm743, %v3053, 0
  %v3327 = vsel %vm743, %v3058, 0
  %v3330 = vsel %vm743, %v3063, 0
  %v3333 = vsel %vm743, %v3068, 0
  %v3336 = vsel %vm743, %v3073, 0
  %v3339 = vsel %vm743, %v3078, 0
  %v3342 = vsel %vm743, %v3161, 0
  %v3345 = vsel %vm743, %v3166, 0
  %v3348 = vsel %vm743, %v3171, 0
  %v3351 = vsel %vm743, %v3176, 0
  %v3354 = vsel %vm743, %v3181, 0
  %v3357 = vsel %vm743, %v3186, 0
  %v3360 = vsel %vm743, %v3191, 0
  %v3363 = vsel %vm743, %v3196, 0
  %3365 = vmatprep.subr.mxu0 0.0
  %3366 = vmatpush1.xpose.msra.mxu0 %v3342
  %3367 = vmatprep.subr.mxu0 0.0
  %3368 = vmatpush1.xpose.msra.mxu0 %v3345
  %3369 = vmatprep.subr.mxu0 0.0
  %3370 = vmatpush1.xpose.msra.mxu0 %v3348
  %3371 = vmatprep.subr.mxu0 0.0
  %3372 = vmatpush1.xpose.msra.mxu0 %v3351
  %3373 = vmatprep.subr.mxu0 0.0
  %3374 = vmatpush1.xpose.msra.mxu0 %v3354
  %3375 = vmatprep.subr.mxu0 0.0
  %3376 = vmatpush1.xpose.msra.mxu0 %v3357
  %3377 = vmatprep.subr.mxu0 0.0
  %3378 = vmatpush1.xpose.msra.mxu0 %v3360
  %3379 = vmatprep.subr.mxu0 0.0
  %3380 = vmatpush1.xpose.msra.mxu0 %v3363
  %3381 = vmatprep.subr.mxu0 0.0
  %3382 = vmatpush1.xpose.msra.mxu0 0.0
  %3383 = vmatprep.subr.mxu0 0.0
  %3384 = vmatpush1.xpose.msra.mxu0 0.0
  %3385 = vmatprep.subr.mxu0 0.0
  %3386 = vmatpush1.xpose.msra.mxu0 0.0
  %3387 = vmatprep.subr.mxu0 0.0
  %3388 = vmatpush1.xpose.msra.mxu0 0.0
  %3389 = vmatprep.subr.mxu0 0.0
  %3390 = vmatpush1.xpose.msra.mxu0 0.0
  %3391 = vmatprep.subr.mxu0 0.0
  %3392 = vmatpush1.xpose.msra.mxu0 0.0
  %3393 = vmatprep.subr.mxu0 0.0
  %3394 = vmatpush1.xpose.msra.mxu0 0.0
  %3395 = vmatprep.subr.mxu0 0.0
  %3396 = vmatpush1.xpose.msra.mxu0 0.0
  %3397 = vmatprep.subr.mxu0 0.0
  %3398 = vmatpush1.xpose.msra.mxu0 0.0
  %3399 = vmatprep.subr.mxu0 0.0
  %3400 = vmatpush1.xpose.msra.mxu0 0.0
  %3401 = vmatprep.subr.mxu0 0.0
  %3402 = vmatpush1.xpose.msra.mxu0 0.0
  %3403 = vmatprep.subr.mxu0 0.0
  %3404 = vmatpush1.xpose.msra.mxu0 0.0
  %3405 = vmatprep.subr.mxu0 0.0
  %3406 = vmatpush1.xpose.msra.mxu0 0.0
  %3407 = vmatprep.subr.mxu0 0.0
  %3408 = vmatpush1.xpose.msra.mxu0 0.0
  %3409 = vmatprep.subr.mxu0 0.0
  %3410 = vmatpush1.xpose.msra.mxu0 0.0
  %3411 = vmatprep.subr.mxu0 0.0
  %3412 = vmatpush1.xpose.msra.mxu0 0.0
  %3413 = vmatprep.subr.mxu0 0.0
  %3414 = vmatpush1.xpose.msra.mxu0 0.0
  %3415 = vmatprep.subr.mxu0 0.0
  %3416 = vmatpush1.xpose.msra.mxu0 0.0
  %3417 = vmatprep.subr.mxu0 0.0
  %3418 = vmatpush1.xpose.msra.mxu0 0.0
  %3419 = vmatprep.subr.mxu0 0.0
  %3420 = vmatpush1.xpose.msra.mxu0 0.0
  %3421 = vmatprep.subr.mxu0 0.0
  %3422 = vmatpush1.xpose.msra.mxu0 0.0
  %3423 = vmatprep.subr.mxu0 0.0
  %3424 = vmatpush1.xpose.msra.mxu0 0.0
  %3425 = vmatprep.subr.mxu0 0.0
  %3426 = vmatpush1.xpose.msra.mxu0 0.0
  %3427 = vmatprep.subr.mxu0 0.0
  %3428 = vmatpush1.xpose.msra.mxu0 0.0
  %3429 = vmatprep.mubr.f32.mxu0 0.0
  %3430 = vmatmul.mubr.f32.gmra.mrb[0].mxu0 %v3318
  %v3431 = vpop.f32.mrb[0].mxu0
  %v3432 = vadd.f32 %v347, %v3431
  %v3433 = vpop.f32.mrb[0].mxu0
  %3434 = vmatprep.mubr.f32.mxu0 0.0
  %3435 = vmatmul.mubr.f32.gmra.mrb[0].mxu0 %v3321
  %v3436 = vpop.f32.mrb[0].mxu0
  %v3437 = vadd.f32 %v348, %v3436
  %v3438 = vpop.f32.mrb[0].mxu0
  %3439 = vmatprep.mubr.f32.mxu0 0.0
  %3440 = vmatmul.mubr.f32.gmra.mrb[0].mxu0 %v3324
  %v3441 = vpop.f32.mrb[0].mxu0
  %v3442 = vadd.f32 %v349, %v3441
  %v3443 = vpop.f32.mrb[0].mxu0
  %3444 = vmatprep.mubr.f32.mxu0 0.0
  %3445 = vmatmul.mubr.f32.gmra.mrb[0].mxu0 %v3327
  %v3446 = vpop.f32.mrb[0].mxu0
  %v3447 = vadd.f32 %v350, %v3446
  %v3448 = vpop.f32.mrb[0].mxu0
  %3449 = vmatprep.mubr.f32.mxu0 0.0
  %3450 = vmatmul.mubr.f32.gmra.mrb[0].mxu0 %v3330
  %v3451 = vpop.f32.mrb[0].mxu0
  %v3452 = vadd.f32 %v351, %v3451
  %v3453 = vpop.f32.mrb[0].mxu0
  %3454 = vmatprep.mubr.f32.mxu0 0.0
  %3455 = vmatmul.mubr.f32.gmra.mrb[0].mxu0 %v3333
  %v3456 = vpop.f32.mrb[0].mxu0
  %v3457 = vadd.f32 %v352, %v3456
  %v3458 = vpop.f32.mrb[0].mxu0
  %3459 = vmatprep.mubr.f32.mxu0 0.0
  %3460 = vmatmul.mubr.f32.gmra.mrb[0].mxu0 %v3336
  %v3461 = vpop.f32.mrb[0].mxu0
  %v3462 = vadd.f32 %v353, %v3461
  %v3463 = vpop.f32.mrb[0].mxu0
  %3464 = vmatprep.mubr.f32.mxu0 0.0
  %3465 = vmatmul.mubr.f32.gmra.mrb[0].mxu0 %v3339
  %v3466 = vpop.f32.mrb[0].mxu0
  %v3467 = vadd.f32 %v354, %v3466
  %v3468 = vpop.f32.mrb[0].mxu0
  %3469 = vdwg.mxu0
  %v3470 = vsel %vm897, %v3432, -inf
  %3471 = vmax.xlane.f32.xlu0 %v3470
  %v3472 = vpop.xlane.xlu0 %3471
  %v3473 = vsel %vm897, %v3437, -inf
  %3474 = vmax.xlane.f32.xlu0 %v3473
  %v3475 = vpop.xlane.xlu0 %3474
  %v3476 = vsel %vm897, %v3442, -inf
  %3477 = vmax.xlane.f32.xlu0 %v3476
  %v3478 = vpop.xlane.xlu0 %3477
  %v3479 = vsel %vm897, %v3447, -inf
  %3480 = vmax.xlane.f32.xlu0 %v3479
  %v3481 = vpop.xlane.xlu0 %3480
  %v3482 = vsel %vm897, %v3452, -inf
  %3483 = vmax.xlane.f32.xlu0 %v3482
  %v3484 = vpop.xlane.xlu0 %3483
  %v3485 = vsel %vm897, %v3457, -inf
  %3486 = vmax.xlane.f32.xlu0 %v3485
  %v3487 = vpop.xlane.xlu0 %3486
  %v3488 = vsel %vm897, %v3462, -inf
  %3489 = vmax.xlane.f32.xlu0 %v3488
  %v3490 = vpop.xlane.xlu0 %3489
  %v3491 = vsel %vm897, %v3467, -inf
  %3492 = vmax.xlane.f32.xlu0 %v3491
  %v3493 = vpop.xlane.xlu0 %3492
  %v3494 = vsub.f32 %v3432, %v3472
  %v3495 = vsub.f32 %v3437, %v3475
  %v3496 = vsub.f32 %v3442, %v3478
  %v3497 = vsub.f32 %v3447, %v3481
  %v3498 = vsub.f32 %v3452, %v3484
  %v3499 = vsub.f32 %v3457, %v3487
  %v3500 = vsub.f32 %v3462, %v3490
  %v3501 = vsub.f32 %v3467, %v3493
  %v3502 = vmul.f32 %v3494, 1.442695
  %v3503 = vpow.pop %v3502
  %v3504 = vmul.f32 %v3495, 1.442695
  %v3505 = vpow.pop %v3504
  %v3506 = vmul.f32 %v3496, 1.442695
  %v3507 = vpow.pop %v3506
  %v3508 = vmul.f32 %v3497, 1.442695
  %v3509 = vpow.pop %v3508
  %v3510 = vmul.f32 %v3498, 1.442695
  %v3511 = vpow.pop %v3510
  %v3512 = vmul.f32 %v3499, 1.442695
  %v3513 = vpow.pop %v3512
  %v3514 = vmul.f32 %v3500, 1.442695
  %v3515 = vpow.pop %v3514
  %v3516 = vmul.f32 %v3501, 1.442695
  %v3517 = vpow.pop %v3516
  %v3518 = vsel %vm897, %v3503, 0.0
  %3519 = vadd.xlane.f32.xlu0 %v3518
  %v3520 = vpop.xlane.xlu0 %3519
  %v3521 = vsel %vm897, %v3505, 0.0
  %3522 = vadd.xlane.f32.xlu0 %v3521
  %v3523 = vpop.xlane.xlu0 %3522
  %v3524 = vsel %vm897, %v3507, 0.0
  %3525 = vadd.xlane.f32.xlu0 %v3524
  %v3526 = vpop.xlane.xlu0 %3525
  %v3527 = vsel %vm897, %v3509, 0.0
  %3528 = vadd.xlane.f32.xlu0 %v3527
  %v3529 = vpop.xlane.xlu0 %3528
  %v3530 = vsel %vm897, %v3511, 0.0
  %3531 = vadd.xlane.f32.xlu0 %v3530
  %v3532 = vpop.xlane.xlu0 %3531
  %v3533 = vsel %vm897, %v3513, 0.0
  %3534 = vadd.xlane.f32.xlu0 %v3533
  %v3535 = vpop.xlane.xlu0 %3534
  %v3536 = vsel %vm897, %v3515, 0.0
  %3537 = vadd.xlane.f32.xlu0 %v3536
  %v3538 = vpop.xlane.xlu0 %3537
  %v3539 = vsel %vm897, %v3517, 0.0
  %3540 = vadd.xlane.f32.xlu0 %v3539
  %v3541 = vpop.xlane.xlu0 %3540
  %v3542 = vrcp.pop %v3520
  %v3543 = vmul.f32 %v3503, %v3542
  %v3544 = vrcp.pop %v3523
  %v3545 = vmul.f32 %v3505, %v3544
  %v3546 = vrcp.pop %v3526
  %v3547 = vmul.f32 %v3507, %v3546
  %v3548 = vrcp.pop %v3529
  %v3549 = vmul.f32 %v3509, %v3548
  %v3550 = vrcp.pop %v3532
  %v3551 = vmul.f32 %v3511, %v3550
  %v3552 = vrcp.pop %v3535
  %v3553 = vmul.f32 %v3513, %v3552
  %v3554 = vrcp.pop %v3538
  %v3555 = vmul.f32 %v3515, %v3554
  %v3556 = vrcp.pop %v3541
  %v3557 = vmul.f32 %v3517, %v3556
  %v3559 = vsel %vm897, %v3543, 0
  %v3562 = vsel %vm897, %v3545, 0
  %v3565 = vsel %vm897, %v3547, 0
  %v3568 = vsel %vm897, %v3549, 0
  %v3571 = vsel %vm897, %v3551, 0
  %v3574 = vsel %vm897, %v3553, 0
  %v3577 = vsel %vm897, %v3555, 0
  %v3580 = vsel %vm897, %v3557, 0
  %3582 = vmatprep.subr.mxu0 0.0
  %3583 = vmatpush1.msra.mxu0 %v3279
  %3584 = vmatprep.subr.mxu0 0.0
  %3585 = vmatpush1.msra.mxu0 %v3284
  %3586 = vmatprep.subr.mxu0 0.0
  %3587 = vmatpush1.msra.mxu0 %v3289
  %3588 = vmatprep.subr.mxu0 0.0
  %3589 = vmatpush1.msra.mxu0 %v3294
  %3590 = vmatprep.subr.mxu0 0.0
  %3591 = vmatpush1.msra.mxu0 %v3299
  %3592 = vmatprep.subr.mxu0 0.0
  %3593 = vmatpush1.msra.mxu0 %v3304
  %3594 = vmatprep.subr.mxu0 0.0
  %3595 = vmatpush1.msra.mxu0 %v3309
  %3596 = vmatprep.subr.mxu0 0.0
  %3597 = vmatpush1.msra.mxu0 %v3314
  %3598 = vmatprep.subr.mxu0 0.0
  %3599 = vmatpush1.msra.mxu0 0.0
  %3600 = vmatprep.subr.mxu0 0.0
  %3601 = vmatpush1.msra.mxu0 0.0
  %3602 = vmatprep.subr.mxu0 0.0
  %3603 = vmatpush1.msra.mxu0 0.0
  %3604 = vmatprep.subr.mxu0 0.0
  %3605 = vmatpush1.msra.mxu0 0.0
  %3606 = vmatprep.subr.mxu0 0.0
  %3607 = vmatpush1.msra.mxu0 0.0
  %3608 = vmatprep.subr.mxu0 0.0
  %3609 = vmatpush1.msra.mxu0 0.0
  %3610 = vmatprep.subr.mxu0 0.0
  %3611 = vmatpush1.msra.mxu0 0.0
  %3612 = vmatprep.subr.mxu0 0.0
  %3613 = vmatpush1.msra.mxu0 0.0
  %3614 = vmatprep.subr.mxu0 0.0
  %3615 = vmatpush1.msra.mxu0 0.0
  %3616 = vmatprep.subr.mxu0 0.0
  %3617 = vmatpush1.msra.mxu0 0.0
  %3618 = vmatprep.subr.mxu0 0.0
  %3619 = vmatpush1.msra.mxu0 0.0
  %3620 = vmatprep.subr.mxu0 0.0
  %3621 = vmatpush1.msra.mxu0 0.0
  %3622 = vmatprep.subr.mxu0 0.0
  %3623 = vmatpush1.msra.mxu0 0.0
  %3624 = vmatprep.subr.mxu0 0.0
  %3625 = vmatpush1.msra.mxu0 0.0
  %3626 = vmatprep.subr.mxu0 0.0
  %3627 = vmatpush1.msra.mxu0 0.0
  %3628 = vmatprep.subr.mxu0 0.0
  %3629 = vmatpush1.msra.mxu0 0.0
  %3630 = vmatprep.subr.mxu0 0.0
  %3631 = vmatpush1.msra.mxu0 0.0
  %3632 = vmatprep.subr.mxu0 0.0
  %3633 = vmatpush1.msra.mxu0 0.0
  %3634 = vmatprep.subr.mxu0 0.0
  %3635 = vmatpush1.msra.mxu0 0.0
  %3636 = vmatprep.subr.mxu0 0.0
  %3637 = vmatpush1.msra.mxu0 0.0
  %3638 = vmatprep.subr.mxu0 0.0
  %3639 = vmatpush1.msra.mxu0 0.0
  %3640 = vmatprep.subr.mxu0 0.0
  %3641 = vmatpush1.msra.mxu0 0.0
  %3642 = vmatprep.subr.mxu0 0.0
  %3643 = vmatpush1.msra.mxu0 0.0
  %3644 = vmatprep.subr.mxu0 0.0
  %3645 = vmatpush1.msra.mxu0 0.0
  %3646 = vmatprep.mubr.f32.mxu0 0.0
  %3647 = vmatmul.mubr.f32.gmra.mrb[0].mxu0 %v3559
  %v3648 = vpop.f32.mrb[0].mxu0
  %v3649 = vadd.f32 0.0, %v3648
  %v3650 = vpop.f32.mrb[0].mxu0
  %3651 = vmatprep.mubr.f32.mxu0 0.0
  %3652 = vmatmul.mubr.f32.gmra.mrb[0].mxu0 %v3562
  %v3653 = vpop.f32.mrb[0].mxu0
  %v3654 = vadd.f32 0.0, %v3653
  %v3655 = vpop.f32.mrb[0].mxu0
  %3656 = vmatprep.mubr.f32.mxu0 0.0
  %3657 = vmatmul.mubr.f32.gmra.mrb[0].mxu0 %v3565
  %v3658 = vpop.f32.mrb[0].mxu0
  %v3659 = vadd.f32 0.0, %v3658
  %v3660 = vpop.f32.mrb[0].mxu0
  %3661 = vmatprep.mubr.f32.mxu0 0.0
  %3662 = vmatmul.mubr.f32.gmra.mrb[0].mxu0 %v3568
  %v3663 = vpop.f32.mrb[0].mxu0
  %v3664 = vadd.f32 0.0, %v3663
  %v3665 = vpop.f32.mrb[0].mxu0
  %3666 = vmatprep.mubr.f32.mxu0 0.0
  %3667 = vmatmul.mubr.f32.gmra.mrb[0].mxu0 %v3571
  %v3668 = vpop.f32.mrb[0].mxu0
  %v3669 = vadd.f32 0.0, %v3668
  %v3670 = vpop.f32.mrb[0].mxu0
  %3671 = vmatprep.mubr.f32.mxu0 0.0
  %3672 = vmatmul.mubr.f32.gmra.mrb[0].mxu0 %v3574
  %v3673 = vpop.f32.mrb[0].mxu0
  %v3674 = vadd.f32 0.0, %v3673
  %v3675 = vpop.f32.mrb[0].mxu0
  %3676 = vmatprep.mubr.f32.mxu0 0.0
  %3677 = vmatmul.mubr.f32.gmra.mrb[0].mxu0 %v3577
  %v3678 = vpop.f32.mrb[0].mxu0
  %v3679 = vadd.f32 0.0, %v3678
  %v3680 = vpop.f32.mrb[0].mxu0
  %3681 = vmatprep.mubr.f32.mxu0 0.0
  %3682 = vmatmul.mubr.f32.gmra.mrb[0].mxu0 %v3580
  %v3683 = vpop.f32.mrb[0].mxu0
  %v3684 = vadd.f32 0.0, %v3683
  %v3685 = vpop.f32.mrb[0].mxu0
  %3686 = vdwg.mxu0
  %s3687 = scalar_lea.vmem %s4, 24
  %v3688 = vld [vmem:[%s3687] sm:$0xff]
  %v3690 = vsel %vm743, %v3649, 0
  %v3693 = vsel %vm743, %v3654, 0
  %v3696 = vsel %vm743, %v3659, 0
  %v3699 = vsel %vm743, %v3664, 0
  %v3702 = vsel %vm743, %v3669, 0
  %v3705 = vsel %vm743, %v3674, 0
  %v3708 = vsel %vm743, %v3679, 0
  %v3711 = vsel %vm743, %v3684, 0
  %3713 = vmatprep.subr.mxu0 0.0
  %3714 = vmatpush1.msra.mxu0 %v3688
  %3715 = vmatprep.subr.mxu0 0.0
  %3716 = vmatpush1.msra.mxu0 0.0
  %3717 = vmatprep.subr.mxu0 0.0
  %3718 = vmatpush1.msra.mxu0 0.0
  %3719 = vmatprep.subr.mxu0 0.0
  %3720 = vmatpush1.msra.mxu0 0.0
  %3721 = vmatprep.subr.mxu0 0.0
  %3722 = vmatpush1.msra.mxu0 0.0
  %3723 = vmatprep.subr.mxu0 0.0
  %3724 = vmatpush1.msra.mxu0 0.0
  %3725 = vmatprep.subr.mxu0 0.0
  %3726 = vmatpush1.msra.mxu0 0.0
  %3727 = vmatprep.subr.mxu0 0.0
  %3728 = vmatpush1.msra.mxu0 0.0
  %3729 = vmatprep.subr.mxu0 0.0
  %3730 = vmatpush1.msra.mxu0 0.0
  %3731 = vmatprep.subr.mxu0 0.0
  %3732 = vmatpush1.msra.mxu0 0.0
  %3733 = vmatprep.subr.mxu0 0.0
  %3734 = vmatpush1.msra.mxu0 0.0
  %3735 = vmatprep.subr.mxu0 0.0
  %3736 = vmatpush1.msra.mxu0 0.0
  %3737 = vmatprep.subr.mxu0 0.0
  %3738 = vmatpush1.msra.mxu0 0.0
  %3739 = vmatprep.subr.mxu0 0.0
  %3740 = vmatpush1.msra.mxu0 0.0
  %3741 = vmatprep.subr.mxu0 0.0
  %3742 = vmatpush1.msra.mxu0 0.0
  %3743 = vmatprep.subr.mxu0 0.0
  %3744 = vmatpush1.msra.mxu0 0.0
  %3745 = vmatprep.subr.mxu0 0.0
  %3746 = vmatpush1.msra.mxu0 0.0
  %3747 = vmatprep.subr.mxu0 0.0
  %3748 = vmatpush1.msra.mxu0 0.0
  %3749 = vmatprep.subr.mxu0 0.0
  %3750 = vmatpush1.msra.mxu0 0.0
  %3751 = vmatprep.subr.mxu0 0.0
  %3752 = vmatpush1.msra.mxu0 0.0
  %3753 = vmatprep.subr.mxu0 0.0
  %3754 = vmatpush1.msra.mxu0 0.0
  %3755 = vmatprep.subr.mxu0 0.0
  %3756 = vmatpush1.msra.mxu0 0.0
  %3757 = vmatprep.subr.mxu0 0.0
  %3758 = vmatpush1.msra.mxu0 0.0
  %3759 = vmatprep.subr.mxu0 0.0
  %3760 = vmatpush1.msra.mxu0 0.0
  %3761 = vmatprep.subr.mxu0 0.0
  %3762 = vmatpush1.msra.mxu0 0.0
  %3763 = vmatprep.subr.mxu0 0.0
  %3764 = vmatpush1.msra.mxu0 0.0
  %3765 = vmatprep.subr.mxu0 0.0
  %3766 = vmatpush1.msra.mxu0 0.0
  %3767 = vmatprep.subr.mxu0 0.0
  %3768 = vmatpush1.msra.mxu0 0.0
  %3769 = vmatprep.subr.mxu0 0.0
  %3770 = vmatpush1.msra.mxu0 0.0
  %3771 = vmatprep.subr.mxu0 0.0
  %3772 = vmatpush1.msra.mxu0 0.0
  %3773 = vmatprep.subr.mxu0 0.0
  %3774 = vmatpush1.msra.mxu0 0.0
  %3775 = vmatprep.subr.mxu0 0.0
  %3776 = vmatpush1.msra.mxu0 0.0
  %3777 = vmatprep.mubr.f32.mxu0 0.0
  %3778 = vmatmul.mubr.f32.gmra.mrb[0].mxu0 %v3690
  %v3779 = vpop.f32.mrb[0].mxu0
  %v3780 = vadd.f32 0.0, %v3779
  %v3781 = vpop.f32.mrb[0].mxu0
  %3782 = vmatprep.mubr.f32.mxu0 0.0
  %3783 = vmatmul.mubr.f32.gmra.mrb[0].mxu0 %v3693
  %v3784 = vpop.f32.mrb[0].mxu0
  %v3785 = vadd.f32 0.0, %v3784
  %v3786 = vpop.f32.mrb[0].mxu0
  %3787 = vmatprep.mubr.f32.mxu0 0.0
  %3788 = vmatmul.mubr.f32.gmra.mrb[0].mxu0 %v3696
  %v3789 = vpop.f32.mrb[0].mxu0
  %v3790 = vadd.f32 0.0, %v3789
  %v3791 = vpop.f32.mrb[0].mxu0
  %3792 = vmatprep.mubr.f32.mxu0 0.0
  %3793 = vmatmul.mubr.f32.gmra.mrb[0].mxu0 %v3699
  %v3794 = vpop.f32.mrb[0].mxu0
  %v3795 = vadd.f32 0.0, %v3794
  %v3796 = vpop.f32.mrb[0].mxu0
  %3797 = vmatprep.mubr.f32.mxu0 0.0
  %3798 = vmatmul.mubr.f32.gmra.mrb[0].mxu0 %v3702
  %v3799 = vpop.f32.mrb[0].mxu0
  %v3800 = vadd.f32 0.0, %v3799
  %v3801 = vpop.f32.mrb[0].mxu0
  %3802 = vmatprep.mubr.f32.mxu0 0.0
  %3803 = vmatmul.mubr.f32.gmra.mrb[0].mxu0 %v3705
  %v3804 = vpop.f32.mrb[0].mxu0
  %v3805 = vadd.f32 0.0, %v3804
  %v3806 = vpop.f32.mrb[0].mxu0
  %3807 = vmatprep.mubr.f32.mxu0 0.0
  %3808 = vmatmul.mubr.f32.gmra.mrb[0].mxu0 %v3708
  %v3809 = vpop.f32.mrb[0].mxu0
  %v3810 = vadd.f32 0.0, %v3809
  %v3811 = vpop.f32.mrb[0].mxu0
  %3812 = vmatprep.mubr.f32.mxu0 0.0
  %3813 = vmatmul.mubr.f32.gmra.mrb[0].mxu0 %v3711
  %v3814 = vpop.f32.mrb[0].mxu0
  %v3815 = vadd.f32 0.0, %v3814
  %v3816 = vpop.f32.mrb[0].mxu0
  %3817 = vdwg.mxu0
  %v3818 = vadd.f32 %v2955, %v3780
  %v3819 = vadd.f32 %v2956, %v3785
  %v3820 = vadd.f32 %v2957, %v3790
  %v3821 = vadd.f32 %v2958, %v3795
  %v3822 = vadd.f32 %v2959, %v3800
  %v3823 = vadd.f32 %v2960, %v3805
  %v3824 = vadd.f32 %v2961, %v3810
  %v3825 = vadd.f32 %v2962, %v3815
  %v3827 = vlaneseq
  %v3828 = vshrl.u32 %v3827, 7
  %v3829 = vsub.s32 0, %v3828
  %v3830 = vrot.slane %v355, %v3829
  %v3832 = vadd.f32 %v3818, %v3830
  %v3833 = vadd.f32 %v3819, %v3830
  %v3834 = vadd.f32 %v3820, %v3830
  %v3835 = vadd.f32 %v3821, %v3830
  %v3836 = vadd.f32 %v3822, %v3830
  %v3837 = vadd.f32 %v3823, %v3830
  %v3838 = vadd.f32 %v3824, %v3830
  %v3839 = vadd.f32 %v3825, %v3830
  %v3840 = vadd.f32 %v247, %v3832
  %v3841 = vadd.f32 %v252, %v3833
  %v3842 = vadd.f32 %v257, %v3834
  %v3843 = vadd.f32 %v262, %v3835
  %v3844 = vadd.f32 %v267, %v3836
  %v3845 = vadd.f32 %v272, %v3837
  %v3846 = vadd.f32 %v277, %v3838
  %v3847 = vadd.f32 %v282, %v3839
  %v3848 = vsel %vm377, %v3840, 0.0
  %3849 = vadd.xlane.f32.xlu0 %v3848
  %v3850 = vpop.xlane.xlu0 %3849
  %v3851 = vsel %vm377, %v3841, 0.0
  %3852 = vadd.xlane.f32.xlu0 %v3851
  %v3853 = vpop.xlane.xlu0 %3852
  %v3854 = vsel %vm377, %v3842, 0.0
  %3855 = vadd.xlane.f32.xlu0 %v3854
  %v3856 = vpop.xlane.xlu0 %3855
  %v3857 = vsel %vm377, %v3843, 0.0
  %3858 = vadd.xlane.f32.xlu0 %v3857
  %v3859 = vpop.xlane.xlu0 %3858
  %v3860 = vsel %vm377, %v3844, 0.0
  %3861 = vadd.xlane.f32.xlu0 %v3860
  %v3862 = vpop.xlane.xlu0 %3861
  %v3863 = vsel %vm377, %v3845, 0.0
  %3864 = vadd.xlane.f32.xlu0 %v3863
  %v3865 = vpop.xlane.xlu0 %3864
  %v3866 = vsel %vm377, %v3846, 0.0
  %3867 = vadd.xlane.f32.xlu0 %v3866
  %v3868 = vpop.xlane.xlu0 %3867
  %v3869 = vsel %vm377, %v3847, 0.0
  %3870 = vadd.xlane.f32.xlu0 %v3869
  %v3871 = vpop.xlane.xlu0 %3870
  %v3872 = vrcp.pop 32.0
  %v3873 = vmul.f32 %v3850, %v3872
  %v3874 = vmul.f32 %v3853, %v3872
  %v3875 = vmul.f32 %v3856, %v3872
  %v3876 = vmul.f32 %v3859, %v3872
  %v3877 = vmul.f32 %v3862, %v3872
  %v3878 = vmul.f32 %v3865, %v3872
  %v3879 = vmul.f32 %v3868, %v3872
  %v3880 = vmul.f32 %v3871, %v3872
  %v3881 = vsub.f32 %v3840, %v3873
  %v3882 = vsub.f32 %v3841, %v3874
  %v3883 = vsub.f32 %v3842, %v3875
  %v3884 = vsub.f32 %v3843, %v3876
  %v3885 = vsub.f32 %v3844, %v3877
  %v3886 = vsub.f32 %v3845, %v3878
  %v3887 = vsub.f32 %v3846, %v3879
  %v3888 = vsub.f32 %v3847, %v3880
  %v3889 = vmul.f32 %v3881, %v3881
  %v3890 = vmul.f32 %v3882, %v3882
  %v3891 = vmul.f32 %v3883, %v3883
  %v3892 = vmul.f32 %v3884, %v3884
  %v3893 = vmul.f32 %v3885, %v3885
  %v3894 = vmul.f32 %v3886, %v3886
  %v3895 = vmul.f32 %v3887, %v3887
  %v3896 = vmul.f32 %v3888, %v3888
  %v3897 = vsel %vm377, %v3889, 0.0
  %3898 = vadd.xlane.f32.xlu0 %v3897
  %v3899 = vpop.xlane.xlu0 %3898
  %v3900 = vsel %vm377, %v3890, 0.0
  %3901 = vadd.xlane.f32.xlu0 %v3900
  %v3902 = vpop.xlane.xlu0 %3901
  %v3903 = vsel %vm377, %v3891, 0.0
  %3904 = vadd.xlane.f32.xlu0 %v3903
  %v3905 = vpop.xlane.xlu0 %3904
  %v3906 = vsel %vm377, %v3892, 0.0
  %3907 = vadd.xlane.f32.xlu0 %v3906
  %v3908 = vpop.xlane.xlu0 %3907
  %v3909 = vsel %vm377, %v3893, 0.0
  %3910 = vadd.xlane.f32.xlu0 %v3909
  %v3911 = vpop.xlane.xlu0 %3910
  %v3912 = vsel %vm377, %v3894, 0.0
  %3913 = vadd.xlane.f32.xlu0 %v3912
  %v3914 = vpop.xlane.xlu0 %3913
  %v3915 = vsel %vm377, %v3895, 0.0
  %3916 = vadd.xlane.f32.xlu0 %v3915
  %v3917 = vpop.xlane.xlu0 %3916
  %v3918 = vsel %vm377, %v3896, 0.0
  %3919 = vadd.xlane.f32.xlu0 %v3918
  %v3920 = vpop.xlane.xlu0 %3919
  %v3921 = vmul.f32 %v3899, %v3872
  %v3922 = vmul.f32 %v3902, %v3872
  %v3923 = vmul.f32 %v3905, %v3872
  %v3924 = vmul.f32 %v3908, %v3872
  %v3925 = vmul.f32 %v3911, %v3872
  %v3926 = vmul.f32 %v3914, %v3872
  %v3927 = vmul.f32 %v3917, %v3872
  %v3928 = vmul.f32 %v3920, %v3872
  %v3929 = vadd.f32 %v3921, 1e-05
  %v3930 = vadd.f32 %v3922, 1e-05
  %v3931 = vadd.f32 %v3923, 1e-05
  %v3932 = vadd.f32 %v3924, 1e-05
  %v3933 = vadd.f32 %v3925, 1e-05
  %v3934 = vadd.f32 %v3926, 1e-05
  %v3935 = vadd.f32 %v3927, 1e-05
  %v3936 = vadd.f32 %v3928, 1e-05
  %v3937 = vrsqrt.pop %v3929
  %v3938 = vrsqrt.pop %v3930
  %v3939 = vrsqrt.pop %v3931
  %v3940 = vrsqrt.pop %v3932
  %v3941 = vrsqrt.pop %v3933
  %v3942 = vrsqrt.pop %v3934
  %v3943 = vrsqrt.pop %v3935
  %v3944 = vrsqrt.pop %v3936
  %v3945 = vmul.f32 %v3881, %v3937
  %v3946 = vmul.f32 %v3882, %v3938
  %v3947 = vmul.f32 %v3883, %v3939
  %v3948 = vmul.f32 %v3884, %v3940
  %v3949 = vmul.f32 %v3885, %v3941
  %v3950 = vmul.f32 %v3886, %v3942
  %v3951 = vmul.f32 %v3887, %v3943
  %v3952 = vmul.f32 %v3888, %v3944
  %v3954 = vlaneseq
  %v3955 = vshrl.u32 %v3954, 7
  %v3956 = vsub.s32 0, %v3955
  %v3957 = vrot.slane %v359, %v3956
  %v3959 = vmul.f32 %v3945, %v3957
  %v3960 = vmul.f32 %v3946, %v3957
  %v3961 = vmul.f32 %v3947, %v3957
  %v3962 = vmul.f32 %v3948, %v3957
  %v3963 = vmul.f32 %v3949, %v3957
  %v3964 = vmul.f32 %v3950, %v3957
  %v3965 = vmul.f32 %v3951, %v3957
  %v3966 = vmul.f32 %v3952, %v3957
  %v3968 = vlaneseq
  %v3969 = vshrl.u32 %v3968, 7
  %v3970 = vsub.s32 0, %v3969
  %v3971 = vrot.slane %v361, %v3970
  %v3973 = vadd.f32 %v3959, %v3971
  %v3974 = vadd.f32 %v3960, %v3971
  %v3975 = vadd.f32 %v3961, %v3971
  %v3976 = vadd.f32 %v3962, %v3971
  %v3977 = vadd.f32 %v3963, %v3971
  %v3978 = vadd.f32 %v3964, %v3971
  %v3979 = vadd.f32 %v3965, %v3971
  %v3980 = vadd.f32 %v3966, %v3971
  %v3981 = vld [vmem:[%s5] sm:$0xff]
  %v3982 = vld [vmem:[%s5 + $0x8] sm:$0xff]
  %v3983 = vld [vmem:[%s5 + $0x10] sm:$0xff]
  %v3984 = vld [vmem:[%s5 + $0x18] sm:$0xff]
  %v3985 = vld [vmem:[%s6] sm:$0x1]
  %v3987 = vlaneseq
  %v3988 = vshrl.u32 %v3987, 7
  %v3989 = vsub.s32 0, %v3988
  %v3990 = vrot.slane %v3985, %v3989
  %v3993 = vsel %vm377, %v3973, 0
  %v3996 = vsel %vm377, %v3974, 0
  %v3999 = vsel %vm377, %v3975, 0
  %v4002 = vsel %vm377, %v3976, 0
  %v4005 = vsel %vm377, %v3977, 0
  %v4008 = vsel %vm377, %v3978, 0
  %v4011 = vsel %vm377, %v3979, 0
  %v4014 = vsel %vm377, %v3980, 0
  %4016 = vmatprep.subr.mxu0 0.0
  %4017 = vmatpush1.msra.mxu0 %v3981
  %4018 = vmatprep.subr.mxu0 0.0
  %4019 = vmatpush1.msra.mxu0 %v3982
  %4020 = vmatprep.subr.mxu0 0.0
  %4021 = vmatpush1.msra.mxu0 %v3983
  %4022 = vmatprep.subr.mxu0 0.0
  %4023 = vmatpush1.msra.mxu0 %v3984
  %4024 = vmatprep.subr.mxu0 0.0
  %4025 = vmatpush1.msra.mxu0 0.0
  %4026 = vmatprep.subr.mxu0 0.0
  %4027 = vmatpush1.msra.mxu0 0.0
  %4028 = vmatprep.subr.mxu0 0.0
  %4029 = vmatpush1.msra.mxu0 0.0
  %4030 = vmatprep.subr.mxu0 0.0
  %4031 = vmatpush1.msra.mxu0 0.0
  %4032 = vmatprep.subr.mxu0 0.0
  %4033 = vmatpush1.msra.mxu0 0.0
  %4034 = vmatprep.subr.mxu0 0.0
  %4035 = vmatpush1.msra.mxu0 0.0
  %4036 = vmatprep.subr.mxu0 0.0
  %4037 = vmatpush1.msra.mxu0 0.0
  %4038 = vmatprep.subr.mxu0 0.0
  %4039 = vmatpush1.msra.mxu0 0.0
  %4040 = vmatprep.subr.mxu0 0.0
  %4041 = vmatpush1.msra.mxu0 0.0
  %4042 = vmatprep.subr.mxu0 0.0
  %4043 = vmatpush1.msra.mxu0 0.0
  %4044 = vmatprep.subr.mxu0 0.0
  %4045 = vmatpush1.msra.mxu0 0.0
  %4046 = vmatprep.subr.mxu0 0.0
  %4047 = vmatpush1.msra.mxu0 0.0
  %4048 = vmatprep.subr.mxu0 0.0
  %4049 = vmatpush1.msra.mxu0 0.0
  %4050 = vmatprep.subr.mxu0 0.0
  %4051 = vmatpush1.msra.mxu0 0.0
  %4052 = vmatprep.subr.mxu0 0.0
  %4053 = vmatpush1.msra.mxu0 0.0
  %4054 = vmatprep.subr.mxu0 0.0
  %4055 = vmatpush1.msra.mxu0 0.0
  %4056 = vmatprep.subr.mxu0 0.0
  %4057 = vmatpush1.msra.mxu0 0.0
  %4058 = vmatprep.subr.mxu0 0.0
  %4059 = vmatpush1.msra.mxu0 0.0
  %4060 = vmatprep.subr.mxu0 0.0
  %4061 = vmatpush1.msra.mxu0 0.0
  %4062 = vmatprep.subr.mxu0 0.0
  %4063 = vmatpush1.msra.mxu0 0.0
  %4064 = vmatprep.subr.mxu0 0.0
  %4065 = vmatpush1.msra.mxu0 0.0
  %4066 = vmatprep.subr.mxu0 0.0
  %4067 = vmatpush1.msra.mxu0 0.0
  %4068 = vmatprep.subr.mxu0 0.0
  %4069 = vmatpush1.msra.mxu0 0.0
  %4070 = vmatprep.subr.mxu0 0.0
  %4071 = vmatpush1.msra.mxu0 0.0
  %4072 = vmatprep.subr.mxu0 0.0
  %4073 = vmatpush1.msra.mxu0 0.0
  %4074 = vmatprep.subr.mxu0 0.0
  %4075 = vmatpush1.msra.mxu0 0.0
  %4076 = vmatprep.subr.mxu0 0.0
  %4077 = vmatpush1.msra.mxu0 0.0
  %4078 = vmatprep.subr.mxu0 0.0
  %4079 = vmatpush1.msra.mxu0 0.0
  %4080 = vmatprep.mubr.f32.mxu0 0.0
  %4081 = vmatmul.mubr.f32.gmra.mrb[0].mxu0 %v3993
  %v4082 = vpop.f32.mrb[0].mxu0
  %v4083 = vadd.f32 %v3990, %v4082
  %v4084 = vpop.f32.mrb[0].mxu0
  %4085 = vmatprep.mubr.f32.mxu0 0.0
  %4086 = vmatmul.mubr.f32.gmra.mrb[0].mxu0 %v3996
  %v4087 = vpop.f32.mrb[0].mxu0
  %v4088 = vadd.f32 %v3990, %v4087
  %v4089 = vpop.f32.mrb[0].mxu0
  %4090 = vmatprep.mubr.f32.mxu0 0.0
  %4091 = vmatmul.mubr.f32.gmra.mrb[0].mxu0 %v3999
  %v4092 = vpop.f32.mrb[0].mxu0
  %v4093 = vadd.f32 %v3990, %v4092
  %v4094 = vpop.f32.mrb[0].mxu0
  %4095 = vmatprep.mubr.f32.mxu0 0.0
  %4096 = vmatmul.mubr.f32.gmra.mrb[0].mxu0 %v4002
  %v4097 = vpop.f32.mrb[0].mxu0
  %v4098 = vadd.f32 %v3990, %v4097
  %v4099 = vpop.f32.mrb[0].mxu0
  %4100 = vmatprep.mubr.f32.mxu0 0.0
  %4101 = vmatmul.mubr.f32.gmra.mrb[0].mxu0 %v4005
  %v4102 = vpop.f32.mrb[0].mxu0
  %v4103 = vadd.f32 %v3990, %v4102
  %v4104 = vpop.f32.mrb[0].mxu0
  %4105 = vmatprep.mubr.f32.mxu0 0.0
  %4106 = vmatmul.mubr.f32.gmra.mrb[0].mxu0 %v4008
  %v4107 = vpop.f32.mrb[0].mxu0
  %v4108 = vadd.f32 %v3990, %v4107
  %v4109 = vpop.f32.mrb[0].mxu0
  %4110 = vmatprep.mubr.f32.mxu0 0.0
  %4111 = vmatmul.mubr.f32.gmra.mrb[0].mxu0 %v4011
  %v4112 = vpop.f32.mrb[0].mxu0
  %v4113 = vadd.f32 %v3990, %v4112
  %v4114 = vpop.f32.mrb[0].mxu0
  %4115 = vmatprep.mubr.f32.mxu0 0.0
  %4116 = vmatmul.mubr.f32.gmra.mrb[0].mxu0 %v4014
  %v4117 = vpop.f32.mrb[0].mxu0
  %v4118 = vadd.f32 %v3990, %v4117
  %v4119 = vpop.f32.mrb[0].mxu0
  %4120 = vdwg.mxu0
  %v4121 = vmax.f32 %v4083, 0.0
  %v4122 = vmax.f32 %v4088, 0.0
  %v4123 = vmax.f32 %v4093, 0.0
  %v4124 = vmax.f32 %v4098, 0.0
  %v4125 = vmax.f32 %v4103, 0.0
  %v4126 = vmax.f32 %v4108, 0.0
  %v4127 = vmax.f32 %v4113, 0.0
  %v4128 = vmax.f32 %v4118, 0.0
  %v4129 = vld [vmem:[%s7] sm:$0xff]
  %v4130 = vld [vmem:[%s7 + $0x8] sm:$0xff]
  %v4131 = vld [vmem:[%s7 + $0x10] sm:$0xff]
  %v4132 = vld [vmem:[%s7 + $0x18] sm:$0xff]
  %v4133 = vld [vmem:[%s7 + $0x20] sm:$0xff]
  %v4134 = vld [vmem:[%s7 + $0x28] sm:$0xff]
  %v4135 = vld [vmem:[%s7 + $0x30] sm:$0xff]
  %v4136 = vld [vmem:[%s7 + $0x38] sm:$0xff]
  %v4138 = vlaneseq
  %v4139 = vshrl.u32 %v4138, 7
  %v4140 = vsub.s32 0, %v4139
  %v4141 = vrot.slane %v357, %v4140
  %v4144 = vsel %vm897, %v4121, 0
  %v4147 = vsel %vm897, %v4122, 0
  %v4150 = vsel %vm897, %v4123, 0
  %v4153 = vsel %vm897, %v4124, 0
  %v4156 = vsel %vm897, %v4125, 0
  %v4159 = vsel %vm897, %v4126, 0
  %v4162 = vsel %vm897, %v4127, 0
  %v4165 = vsel %vm897, %v4128, 0
  %4167 = vmatprep.subr.mxu0 0.0
  %4168 = vmatpush1.msra.mxu0 %v4129
  %4169 = vmatprep.subr.mxu0 0.0
  %4170 = vmatpush1.msra.mxu0 %v4130
  %4171 = vmatprep.subr.mxu0 0.0
  %4172 = vmatpush1.msra.mxu0 %v4131
  %4173 = vmatprep.subr.mxu0 0.0
  %4174 = vmatpush1.msra.mxu0 %v4132
  %4175 = vmatprep.subr.mxu0 0.0
  %4176 = vmatpush1.msra.mxu0 %v4133
  %4177 = vmatprep.subr.mxu0 0.0
  %4178 = vmatpush1.msra.mxu0 %v4134
  %4179 = vmatprep.subr.mxu0 0.0
  %4180 = vmatpush1.msra.mxu0 %v4135
  %4181 = vmatprep.subr.mxu0 0.0
  %4182 = vmatpush1.msra.mxu0 %v4136
  %4183 = vmatprep.subr.mxu0 0.0
  %4184 = vmatpush1.msra.mxu0 0.0
  %4185 = vmatprep.subr.mxu0 0.0
  %4186 = vmatpush1.msra.mxu0 0.0
  %4187 = vmatprep.subr.mxu0 0.0
  %4188 = vmatpush1.msra.mxu0 0.0
  %4189 = vmatprep.subr.mxu0 0.0
  %4190 = vmatpush1.msra.mxu0 0.0
  %4191 = vmatprep.subr.mxu0 0.0
  %4192 = vmatpush1.msra.mxu0 0.0
  %4193 = vmatprep.subr.mxu0 0.0
  %4194 = vmatpush1.msra.mxu0 0.0
  %4195 = vmatprep.subr.mxu0 0.0
  %4196 = vmatpush1.msra.mxu0 0.0
  %4197 = vmatprep.subr.mxu0 0.0
  %4198 = vmatpush1.msra.mxu0 0.0
  %4199 = vmatprep.subr.mxu0 0.0
  %4200 = vmatpush1.msra.mxu0 0.0
  %4201 = vmatprep.subr.mxu0 0.0
  %4202 = vmatpush1.msra.mxu0 0.0
  %4203 = vmatprep.subr.mxu0 0.0
  %4204 = vmatpush1.msra.mxu0 0.0
  %4205 = vmatprep.subr.mxu0 0.0
  %4206 = vmatpush1.msra.mxu0 0.0
  %4207 = vmatprep.subr.mxu0 0.0
  %4208 = vmatpush1.msra.mxu0 0.0
  %4209 = vmatprep.subr.mxu0 0.0
  %4210 = vmatpush1.msra.mxu0 0.0
  %4211 = vmatprep.subr.mxu0 0.0
  %4212 = vmatpush1.msra.mxu0 0.0
  %4213 = vmatprep.subr.mxu0 0.0
  %4214 = vmatpush1.msra.mxu0 0.0
  %4215 = vmatprep.subr.mxu0 0.0
  %4216 = vmatpush1.msra.mxu0 0.0
  %4217 = vmatprep.subr.mxu0 0.0
  %4218 = vmatpush1.msra.mxu0 0.0
  %4219 = vmatprep.subr.mxu0 0.0
  %4220 = vmatpush1.msra.mxu0 0.0
  %4221 = vmatprep.subr.mxu0 0.0
  %4222 = vmatpush1.msra.mxu0 0.0
  %4223 = vmatprep.subr.mxu0 0.0
  %4224 = vmatpush1.msra.mxu0 0.0
  %4225 = vmatprep.subr.mxu0 0.0
  %4226 = vmatpush1.msra.mxu0 0.0
  %4227 = vmatprep.subr.mxu0 0.0
  %4228 = vmatpush1.msra.mxu0 0.0
  %4229 = vmatprep.subr.mxu0 0.0
  %4230 = vmatpush1.msra.mxu0 0.0
  %4231 = vmatprep.mubr.f32.mxu0 0.0
  %4232 = vmatmul.mubr.f32.gmra.mrb[0].mxu0 %v4144
  %v4233 = vpop.f32.mrb[0].mxu0
  %v4234 = vadd.f32 %v4141, %v4233
  %v4235 = vpop.f32.mrb[0].mxu0
  %4236 = vmatprep.mubr.f32.mxu0 0.0
  %4237 = vmatmul.mubr.f32.gmra.mrb[0].mxu0 %v4147
  %v4238 = vpop.f32.mrb[0].mxu0
  %v4239 = vadd.f32 %v4141, %v4238
  %v4240 = vpop.f32.mrb[0].mxu0
  %4241 = vmatprep.mubr.f32.mxu0 0.0
  %4242 = vmatmul.mubr.f32.gmra.mrb[0].mxu0 %v4150
  %v4243 = vpop.f32.mrb[0].mxu0
  %v4244 = vadd.f32 %v4141, %v4243
  %v4245 = vpop.f32.mrb[0].mxu0
  %4246 = vmatprep.mubr.f32.mxu0 0.0
  %4247 = vmatmul.mubr.f32.gmra.mrb[0].mxu0 %v4153
  %v4248 = vpop.f32.mrb[0].mxu0
  %v4249 = vadd.f32 %v4141, %v4248
  %v4250 = vpop.f32.mrb[0].mxu0
  %4251 = vmatprep.mubr.f32.mxu0 0.0
  %4252 = vmatmul.mubr.f32.gmra.mrb[0].mxu0 %v4156
  %v4253 = vpop.f32.mrb[0].mxu0
  %v4254 = vadd.f32 %v4141, %v4253
  %v4255 = vpop.f32.mrb[0].mxu0
  %4256 = vmatprep.mubr.f32.mxu0 0.0
  %4257 = vmatmul.mubr.f32.gmra.mrb[0].mxu0 %v4159
  %v4258 = vpop.f32.mrb[0].mxu0
  %v4259 = vadd.f32 %v4141, %v4258
  %v4260 = vpop.f32.mrb[0].mxu0
  %4261 = vmatprep.mubr.f32.mxu0 0.0
  %4262 = vmatmul.mubr.f32.gmra.mrb[0].mxu0 %v4162
  %v4263 = vpop.f32.mrb[0].mxu0
  %v4264 = vadd.f32 %v4141, %v4263
  %v4265 = vpop.f32.mrb[0].mxu0
  %4266 = vmatprep.mubr.f32.mxu0 0.0
  %4267 = vmatmul.mubr.f32.gmra.mrb[0].mxu0 %v4165
  %v4268 = vpop.f32.mrb[0].mxu0
  %v4269 = vadd.f32 %v4141, %v4268
  %v4270 = vpop.f32.mrb[0].mxu0
  %4271 = vdwg.mxu0
  %v4272 = vadd.f32 %v3973, %v4234
  %v4273 = vadd.f32 %v3974, %v4239
  %v4274 = vadd.f32 %v3975, %v4244
  %v4275 = vadd.f32 %v3976, %v4249
  %v4276 = vadd.f32 %v3977, %v4254
  %v4277 = vadd.f32 %v3978, %v4259
  %v4278 = vadd.f32 %v3979, %v4264
  %v4279 = vadd.f32 %v3980, %v4269
  %v4280 = vsel %vm377, %v4272, 0.0
  %4281 = vadd.xlane.f32.xlu0 %v4280
  %v4282 = vpop.xlane.xlu0 %4281
  %v4283 = vsel %vm377, %v4273, 0.0
  %4284 = vadd.xlane.f32.xlu0 %v4283
  %v4285 = vpop.xlane.xlu0 %4284
  %v4286 = vsel %vm377, %v4274, 0.0
  %4287 = vadd.xlane.f32.xlu0 %v4286
  %v4288 = vpop.xlane.xlu0 %4287
  %v4289 = vsel %vm377, %v4275, 0.0
  %4290 = vadd.xlane.f32.xlu0 %v4289
  %v4291 = vpop.xlane.xlu0 %4290
  %v4292 = vsel %vm377, %v4276, 0.0
  %4293 = vadd.xlane.f32.xlu0 %v4292
  %v4294 = vpop.xlane.xlu0 %4293
  %v4295 = vsel %vm377, %v4277, 0.0
  %4296 = vadd.xlane.f32.xlu0 %v4295
  %v4297 = vpop.xlane.xlu0 %4296
  %v4298 = vsel %vm377, %v4278, 0.0
  %4299 = vadd.xlane.f32.xlu0 %v4298
  %v4300 = vpop.xlane.xlu0 %4299
  %v4301 = vsel %vm377, %v4279, 0.0
  %4302 = vadd.xlane.f32.xlu0 %v4301
  %v4303 = vpop.xlane.xlu0 %4302
  %v4304 = vmul.f32 %v4282, %v3872
  %v4305 = vmul.f32 %v4285, %v3872
  %v4306 = vmul.f32 %v4288, %v3872
  %v4307 = vmul.f32 %v4291, %v3872
  %v4308 = vmul.f32 %v4294, %v3872
  %v4309 = vmul.f32 %v4297, %v3872
  %v4310 = vmul.f32 %v4300, %v3872
  %v4311 = vmul.f32 %v4303, %v3872
  %v4312 = vsub.f32 %v4272, %v4304
  %v4313 = vsub.f32 %v4273, %v4305
  %v4314 = vsub.f32 %v4274, %v4306
  %v4315 = vsub.f32 %v4275, %v4307
  %v4316 = vsub.f32 %v4276, %v4308
  %v4317 = vsub.f32 %v4277, %v4309
  %v4318 = vsub.f32 %v4278, %v4310
  %v4319 = vsub.f32 %v4279, %v4311
  %v4320 = vmul.f32 %v4312, %v4312
  %v4321 = vmul.f32 %v4313, %v4313
  %v4322 = vmul.f32 %v4314, %v4314
  %v4323 = vmul.f32 %v4315, %v4315
  %v4324 = vmul.f32 %v4316, %v4316
  %v4325 = vmul.f32 %v4317, %v4317
  %v4326 = vmul.f32 %v4318, %v4318
  %v4327 = vmul.f32 %v4319, %v4319
  %v4328 = vsel %vm377, %v4320, 0.0
  %4329 = vadd.xlane.f32.xlu0 %v4328
  %v4330 = vpop.xlane.xlu0 %4329
  %v4331 = vsel %vm377, %v4321, 0.0
  %4332 = vadd.xlane.f32.xlu0 %v4331
  %v4333 = vpop.xlane.xlu0 %4332
  %v4334 = vsel %vm377, %v4322, 0.0
  %4335 = vadd.xlane.f32.xlu0 %v4334
  %v4336 = vpop.xlane.xlu0 %4335
  %v4337 = vsel %vm377, %v4323, 0.0
  %4338 = vadd.xlane.f32.xlu0 %v4337
  %v4339 = vpop.xlane.xlu0 %4338
  %v4340 = vsel %vm377, %v4324, 0.0
  %4341 = vadd.xlane.f32.xlu0 %v4340
  %v4342 = vpop.xlane.xlu0 %4341
  %v4343 = vsel %vm377, %v4325, 0.0
  %4344 = vadd.xlane.f32.xlu0 %v4343
  %v4345 = vpop.xlane.xlu0 %4344
  %v4346 = vsel %vm377, %v4326, 0.0
  %4347 = vadd.xlane.f32.xlu0 %v4346
  %v4348 = vpop.xlane.xlu0 %4347
  %v4349 = vsel %vm377, %v4327, 0.0
  %4350 = vadd.xlane.f32.xlu0 %v4349
  %v4351 = vpop.xlane.xlu0 %4350
  %v4352 = vmul.f32 %v4330, %v3872
  %v4353 = vmul.f32 %v4333, %v3872
  %v4354 = vmul.f32 %v4336, %v3872
  %v4355 = vmul.f32 %v4339, %v3872
  %v4356 = vmul.f32 %v4342, %v3872
  %v4357 = vmul.f32 %v4345, %v3872
  %v4358 = vmul.f32 %v4348, %v3872
  %v4359 = vmul.f32 %v4351, %v3872
  %v4360 = vadd.f32 %v4352, 1e-05
  %v4361 = vadd.f32 %v4353, 1e-05
  %v4362 = vadd.f32 %v4354, 1e-05
  %v4363 = vadd.f32 %v4355, 1e-05
  %v4364 = vadd.f32 %v4356, 1e-05
  %v4365 = vadd.f32 %v4357, 1e-05
  %v4366 = vadd.f32 %v4358, 1e-05
  %v4367 = vadd.f32 %v4359, 1e-05
  %v4368 = vrsqrt.pop %v4360
  %v4369 = vrsqrt.pop %v4361
  %v4370 = vrsqrt.pop %v4362
  %v4371 = vrsqrt.pop %v4363
  %v4372 = vrsqrt.pop %v4364
  %v4373 = vrsqrt.pop %v4365
  %v4374 = vrsqrt.pop %v4366
  %v4375 = vrsqrt.pop %v4367
  %v4376 = vmul.f32 %v4312, %v4368
  %v4377 = vmul.f32 %v4313, %v4369
  %v4378 = vmul.f32 %v4314, %v4370
  %v4379 = vmul.f32 %v4315, %v4371
  %v4380 = vmul.f32 %v4316, %v4372
  %v4381 = vmul.f32 %v4317, %v4373
  %v4382 = vmul.f32 %v4318, %v4374
  %v4383 = vmul.f32 %v4319, %v4375
  %v4385 = vlaneseq
  %v4386 = vshrl.u32 %v4385, 7
  %v4387 = vsub.s32 0, %v4386
  %v4388 = vrot.slane %v363, %v4387
  %v4390 = vmul.f32 %v4376, %v4388
  %v4391 = vmul.f32 %v4377, %v4388
  %v4392 = vmul.f32 %v4378, %v4388
  %v4393 = vmul.f32 %v4379, %v4388
  %v4394 = vmul.f32 %v4380, %v4388
  %v4395 = vmul.f32 %v4381, %v4388
  %v4396 = vmul.f32 %v4382, %v4388
  %v4397 = vmul.f32 %v4383, %v4388
  %v4399 = vlaneseq
  %v4400 = vshrl.u32 %v4399, 7
  %v4401 = vsub.s32 0, %v4400
  %v4402 = vrot.slane %v365, %v4401
  %v4404 = vadd.f32 %v4390, %v4402
  %v4405 = vadd.f32 %v4391, %v4402
  %v4406 = vadd.f32 %v4392, %v4402
  %v4407 = vadd.f32 %v4393, %v4402
  %v4408 = vadd.f32 %v4394, %v4402
  %v4409 = vadd.f32 %v4395, %v4402
  %v4410 = vadd.f32 %v4396, %v4402
  %v4411 = vadd.f32 %v4397, %v4402
  %s4412 = scalar_lea.vmem %s8, 6
  %v4413 = vld [vmem:[%s4412] sm:$0x1]
  %s4414 = scalar_lea.vmem %s8, 7
  %v4415 = vld [vmem:[%s4414] sm:$0x1]
  %s4416 = scalar_lea.vmem %s8, 8
  %v4417 = vld [vmem:[%s4416] sm:$0x1]
  %s4418 = scalar_lea.vmem %s8, 9
  %v4419 = vld [vmem:[%s4418] sm:$0x1]
  %s4420 = scalar_lea.vmem %s8, 10
  %v4421 = vld [vmem:[%s4420] sm:$0x1]
  %s4422 = scalar_lea.vmem %s8, 11
  %v4423 = vld [vmem:[%s4422] sm:$0x1]
  %s4424 = scalar_lea.vmem %s2, 384
  %v4425 = vld [vmem:[%s4424] sm:$0xff]
  %v4426 = vld [vmem:[%s4424 + $0x8] sm:$0xff]
  %v4427 = vld [vmem:[%s4424 + $0x10] sm:$0xff]
  %v4428 = vld [vmem:[%s4424 + $0x18] sm:$0xff]
  %s4429 = scalar_lea.vmem %s3, 12
  %v4430 = vld [vmem:[%s4429] sm:$0x1]
  %v4432 = vlaneseq
  %v4433 = vshrl.u32 %v4432, 7
  %v4434 = vsub.s32 0, %v4433
  %v4435 = vrot.slane %v4430, %v4434
  %v4438 = vsel %vm377, %v4404, 0
  %v4441 = vsel %vm377, %v4405, 0
  %v4444 = vsel %vm377, %v4406, 0
  %v4447 = vsel %vm377, %v4407, 0
  %v4450 = vsel %vm377, %v4408, 0
  %v4453 = vsel %vm377, %v4409, 0
  %v4456 = vsel %vm377, %v4410, 0
  %v4459 = vsel %vm377, %v4411, 0
  %4461 = vmatprep.subr.mxu0 0.0
  %4462 = vmatpush1.msra.mxu0 %v4425
  %4463 = vmatprep.subr.mxu0 0.0
  %4464 = vmatpush1.msra.mxu0 %v4426
  %4465 = vmatprep.subr.mxu0 0.0
  %4466 = vmatpush1.msra.mxu0 %v4427
  %4467 = vmatprep.subr.mxu0 0.0
  %4468 = vmatpush1.msra.mxu0 %v4428
  %4469 = vmatprep.subr.mxu0 0.0
  %4470 = vmatpush1.msra.mxu0 0.0
  %4471 = vmatprep.subr.mxu0 0.0
  %4472 = vmatpush1.msra.mxu0 0.0
  %4473 = vmatprep.subr.mxu0 0.0
  %4474 = vmatpush1.msra.mxu0 0.0
  %4475 = vmatprep.subr.mxu0 0.0
  %4476 = vmatpush1.msra.mxu0 0.0
  %4477 = vmatprep.subr.mxu0 0.0
  %4478 = vmatpush1.msra.mxu0 0.0
  %4479 = vmatprep.subr.mxu0 0.0
  %4480 = vmatpush1.msra.mxu0 0.0
  %4481 = vmatprep.subr.mxu0 0.0
  %4482 = vmatpush1.msra.mxu0 0.0
  %4483 = vmatprep.subr.mxu0 0.0
  %4484 = vmatpush1.msra.mxu0 0.0
  %4485 = vmatprep.subr.mxu0 0.0
  %4486 = vmatpush1.msra.mxu0 0.0
  %4487 = vmatprep.subr.mxu0 0.0
  %4488 = vmatpush1.msra.mxu0 0.0
  %4489 = vmatprep.subr.mxu0 0.0
  %4490 = vmatpush1.msra.mxu0 0.0
  %4491 = vmatprep.subr.mxu0 0.0
  %4492 = vmatpush1.msra.mxu0 0.0
  %4493 = vmatprep.subr.mxu0 0.0
  %4494 = vmatpush1.msra.mxu0 0.0
  %4495 = vmatprep.subr.mxu0 0.0
  %4496 = vmatpush1.msra.mxu0 0.0
  %4497 = vmatprep.subr.mxu0 0.0
  %4498 = vmatpush1.msra.mxu0 0.0
  %4499 = vmatprep.subr.mxu0 0.0
  %4500 = vmatpush1.msra.mxu0 0.0
  %4501 = vmatprep.subr.mxu0 0.0
  %4502 = vmatpush1.msra.mxu0 0.0
  %4503 = vmatprep.subr.mxu0 0.0
  %4504 = vmatpush1.msra.mxu0 0.0
  %4505 = vmatprep.subr.mxu0 0.0
  %4506 = vmatpush1.msra.mxu0 0.0
  %4507 = vmatprep.subr.mxu0 0.0
  %4508 = vmatpush1.msra.mxu0 0.0
  %4509 = vmatprep.subr.mxu0 0.0
  %4510 = vmatpush1.msra.mxu0 0.0
  %4511 = vmatprep.subr.mxu0 0.0
  %4512 = vmatpush1.msra.mxu0 0.0
  %4513 = vmatprep.subr.mxu0 0.0
  %4514 = vmatpush1.msra.mxu0 0.0
  %4515 = vmatprep.subr.mxu0 0.0
  %4516 = vmatpush1.msra.mxu0 0.0
  %4517 = vmatprep.subr.mxu0 0.0
  %4518 = vmatpush1.msra.mxu0 0.0
  %4519 = vmatprep.subr.mxu0 0.0
  %4520 = vmatpush1.msra.mxu0 0.0
  %4521 = vmatprep.subr.mxu0 0.0
  %4522 = vmatpush1.msra.mxu0 0.0
  %4523 = vmatprep.subr.mxu0 0.0
  %4524 = vmatpush1.msra.mxu0 0.0
  %4525 = vmatprep.mubr.f32.mxu0 0.0
  %4526 = vmatmul.mubr.f32.gmra.mrb[0].mxu0 %v4438
  %v4527 = vpop.f32.mrb[0].mxu0
  %v4528 = vadd.f32 %v4435, %v4527
  %v4529 = vpop.f32.mrb[0].mxu0
  %4530 = vmatprep.mubr.f32.mxu0 0.0
  %4531 = vmatmul.mubr.f32.gmra.mrb[0].mxu0 %v4441
  %v4532 = vpop.f32.mrb[0].mxu0
  %v4533 = vadd.f32 %v4435, %v4532
  %v4534 = vpop.f32.mrb[0].mxu0
  %4535 = vmatprep.mubr.f32.mxu0 0.0
  %4536 = vmatmul.mubr.f32.gmra.mrb[0].mxu0 %v4444
  %v4537 = vpop.f32.mrb[0].mxu0
  %v4538 = vadd.f32 %v4435, %v4537
  %v4539 = vpop.f32.mrb[0].mxu0
  %4540 = vmatprep.mubr.f32.mxu0 0.0
  %4541 = vmatmul.mubr.f32.gmra.mrb[0].mxu0 %v4447
  %v4542 = vpop.f32.mrb[0].mxu0
  %v4543 = vadd.f32 %v4435, %v4542
  %v4544 = vpop.f32.mrb[0].mxu0
  %4545 = vmatprep.mubr.f32.mxu0 0.0
  %4546 = vmatmul.mubr.f32.gmra.mrb[0].mxu0 %v4450
  %v4547 = vpop.f32.mrb[0].mxu0
  %v4548 = vadd.f32 %v4435, %v4547
  %v4549 = vpop.f32.mrb[0].mxu0
  %4550 = vmatprep.mubr.f32.mxu0 0.0
  %4551 = vmatmul.mubr.f32.gmra.mrb[0].mxu0 %v4453
  %v4552 = vpop.f32.mrb[0].mxu0
  %v4553 = vadd.f32 %v4435, %v4552
  %v4554 = vpop.f32.mrb[0].mxu0
  %4555 = vmatprep.mubr.f32.mxu0 0.0
  %4556 = vmatmul.mubr.f32.gmra.mrb[0].mxu0 %v4456
  %v4557 = vpop.f32.mrb[0].mxu0
  %v4558 = vadd.f32 %v4435, %v4557
  %v4559 = vpop.f32.mrb[0].mxu0
  %4560 = vmatprep.mubr.f32.mxu0 0.0
  %4561 = vmatmul.mubr.f32.gmra.mrb[0].mxu0 %v4459
  %v4562 = vpop.f32.mrb[0].mxu0
  %v4563 = vadd.f32 %v4435, %v4562
  %v4564 = vpop.f32.mrb[0].mxu0
  %4565 = vdwg.mxu0
  %s4566 = scalar_lea.vmem %s2, 512
  %v4567 = vld [vmem:[%s4566] sm:$0xff]
  %v4568 = vld [vmem:[%s4566 + $0x8] sm:$0xff]
  %v4569 = vld [vmem:[%s4566 + $0x10] sm:$0xff]
  %v4570 = vld [vmem:[%s4566 + $0x18] sm:$0xff]
  %s4571 = scalar_lea.vmem %s3, 16
  %v4572 = vld [vmem:[%s4571] sm:$0x1]
  %v4574 = vlaneseq
  %v4575 = vshrl.u32 %v4574, 7
  %v4576 = vsub.s32 0, %v4575
  %v4577 = vrot.slane %v4572, %v4576
  %4579 = vmatprep.subr.mxu0 0.0
  %4580 = vmatpush1.msra.mxu0 %v4567
  %4581 = vmatprep.subr.mxu0 0.0
  %4582 = vmatpush1.msra.mxu0 %v4568
  %4583 = vmatprep.subr.mxu0 0.0
  %4584 = vmatpush1.msra.mxu0 %v4569
  %4585 = vmatprep.subr.mxu0 0.0
  %4586 = vmatpush1.msra.mxu0 %v4570
  %4587 = vmatprep.subr.mxu0 0.0
  %4588 = vmatpush1.msra.mxu0 0.0
  %4589 = vmatprep.subr.mxu0 0.0
  %4590 = vmatpush1.msra.mxu0 0.0
  %4591 = vmatprep.subr.mxu0 0.0
  %4592 = vmatpush1.msra.mxu0 0.0
  %4593 = vmatprep.subr.mxu0 0.0
  %4594 = vmatpush1.msra.mxu0 0.0
  %4595 = vmatprep.subr.mxu0 0.0
  %4596 = vmatpush1.msra.mxu0 0.0
  %4597 = vmatprep.subr.mxu0 0.0
  %4598 = vmatpush1.msra.mxu0 0.0
  %4599 = vmatprep.subr.mxu0 0.0
  %4600 = vmatpush1.msra.mxu0 0.0
  %4601 = vmatprep.subr.mxu0 0.0
  %4602 = vmatpush1.msra.mxu0 0.0
  %4603 = vmatprep.subr.mxu0 0.0
  %4604 = vmatpush1.msra.mxu0 0.0
  %4605 = vmatprep.subr.mxu0 0.0
  %4606 = vmatpush1.msra.mxu0 0.0
  %4607 = vmatprep.subr.mxu0 0.0
  %4608 = vmatpush1.msra.mxu0 0.0
  %4609 = vmatprep.subr.mxu0 0.0
  %4610 = vmatpush1.msra.mxu0 0.0
  %4611 = vmatprep.subr.mxu0 0.0
  %4612 = vmatpush1.msra.mxu0 0.0
  %4613 = vmatprep.subr.mxu0 0.0
  %4614 = vmatpush1.msra.mxu0 0.0
  %4615 = vmatprep.subr.mxu0 0.0
  %4616 = vmatpush1.msra.mxu0 0.0
  %4617 = vmatprep.subr.mxu0 0.0
  %4618 = vmatpush1.msra.mxu0 0.0
  %4619 = vmatprep.subr.mxu0 0.0
  %4620 = vmatpush1.msra.mxu0 0.0
  %4621 = vmatprep.subr.mxu0 0.0
  %4622 = vmatpush1.msra.mxu0 0.0
  %4623 = vmatprep.subr.mxu0 0.0
  %4624 = vmatpush1.msra.mxu0 0.0
  %4625 = vmatprep.subr.mxu0 0.0
  %4626 = vmatpush1.msra.mxu0 0.0
  %4627 = vmatprep.subr.mxu0 0.0
  %4628 = vmatpush1.msra.mxu0 0.0
  %4629 = vmatprep.subr.mxu0 0.0
  %4630 = vmatpush1.msra.mxu0 0.0
  %4631 = vmatprep.subr.mxu0 0.0
  %4632 = vmatpush1.msra.mxu0 0.0
  %4633 = vmatprep.subr.mxu0 0.0
  %4634 = vmatpush1.msra.mxu0 0.0
  %4635 = vmatprep.subr.mxu0 0.0
  %4636 = vmatpush1.msra.mxu0 0.0
  %4637 = vmatprep.subr.mxu0 0.0
  %4638 = vmatpush1.msra.mxu0 0.0
  %4639 = vmatprep.subr.mxu0 0.0
  %4640 = vmatpush1.msra.mxu0 0.0
  %4641 = vmatprep.subr.mxu0 0.0
  %4642 = vmatpush1.msra.mxu0 0.0
  %4643 = vmatprep.mubr.f32.mxu0 0.0
  %4644 = vmatmul.mubr.f32.gmra.mrb[0].mxu0 %v4438
  %v4645 = vpop.f32.mrb[0].mxu0
  %v4646 = vadd.f32 %v4577, %v4645
  %v4647 = vpop.f32.mrb[0].mxu0
  %4648 = vmatprep.mubr.f32.mxu0 0.0
  %4649 = vmatmul.mubr.f32.gmra.mrb[0].mxu0 %v4441
  %v4650 = vpop.f32.mrb[0].mxu0
  %v4651 = vadd.f32 %v4577, %v4650
  %v4652 = vpop.f32.mrb[0].mxu0
  %4653 = vmatprep.mubr.f32.mxu0 0.0
  %4654 = vmatmul.mubr.f32.gmra.mrb[0].mxu0 %v4444
  %v4655 = vpop.f32.mrb[0].mxu0
  %v4656 = vadd.f32 %v4577, %v4655
  %v4657 = vpop.f32.mrb[0].mxu0
  %4658 = vmatprep.mubr.f32.mxu0 0.0
  %4659 = vmatmul.mubr.f32.gmra.mrb[0].mxu0 %v4447
  %v4660 = vpop.f32.mrb[0].mxu0
  %v4661 = vadd.f32 %v4577, %v4660
  %v4662 = vpop.f32.mrb[0].mxu0
  %4663 = vmatprep.mubr.f32.mxu0 0.0
  %4664 = vmatmul.mubr.f32.gmra.mrb[0].mxu0 %v4450
  %v4665 = vpop.f32.mrb[0].mxu0
  %v4666 = vadd.f32 %v4577, %v4665
  %v4667 = vpop.f32.mrb[0].mxu0
  %4668 = vmatprep.mubr.f32.mxu0 0.0
  %4669 = vmatmul.mubr.f32.gmra.mrb[0].mxu0 %v4453
  %v4670 = vpop.f32.mrb[0].mxu0
  %v4671 = vadd.f32 %v4577, %v4670
  %v4672 = vpop.f32.mrb[0].mxu0
  %4673 = vmatprep.mubr.f32.mxu0 0.0
  %4674 = vmatmul.mubr.f32.gmra.mrb[0].mxu0 %v4456
  %v4675 = vpop.f32.mrb[0].mxu0
  %v4676 = vadd.f32 %v4577, %v4675
  %v4677 = vpop.f32.mrb[0].mxu0
  %4678 = vmatprep.mubr.f32.mxu0 0.0
  %4679 = vmatmul.mubr.f32.gmra.mrb[0].mxu0 %v4459
  %v4680 = vpop.f32.mrb[0].mxu0
  %v4681 = vadd.f32 %v4577, %v4680
  %v4682 = vpop.f32.mrb[0].mxu0
  %4683 = vdwg.mxu0
  %s4684 = scalar_lea.vmem %s2, 640
  %v4685 = vld [vmem:[%s4684] sm:$0xff]
  %v4686 = vld [vmem:[%s4684 + $0x8] sm:$0xff]
  %v4687 = vld [vmem:[%s4684 + $0x10] sm:$0xff]
  %v4688 = vld [vmem:[%s4684 + $0x18] sm:$0xff]
  %s4689 = scalar_lea.vmem %s3, 20
  %v4690 = vld [vmem:[%s4689] sm:$0x1]
  %v4692 = vlaneseq
  %v4693 = vshrl.u32 %v4692, 7
  %v4694 = vsub.s32 0, %v4693
  %v4695 = vrot.slane %v4690, %v4694
  %4697 = vmatprep.subr.mxu0 0.0
  %4698 = vmatpush1.msra.mxu0 %v4685
  %4699 = vmatprep.subr.mxu0 0.0
  %4700 = vmatpush1.msra.mxu0 %v4686
  %4701 = vmatprep.subr.mxu0 0.0
  %4702 = vmatpush1.msra.mxu0 %v4687
  %4703 = vmatprep.subr.mxu0 0.0
  %4704 = vmatpush1.msra.mxu0 %v4688
  %4705 = vmatprep.subr.mxu0 0.0
  %4706 = vmatpush1.msra.mxu0 0.0
  %4707 = vmatprep.subr.mxu0 0.0
  %4708 = vmatpush1.msra.mxu0 0.0
  %4709 = vmatprep.subr.mxu0 0.0
  %4710 = vmatpush1.msra.mxu0 0.0
  %4711 = vmatprep.subr.mxu0 0.0
  %4712 = vmatpush1.msra.mxu0 0.0
  %4713 = vmatprep.subr.mxu0 0.0
  %4714 = vmatpush1.msra.mxu0 0.0
  %4715 = vmatprep.subr.mxu0 0.0
  %4716 = vmatpush1.msra.mxu0 0.0
  %4717 = vmatprep.subr.mxu0 0.0
  %4718 = vmatpush1.msra.mxu0 0.0
  %4719 = vmatprep.subr.mxu0 0.0
  %4720 = vmatpush1.msra.mxu0 0.0
  %4721 = vmatprep.subr.mxu0 0.0
  %4722 = vmatpush1.msra.mxu0 0.0
  %4723 = vmatprep.subr.mxu0 0.0
  %4724 = vmatpush1.msra.mxu0 0.0
  %4725 = vmatprep.subr.mxu0 0.0
  %4726 = vmatpush1.msra.mxu0 0.0
  %4727 = vmatprep.subr.mxu0 0.0
  %4728 = vmatpush1.msra.mxu0 0.0
  %4729 = vmatprep.subr.mxu0 0.0
  %4730 = vmatpush1.msra.mxu0 0.0
  %4731 = vmatprep.subr.mxu0 0.0
  %4732 = vmatpush1.msra.mxu0 0.0
  %4733 = vmatprep.subr.mxu0 0.0
  %4734 = vmatpush1.msra.mxu0 0.0
  %4735 = vmatprep.subr.mxu0 0.0
  %4736 = vmatpush1.msra.mxu0 0.0
  %4737 = vmatprep.subr.mxu0 0.0
  %4738 = vmatpush1.msra.mxu0 0.0
  %4739 = vmatprep.subr.mxu0 0.0
  %4740 = vmatpush1.msra.mxu0 0.0
  %4741 = vmatprep.subr.mxu0 0.0
  %4742 = vmatpush1.msra.mxu0 0.0
  %4743 = vmatprep.subr.mxu0 0.0
  %4744 = vmatpush1.msra.mxu0 0.0
  %4745 = vmatprep.subr.mxu0 0.0
  %4746 = vmatpush1.msra.mxu0 0.0
  %4747 = vmatprep.subr.mxu0 0.0
  %4748 = vmatpush1.msra.mxu0 0.0
  %4749 = vmatprep.subr.mxu0 0.0
  %4750 = vmatpush1.msra.mxu0 0.0
  %4751 = vmatprep.subr.mxu0 0.0
  %4752 = vmatpush1.msra.mxu0 0.0
  %4753 = vmatprep.subr.mxu0 0.0
  %4754 = vmatpush1.msra.mxu0 0.0
  %4755 = vmatprep.subr.mxu0 0.0
  %4756 = vmatpush1.msra.mxu0 0.0
  %4757 = vmatprep.subr.mxu0 0.0
  %4758 = vmatpush1.msra.mxu0 0.0
  %4759 = vmatprep.subr.mxu0 0.0
  %4760 = vmatpush1.msra.mxu0 0.0
  %4761 = vmatprep.mubr.f32.mxu0 0.0
  %4762 = vmatmul.mubr.f32.gmra.mrb[0].mxu0 %v4438
  %v4763 = vpop.f32.mrb[0].mxu0
  %v4764 = vadd.f32 %v4695, %v4763
  %v4765 = vpop.f32.mrb[0].mxu0
  %4766 = vmatprep.mubr.f32.mxu0 0.0
  %4767 = vmatmul.mubr.f32.gmra.mrb[0].mxu0 %v4441
  %v4768 = vpop.f32.mrb[0].mxu0
  %v4769 = vadd.f32 %v4695, %v4768
  %v4770 = vpop.f32.mrb[0].mxu0
  %4771 = vmatprep.mubr.f32.mxu0 0.0
  %4772 = vmatmul.mubr.f32.gmra.mrb[0].mxu0 %v4444
  %v4773 = vpop.f32.mrb[0].mxu0
  %v4774 = vadd.f32 %v4695, %v4773
  %v4775 = vpop.f32.mrb[0].mxu0
  %4776 = vmatprep.mubr.f32.mxu0 0.0
  %4777 = vmatmul.mubr.f32.gmra.mrb[0].mxu0 %v4447
  %v4778 = vpop.f32.mrb[0].mxu0
  %v4779 = vadd.f32 %v4695, %v4778
  %v4780 = vpop.f32.mrb[0].mxu0
  %4781 = vmatprep.mubr.f32.mxu0 0.0
  %4782 = vmatmul.mubr.f32.gmra.mrb[0].mxu0 %v4450
  %v4783 = vpop.f32.mrb[0].mxu0
  %v4784 = vadd.f32 %v4695, %v4783
  %v4785 = vpop.f32.mrb[0].mxu0
  %4786 = vmatprep.mubr.f32.mxu0 0.0
  %4787 = vmatmul.mubr.f32.gmra.mrb[0].mxu0 %v4453
  %v4788 = vpop.f32.mrb[0].mxu0
  %v4789 = vadd.f32 %v4695, %v4788
  %v4790 = vpop.f32.mrb[0].mxu0
  %4791 = vmatprep.mubr.f32.mxu0 0.0
  %4792 = vmatmul.mubr.f32.gmra.mrb[0].mxu0 %v4456
  %v4793 = vpop.f32.mrb[0].mxu0
  %v4794 = vadd.f32 %v4695, %v4793
  %v4795 = vpop.f32.mrb[0].mxu0
  %4796 = vmatprep.mubr.f32.mxu0 0.0
  %4797 = vmatmul.mubr.f32.gmra.mrb[0].mxu0 %v4459
  %v4798 = vpop.f32.mrb[0].mxu0
  %v4799 = vadd.f32 %v4695, %v4798
  %v4800 = vpop.f32.mrb[0].mxu0
  %4801 = vdwg.mxu0
  %v4803 = vsel %vm743, %v4528, 0
  %v4806 = vsel %vm743, %v4533, 0
  %v4809 = vsel %vm743, %v4538, 0
  %v4812 = vsel %vm743, %v4543, 0
  %v4815 = vsel %vm743, %v4548, 0
  %v4818 = vsel %vm743, %v4553, 0
  %v4821 = vsel %vm743, %v4558, 0
  %v4824 = vsel %vm743, %v4563, 0
  %v4827 = vsel %vm743, %v4646, 0
  %v4830 = vsel %vm743, %v4651, 0
  %v4833 = vsel %vm743, %v4656, 0
  %v4836 = vsel %vm743, %v4661, 0
  %v4839 = vsel %vm743, %v4666, 0
  %v4842 = vsel %vm743, %v4671, 0
  %v4845 = vsel %vm743, %v4676, 0
  %v4848 = vsel %vm743, %v4681, 0
  %4850 = vmatprep.subr.mxu0 0.0
  %4851 = vmatpush1.xpose.msra.mxu0 %v4827
  %4852 = vmatprep.subr.mxu0 0.0
  %4853 = vmatpush1.xpose.msra.mxu0 %v4830
  %4854 = vmatprep.subr.mxu0 0.0
  %4855 = vmatpush1.xpose.msra.mxu0 %v4833
  %4856 = vmatprep.subr.mxu0 0.0
  %4857 = vmatpush1.xpose.msra.mxu0 %v4836
  %4858 = vmatprep.subr.mxu0 0.0
  %4859 = vmatpush1.xpose.msra.mxu0 %v4839
  %4860 = vmatprep.subr.mxu0 0.0
  %4861 = vmatpush1.xpose.msra.mxu0 %v4842
  %4862 = vmatprep.subr.mxu0 0.0
  %4863 = vmatpush1.xpose.msra.mxu0 %v4845
  %4864 = vmatprep.subr.mxu0 0.0
  %4865 = vmatpush1.xpose.msra.mxu0 %v4848
  %4866 = vmatprep.subr.mxu0 0.0
  %4867 = vmatpush1.xpose.msra.mxu0 0.0
  %4868 = vmatprep.subr.mxu0 0.0
  %4869 = vmatpush1.xpose.msra.mxu0 0.0
  %4870 = vmatprep.subr.mxu0 0.0
  %4871 = vmatpush1.xpose.msra.mxu0 0.0
  %4872 = vmatprep.subr.mxu0 0.0
  %4873 = vmatpush1.xpose.msra.mxu0 0.0
  %4874 = vmatprep.subr.mxu0 0.0
  %4875 = vmatpush1.xpose.msra.mxu0 0.0
  %4876 = vmatprep.subr.mxu0 0.0
  %4877 = vmatpush1.xpose.msra.mxu0 0.0
  %4878 = vmatprep.subr.mxu0 0.0
  %4879 = vmatpush1.xpose.msra.mxu0 0.0
  %4880 = vmatprep.subr.mxu0 0.0
  %4881 = vmatpush1.xpose.msra.mxu0 0.0
  %4882 = vmatprep.subr.mxu0 0.0
  %4883 = vmatpush1.xpose.msra.mxu0 0.0
  %4884 = vmatprep.subr.mxu0 0.0
  %4885 = vmatpush1.xpose.msra.mxu0 0.0
  %4886 = vmatprep.subr.mxu0 0.0
  %4887 = vmatpush1.xpose.msra.mxu0 0.0
  %4888 = vmatprep.subr.mxu0 0.0
  %4889 = vmatpush1.xpose.msra.mxu0 0.0
  %4890 = vmatprep.subr.mxu0 0.0
  %4891 = vmatpush1.xpose.msra.mxu0 0.0
  %4892 = vmatprep.subr.mxu0 0.0
  %4893 = vmatpush1.xpose.msra.mxu0 0.0
  %4894 = vmatprep.subr.mxu0 0.0
  %4895 = vmatpush1.xpose.msra.mxu0 0.0
  %4896 = vmatprep.subr.mxu0 0.0
  %4897 = vmatpush1.xpose.msra.mxu0 0.0
  %4898 = vmatprep.subr.mxu0 0.0
  %4899 = vmatpush1.xpose.msra.mxu0 0.0
  %4900 = vmatprep.subr.mxu0 0.0
  %4901 = vmatpush1.xpose.msra.mxu0 0.0
  %4902 = vmatprep.subr.mxu0 0.0
  %4903 = vmatpush1.xpose.msra.mxu0 0.0
  %4904 = vmatprep.subr.mxu0 0.0
  %4905 = vmatpush1.xpose.msra.mxu0 0.0
  %4906 = vmatprep.subr.mxu0 0.0
  %4907 = vmatpush1.xpose.msra.mxu0 0.0
  %4908 = vmatprep.subr.mxu0 0.0
  %4909 = vmatpush1.xpose.msra.mxu0 0.0
  %4910 = vmatprep.subr.mxu0 0.0
  %4911 = vmatpush1.xpose.msra.mxu0 0.0
  %4912 = vmatprep.subr.mxu0 0.0
  %4913 = vmatpush1.xpose.msra.mxu0 0.0
  %4914 = vmatprep.mubr.f32.mxu0 0.0
  %4915 = vmatmul.mubr.f32.gmra.mrb[0].mxu0 %v4803
  %v4916 = vpop.f32.mrb[0].mxu0
  %v4917 = vadd.f32 %v347, %v4916
  %v4918 = vpop.f32.mrb[0].mxu0
  %4919 = vmatprep.mubr.f32.mxu0 0.0
  %4920 = vmatmul.mubr.f32.gmra.mrb[0].mxu0 %v4806
  %v4921 = vpop.f32.mrb[0].mxu0
  %v4922 = vadd.f32 %v348, %v4921
  %v4923 = vpop.f32.mrb[0].mxu0
  %4924 = vmatprep.mubr.f32.mxu0 0.0
  %4925 = vmatmul.mubr.f32.gmra.mrb[0].mxu0 %v4809
  %v4926 = vpop.f32.mrb[0].mxu0
  %v4927 = vadd.f32 %v349, %v4926
  %v4928 = vpop.f32.mrb[0].mxu0
  %4929 = vmatprep.mubr.f32.mxu0 0.0
  %4930 = vmatmul.mubr.f32.gmra.mrb[0].mxu0 %v4812
  %v4931 = vpop.f32.mrb[0].mxu0
  %v4932 = vadd.f32 %v350, %v4931
  %v4933 = vpop.f32.mrb[0].mxu0
  %4934 = vmatprep.mubr.f32.mxu0 0.0
  %4935 = vmatmul.mubr.f32.gmra.mrb[0].mxu0 %v4815
  %v4936 = vpop.f32.mrb[0].mxu0
  %v4937 = vadd.f32 %v351, %v4936
  %v4938 = vpop.f32.mrb[0].mxu0
  %4939 = vmatprep.mubr.f32.mxu0 0.0
  %4940 = vmatmul.mubr.f32.gmra.mrb[0].mxu0 %v4818
  %v4941 = vpop.f32.mrb[0].mxu0
  %v4942 = vadd.f32 %v352, %v4941
  %v4943 = vpop.f32.mrb[0].mxu0
  %4944 = vmatprep.mubr.f32.mxu0 0.0
  %4945 = vmatmul.mubr.f32.gmra.mrb[0].mxu0 %v4821
  %v4946 = vpop.f32.mrb[0].mxu0
  %v4947 = vadd.f32 %v353, %v4946
  %v4948 = vpop.f32.mrb[0].mxu0
  %4949 = vmatprep.mubr.f32.mxu0 0.0
  %4950 = vmatmul.mubr.f32.gmra.mrb[0].mxu0 %v4824
  %v4951 = vpop.f32.mrb[0].mxu0
  %v4952 = vadd.f32 %v354, %v4951
  %v4953 = vpop.f32.mrb[0].mxu0
  %4954 = vdwg.mxu0
  %v4955 = vsel %vm897, %v4917, -inf
  %4956 = vmax.xlane.f32.xlu0 %v4955
  %v4957 = vpop.xlane.xlu0 %4956
  %v4958 = vsel %vm897, %v4922, -inf
  %4959 = vmax.xlane.f32.xlu0 %v4958
  %v4960 = vpop.xlane.xlu0 %4959
  %v4961 = vsel %vm897, %v4927, -inf
  %4962 = vmax.xlane.f32.xlu0 %v4961
  %v4963 = vpop.xlane.xlu0 %4962
  %v4964 = vsel %vm897, %v4932, -inf
  %4965 = vmax.xlane.f32.xlu0 %v4964
  %v4966 = vpop.xlane.xlu0 %4965
  %v4967 = vsel %vm897, %v4937, -inf
  %4968 = vmax.xlane.f32.xlu0 %v4967
  %v4969 = vpop.xlane.xlu0 %4968
  %v4970 = vsel %vm897, %v4942, -inf
  %4971 = vmax.xlane.f32.xlu0 %v4970
  %v4972 = vpop.xlane.xlu0 %4971
  %v4973 = vsel %vm897, %v4947, -inf
  %4974 = vmax.xlane.f32.xlu0 %v4973
  %v4975 = vpop.xlane.xlu0 %4974
  %v4976 = vsel %vm897, %v4952, -inf
  %4977 = vmax.xlane.f32.xlu0 %v4976
  %v4978 = vpop.xlane.xlu0 %4977
  %v4979 = vsub.f32 %v4917, %v4957
  %v4980 = vsub.f32 %v4922, %v4960
  %v4981 = vsub.f32 %v4927, %v4963
  %v4982 = vsub.f32 %v4932, %v4966
  %v4983 = vsub.f32 %v4937, %v4969
  %v4984 = vsub.f32 %v4942, %v4972
  %v4985 = vsub.f32 %v4947, %v4975
  %v4986 = vsub.f32 %v4952, %v4978
  %v4987 = vmul.f32 %v4979, 1.442695
  %v4988 = vpow.pop %v4987
  %v4989 = vmul.f32 %v4980, 1.442695
  %v4990 = vpow.pop %v4989
  %v4991 = vmul.f32 %v4981, 1.442695
  %v4992 = vpow.pop %v4991
  %v4993 = vmul.f32 %v4982, 1.442695
  %v4994 = vpow.pop %v4993
  %v4995 = vmul.f32 %v4983, 1.442695
  %v4996 = vpow.pop %v4995
  %v4997 = vmul.f32 %v4984, 1.442695
  %v4998 = vpow.pop %v4997
  %v4999 = vmul.f32 %v4985, 1.442695
  %v5000 = vpow.pop %v4999
  %v5001 = vmul.f32 %v4986, 1.442695
  %v5002 = vpow.pop %v5001
  %v5003 = vsel %vm897, %v4988, 0.0
  %5004 = vadd.xlane.f32.xlu0 %v5003
  %v5005 = vpop.xlane.xlu0 %5004
  %v5006 = vsel %vm897, %v4990, 0.0
  %5007 = vadd.xlane.f32.xlu0 %v5006
  %v5008 = vpop.xlane.xlu0 %5007
  %v5009 = vsel %vm897, %v4992, 0.0
  %5010 = vadd.xlane.f32.xlu0 %v5009
  %v5011 = vpop.xlane.xlu0 %5010
  %v5012 = vsel %vm897, %v4994, 0.0
  %5013 = vadd.xlane.f32.xlu0 %v5012
  %v5014 = vpop.xlane.xlu0 %5013
  %v5015 = vsel %vm897, %v4996, 0.0
  %5016 = vadd.xlane.f32.xlu0 %v5015
  %v5017 = vpop.xlane.xlu0 %5016
  %v5018 = vsel %vm897, %v4998, 0.0
  %5019 = vadd.xlane.f32.xlu0 %v5018
  %v5020 = vpop.xlane.xlu0 %5019
  %v5021 = vsel %vm897, %v5000, 0.0
  %5022 = vadd.xlane.f32.xlu0 %v5021
  %v5023 = vpop.xlane.xlu0 %5022
  %v5024 = vsel %vm897, %v5002, 0.0
  %5025 = vadd.xlane.f32.xlu0 %v5024
  %v5026 = vpop.xlane.xlu0 %5025
  %v5027 = vrcp.pop %v5005
  %v5028 = vmul.f32 %v4988, %v5027
  %v5029 = vrcp.pop %v5008
  %v5030 = vmul.f32 %v4990, %v5029
  %v5031 = vrcp.pop %v5011
  %v5032 = vmul.f32 %v4992, %v5031
  %v5033 = vrcp.pop %v5014
  %v5034 = vmul.f32 %v4994, %v5033
  %v5035 = vrcp.pop %v5017
  %v5036 = vmul.f32 %v4996, %v5035
  %v5037 = vrcp.pop %v5020
  %v5038 = vmul.f32 %v4998, %v5037
  %v5039 = vrcp.pop %v5023
  %v5040 = vmul.f32 %v5000, %v5039
  %v5041 = vrcp.pop %v5026
  %v5042 = vmul.f32 %v5002, %v5041
  %v5044 = vsel %vm897, %v5028, 0
  %v5047 = vsel %vm897, %v5030, 0
  %v5050 = vsel %vm897, %v5032, 0
  %v5053 = vsel %vm897, %v5034, 0
  %v5056 = vsel %vm897, %v5036, 0
  %v5059 = vsel %vm897, %v5038, 0
  %v5062 = vsel %vm897, %v5040, 0
  %v5065 = vsel %vm897, %v5042, 0
  %5067 = vmatprep.subr.mxu0 0.0
  %5068 = vmatpush1.msra.mxu0 %v4764
  %5069 = vmatprep.subr.mxu0 0.0
  %5070 = vmatpush1.msra.mxu0 %v4769
  %5071 = vmatprep.subr.mxu0 0.0
  %5072 = vmatpush1.msra.mxu0 %v4774
  %5073 = vmatprep.subr.mxu0 0.0
  %5074 = vmatpush1.msra.mxu0 %v4779
  %5075 = vmatprep.subr.mxu0 0.0
  %5076 = vmatpush1.msra.mxu0 %v4784
  %5077 = vmatprep.subr.mxu0 0.0
  %5078 = vmatpush1.msra.mxu0 %v4789
  %5079 = vmatprep.subr.mxu0 0.0
  %5080 = vmatpush1.msra.mxu0 %v4794
  %5081 = vmatprep.subr.mxu0 0.0
  %5082 = vmatpush1.msra.mxu0 %v4799
  %5083 = vmatprep.subr.mxu0 0.0
  %5084 = vmatpush1.msra.mxu0 0.0
  %5085 = vmatprep.subr.mxu0 0.0
  %5086 = vmatpush1.msra.mxu0 0.0
  %5087 = vmatprep.subr.mxu0 0.0
  %5088 = vmatpush1.msra.mxu0 0.0
  %5089 = vmatprep.subr.mxu0 0.0
  %5090 = vmatpush1.msra.mxu0 0.0
  %5091 = vmatprep.subr.mxu0 0.0
  %5092 = vmatpush1.msra.mxu0 0.0
  %5093 = vmatprep.subr.mxu0 0.0
  %5094 = vmatpush1.msra.mxu0 0.0
  %5095 = vmatprep.subr.mxu0 0.0
  %5096 = vmatpush1.msra.mxu0 0.0
  %5097 = vmatprep.subr.mxu0 0.0
  %5098 = vmatpush1.msra.mxu0 0.0
  %5099 = vmatprep.subr.mxu0 0.0
  %5100 = vmatpush1.msra.mxu0 0.0
  %5101 = vmatprep.subr.mxu0 0.0
  %5102 = vmatpush1.msra.mxu0 0.0
  %5103 = vmatprep.subr.mxu0 0.0
  %5104 = vmatpush1.msra.mxu0 0.0
  %5105 = vmatprep.subr.mxu0 0.0
  %5106 = vmatpush1.msra.mxu0 0.0
  %5107 = vmatprep.subr.mxu0 0.0
  %5108 = vmatpush1.msra.mxu0 0.0
  %5109 = vmatprep.subr.mxu0 0.0
  %5110 = vmatpush1.msra.mxu0 0.0
  %5111 = vmatprep.subr.mxu0 0.0
  %5112 = vmatpush1.msra.mxu0 0.0
  %5113 = vmatprep.subr.mxu0 0.0
  %5114 = vmatpush1.msra.mxu0 0.0
  %5115 = vmatprep.subr.mxu0 0.0
  %5116 = vmatpush1.msra.mxu0 0.0
  %5117 = vmatprep.subr.mxu0 0.0
  %5118 = vmatpush1.msra.mxu0 0.0
  %5119 = vmatprep.subr.mxu0 0.0
  %5120 = vmatpush1.msra.mxu0 0.0
  %5121 = vmatprep.subr.mxu0 0.0
  %5122 = vmatpush1.msra.mxu0 0.0
  %5123 = vmatprep.subr.mxu0 0.0
  %5124 = vmatpush1.msra.mxu0 0.0
  %5125 = vmatprep.subr.mxu0 0.0
  %5126 = vmatpush1.msra.mxu0 0.0
  %5127 = vmatprep.subr.mxu0 0.0
  %5128 = vmatpush1.msra.mxu0 0.0
  %5129 = vmatprep.subr.mxu0 0.0
  %5130 = vmatpush1.msra.mxu0 0.0
  %5131 = vmatprep.mubr.f32.mxu0 0.0
  %5132 = vmatmul.mubr.f32.gmra.mrb[0].mxu0 %v5044
  %v5133 = vpop.f32.mrb[0].mxu0
  %v5134 = vadd.f32 0.0, %v5133
  %v5135 = vpop.f32.mrb[0].mxu0
  %5136 = vmatprep.mubr.f32.mxu0 0.0
  %5137 = vmatmul.mubr.f32.gmra.mrb[0].mxu0 %v5047
  %v5138 = vpop.f32.mrb[0].mxu0
  %v5139 = vadd.f32 0.0, %v5138
  %v5140 = vpop.f32.mrb[0].mxu0
  %5141 = vmatprep.mubr.f32.mxu0 0.0
  %5142 = vmatmul.mubr.f32.gmra.mrb[0].mxu0 %v5050
  %v5143 = vpop.f32.mrb[0].mxu0
  %v5144 = vadd.f32 0.0, %v5143
  %v5145 = vpop.f32.mrb[0].mxu0
  %5146 = vmatprep.mubr.f32.mxu0 0.0
  %5147 = vmatmul.mubr.f32.gmra.mrb[0].mxu0 %v5053
  %v5148 = vpop.f32.mrb[0].mxu0
  %v5149 = vadd.f32 0.0, %v5148
  %v5150 = vpop.f32.mrb[0].mxu0
  %5151 = vmatprep.mubr.f32.mxu0 0.0
  %5152 = vmatmul.mubr.f32.gmra.mrb[0].mxu0 %v5056
  %v5153 = vpop.f32.mrb[0].mxu0
  %v5154 = vadd.f32 0.0, %v5153
  %v5155 = vpop.f32.mrb[0].mxu0
  %5156 = vmatprep.mubr.f32.mxu0 0.0
  %5157 = vmatmul.mubr.f32.gmra.mrb[0].mxu0 %v5059
  %v5158 = vpop.f32.mrb[0].mxu0
  %v5159 = vadd.f32 0.0, %v5158
  %v5160 = vpop.f32.mrb[0].mxu0
  %5161 = vmatprep.mubr.f32.mxu0 0.0
  %5162 = vmatmul.mubr.f32.gmra.mrb[0].mxu0 %v5062
  %v5163 = vpop.f32.mrb[0].mxu0
  %v5164 = vadd.f32 0.0, %v5163
  %v5165 = vpop.f32.mrb[0].mxu0
  %5166 = vmatprep.mubr.f32.mxu0 0.0
  %5167 = vmatmul.mubr.f32.gmra.mrb[0].mxu0 %v5065
  %v5168 = vpop.f32.mrb[0].mxu0
  %v5169 = vadd.f32 0.0, %v5168
  %v5170 = vpop.f32.mrb[0].mxu0
  %5171 = vdwg.mxu0
  %s5172 = scalar_lea.vmem %s4, 32
  %v5173 = vld [vmem:[%s5172] sm:$0xff]
  %s5174 = scalar_lea.vmem %s2, 416
  %v5175 = vld [vmem:[%s5174] sm:$0xff]
  %v5176 = vld [vmem:[%s5174 + $0x8] sm:$0xff]
  %v5177 = vld [vmem:[%s5174 + $0x10] sm:$0xff]
  %v5178 = vld [vmem:[%s5174 + $0x18] sm:$0xff]
  %s5179 = scalar_lea.vmem %s3, 13
  %v5180 = vld [vmem:[%s5179] sm:$0x1]
  %v5182 = vlaneseq
  %v5183 = vshrl.u32 %v5182, 7
  %v5184 = vsub.s32 0, %v5183
  %v5185 = vrot.slane %v5180, %v5184
  %5187 = vmatprep.subr.mxu0 0.0
  %5188 = vmatpush1.msra.mxu0 %v5175
  %5189 = vmatprep.subr.mxu0 0.0
  %5190 = vmatpush1.msra.mxu0 %v5176
  %5191 = vmatprep.subr.mxu0 0.0
  %5192 = vmatpush1.msra.mxu0 %v5177
  %5193 = vmatprep.subr.mxu0 0.0
  %5194 = vmatpush1.msra.mxu0 %v5178
  %5195 = vmatprep.subr.mxu0 0.0
  %5196 = vmatpush1.msra.mxu0 0.0
  %5197 = vmatprep.subr.mxu0 0.0
  %5198 = vmatpush1.msra.mxu0 0.0
  %5199 = vmatprep.subr.mxu0 0.0
  %5200 = vmatpush1.msra.mxu0 0.0
  %5201 = vmatprep.subr.mxu0 0.0
  %5202 = vmatpush1.msra.mxu0 0.0
  %5203 = vmatprep.subr.mxu0 0.0
  %5204 = vmatpush1.msra.mxu0 0.0
  %5205 = vmatprep.subr.mxu0 0.0
  %5206 = vmatpush1.msra.mxu0 0.0
  %5207 = vmatprep.subr.mxu0 0.0
  %5208 = vmatpush1.msra.mxu0 0.0
  %5209 = vmatprep.subr.mxu0 0.0
  %5210 = vmatpush1.msra.mxu0 0.0
  %5211 = vmatprep.subr.mxu0 0.0
  %5212 = vmatpush1.msra.mxu0 0.0
  %5213 = vmatprep.subr.mxu0 0.0
  %5214 = vmatpush1.msra.mxu0 0.0
  %5215 = vmatprep.subr.mxu0 0.0
  %5216 = vmatpush1.msra.mxu0 0.0
  %5217 = vmatprep.subr.mxu0 0.0
  %5218 = vmatpush1.msra.mxu0 0.0
  %5219 = vmatprep.subr.mxu0 0.0
  %5220 = vmatpush1.msra.mxu0 0.0
  %5221 = vmatprep.subr.mxu0 0.0
  %5222 = vmatpush1.msra.mxu0 0.0
  %5223 = vmatprep.subr.mxu0 0.0
  %5224 = vmatpush1.msra.mxu0 0.0
  %5225 = vmatprep.subr.mxu0 0.0
  %5226 = vmatpush1.msra.mxu0 0.0
  %5227 = vmatprep.subr.mxu0 0.0
  %5228 = vmatpush1.msra.mxu0 0.0
  %5229 = vmatprep.subr.mxu0 0.0
  %5230 = vmatpush1.msra.mxu0 0.0
  %5231 = vmatprep.subr.mxu0 0.0
  %5232 = vmatpush1.msra.mxu0 0.0
  %5233 = vmatprep.subr.mxu0 0.0
  %5234 = vmatpush1.msra.mxu0 0.0
  %5235 = vmatprep.subr.mxu0 0.0
  %5236 = vmatpush1.msra.mxu0 0.0
  %5237 = vmatprep.subr.mxu0 0.0
  %5238 = vmatpush1.msra.mxu0 0.0
  %5239 = vmatprep.subr.mxu0 0.0
  %5240 = vmatpush1.msra.mxu0 0.0
  %5241 = vmatprep.subr.mxu0 0.0
  %5242 = vmatpush1.msra.mxu0 0.0
  %5243 = vmatprep.subr.mxu0 0.0
  %5244 = vmatpush1.msra.mxu0 0.0
  %5245 = vmatprep.subr.mxu0 0.0
  %5246 = vmatpush1.msra.mxu0 0.0
  %5247 = vmatprep.subr.mxu0 0.0
  %5248 = vmatpush1.msra.mxu0 0.0
  %5249 = vmatprep.subr.mxu0 0.0
  %5250 = vmatpush1.msra.mxu0 0.0
  %5251 = vmatprep.mubr.f32.mxu0 0.0
  %5252 = vmatmul.mubr.f32.gmra.mrb[0].mxu0 %v4438
  %v5253 = vpop.f32.mrb[0].mxu0
  %v5254 = vadd.f32 %v5185, %v5253
  %v5255 = vpop.f32.mrb[0].mxu0
  %5256 = vmatprep.mubr.f32.mxu0 0.0
  %5257 = vmatmul.mubr.f32.gmra.mrb[0].mxu0 %v4441
  %v5258 = vpop.f32.mrb[0].mxu0
  %v5259 = vadd.f32 %v5185, %v5258
  %v5260 = vpop.f32.mrb[0].mxu0
  %5261 = vmatprep.mubr.f32.mxu0 0.0
  %5262 = vmatmul.mubr.f32.gmra.mrb[0].mxu0 %v4444
  %v5263 = vpop.f32.mrb[0].mxu0
  %v5264 = vadd.f32 %v5185, %v5263
  %v5265 = vpop.f32.mrb[0].mxu0
  %5266 = vmatprep.mubr.f32.mxu0 0.0
  %5267 = vmatmul.mubr.f32.gmra.mrb[0].mxu0 %v4447
  %v5268 = vpop.f32.mrb[0].mxu0
  %v5269 = vadd.f32 %v5185, %v5268
  %v5270 = vpop.f32.mrb[0].mxu0
  %5271 = vmatprep.mubr.f32.mxu0 0.0
  %5272 = vmatmul.mubr.f32.gmra.mrb[0].mxu0 %v4450
  %v5273 = vpop.f32.mrb[0].mxu0
  %v5274 = vadd.f32 %v5185, %v5273
  %v5275 = vpop.f32.mrb[0].mxu0
  %5276 = vmatprep.mubr.f32.mxu0 0.0
  %5277 = vmatmul.mubr.f32.gmra.mrb[0].mxu0 %v4453
  %v5278 = vpop.f32.mrb[0].mxu0
  %v5279 = vadd.f32 %v5185, %v5278
  %v5280 = vpop.f32.mrb[0].mxu0
  %5281 = vmatprep.mubr.f32.mxu0 0.0
  %5282 = vmatmul.mubr.f32.gmra.mrb[0].mxu0 %v4456
  %v5283 = vpop.f32.mrb[0].mxu0
  %v5284 = vadd.f32 %v5185, %v5283
  %v5285 = vpop.f32.mrb[0].mxu0
  %5286 = vmatprep.mubr.f32.mxu0 0.0
  %5287 = vmatmul.mubr.f32.gmra.mrb[0].mxu0 %v4459
  %v5288 = vpop.f32.mrb[0].mxu0
  %v5289 = vadd.f32 %v5185, %v5288
  %v5290 = vpop.f32.mrb[0].mxu0
  %5291 = vdwg.mxu0
  %s5292 = scalar_lea.vmem %s2, 544
  %v5293 = vld [vmem:[%s5292] sm:$0xff]
  %v5294 = vld [vmem:[%s5292 + $0x8] sm:$0xff]
  %v5295 = vld [vmem:[%s5292 + $0x10] sm:$0xff]
  %v5296 = vld [vmem:[%s5292 + $0x18] sm:$0xff]
  %s5297 = scalar_lea.vmem %s3, 17
  %v5298 = vld [vmem:[%s5297] sm:$0x1]
  %v5300 = vlaneseq
  %v5301 = vshrl.u32 %v5300, 7
  %v5302 = vsub.s32 0, %v5301
  %v5303 = vrot.slane %v5298, %v5302
  %5305 = vmatprep.subr.mxu0 0.0
  %5306 = vmatpush1.msra.mxu0 %v5293
  %5307 = vmatprep.subr.mxu0 0.0
  %5308 = vmatpush1.msra.mxu0 %v5294
  %5309 = vmatprep.subr.mxu0 0.0
  %5310 = vmatpush1.msra.mxu0 %v5295
  %5311 = vmatprep.subr.mxu0 0.0
  %5312 = vmatpush1.msra.mxu0 %v5296
  %5313 = vmatprep.subr.mxu0 0.0
  %5314 = vmatpush1.msra.mxu0 0.0
  %5315 = vmatprep.subr.mxu0 0.0
  %5316 = vmatpush1.msra.mxu0 0.0
  %5317 = vmatprep.subr.mxu0 0.0
  %5318 = vmatpush1.msra.mxu0 0.0
  %5319 = vmatprep.subr.mxu0 0.0
  %5320 = vmatpush1.msra.mxu0 0.0
  %5321 = vmatprep.subr.mxu0 0.0
  %5322 = vmatpush1.msra.mxu0 0.0
  %5323 = vmatprep.subr.mxu0 0.0
  %5324 = vmatpush1.msra.mxu0 0.0
  %5325 = vmatprep.subr.mxu0 0.0
  %5326 = vmatpush1.msra.mxu0 0.0
  %5327 = vmatprep.subr.mxu0 0.0
  %5328 = vmatpush1.msra.mxu0 0.0
  %5329 = vmatprep.subr.mxu0 0.0
  %5330 = vmatpush1.msra.mxu0 0.0
  %5331 = vmatprep.subr.mxu0 0.0
  %5332 = vmatpush1.msra.mxu0 0.0
  %5333 = vmatprep.subr.mxu0 0.0
  %5334 = vmatpush1.msra.mxu0 0.0
  %5335 = vmatprep.subr.mxu0 0.0
  %5336 = vmatpush1.msra.mxu0 0.0
  %5337 = vmatprep.subr.mxu0 0.0
  %5338 = vmatpush1.msra.mxu0 0.0
  %5339 = vmatprep.subr.mxu0 0.0
  %5340 = vmatpush1.msra.mxu0 0.0
  %5341 = vmatprep.subr.mxu0 0.0
  %5342 = vmatpush1.msra.mxu0 0.0
  %5343 = vmatprep.subr.mxu0 0.0
  %5344 = vmatpush1.msra.mxu0 0.0
  %5345 = vmatprep.subr.mxu0 0.0
  %5346 = vmatpush1.msra.mxu0 0.0
  %5347 = vmatprep.subr.mxu0 0.0
  %5348 = vmatpush1.msra.mxu0 0.0
  %5349 = vmatprep.subr.mxu0 0.0
  %5350 = vmatpush1.msra.mxu0 0.0
  %5351 = vmatprep.subr.mxu0 0.0
  %5352 = vmatpush1.msra.mxu0 0.0
  %5353 = vmatprep.subr.mxu0 0.0
  %5354 = vmatpush1.msra.mxu0 0.0
  %5355 = vmatprep.subr.mxu0 0.0
  %5356 = vmatpush1.msra.mxu0 0.0
  %5357 = vmatprep.subr.mxu0 0.0
  %5358 = vmatpush1.msra.mxu0 0.0
  %5359 = vmatprep.subr.mxu0 0.0
  %5360 = vmatpush1.msra.mxu0 0.0
  %5361 = vmatprep.subr.mxu0 0.0
  %5362 = vmatpush1.msra.mxu0 0.0
  %5363 = vmatprep.subr.mxu0 0.0
  %5364 = vmatpush1.msra.mxu0 0.0
  %5365 = vmatprep.subr.mxu0 0.0
  %5366 = vmatpush1.msra.mxu0 0.0
  %5367 = vmatprep.subr.mxu0 0.0
  %5368 = vmatpush1.msra.mxu0 0.0
  %5369 = vmatprep.mubr.f32.mxu0 0.0
  %5370 = vmatmul.mubr.f32.gmra.mrb[0].mxu0 %v4438
  %v5371 = vpop.f32.mrb[0].mxu0
  %v5372 = vadd.f32 %v5303, %v5371
  %v5373 = vpop.f32.mrb[0].mxu0
  %5374 = vmatprep.mubr.f32.mxu0 0.0
  %5375 = vmatmul.mubr.f32.gmra.mrb[0].mxu0 %v4441
  %v5376 = vpop.f32.mrb[0].mxu0
  %v5377 = vadd.f32 %v5303, %v5376
  %v5378 = vpop.f32.mrb[0].mxu0
  %5379 = vmatprep.mubr.f32.mxu0 0.0
  %5380 = vmatmul.mubr.f32.gmra.mrb[0].mxu0 %v4444
  %v5381 = vpop.f32.mrb[0].mxu0
  %v5382 = vadd.f32 %v5303, %v5381
  %v5383 = vpop.f32.mrb[0].mxu0
  %5384 = vmatprep.mubr.f32.mxu0 0.0
  %5385 = vmatmul.mubr.f32.gmra.mrb[0].mxu0 %v4447
  %v5386 = vpop.f32.mrb[0].mxu0
  %v5387 = vadd.f32 %v5303, %v5386
  %v5388 = vpop.f32.mrb[0].mxu0
  %5389 = vmatprep.mubr.f32.mxu0 0.0
  %5390 = vmatmul.mubr.f32.gmra.mrb[0].mxu0 %v4450
  %v5391 = vpop.f32.mrb[0].mxu0
  %v5392 = vadd.f32 %v5303, %v5391
  %v5393 = vpop.f32.mrb[0].mxu0
  %5394 = vmatprep.mubr.f32.mxu0 0.0
  %5395 = vmatmul.mubr.f32.gmra.mrb[0].mxu0 %v4453
  %v5396 = vpop.f32.mrb[0].mxu0
  %v5397 = vadd.f32 %v5303, %v5396
  %v5398 = vpop.f32.mrb[0].mxu0
  %5399 = vmatprep.mubr.f32.mxu0 0.0
  %5400 = vmatmul.mubr.f32.gmra.mrb[0].mxu0 %v4456
  %v5401 = vpop.f32.mrb[0].mxu0
  %v5402 = vadd.f32 %v5303, %v5401
  %v5403 = vpop.f32.mrb[0].mxu0
  %5404 = vmatprep.mubr.f32.mxu0 0.0
  %5405 = vmatmul.mubr.f32.gmra.mrb[0].mxu0 %v4459
  %v5406 = vpop.f32.mrb[0].mxu0
  %v5407 = vadd.f32 %v5303, %v5406
  %v5408 = vpop.f32.mrb[0].mxu0
  %5409 = vdwg.mxu0
  %s5410 = scalar_lea.vmem %s2, 672
  %v5411 = vld [vmem:[%s5410] sm:$0xff]
  %v5412 = vld [vmem:[%s5410 + $0x8] sm:$0xff]
  %v5413 = vld [vmem:[%s5410 + $0x10] sm:$0xff]
  %v5414 = vld [vmem:[%s5410 + $0x18] sm:$0xff]
  %s5415 = scalar_lea.vmem %s3, 21
  %v5416 = vld [vmem:[%s5415] sm:$0x1]
  %v5418 = vlaneseq
  %v5419 = vshrl.u32 %v5418, 7
  %v5420 = vsub.s32 0, %v5419
  %v5421 = vrot.slane %v5416, %v5420
  %5423 = vmatprep.subr.mxu0 0.0
  %5424 = vmatpush1.msra.mxu0 %v5411
  %5425 = vmatprep.subr.mxu0 0.0
  %5426 = vmatpush1.msra.mxu0 %v5412
  %5427 = vmatprep.subr.mxu0 0.0
  %5428 = vmatpush1.msra.mxu0 %v5413
  %5429 = vmatprep.subr.mxu0 0.0
  %5430 = vmatpush1.msra.mxu0 %v5414
  %5431 = vmatprep.subr.mxu0 0.0
  %5432 = vmatpush1.msra.mxu0 0.0
  %5433 = vmatprep.subr.mxu0 0.0
  %5434 = vmatpush1.msra.mxu0 0.0
  %5435 = vmatprep.subr.mxu0 0.0
  %5436 = vmatpush1.msra.mxu0 0.0
  %5437 = vmatprep.subr.mxu0 0.0
  %5438 = vmatpush1.msra.mxu0 0.0
  %5439 = vmatprep.subr.mxu0 0.0
  %5440 = vmatpush1.msra.mxu0 0.0
  %5441 = vmatprep.subr.mxu0 0.0
  %5442 = vmatpush1.msra.mxu0 0.0
  %5443 = vmatprep.subr.mxu0 0.0
  %5444 = vmatpush1.msra.mxu0 0.0
  %5445 = vmatprep.subr.mxu0 0.0
  %5446 = vmatpush1.msra.mxu0 0.0
  %5447 = vmatprep.subr.mxu0 0.0
  %5448 = vmatpush1.msra.mxu0 0.0
  %5449 = vmatprep.subr.mxu0 0.0
  %5450 = vmatpush1.msra.mxu0 0.0
  %5451 = vmatprep.subr.mxu0 0.0
  %5452 = vmatpush1.msra.mxu0 0.0
  %5453 = vmatprep.subr.mxu0 0.0
  %5454 = vmatpush1.msra.mxu0 0.0
  %5455 = vmatprep.subr.mxu0 0.0
  %5456 = vmatpush1.msra.mxu0 0.0
  %5457 = vmatprep.subr.mxu0 0.0
  %5458 = vmatpush1.msra.mxu0 0.0
  %5459 = vmatprep.subr.mxu0 0.0
  %5460 = vmatpush1.msra.mxu0 0.0
  %5461 = vmatprep.subr.mxu0 0.0
  %5462 = vmatpush1.msra.mxu0 0.0
  %5463 = vmatprep.subr.mxu0 0.0
  %5464 = vmatpush1.msra.mxu0 0.0
  %5465 = vmatprep.subr.mxu0 0.0
  %5466 = vmatpush1.msra.mxu0 0.0
  %5467 = vmatprep.subr.mxu0 0.0
  %5468 = vmatpush1.msra.mxu0 0.0
  %5469 = vmatprep.subr.mxu0 0.0
  %5470 = vmatpush1.msra.mxu0 0.0
  %5471 = vmatprep.subr.mxu0 0.0
  %5472 = vmatpush1.msra.mxu0 0.0
  %5473 = vmatprep.subr.mxu0 0.0
  %5474 = vmatpush1.msra.mxu0 0.0
  %5475 = vmatprep.subr.mxu0 0.0
  %5476 = vmatpush1.msra.mxu0 0.0
  %5477 = vmatprep.subr.mxu0 0.0
  %5478 = vmatpush1.msra.mxu0 0.0
  %5479 = vmatprep.subr.mxu0 0.0
  %5480 = vmatpush1.msra.mxu0 0.0
  %5481 = vmatprep.subr.mxu0 0.0
  %5482 = vmatpush1.msra.mxu0 0.0
  %5483 = vmatprep.subr.mxu0 0.0
  %5484 = vmatpush1.msra.mxu0 0.0
  %5485 = vmatprep.subr.mxu0 0.0
  %5486 = vmatpush1.msra.mxu0 0.0
  %5487 = vmatprep.mubr.f32.mxu0 0.0
  %5488 = vmatmul.mubr.f32.gmra.mrb[0].mxu0 %v4438
  %v5489 = vpop.f32.mrb[0].mxu0
  %v5490 = vadd.f32 %v5421, %v5489
  %v5491 = vpop.f32.mrb[0].mxu0
  %5492 = vmatprep.mubr.f32.mxu0 0.0
  %5493 = vmatmul.mubr.f32.gmra.mrb[0].mxu0 %v4441
  %v5494 = vpop.f32.mrb[0].mxu0
  %v5495 = vadd.f32 %v5421, %v5494
  %v5496 = vpop.f32.mrb[0].mxu0
  %5497 = vmatprep.mubr.f32.mxu0 0.0
  %5498 = vmatmul.mubr.f32.gmra.mrb[0].mxu0 %v4444
  %v5499 = vpop.f32.mrb[0].mxu0
  %v5500 = vadd.f32 %v5421, %v5499
  %v5501 = vpop.f32.mrb[0].mxu0
  %5502 = vmatprep.mubr.f32.mxu0 0.0
  %5503 = vmatmul.mubr.f32.gmra.mrb[0].mxu0 %v4447
  %v5504 = vpop.f32.mrb[0].mxu0
  %v5505 = vadd.f32 %v5421, %v5504
  %v5506 = vpop.f32.mrb[0].mxu0
  %5507 = vmatprep.mubr.f32.mxu0 0.0
  %5508 = vmatmul.mubr.f32.gmra.mrb[0].mxu0 %v4450
  %v5509 = vpop.f32.mrb[0].mxu0
  %v5510 = vadd.f32 %v5421, %v5509
  %v5511 = vpop.f32.mrb[0].mxu0
  %5512 = vmatprep.mubr.f32.mxu0 0.0
  %5513 = vmatmul.mubr.f32.gmra.mrb[0].mxu0 %v4453
  %v5514 = vpop.f32.mrb[0].mxu0
  %v5515 = vadd.f32 %v5421, %v5514
  %v5516 = vpop.f32.mrb[0].mxu0
  %5517 = vmatprep.mubr.f32.mxu0 0.0
  %5518 = vmatmul.mubr.f32.gmra.mrb[0].mxu0 %v4456
  %v5519 = vpop.f32.mrb[0].mxu0
  %v5520 = vadd.f32 %v5421, %v5519
  %v5521 = vpop.f32.mrb[0].mxu0
  %5522 = vmatprep.mubr.f32.mxu0 0.0
  %5523 = vmatmul.mubr.f32.gmra.mrb[0].mxu0 %v4459
  %v5524 = vpop.f32.mrb[0].mxu0
  %v5525 = vadd.f32 %v5421, %v5524
  %v5526 = vpop.f32.mrb[0].mxu0
  %5527 = vdwg.mxu0
  %v5529 = vsel %vm743, %v5254, 0
  %v5532 = vsel %vm743, %v5259, 0
  %v5535 = vsel %vm743, %v5264, 0
  %v5538 = vsel %vm743, %v5269, 0
  %v5541 = vsel %vm743, %v5274, 0
  %v5544 = vsel %vm743, %v5279, 0
  %v5547 = vsel %vm743, %v5284, 0
  %v5550 = vsel %vm743, %v5289, 0
  %v5553 = vsel %vm743, %v5372, 0
  %v5556 = vsel %vm743, %v5377, 0
  %v5559 = vsel %vm743, %v5382, 0
  %v5562 = vsel %vm743, %v5387, 0
  %v5565 = vsel %vm743, %v5392, 0
  %v5568 = vsel %vm743, %v5397, 0
  %v5571 = vsel %vm743, %v5402, 0
  %v5574 = vsel %vm743, %v5407, 0
  %5576 = vmatprep.subr.mxu0 0.0
  %5577 = vmatpush1.xpose.msra.mxu0 %v5553
  %5578 = vmatprep.subr.mxu0 0.0
  %5579 = vmatpush1.xpose.msra.mxu0 %v5556
  %5580 = vmatprep.subr.mxu0 0.0
  %5581 = vmatpush1.xpose.msra.mxu0 %v5559
  %5582 = vmatprep.subr.mxu0 0.0
  %5583 = vmatpush1.xpose.msra.mxu0 %v5562
  %5584 = vmatprep.subr.mxu0 0.0
  %5585 = vmatpush1.xpose.msra.mxu0 %v5565
  %5586 = vmatprep.subr.mxu0 0.0
  %5587 = vmatpush1.xpose.msra.mxu0 %v5568
  %5588 = vmatprep.subr.mxu0 0.0
  %5589 = vmatpush1.xpose.msra.mxu0 %v5571
  %5590 = vmatprep.subr.mxu0 0.0
  %5591 = vmatpush1.xpose.msra.mxu0 %v5574
  %5592 = vmatprep.subr.mxu0 0.0
  %5593 = vmatpush1.xpose.msra.mxu0 0.0
  %5594 = vmatprep.subr.mxu0 0.0
  %5595 = vmatpush1.xpose.msra.mxu0 0.0
  %5596 = vmatprep.subr.mxu0 0.0
  %5597 = vmatpush1.xpose.msra.mxu0 0.0
  %5598 = vmatprep.subr.mxu0 0.0
  %5599 = vmatpush1.xpose.msra.mxu0 0.0
  %5600 = vmatprep.subr.mxu0 0.0
  %5601 = vmatpush1.xpose.msra.mxu0 0.0
  %5602 = vmatprep.subr.mxu0 0.0
  %5603 = vmatpush1.xpose.msra.mxu0 0.0
  %5604 = vmatprep.subr.mxu0 0.0
  %5605 = vmatpush1.xpose.msra.mxu0 0.0
  %5606 = vmatprep.subr.mxu0 0.0
  %5607 = vmatpush1.xpose.msra.mxu0 0.0
  %5608 = vmatprep.subr.mxu0 0.0
  %5609 = vmatpush1.xpose.msra.mxu0 0.0
  %5610 = vmatprep.subr.mxu0 0.0
  %5611 = vmatpush1.xpose.msra.mxu0 0.0
  %5612 = vmatprep.subr.mxu0 0.0
  %5613 = vmatpush1.xpose.msra.mxu0 0.0
  %5614 = vmatprep.subr.mxu0 0.0
  %5615 = vmatpush1.xpose.msra.mxu0 0.0
  %5616 = vmatprep.subr.mxu0 0.0
  %5617 = vmatpush1.xpose.msra.mxu0 0.0
  %5618 = vmatprep.subr.mxu0 0.0
  %5619 = vmatpush1.xpose.msra.mxu0 0.0
  %5620 = vmatprep.subr.mxu0 0.0
  %5621 = vmatpush1.xpose.msra.mxu0 0.0
  %5622 = vmatprep.subr.mxu0 0.0
  %5623 = vmatpush1.xpose.msra.mxu0 0.0
  %5624 = vmatprep.subr.mxu0 0.0
  %5625 = vmatpush1.xpose.msra.mxu0 0.0
  %5626 = vmatprep.subr.mxu0 0.0
  %5627 = vmatpush1.xpose.msra.mxu0 0.0
  %5628 = vmatprep.subr.mxu0 0.0
  %5629 = vmatpush1.xpose.msra.mxu0 0.0
  %5630 = vmatprep.subr.mxu0 0.0
  %5631 = vmatpush1.xpose.msra.mxu0 0.0
  %5632 = vmatprep.subr.mxu0 0.0
  %5633 = vmatpush1.xpose.msra.mxu0 0.0
  %5634 = vmatprep.subr.mxu0 0.0
  %5635 = vmatpush1.xpose.msra.mxu0 0.0
  %5636 = vmatprep.subr.mxu0 0.0
  %5637 = vmatpush1.xpose.msra.mxu0 0.0
  %5638 = vmatprep.subr.mxu0 0.0
  %5639 = vmatpush1.xpose.msra.mxu0 0.0
  %5640 = vmatprep.mubr.f32.mxu0 0.0
  %5641 = vmatmul.mubr.f32.gmra.mrb[0].mxu0 %v5529
  %v5642 = vpop.f32.mrb[0].mxu0
  %v5643 = vadd.f32 %v347, %v5642
  %v5644 = vpop.f32.mrb[0].mxu0
  %5645 = vmatprep.mubr.f32.mxu0 0.0
  %5646 = vmatmul.mubr.f32.gmra.mrb[0].mxu0 %v5532
  %v5647 = vpop.f32.mrb[0].mxu0
  %v5648 = vadd.f32 %v348, %v5647
  %v5649 = vpop.f32.mrb[0].mxu0
  %5650 = vmatprep.mubr.f32.mxu0 0.0
  %5651 = vmatmul.mubr.f32.gmra.mrb[0].mxu0 %v5535
  %v5652 = vpop.f32.mrb[0].mxu0
  %v5653 = vadd.f32 %v349, %v5652
  %v5654 = vpop.f32.mrb[0].mxu0
  %5655 = vmatprep.mubr.f32.mxu0 0.0
  %5656 = vmatmul.mubr.f32.gmra.mrb[0].mxu0 %v5538
  %v5657 = vpop.f32.mrb[0].mxu0
  %v5658 = vadd.f32 %v350, %v5657
  %v5659 = vpop.f32.mrb[0].mxu0
  %5660 = vmatprep.mubr.f32.mxu0 0.0
  %5661 = vmatmul.mubr.f32.gmra.mrb[0].mxu0 %v5541
  %v5662 = vpop.f32.mrb[0].mxu0
  %v5663 = vadd.f32 %v351, %v5662
  %v5664 = vpop.f32.mrb[0].mxu0
  %5665 = vmatprep.mubr.f32.mxu0 0.0
  %5666 = vmatmul.mubr.f32.gmra.mrb[0].mxu0 %v5544
  %v5667 = vpop.f32.mrb[0].mxu0
  %v5668 = vadd.f32 %v352, %v5667
  %v5669 = vpop.f32.mrb[0].mxu0
  %5670 = vmatprep.mubr.f32.mxu0 0.0
  %5671 = vmatmul.mubr.f32.gmra.mrb[0].mxu0 %v5547
  %v5672 = vpop.f32.mrb[0].mxu0
  %v5673 = vadd.f32 %v353, %v5672
  %v5674 = vpop.f32.mrb[0].mxu0
  %5675 = vmatprep.mubr.f32.mxu0 0.0
  %5676 = vmatmul.mubr.f32.gmra.mrb[0].mxu0 %v5550
  %v5677 = vpop.f32.mrb[0].mxu0
  %v5678 = vadd.f32 %v354, %v5677
  %v5679 = vpop.f32.mrb[0].mxu0
  %5680 = vdwg.mxu0
  %v5681 = vsel %vm897, %v5643, -inf
  %5682 = vmax.xlane.f32.xlu0 %v5681
  %v5683 = vpop.xlane.xlu0 %5682
  %v5684 = vsel %vm897, %v5648, -inf
  %5685 = vmax.xlane.f32.xlu0 %v5684
  %v5686 = vpop.xlane.xlu0 %5685
  %v5687 = vsel %vm897, %v5653, -inf
  %5688 = vmax.xlane.f32.xlu0 %v5687
  %v5689 = vpop.xlane.xlu0 %5688
  %v5690 = vsel %vm897, %v5658, -inf
  %5691 = vmax.xlane.f32.xlu0 %v5690
  %v5692 = vpop.xlane.xlu0 %5691
  %v5693 = vsel %vm897, %v5663, -inf
  %5694 = vmax.xlane.f32.xlu0 %v5693
  %v5695 = vpop.xlane.xlu0 %5694
  %v5696 = vsel %vm897, %v5668, -inf
  %5697 = vmax.xlane.f32.xlu0 %v5696
  %v5698 = vpop.xlane.xlu0 %5697
  %v5699 = vsel %vm897, %v5673, -inf
  %5700 = vmax.xlane.f32.xlu0 %v5699
  %v5701 = vpop.xlane.xlu0 %5700
  %v5702 = vsel %vm897, %v5678, -inf
  %5703 = vmax.xlane.f32.xlu0 %v5702
  %v5704 = vpop.xlane.xlu0 %5703
  %v5705 = vsub.f32 %v5643, %v5683
  %v5706 = vsub.f32 %v5648, %v5686
  %v5707 = vsub.f32 %v5653, %v5689
  %v5708 = vsub.f32 %v5658, %v5692
  %v5709 = vsub.f32 %v5663, %v5695
  %v5710 = vsub.f32 %v5668, %v5698
  %v5711 = vsub.f32 %v5673, %v5701
  %v5712 = vsub.f32 %v5678, %v5704
  %v5713 = vmul.f32 %v5705, 1.442695
  %v5714 = vpow.pop %v5713
  %v5715 = vmul.f32 %v5706, 1.442695
  %v5716 = vpow.pop %v5715
  %v5717 = vmul.f32 %v5707, 1.442695
  %v5718 = vpow.pop %v5717
  %v5719 = vmul.f32 %v5708, 1.442695
  %v5720 = vpow.pop %v5719
  %v5721 = vmul.f32 %v5709, 1.442695
  %v5722 = vpow.pop %v5721
  %v5723 = vmul.f32 %v5710, 1.442695
  %v5724 = vpow.pop %v5723
  %v5725 = vmul.f32 %v5711, 1.442695
  %v5726 = vpow.pop %v5725
  %v5727 = vmul.f32 %v5712, 1.442695
  %v5728 = vpow.pop %v5727
  %v5729 = vsel %vm897, %v5714, 0.0
  %5730 = vadd.xlane.f32.xlu0 %v5729
  %v5731 = vpop.xlane.xlu0 %5730
  %v5732 = vsel %vm897, %v5716, 0.0
  %5733 = vadd.xlane.f32.xlu0 %v5732
  %v5734 = vpop.xlane.xlu0 %5733
  %v5735 = vsel %vm897, %v5718, 0.0
  %5736 = vadd.xlane.f32.xlu0 %v5735
  %v5737 = vpop.xlane.xlu0 %5736
  %v5738 = vsel %vm897, %v5720, 0.0
  %5739 = vadd.xlane.f32.xlu0 %v5738
  %v5740 = vpop.xlane.xlu0 %5739
  %v5741 = vsel %vm897, %v5722, 0.0
  %5742 = vadd.xlane.f32.xlu0 %v5741
  %v5743 = vpop.xlane.xlu0 %5742
  %v5744 = vsel %vm897, %v5724, 0.0
  %5745 = vadd.xlane.f32.xlu0 %v5744
  %v5746 = vpop.xlane.xlu0 %5745
  %v5747 = vsel %vm897, %v5726, 0.0
  %5748 = vadd.xlane.f32.xlu0 %v5747
  %v5749 = vpop.xlane.xlu0 %5748
  %v5750 = vsel %vm897, %v5728, 0.0
  %5751 = vadd.xlane.f32.xlu0 %v5750
  %v5752 = vpop.xlane.xlu0 %5751
  %v5753 = vrcp.pop %v5731
  %v5754 = vmul.f32 %v5714, %v5753
  %v5755 = vrcp.pop %v5734
  %v5756 = vmul.f32 %v5716, %v5755
  %v5757 = vrcp.pop %v5737
  %v5758 = vmul.f32 %v5718, %v5757
  %v5759 = vrcp.pop %v5740
  %v5760 = vmul.f32 %v5720, %v5759
  %v5761 = vrcp.pop %v5743
  %v5762 = vmul.f32 %v5722, %v5761
  %v5763 = vrcp.pop %v5746
  %v5764 = vmul.f32 %v5724, %v5763
  %v5765 = vrcp.pop %v5749
  %v5766 = vmul.f32 %v5726, %v5765
  %v5767 = vrcp.pop %v5752
  %v5768 = vmul.f32 %v5728, %v5767
  %v5770 = vsel %vm897, %v5754, 0
  %v5773 = vsel %vm897, %v5756, 0
  %v5776 = vsel %vm897, %v5758, 0
  %v5779 = vsel %vm897, %v5760, 0
  %v5782 = vsel %vm897, %v5762, 0
  %v5785 = vsel %vm897, %v5764, 0
  %v5788 = vsel %vm897, %v5766, 0
  %v5791 = vsel %vm897, %v5768, 0
  %5793 = vmatprep.subr.mxu0 0.0
  %5794 = vmatpush1.msra.mxu0 %v5490
  %5795 = vmatprep.subr.mxu0 0.0
  %5796 = vmatpush1.msra.mxu0 %v5495
  %5797 = vmatprep.subr.mxu0 0.0
  %5798 = vmatpush1.msra.mxu0 %v5500
  %5799 = vmatprep.subr.mxu0 0.0
  %5800 = vmatpush1.msra.mxu0 %v5505
  %5801 = vmatprep.subr.mxu0 0.0
  %5802 = vmatpush1.msra.mxu0 %v5510
  %5803 = vmatprep.subr.mxu0 0.0
  %5804 = vmatpush1.msra.mxu0 %v5515
  %5805 = vmatprep.subr.mxu0 0.0
  %5806 = vmatpush1.msra.mxu0 %v5520
  %5807 = vmatprep.subr.mxu0 0.0
  %5808 = vmatpush1.msra.mxu0 %v5525
  %5809 = vmatprep.subr.mxu0 0.0
  %5810 = vmatpush1.msra.mxu0 0.0
  %5811 = vmatprep.subr.mxu0 0.0
  %5812 = vmatpush1.msra.mxu0 0.0
  %5813 = vmatprep.subr.mxu0 0.0
  %5814 = vmatpush1.msra.mxu0 0.0
  %5815 = vmatprep.subr.mxu0 0.0
  %5816 = vmatpush1.msra.mxu0 0.0
  %5817 = vmatprep.subr.mxu0 0.0
  %5818 = vmatpush1.msra.mxu0 0.0
  %5819 = vmatprep.subr.mxu0 0.0
  %5820 = vmatpush1.msra.mxu0 0.0
  %5821 = vmatprep.subr.mxu0 0.0
  %5822 = vmatpush1.msra.mxu0 0.0
  %5823 = vmatprep.subr.mxu0 0.0
  %5824 = vmatpush1.msra.mxu0 0.0
  %5825 = vmatprep.subr.mxu0 0.0
  %5826 = vmatpush1.msra.mxu0 0.0
  %5827 = vmatprep.subr.mxu0 0.0
  %5828 = vmatpush1.msra.mxu0 0.0
  %5829 = vmatprep.subr.mxu0 0.0
  %5830 = vmatpush1.msra.mxu0 0.0
  %5831 = vmatprep.subr.mxu0 0.0
  %5832 = vmatpush1.msra.mxu0 0.0
  %5833 = vmatprep.subr.mxu0 0.0
  %5834 = vmatpush1.msra.mxu0 0.0
  %5835 = vmatprep.subr.mxu0 0.0
  %5836 = vmatpush1.msra.mxu0 0.0
  %5837 = vmatprep.subr.mxu0 0.0
  %5838 = vmatpush1.msra.mxu0 0.0
  %5839 = vmatprep.subr.mxu0 0.0
  %5840 = vmatpush1.msra.mxu0 0.0
  %5841 = vmatprep.subr.mxu0 0.0
  %5842 = vmatpush1.msra.mxu0 0.0
  %5843 = vmatprep.subr.mxu0 0.0
  %5844 = vmatpush1.msra.mxu0 0.0
  %5845 = vmatprep.subr.mxu0 0.0
  %5846 = vmatpush1.msra.mxu0 0.0
  %5847 = vmatprep.subr.mxu0 0.0
  %5848 = vmatpush1.msra.mxu0 0.0
  %5849 = vmatprep.subr.mxu0 0.0
  %5850 = vmatpush1.msra.mxu0 0.0
  %5851 = vmatprep.subr.mxu0 0.0
  %5852 = vmatpush1.msra.mxu0 0.0
  %5853 = vmatprep.subr.mxu0 0.0
  %5854 = vmatpush1.msra.mxu0 0.0
  %5855 = vmatprep.subr.mxu0 0.0
  %5856 = vmatpush1.msra.mxu0 0.0
  %5857 = vmatprep.mubr.f32.mxu0 0.0
  %5858 = vmatmul.mubr.f32.gmra.mrb[0].mxu0 %v5770
  %v5859 = vpop.f32.mrb[0].mxu0
  %v5860 = vadd.f32 0.0, %v5859
  %v5861 = vpop.f32.mrb[0].mxu0
  %5862 = vmatprep.mubr.f32.mxu0 0.0
  %5863 = vmatmul.mubr.f32.gmra.mrb[0].mxu0 %v5773
  %v5864 = vpop.f32.mrb[0].mxu0
  %v5865 = vadd.f32 0.0, %v5864
  %v5866 = vpop.f32.mrb[0].mxu0
  %5867 = vmatprep.mubr.f32.mxu0 0.0
  %5868 = vmatmul.mubr.f32.gmra.mrb[0].mxu0 %v5776
  %v5869 = vpop.f32.mrb[0].mxu0
  %v5870 = vadd.f32 0.0, %v5869
  %v5871 = vpop.f32.mrb[0].mxu0
  %5872 = vmatprep.mubr.f32.mxu0 0.0
  %5873 = vmatmul.mubr.f32.gmra.mrb[0].mxu0 %v5779
  %v5874 = vpop.f32.mrb[0].mxu0
  %v5875 = vadd.f32 0.0, %v5874
  %v5876 = vpop.f32.mrb[0].mxu0
  %5877 = vmatprep.mubr.f32.mxu0 0.0
  %5878 = vmatmul.mubr.f32.gmra.mrb[0].mxu0 %v5782
  %v5879 = vpop.f32.mrb[0].mxu0
  %v5880 = vadd.f32 0.0, %v5879
  %v5881 = vpop.f32.mrb[0].mxu0
  %5882 = vmatprep.mubr.f32.mxu0 0.0
  %5883 = vmatmul.mubr.f32.gmra.mrb[0].mxu0 %v5785
  %v5884 = vpop.f32.mrb[0].mxu0
  %v5885 = vadd.f32 0.0, %v5884
  %v5886 = vpop.f32.mrb[0].mxu0
  %5887 = vmatprep.mubr.f32.mxu0 0.0
  %5888 = vmatmul.mubr.f32.gmra.mrb[0].mxu0 %v5788
  %v5889 = vpop.f32.mrb[0].mxu0
  %v5890 = vadd.f32 0.0, %v5889
  %v5891 = vpop.f32.mrb[0].mxu0
  %5892 = vmatprep.mubr.f32.mxu0 0.0
  %5893 = vmatmul.mubr.f32.gmra.mrb[0].mxu0 %v5791
  %v5894 = vpop.f32.mrb[0].mxu0
  %v5895 = vadd.f32 0.0, %v5894
  %v5896 = vpop.f32.mrb[0].mxu0
  %5897 = vdwg.mxu0
  %s5898 = scalar_lea.vmem %s4, 40
  %v5899 = vld [vmem:[%s5898] sm:$0xff]
  %v5901 = vsel %vm743, %v5860, 0
  %v5904 = vsel %vm743, %v5865, 0
  %v5907 = vsel %vm743, %v5870, 0
  %v5910 = vsel %vm743, %v5875, 0
  %v5913 = vsel %vm743, %v5880, 0
  %v5916 = vsel %vm743, %v5885, 0
  %v5919 = vsel %vm743, %v5890, 0
  %v5922 = vsel %vm743, %v5895, 0
  %5924 = vmatprep.subr.mxu0 0.0
  %5925 = vmatpush1.msra.mxu0 %v5899
  %5926 = vmatprep.subr.mxu0 0.0
  %5927 = vmatpush1.msra.mxu0 0.0
  %5928 = vmatprep.subr.mxu0 0.0
  %5929 = vmatpush1.msra.mxu0 0.0
  %5930 = vmatprep.subr.mxu0 0.0
  %5931 = vmatpush1.msra.mxu0 0.0
  %5932 = vmatprep.subr.mxu0 0.0
  %5933 = vmatpush1.msra.mxu0 0.0
  %5934 = vmatprep.subr.mxu0 0.0
  %5935 = vmatpush1.msra.mxu0 0.0
  %5936 = vmatprep.subr.mxu0 0.0
  %5937 = vmatpush1.msra.mxu0 0.0
  %5938 = vmatprep.subr.mxu0 0.0
  %5939 = vmatpush1.msra.mxu0 0.0
  %5940 = vmatprep.subr.mxu0 0.0
  %5941 = vmatpush1.msra.mxu0 0.0
  %5942 = vmatprep.subr.mxu0 0.0
  %5943 = vmatpush1.msra.mxu0 0.0
  %5944 = vmatprep.subr.mxu0 0.0
  %5945 = vmatpush1.msra.mxu0 0.0
  %5946 = vmatprep.subr.mxu0 0.0
  %5947 = vmatpush1.msra.mxu0 0.0
  %5948 = vmatprep.subr.mxu0 0.0
  %5949 = vmatpush1.msra.mxu0 0.0
  %5950 = vmatprep.subr.mxu0 0.0
  %5951 = vmatpush1.msra.mxu0 0.0
  %5952 = vmatprep.subr.mxu0 0.0
  %5953 = vmatpush1.msra.mxu0 0.0
  %5954 = vmatprep.subr.mxu0 0.0
  %5955 = vmatpush1.msra.mxu0 0.0
  %5956 = vmatprep.subr.mxu0 0.0
  %5957 = vmatpush1.msra.mxu0 0.0
  %5958 = vmatprep.subr.mxu0 0.0
  %5959 = vmatpush1.msra.mxu0 0.0
  %5960 = vmatprep.subr.mxu0 0.0
  %5961 = vmatpush1.msra.mxu0 0.0
  %5962 = vmatprep.subr.mxu0 0.0
  %5963 = vmatpush1.msra.mxu0 0.0
  %5964 = vmatprep.subr.mxu0 0.0
  %5965 = vmatpush1.msra.mxu0 0.0
  %5966 = vmatprep.subr.mxu0 0.0
  %5967 = vmatpush1.msra.mxu0 0.0
  %5968 = vmatprep.subr.mxu0 0.0
  %5969 = vmatpush1.msra.mxu0 0.0
  %5970 = vmatprep.subr.mxu0 0.0
  %5971 = vmatpush1.msra.mxu0 0.0
  %5972 = vmatprep.subr.mxu0 0.0
  %5973 = vmatpush1.msra.mxu0 0.0
  %5974 = vmatprep.subr.mxu0 0.0
  %5975 = vmatpush1.msra.mxu0 0.0
  %5976 = vmatprep.subr.mxu0 0.0
  %5977 = vmatpush1.msra.mxu0 0.0
  %5978 = vmatprep.subr.mxu0 0.0
  %5979 = vmatpush1.msra.mxu0 0.0
  %5980 = vmatprep.subr.mxu0 0.0
  %5981 = vmatpush1.msra.mxu0 0.0
  %5982 = vmatprep.subr.mxu0 0.0
  %5983 = vmatpush1.msra.mxu0 0.0
  %5984 = vmatprep.subr.mxu0 0.0
  %5985 = vmatpush1.msra.mxu0 0.0
  %5986 = vmatprep.subr.mxu0 0.0
  %5987 = vmatpush1.msra.mxu0 0.0
  %5988 = vmatprep.mubr.f32.mxu0 0.0
  %5989 = vmatmul.mubr.f32.gmra.mrb[0].mxu0 %v5901
  %v5990 = vpop.f32.mrb[0].mxu0
  %v5991 = vadd.f32 0.0, %v5990
  %v5992 = vpop.f32.mrb[0].mxu0
  %5993 = vmatprep.mubr.f32.mxu0 0.0
  %5994 = vmatmul.mubr.f32.gmra.mrb[0].mxu0 %v5904
  %v5995 = vpop.f32.mrb[0].mxu0
  %v5996 = vadd.f32 0.0, %v5995
  %v5997 = vpop.f32.mrb[0].mxu0
  %5998 = vmatprep.mubr.f32.mxu0 0.0
  %5999 = vmatmul.mubr.f32.gmra.mrb[0].mxu0 %v5907
  %v6000 = vpop.f32.mrb[0].mxu0
  %v6001 = vadd.f32 0.0, %v6000
  %v6002 = vpop.f32.mrb[0].mxu0
  %6003 = vmatprep.mubr.f32.mxu0 0.0
  %6004 = vmatmul.mubr.f32.gmra.mrb[0].mxu0 %v5910
  %v6005 = vpop.f32.mrb[0].mxu0
  %v6006 = vadd.f32 0.0, %v6005
  %v6007 = vpop.f32.mrb[0].mxu0
  %6008 = vmatprep.mubr.f32.mxu0 0.0
  %6009 = vmatmul.mubr.f32.gmra.mrb[0].mxu0 %v5913
  %v6010 = vpop.f32.mrb[0].mxu0
  %v6011 = vadd.f32 0.0, %v6010
  %v6012 = vpop.f32.mrb[0].mxu0
  %6013 = vmatprep.mubr.f32.mxu0 0.0
  %6014 = vmatmul.mubr.f32.gmra.mrb[0].mxu0 %v5916
  %v6015 = vpop.f32.mrb[0].mxu0
  %v6016 = vadd.f32 0.0, %v6015
  %v6017 = vpop.f32.mrb[0].mxu0
  %6018 = vmatprep.mubr.f32.mxu0 0.0
  %6019 = vmatmul.mubr.f32.gmra.mrb[0].mxu0 %v5919
  %v6020 = vpop.f32.mrb[0].mxu0
  %v6021 = vadd.f32 0.0, %v6020
  %v6022 = vpop.f32.mrb[0].mxu0
  %6023 = vmatprep.mubr.f32.mxu0 0.0
  %6024 = vmatmul.mubr.f32.gmra.mrb[0].mxu0 %v5922
  %v6025 = vpop.f32.mrb[0].mxu0
  %v6026 = vadd.f32 0.0, %v6025
  %v6027 = vpop.f32.mrb[0].mxu0
  %6028 = vdwg.mxu0
  %v6030 = vsel %vm743, %v5134, 0
  %v6033 = vsel %vm743, %v5139, 0
  %v6036 = vsel %vm743, %v5144, 0
  %v6039 = vsel %vm743, %v5149, 0
  %v6042 = vsel %vm743, %v5154, 0
  %v6045 = vsel %vm743, %v5159, 0
  %v6048 = vsel %vm743, %v5164, 0
  %v6051 = vsel %vm743, %v5169, 0
  %6053 = vmatprep.subr.mxu0 0.0
  %6054 = vmatpush1.msra.mxu0 %v5173
  %6055 = vmatprep.subr.mxu0 0.0
  %6056 = vmatpush1.msra.mxu0 0.0
  %6057 = vmatprep.subr.mxu0 0.0
  %6058 = vmatpush1.msra.mxu0 0.0
  %6059 = vmatprep.subr.mxu0 0.0
  %6060 = vmatpush1.msra.mxu0 0.0
  %6061 = vmatprep.subr.mxu0 0.0
  %6062 = vmatpush1.msra.mxu0 0.0
  %6063 = vmatprep.subr.mxu0 0.0
  %6064 = vmatpush1.msra.mxu0 0.0
  %6065 = vmatprep.subr.mxu0 0.0
  %6066 = vmatpush1.msra.mxu0 0.0
  %6067 = vmatprep.subr.mxu0 0.0
  %6068 = vmatpush1.msra.mxu0 0.0
  %6069 = vmatprep.subr.mxu0 0.0
  %6070 = vmatpush1.msra.mxu0 0.0
  %6071 = vmatprep.subr.mxu0 0.0
  %6072 = vmatpush1.msra.mxu0 0.0
  %6073 = vmatprep.subr.mxu0 0.0
  %6074 = vmatpush1.msra.mxu0 0.0
  %6075 = vmatprep.subr.mxu0 0.0
  %6076 = vmatpush1.msra.mxu0 0.0
  %6077 = vmatprep.subr.mxu0 0.0
  %6078 = vmatpush1.msra.mxu0 0.0
  %6079 = vmatprep.subr.mxu0 0.0
  %6080 = vmatpush1.msra.mxu0 0.0
  %6081 = vmatprep.subr.mxu0 0.0
  %6082 = vmatpush1.msra.mxu0 0.0
  %6083 = vmatprep.subr.mxu0 0.0
  %6084 = vmatpush1.msra.mxu0 0.0
  %6085 = vmatprep.subr.mxu0 0.0
  %6086 = vmatpush1.msra.mxu0 0.0
  %6087 = vmatprep.subr.mxu0 0.0
  %6088 = vmatpush1.msra.mxu0 0.0
  %6089 = vmatprep.subr.mxu0 0.0
  %6090 = vmatpush1.msra.mxu0 0.0
  %6091 = vmatprep.subr.mxu0 0.0
  %6092 = vmatpush1.msra.mxu0 0.0
  %6093 = vmatprep.subr.mxu0 0.0
  %6094 = vmatpush1.msra.mxu0 0.0
  %6095 = vmatprep.subr.mxu0 0.0
  %6096 = vmatpush1.msra.mxu0 0.0
  %6097 = vmatprep.subr.mxu0 0.0
  %6098 = vmatpush1.msra.mxu0 0.0
  %6099 = vmatprep.subr.mxu0 0.0
  %6100 = vmatpush1.msra.mxu0 0.0
  %6101 = vmatprep.subr.mxu0 0.0
  %6102 = vmatpush1.msra.mxu0 0.0
  %6103 = vmatprep.subr.mxu0 0.0
  %6104 = vmatpush1.msra.mxu0 0.0
  %6105 = vmatprep.subr.mxu0 0.0
  %6106 = vmatpush1.msra.mxu0 0.0
  %6107 = vmatprep.subr.mxu0 0.0
  %6108 = vmatpush1.msra.mxu0 0.0
  %6109 = vmatprep.subr.mxu0 0.0
  %6110 = vmatpush1.msra.mxu0 0.0
  %6111 = vmatprep.subr.mxu0 0.0
  %6112 = vmatpush1.msra.mxu0 0.0
  %6113 = vmatprep.subr.mxu0 0.0
  %6114 = vmatpush1.msra.mxu0 0.0
  %6115 = vmatprep.subr.mxu0 0.0
  %6116 = vmatpush1.msra.mxu0 0.0
  %6117 = vmatprep.mubr.f32.mxu0 0.0
  %6118 = vmatmul.mubr.f32.gmra.mrb[0].mxu0 %v6030
  %v6119 = vpop.f32.mrb[0].mxu0
  %v6120 = vadd.f32 %v5991, %v6119
  %v6121 = vpop.f32.mrb[0].mxu0
  %6122 = vmatprep.mubr.f32.mxu0 0.0
  %6123 = vmatmul.mubr.f32.gmra.mrb[0].mxu0 %v6033
  %v6124 = vpop.f32.mrb[0].mxu0
  %v6125 = vadd.f32 %v5996, %v6124
  %v6126 = vpop.f32.mrb[0].mxu0
  %6127 = vmatprep.mubr.f32.mxu0 0.0
  %6128 = vmatmul.mubr.f32.gmra.mrb[0].mxu0 %v6036
  %v6129 = vpop.f32.mrb[0].mxu0
  %v6130 = vadd.f32 %v6001, %v6129
  %v6131 = vpop.f32.mrb[0].mxu0
  %6132 = vmatprep.mubr.f32.mxu0 0.0
  %6133 = vmatmul.mubr.f32.gmra.mrb[0].mxu0 %v6039
  %v6134 = vpop.f32.mrb[0].mxu0
  %v6135 = vadd.f32 %v6006, %v6134
  %v6136 = vpop.f32.mrb[0].mxu0
  %6137 = vmatprep.mubr.f32.mxu0 0.0
  %6138 = vmatmul.mubr.f32.gmra.mrb[0].mxu0 %v6042
  %v6139 = vpop.f32.mrb[0].mxu0
  %v6140 = vadd.f32 %v6011, %v6139
  %v6141 = vpop.f32.mrb[0].mxu0
  %6142 = vmatprep.mubr.f32.mxu0 0.0
  %6143 = vmatmul.mubr.f32.gmra.mrb[0].mxu0 %v6045
  %v6144 = vpop.f32.mrb[0].mxu0
  %v6145 = vadd.f32 %v6016, %v6144
  %v6146 = vpop.f32.mrb[0].mxu0
  %6147 = vmatprep.mubr.f32.mxu0 0.0
  %6148 = vmatmul.mubr.f32.gmra.mrb[0].mxu0 %v6048
  %v6149 = vpop.f32.mrb[0].mxu0
  %v6150 = vadd.f32 %v6021, %v6149
  %v6151 = vpop.f32.mrb[0].mxu0
  %6152 = vmatprep.mubr.f32.mxu0 0.0
  %6153 = vmatmul.mubr.f32.gmra.mrb[0].mxu0 %v6051
  %v6154 = vpop.f32.mrb[0].mxu0
  %v6155 = vadd.f32 %v6026, %v6154
  %v6156 = vpop.f32.mrb[0].mxu0
  %6157 = vdwg.mxu0
  %s6158 = scalar_lea.vmem %s2, 448
  %v6159 = vld [vmem:[%s6158] sm:$0xff]
  %v6160 = vld [vmem:[%s6158 + $0x8] sm:$0xff]
  %v6161 = vld [vmem:[%s6158 + $0x10] sm:$0xff]
  %v6162 = vld [vmem:[%s6158 + $0x18] sm:$0xff]
  %s6163 = scalar_lea.vmem %s3, 14
  %v6164 = vld [vmem:[%s6163] sm:$0x1]
  %v6166 = vlaneseq
  %v6167 = vshrl.u32 %v6166, 7
  %v6168 = vsub.s32 0, %v6167
  %v6169 = vrot.slane %v6164, %v6168
  %6171 = vmatprep.subr.mxu0 0.0
  %6172 = vmatpush1.msra.mxu0 %v6159
  %6173 = vmatprep.subr.mxu0 0.0
  %6174 = vmatpush1.msra.mxu0 %v6160
  %6175 = vmatprep.subr.mxu0 0.0
  %6176 = vmatpush1.msra.mxu0 %v6161
  %6177 = vmatprep.subr.mxu0 0.0
  %6178 = vmatpush1.msra.mxu0 %v6162
  %6179 = vmatprep.subr.mxu0 0.0
  %6180 = vmatpush1.msra.mxu0 0.0
  %6181 = vmatprep.subr.mxu0 0.0
  %6182 = vmatpush1.msra.mxu0 0.0
  %6183 = vmatprep.subr.mxu0 0.0
  %6184 = vmatpush1.msra.mxu0 0.0
  %6185 = vmatprep.subr.mxu0 0.0
  %6186 = vmatpush1.msra.mxu0 0.0
  %6187 = vmatprep.subr.mxu0 0.0
  %6188 = vmatpush1.msra.mxu0 0.0
  %6189 = vmatprep.subr.mxu0 0.0
  %6190 = vmatpush1.msra.mxu0 0.0
  %6191 = vmatprep.subr.mxu0 0.0
  %6192 = vmatpush1.msra.mxu0 0.0
  %6193 = vmatprep.subr.mxu0 0.0
  %6194 = vmatpush1.msra.mxu0 0.0
  %6195 = vmatprep.subr.mxu0 0.0
  %6196 = vmatpush1.msra.mxu0 0.0
  %6197 = vmatprep.subr.mxu0 0.0
  %6198 = vmatpush1.msra.mxu0 0.0
  %6199 = vmatprep.subr.mxu0 0.0
  %6200 = vmatpush1.msra.mxu0 0.0
  %6201 = vmatprep.subr.mxu0 0.0
  %6202 = vmatpush1.msra.mxu0 0.0
  %6203 = vmatprep.subr.mxu0 0.0
  %6204 = vmatpush1.msra.mxu0 0.0
  %6205 = vmatprep.subr.mxu0 0.0
  %6206 = vmatpush1.msra.mxu0 0.0
  %6207 = vmatprep.subr.mxu0 0.0
  %6208 = vmatpush1.msra.mxu0 0.0
  %6209 = vmatprep.subr.mxu0 0.0
  %6210 = vmatpush1.msra.mxu0 0.0
  %6211 = vmatprep.subr.mxu0 0.0
  %6212 = vmatpush1.msra.mxu0 0.0
  %6213 = vmatprep.subr.mxu0 0.0
  %6214 = vmatpush1.msra.mxu0 0.0
  %6215 = vmatprep.subr.mxu0 0.0
  %6216 = vmatpush1.msra.mxu0 0.0
  %6217 = vmatprep.subr.mxu0 0.0
  %6218 = vmatpush1.msra.mxu0 0.0
  %6219 = vmatprep.subr.mxu0 0.0
  %6220 = vmatpush1.msra.mxu0 0.0
  %6221 = vmatprep.subr.mxu0 0.0
  %6222 = vmatpush1.msra.mxu0 0.0
  %6223 = vmatprep.subr.mxu0 0.0
  %6224 = vmatpush1.msra.mxu0 0.0
  %6225 = vmatprep.subr.mxu0 0.0
  %6226 = vmatpush1.msra.mxu0 0.0
  %6227 = vmatprep.subr.mxu0 0.0
  %6228 = vmatpush1.msra.mxu0 0.0
  %6229 = vmatprep.subr.mxu0 0.0
  %6230 = vmatpush1.msra.mxu0 0.0
  %6231 = vmatprep.subr.mxu0 0.0
  %6232 = vmatpush1.msra.mxu0 0.0
  %6233 = vmatprep.subr.mxu0 0.0
  %6234 = vmatpush1.msra.mxu0 0.0
  %6235 = vmatprep.mubr.f32.mxu0 0.0
  %6236 = vmatmul.mubr.f32.gmra.mrb[0].mxu0 %v4438
  %v6237 = vpop.f32.mrb[0].mxu0
  %v6238 = vadd.f32 %v6169, %v6237
  %v6239 = vpop.f32.mrb[0].mxu0
  %6240 = vmatprep.mubr.f32.mxu0 0.0
  %6241 = vmatmul.mubr.f32.gmra.mrb[0].mxu0 %v4441
  %v6242 = vpop.f32.mrb[0].mxu0
  %v6243 = vadd.f32 %v6169, %v6242
  %v6244 = vpop.f32.mrb[0].mxu0
  %6245 = vmatprep.mubr.f32.mxu0 0.0
  %6246 = vmatmul.mubr.f32.gmra.mrb[0].mxu0 %v4444
  %v6247 = vpop.f32.mrb[0].mxu0
  %v6248 = vadd.f32 %v6169, %v6247
  %v6249 = vpop.f32.mrb[0].mxu0
  %6250 = vmatprep.mubr.f32.mxu0 0.0
  %6251 = vmatmul.mubr.f32.gmra.mrb[0].mxu0 %v4447
  %v6252 = vpop.f32.mrb[0].mxu0
  %v6253 = vadd.f32 %v6169, %v6252
  %v6254 = vpop.f32.mrb[0].mxu0
  %6255 = vmatprep.mubr.f32.mxu0 0.0
  %6256 = vmatmul.mubr.f32.gmra.mrb[0].mxu0 %v4450
  %v6257 = vpop.f32.mrb[0].mxu0
  %v6258 = vadd.f32 %v6169, %v6257
  %v6259 = vpop.f32.mrb[0].mxu0
  %6260 = vmatprep.mubr.f32.mxu0 0.0
  %6261 = vmatmul.mubr.f32.gmra.mrb[0].mxu0 %v4453
  %v6262 = vpop.f32.mrb[0].mxu0
  %v6263 = vadd.f32 %v6169, %v6262
  %v6264 = vpop.f32.mrb[0].mxu0
  %6265 = vmatprep.mubr.f32.mxu0 0.0
  %6266 = vmatmul.mubr.f32.gmra.mrb[0].mxu0 %v4456
  %v6267 = vpop.f32.mrb[0].mxu0
  %v6268 = vadd.f32 %v6169, %v6267
  %v6269 = vpop.f32.mrb[0].mxu0
  %6270 = vmatprep.mubr.f32.mxu0 0.0
  %6271 = vmatmul.mubr.f32.gmra.mrb[0].mxu0 %v4459
  %v6272 = vpop.f32.mrb[0].mxu0
  %v6273 = vadd.f32 %v6169, %v6272
  %v6274 = vpop.f32.mrb[0].mxu0
  %6275 = vdwg.mxu0
  %s6276 = scalar_lea.vmem %s2, 576
  %v6277 = vld [vmem:[%s6276] sm:$0xff]
  %v6278 = vld [vmem:[%s6276 + $0x8] sm:$0xff]
  %v6279 = vld [vmem:[%s6276 + $0x10] sm:$0xff]
  %v6280 = vld [vmem:[%s6276 + $0x18] sm:$0xff]
  %s6281 = scalar_lea.vmem %s3, 18
  %v6282 = vld [vmem:[%s6281] sm:$0x1]
  %v6284 = vlaneseq
  %v6285 = vshrl.u32 %v6284, 7
  %v6286 = vsub.s32 0, %v6285
  %v6287 = vrot.slane %v6282, %v6286
  %6289 = vmatprep.subr.mxu0 0.0
  %6290 = vmatpush1.msra.mxu0 %v6277
  %6291 = vmatprep.subr.mxu0 0.0
  %6292 = vmatpush1.msra.mxu0 %v6278
  %6293 = vmatprep.subr.mxu0 0.0
  %6294 = vmatpush1.msra.mxu0 %v6279
  %6295 = vmatprep.subr.mxu0 0.0
  %6296 = vmatpush1.msra.mxu0 %v6280
  %6297 = vmatprep.subr.mxu0 0.0
  %6298 = vmatpush1.msra.mxu0 0.0
  %6299 = vmatprep.subr.mxu0 0.0
  %6300 = vmatpush1.msra.mxu0 0.0
  %6301 = vmatprep.subr.mxu0 0.0
  %6302 = vmatpush1.msra.mxu0 0.0
  %6303 = vmatprep.subr.mxu0 0.0
  %6304 = vmatpush1.msra.mxu0 0.0
  %6305 = vmatprep.subr.mxu0 0.0
  %6306 = vmatpush1.msra.mxu0 0.0
  %6307 = vmatprep.subr.mxu0 0.0
  %6308 = vmatpush1.msra.mxu0 0.0
  %6309 = vmatprep.subr.mxu0 0.0
  %6310 = vmatpush1.msra.mxu0 0.0
  %6311 = vmatprep.subr.mxu0 0.0
  %6312 = vmatpush1.msra.mxu0 0.0
  %6313 = vmatprep.subr.mxu0 0.0
  %6314 = vmatpush1.msra.mxu0 0.0
  %6315 = vmatprep.subr.mxu0 0.0
  %6316 = vmatpush1.msra.mxu0 0.0
  %6317 = vmatprep.subr.mxu0 0.0
  %6318 = vmatpush1.msra.mxu0 0.0
  %6319 = vmatprep.subr.mxu0 0.0
  %6320 = vmatpush1.msra.mxu0 0.0
  %6321 = vmatprep.subr.mxu0 0.0
  %6322 = vmatpush1.msra.mxu0 0.0
  %6323 = vmatprep.subr.mxu0 0.0
  %6324 = vmatpush1.msra.mxu0 0.0
  %6325 = vmatprep.subr.mxu0 0.0
  %6326 = vmatpush1.msra.mxu0 0.0
  %6327 = vmatprep.subr.mxu0 0.0
  %6328 = vmatpush1.msra.mxu0 0.0
  %6329 = vmatprep.subr.mxu0 0.0
  %6330 = vmatpush1.msra.mxu0 0.0
  %6331 = vmatprep.subr.mxu0 0.0
  %6332 = vmatpush1.msra.mxu0 0.0
  %6333 = vmatprep.subr.mxu0 0.0
  %6334 = vmatpush1.msra.mxu0 0.0
  %6335 = vmatprep.subr.mxu0 0.0
  %6336 = vmatpush1.msra.mxu0 0.0
  %6337 = vmatprep.subr.mxu0 0.0
  %6338 = vmatpush1.msra.mxu0 0.0
  %6339 = vmatprep.subr.mxu0 0.0
  %6340 = vmatpush1.msra.mxu0 0.0
  %6341 = vmatprep.subr.mxu0 0.0
  %6342 = vmatpush1.msra.mxu0 0.0
  %6343 = vmatprep.subr.mxu0 0.0
  %6344 = vmatpush1.msra.mxu0 0.0
  %6345 = vmatprep.subr.mxu0 0.0
  %6346 = vmatpush1.msra.mxu0 0.0
  %6347 = vmatprep.subr.mxu0 0.0
  %6348 = vmatpush1.msra.mxu0 0.0
  %6349 = vmatprep.subr.mxu0 0.0
  %6350 = vmatpush1.msra.mxu0 0.0
  %6351 = vmatprep.subr.mxu0 0.0
  %6352 = vmatpush1.msra.mxu0 0.0
  %6353 = vmatprep.mubr.f32.mxu0 0.0
  %6354 = vmatmul.mubr.f32.gmra.mrb[0].mxu0 %v4438
  %v6355 = vpop.f32.mrb[0].mxu0
  %v6356 = vadd.f32 %v6287, %v6355
  %v6357 = vpop.f32.mrb[0].mxu0
  %6358 = vmatprep.mubr.f32.mxu0 0.0
  %6359 = vmatmul.mubr.f32.gmra.mrb[0].mxu0 %v4441
  %v6360 = vpop.f32.mrb[0].mxu0
  %v6361 = vadd.f32 %v6287, %v6360
  %v6362 = vpop.f32.mrb[0].mxu0
  %6363 = vmatprep.mubr.f32.mxu0 0.0
  %6364 = vmatmul.mubr.f32.gmra.mrb[0].mxu0 %v4444
  %v6365 = vpop.f32.mrb[0].mxu0
  %v6366 = vadd.f32 %v6287, %v6365
  %v6367 = vpop.f32.mrb[0].mxu0
  %6368 = vmatprep.mubr.f32.mxu0 0.0
  %6369 = vmatmul.mubr.f32.gmra.mrb[0].mxu0 %v4447
  %v6370 = vpop.f32.mrb[0].mxu0
  %v6371 = vadd.f32 %v6287, %v6370
  %v6372 = vpop.f32.mrb[0].mxu0
  %6373 = vmatprep.mubr.f32.mxu0 0.0
  %6374 = vmatmul.mubr.f32.gmra.mrb[0].mxu0 %v4450
  %v6375 = vpop.f32.mrb[0].mxu0
  %v6376 = vadd.f32 %v6287, %v6375
  %v6377 = vpop.f32.mrb[0].mxu0
  %6378 = vmatprep.mubr.f32.mxu0 0.0
  %6379 = vmatmul.mubr.f32.gmra.mrb[0].mxu0 %v4453
  %v6380 = vpop.f32.mrb[0].mxu0
  %v6381 = vadd.f32 %v6287, %v6380
  %v6382 = vpop.f32.mrb[0].mxu0
  %6383 = vmatprep.mubr.f32.mxu0 0.0
  %6384 = vmatmul.mubr.f32.gmra.mrb[0].mxu0 %v4456
  %v6385 = vpop.f32.mrb[0].mxu0
  %v6386 = vadd.f32 %v6287, %v6385
  %v6387 = vpop.f32.mrb[0].mxu0
  %6388 = vmatprep.mubr.f32.mxu0 0.0
  %6389 = vmatmul.mubr.f32.gmra.mrb[0].mxu0 %v4459
  %v6390 = vpop.f32.mrb[0].mxu0
  %v6391 = vadd.f32 %v6287, %v6390
  %v6392 = vpop.f32.mrb[0].mxu0
  %6393 = vdwg.mxu0
  %s6394 = scalar_lea.vmem %s2, 704
  %v6395 = vld [vmem:[%s6394] sm:$0xff]
  %v6396 = vld [vmem:[%s6394 + $0x8] sm:$0xff]
  %v6397 = vld [vmem:[%s6394 + $0x10] sm:$0xff]
  %v6398 = vld [vmem:[%s6394 + $0x18] sm:$0xff]
  %s6399 = scalar_lea.vmem %s3, 22
  %v6400 = vld [vmem:[%s6399] sm:$0x1]
  %v6402 = vlaneseq
  %v6403 = vshrl.u32 %v6402, 7
  %v6404 = vsub.s32 0, %v6403
  %v6405 = vrot.slane %v6400, %v6404
  %6407 = vmatprep.subr.mxu0 0.0
  %6408 = vmatpush1.msra.mxu0 %v6395
  %6409 = vmatprep.subr.mxu0 0.0
  %6410 = vmatpush1.msra.mxu0 %v6396
  %6411 = vmatprep.subr.mxu0 0.0
  %6412 = vmatpush1.msra.mxu0 %v6397
  %6413 = vmatprep.subr.mxu0 0.0
  %6414 = vmatpush1.msra.mxu0 %v6398
  %6415 = vmatprep.subr.mxu0 0.0
  %6416 = vmatpush1.msra.mxu0 0.0
  %6417 = vmatprep.subr.mxu0 0.0
  %6418 = vmatpush1.msra.mxu0 0.0
  %6419 = vmatprep.subr.mxu0 0.0
  %6420 = vmatpush1.msra.mxu0 0.0
  %6421 = vmatprep.subr.mxu0 0.0
  %6422 = vmatpush1.msra.mxu0 0.0
  %6423 = vmatprep.subr.mxu0 0.0
  %6424 = vmatpush1.msra.mxu0 0.0
  %6425 = vmatprep.subr.mxu0 0.0
  %6426 = vmatpush1.msra.mxu0 0.0
  %6427 = vmatprep.subr.mxu0 0.0
  %6428 = vmatpush1.msra.mxu0 0.0
  %6429 = vmatprep.subr.mxu0 0.0
  %6430 = vmatpush1.msra.mxu0 0.0
  %6431 = vmatprep.subr.mxu0 0.0
  %6432 = vmatpush1.msra.mxu0 0.0
  %6433 = vmatprep.subr.mxu0 0.0
  %6434 = vmatpush1.msra.mxu0 0.0
  %6435 = vmatprep.subr.mxu0 0.0
  %6436 = vmatpush1.msra.mxu0 0.0
  %6437 = vmatprep.subr.mxu0 0.0
  %6438 = vmatpush1.msra.mxu0 0.0
  %6439 = vmatprep.subr.mxu0 0.0
  %6440 = vmatpush1.msra.mxu0 0.0
  %6441 = vmatprep.subr.mxu0 0.0
  %6442 = vmatpush1.msra.mxu0 0.0
  %6443 = vmatprep.subr.mxu0 0.0
  %6444 = vmatpush1.msra.mxu0 0.0
  %6445 = vmatprep.subr.mxu0 0.0
  %6446 = vmatpush1.msra.mxu0 0.0
  %6447 = vmatprep.subr.mxu0 0.0
  %6448 = vmatpush1.msra.mxu0 0.0
  %6449 = vmatprep.subr.mxu0 0.0
  %6450 = vmatpush1.msra.mxu0 0.0
  %6451 = vmatprep.subr.mxu0 0.0
  %6452 = vmatpush1.msra.mxu0 0.0
  %6453 = vmatprep.subr.mxu0 0.0
  %6454 = vmatpush1.msra.mxu0 0.0
  %6455 = vmatprep.subr.mxu0 0.0
  %6456 = vmatpush1.msra.mxu0 0.0
  %6457 = vmatprep.subr.mxu0 0.0
  %6458 = vmatpush1.msra.mxu0 0.0
  %6459 = vmatprep.subr.mxu0 0.0
  %6460 = vmatpush1.msra.mxu0 0.0
  %6461 = vmatprep.subr.mxu0 0.0
  %6462 = vmatpush1.msra.mxu0 0.0
  %6463 = vmatprep.subr.mxu0 0.0
  %6464 = vmatpush1.msra.mxu0 0.0
  %6465 = vmatprep.subr.mxu0 0.0
  %6466 = vmatpush1.msra.mxu0 0.0
  %6467 = vmatprep.subr.mxu0 0.0
  %6468 = vmatpush1.msra.mxu0 0.0
  %6469 = vmatprep.subr.mxu0 0.0
  %6470 = vmatpush1.msra.mxu0 0.0
  %6471 = vmatprep.mubr.f32.mxu0 0.0
  %6472 = vmatmul.mubr.f32.gmra.mrb[0].mxu0 %v4438
  %v6473 = vpop.f32.mrb[0].mxu0
  %v6474 = vadd.f32 %v6405, %v6473
  %v6475 = vpop.f32.mrb[0].mxu0
  %6476 = vmatprep.mubr.f32.mxu0 0.0
  %6477 = vmatmul.mubr.f32.gmra.mrb[0].mxu0 %v4441
  %v6478 = vpop.f32.mrb[0].mxu0
  %v6479 = vadd.f32 %v6405, %v6478
  %v6480 = vpop.f32.mrb[0].mxu0
  %6481 = vmatprep.mubr.f32.mxu0 0.0
  %6482 = vmatmul.mubr.f32.gmra.mrb[0].mxu0 %v4444
  %v6483 = vpop.f32.mrb[0].mxu0
  %v6484 = vadd.f32 %v6405, %v6483
  %v6485 = vpop.f32.mrb[0].mxu0
  %6486 = vmatprep.mubr.f32.mxu0 0.0
  %6487 = vmatmul.mubr.f32.gmra.mrb[0].mxu0 %v4447
  %v6488 = vpop.f32.mrb[0].mxu0
  %v6489 = vadd.f32 %v6405, %v6488
  %v6490 = vpop.f32.mrb[0].mxu0
  %6491 = vmatprep.mubr.f32.mxu0 0.0
  %6492 = vmatmul.mubr.f32.gmra.mrb[0].mxu0 %v4450
  %v6493 = vpop.f32.mrb[0].mxu0
  %v6494 = vadd.f32 %v6405, %v6493
  %v6495 = vpop.f32.mrb[0].mxu0
  %6496 = vmatprep.mubr.f32.mxu0 0.0
  %6497 = vmatmul.mubr.f32.gmra.mrb[0].mxu0 %v4453
  %v6498 = vpop.f32.mrb[0].mxu0
  %v6499 = vadd.f32 %v6405, %v6498
  %v6500 = vpop.f32.mrb[0].mxu0
  %6501 = vmatprep.mubr.f32.mxu0 0.0
  %6502 = vmatmul.mubr.f32.gmra.mrb[0].mxu0 %v4456
  %v6503 = vpop.f32.mrb[0].mxu0
  %v6504 = vadd.f32 %v6405, %v6503
  %v6505 = vpop.f32.mrb[0].mxu0
  %6506 = vmatprep.mubr.f32.mxu0 0.0
  %6507 = vmatmul.mubr.f32.gmra.mrb[0].mxu0 %v4459
  %v6508 = vpop.f32.mrb[0].mxu0
  %v6509 = vadd.f32 %v6405, %v6508
  %v6510 = vpop.f32.mrb[0].mxu0
  %6511 = vdwg.mxu0
  %v6513 = vsel %vm743, %v6238, 0
  %v6516 = vsel %vm743, %v6243, 0
  %v6519 = vsel %vm743, %v6248, 0
  %v6522 = vsel %vm743, %v6253, 0
  %v6525 = vsel %vm743, %v6258, 0
  %v6528 = vsel %vm743, %v6263, 0
  %v6531 = vsel %vm743, %v6268, 0
  %v6534 = vsel %vm743, %v6273, 0
  %v6537 = vsel %vm743, %v6356, 0
  %v6540 = vsel %vm743, %v6361, 0
  %v6543 = vsel %vm743, %v6366, 0
  %v6546 = vsel %vm743, %v6371, 0
  %v6549 = vsel %vm743, %v6376, 0
  %v6552 = vsel %vm743, %v6381, 0
  %v6555 = vsel %vm743, %v6386, 0
  %v6558 = vsel %vm743, %v6391, 0
  %6560 = vmatprep.subr.mxu0 0.0
  %6561 = vmatpush1.xpose.msra.mxu0 %v6537
  %6562 = vmatprep.subr.mxu0 0.0
  %6563 = vmatpush1.xpose.msra.mxu0 %v6540
  %6564 = vmatprep.subr.mxu0 0.0
  %6565 = vmatpush1.xpose.msra.mxu0 %v6543
  %6566 = vmatprep.subr.mxu0 0.0
  %6567 = vmatpush1.xpose.msra.mxu0 %v6546
  %6568 = vmatprep.subr.mxu0 0.0
  %6569 = vmatpush1.xpose.msra.mxu0 %v6549
  %6570 = vmatprep.subr.mxu0 0.0
  %6571 = vmatpush1.xpose.msra.mxu0 %v6552
  %6572 = vmatprep.subr.mxu0 0.0
  %6573 = vmatpush1.xpose.msra.mxu0 %v6555
  %6574 = vmatprep.subr.mxu0 0.0
  %6575 = vmatpush1.xpose.msra.mxu0 %v6558
  %6576 = vmatprep.subr.mxu0 0.0
  %6577 = vmatpush1.xpose.msra.mxu0 0.0
  %6578 = vmatprep.subr.mxu0 0.0
  %6579 = vmatpush1.xpose.msra.mxu0 0.0
  %6580 = vmatprep.subr.mxu0 0.0
  %6581 = vmatpush1.xpose.msra.mxu0 0.0
  %6582 = vmatprep.subr.mxu0 0.0
  %6583 = vmatpush1.xpose.msra.mxu0 0.0
  %6584 = vmatprep.subr.mxu0 0.0
  %6585 = vmatpush1.xpose.msra.mxu0 0.0
  %6586 = vmatprep.subr.mxu0 0.0
  %6587 = vmatpush1.xpose.msra.mxu0 0.0
  %6588 = vmatprep.subr.mxu0 0.0
  %6589 = vmatpush1.xpose.msra.mxu0 0.0
  %6590 = vmatprep.subr.mxu0 0.0
  %6591 = vmatpush1.xpose.msra.mxu0 0.0
  %6592 = vmatprep.subr.mxu0 0.0
  %6593 = vmatpush1.xpose.msra.mxu0 0.0
  %6594 = vmatprep.subr.mxu0 0.0
  %6595 = vmatpush1.xpose.msra.mxu0 0.0
  %6596 = vmatprep.subr.mxu0 0.0
  %6597 = vmatpush1.xpose.msra.mxu0 0.0
  %6598 = vmatprep.subr.mxu0 0.0
  %6599 = vmatpush1.xpose.msra.mxu0 0.0
  %6600 = vmatprep.subr.mxu0 0.0
  %6601 = vmatpush1.xpose.msra.mxu0 0.0
  %6602 = vmatprep.subr.mxu0 0.0
  %6603 = vmatpush1.xpose.msra.mxu0 0.0
  %6604 = vmatprep.subr.mxu0 0.0
  %6605 = vmatpush1.xpose.msra.mxu0 0.0
  %6606 = vmatprep.subr.mxu0 0.0
  %6607 = vmatpush1.xpose.msra.mxu0 0.0
  %6608 = vmatprep.subr.mxu0 0.0
  %6609 = vmatpush1.xpose.msra.mxu0 0.0
  %6610 = vmatprep.subr.mxu0 0.0
  %6611 = vmatpush1.xpose.msra.mxu0 0.0
  %6612 = vmatprep.subr.mxu0 0.0
  %6613 = vmatpush1.xpose.msra.mxu0 0.0
  %6614 = vmatprep.subr.mxu0 0.0
  %6615 = vmatpush1.xpose.msra.mxu0 0.0
  %6616 = vmatprep.subr.mxu0 0.0
  %6617 = vmatpush1.xpose.msra.mxu0 0.0
  %6618 = vmatprep.subr.mxu0 0.0
  %6619 = vmatpush1.xpose.msra.mxu0 0.0
  %6620 = vmatprep.subr.mxu0 0.0
  %6621 = vmatpush1.xpose.msra.mxu0 0.0
  %6622 = vmatprep.subr.mxu0 0.0
  %6623 = vmatpush1.xpose.msra.mxu0 0.0
  %6624 = vmatprep.mubr.f32.mxu0 0.0
  %6625 = vmatmul.mubr.f32.gmra.mrb[0].mxu0 %v6513
  %v6626 = vpop.f32.mrb[0].mxu0
  %v6627 = vadd.f32 %v347, %v6626
  %v6628 = vpop.f32.mrb[0].mxu0
  %6629 = vmatprep.mubr.f32.mxu0 0.0
  %6630 = vmatmul.mubr.f32.gmra.mrb[0].mxu0 %v6516
  %v6631 = vpop.f32.mrb[0].mxu0
  %v6632 = vadd.f32 %v348, %v6631
  %v6633 = vpop.f32.mrb[0].mxu0
  %6634 = vmatprep.mubr.f32.mxu0 0.0
  %6635 = vmatmul.mubr.f32.gmra.mrb[0].mxu0 %v6519
  %v6636 = vpop.f32.mrb[0].mxu0
  %v6637 = vadd.f32 %v349, %v6636
  %v6638 = vpop.f32.mrb[0].mxu0
  %6639 = vmatprep.mubr.f32.mxu0 0.0
  %6640 = vmatmul.mubr.f32.gmra.mrb[0].mxu0 %v6522
  %v6641 = vpop.f32.mrb[0].mxu0
  %v6642 = vadd.f32 %v350, %v6641
  %v6643 = vpop.f32.mrb[0].mxu0
  %6644 = vmatprep.mubr.f32.mxu0 0.0
  %6645 = vmatmul.mubr.f32.gmra.mrb[0].mxu0 %v6525
  %v6646 = vpop.f32.mrb[0].mxu0
  %v6647 = vadd.f32 %v351, %v6646
  %v6648 = vpop.f32.mrb[0].mxu0
  %6649 = vmatprep.mubr.f32.mxu0 0.0
  %6650 = vmatmul.mubr.f32.gmra.mrb[0].mxu0 %v6528
  %v6651 = vpop.f32.mrb[0].mxu0
  %v6652 = vadd.f32 %v352, %v6651
  %v6653 = vpop.f32.mrb[0].mxu0
  %6654 = vmatprep.mubr.f32.mxu0 0.0
  %6655 = vmatmul.mubr.f32.gmra.mrb[0].mxu0 %v6531
  %v6656 = vpop.f32.mrb[0].mxu0
  %v6657 = vadd.f32 %v353, %v6656
  %v6658 = vpop.f32.mrb[0].mxu0
  %6659 = vmatprep.mubr.f32.mxu0 0.0
  %6660 = vmatmul.mubr.f32.gmra.mrb[0].mxu0 %v6534
  %v6661 = vpop.f32.mrb[0].mxu0
  %v6662 = vadd.f32 %v354, %v6661
  %v6663 = vpop.f32.mrb[0].mxu0
  %6664 = vdwg.mxu0
  %v6665 = vsel %vm897, %v6627, -inf
  %6666 = vmax.xlane.f32.xlu0 %v6665
  %v6667 = vpop.xlane.xlu0 %6666
  %v6668 = vsel %vm897, %v6632, -inf
  %6669 = vmax.xlane.f32.xlu0 %v6668
  %v6670 = vpop.xlane.xlu0 %6669
  %v6671 = vsel %vm897, %v6637, -inf
  %6672 = vmax.xlane.f32.xlu0 %v6671
  %v6673 = vpop.xlane.xlu0 %6672
  %v6674 = vsel %vm897, %v6642, -inf
  %6675 = vmax.xlane.f32.xlu0 %v6674
  %v6676 = vpop.xlane.xlu0 %6675
  %v6677 = vsel %vm897, %v6647, -inf
  %6678 = vmax.xlane.f32.xlu0 %v6677
  %v6679 = vpop.xlane.xlu0 %6678
  %v6680 = vsel %vm897, %v6652, -inf
  %6681 = vmax.xlane.f32.xlu0 %v6680
  %v6682 = vpop.xlane.xlu0 %6681
  %v6683 = vsel %vm897, %v6657, -inf
  %6684 = vmax.xlane.f32.xlu0 %v6683
  %v6685 = vpop.xlane.xlu0 %6684
  %v6686 = vsel %vm897, %v6662, -inf
  %6687 = vmax.xlane.f32.xlu0 %v6686
  %v6688 = vpop.xlane.xlu0 %6687
  %v6689 = vsub.f32 %v6627, %v6667
  %v6690 = vsub.f32 %v6632, %v6670
  %v6691 = vsub.f32 %v6637, %v6673
  %v6692 = vsub.f32 %v6642, %v6676
  %v6693 = vsub.f32 %v6647, %v6679
  %v6694 = vsub.f32 %v6652, %v6682
  %v6695 = vsub.f32 %v6657, %v6685
  %v6696 = vsub.f32 %v6662, %v6688
  %v6697 = vmul.f32 %v6689, 1.442695
  %v6698 = vpow.pop %v6697
  %v6699 = vmul.f32 %v6690, 1.442695
  %v6700 = vpow.pop %v6699
  %v6701 = vmul.f32 %v6691, 1.442695
  %v6702 = vpow.pop %v6701
  %v6703 = vmul.f32 %v6692, 1.442695
  %v6704 = vpow.pop %v6703
  %v6705 = vmul.f32 %v6693, 1.442695
  %v6706 = vpow.pop %v6705
  %v6707 = vmul.f32 %v6694, 1.442695
  %v6708 = vpow.pop %v6707
  %v6709 = vmul.f32 %v6695, 1.442695
  %v6710 = vpow.pop %v6709
  %v6711 = vmul.f32 %v6696, 1.442695
  %v6712 = vpow.pop %v6711
  %v6713 = vsel %vm897, %v6698, 0.0
  %6714 = vadd.xlane.f32.xlu0 %v6713
  %v6715 = vpop.xlane.xlu0 %6714
  %v6716 = vsel %vm897, %v6700, 0.0
  %6717 = vadd.xlane.f32.xlu0 %v6716
  %v6718 = vpop.xlane.xlu0 %6717
  %v6719 = vsel %vm897, %v6702, 0.0
  %6720 = vadd.xlane.f32.xlu0 %v6719
  %v6721 = vpop.xlane.xlu0 %6720
  %v6722 = vsel %vm897, %v6704, 0.0
  %6723 = vadd.xlane.f32.xlu0 %v6722
  %v6724 = vpop.xlane.xlu0 %6723
  %v6725 = vsel %vm897, %v6706, 0.0
  %6726 = vadd.xlane.f32.xlu0 %v6725
  %v6727 = vpop.xlane.xlu0 %6726
  %v6728 = vsel %vm897, %v6708, 0.0
  %6729 = vadd.xlane.f32.xlu0 %v6728
  %v6730 = vpop.xlane.xlu0 %6729
  %v6731 = vsel %vm897, %v6710, 0.0
  %6732 = vadd.xlane.f32.xlu0 %v6731
  %v6733 = vpop.xlane.xlu0 %6732
  %v6734 = vsel %vm897, %v6712, 0.0
  %6735 = vadd.xlane.f32.xlu0 %v6734
  %v6736 = vpop.xlane.xlu0 %6735
  %v6737 = vrcp.pop %v6715
  %v6738 = vmul.f32 %v6698, %v6737
  %v6739 = vrcp.pop %v6718
  %v6740 = vmul.f32 %v6700, %v6739
  %v6741 = vrcp.pop %v6721
  %v6742 = vmul.f32 %v6702, %v6741
  %v6743 = vrcp.pop %v6724
  %v6744 = vmul.f32 %v6704, %v6743
  %v6745 = vrcp.pop %v6727
  %v6746 = vmul.f32 %v6706, %v6745
  %v6747 = vrcp.pop %v6730
  %v6748 = vmul.f32 %v6708, %v6747
  %v6749 = vrcp.pop %v6733
  %v6750 = vmul.f32 %v6710, %v6749
  %v6751 = vrcp.pop %v6736
  %v6752 = vmul.f32 %v6712, %v6751
  %v6754 = vsel %vm897, %v6738, 0
  %v6757 = vsel %vm897, %v6740, 0
  %v6760 = vsel %vm897, %v6742, 0
  %v6763 = vsel %vm897, %v6744, 0
  %v6766 = vsel %vm897, %v6746, 0
  %v6769 = vsel %vm897, %v6748, 0
  %v6772 = vsel %vm897, %v6750, 0
  %v6775 = vsel %vm897, %v6752, 0
  %6777 = vmatprep.subr.mxu0 0.0
  %6778 = vmatpush1.msra.mxu0 %v6474
  %6779 = vmatprep.subr.mxu0 0.0
  %6780 = vmatpush1.msra.mxu0 %v6479
  %6781 = vmatprep.subr.mxu0 0.0
  %6782 = vmatpush1.msra.mxu0 %v6484
  %6783 = vmatprep.subr.mxu0 0.0
  %6784 = vmatpush1.msra.mxu0 %v6489
  %6785 = vmatprep.subr.mxu0 0.0
  %6786 = vmatpush1.msra.mxu0 %v6494
  %6787 = vmatprep.subr.mxu0 0.0
  %6788 = vmatpush1.msra.mxu0 %v6499
  %6789 = vmatprep.subr.mxu0 0.0
  %6790 = vmatpush1.msra.mxu0 %v6504
  %6791 = vmatprep.subr.mxu0 0.0
  %6792 = vmatpush1.msra.mxu0 %v6509
  %6793 = vmatprep.subr.mxu0 0.0
  %6794 = vmatpush1.msra.mxu0 0.0
  %6795 = vmatprep.subr.mxu0 0.0
  %6796 = vmatpush1.msra.mxu0 0.0
  %6797 = vmatprep.subr.mxu0 0.0
  %6798 = vmatpush1.msra.mxu0 0.0
  %6799 = vmatprep.subr.mxu0 0.0
  %6800 = vmatpush1.msra.mxu0 0.0
  %6801 = vmatprep.subr.mxu0 0.0
  %6802 = vmatpush1.msra.mxu0 0.0
  %6803 = vmatprep.subr.mxu0 0.0
  %6804 = vmatpush1.msra.mxu0 0.0
  %6805 = vmatprep.subr.mxu0 0.0
  %6806 = vmatpush1.msra.mxu0 0.0
  %6807 = vmatprep.subr.mxu0 0.0
  %6808 = vmatpush1.msra.mxu0 0.0
  %6809 = vmatprep.subr.mxu0 0.0
  %6810 = vmatpush1.msra.mxu0 0.0
  %6811 = vmatprep.subr.mxu0 0.0
  %6812 = vmatpush1.msra.mxu0 0.0
  %6813 = vmatprep.subr.mxu0 0.0
  %6814 = vmatpush1.msra.mxu0 0.0
  %6815 = vmatprep.subr.mxu0 0.0
  %6816 = vmatpush1.msra.mxu0 0.0
  %6817 = vmatprep.subr.mxu0 0.0
  %6818 = vmatpush1.msra.mxu0 0.0
  %6819 = vmatprep.subr.mxu0 0.0
  %6820 = vmatpush1.msra.mxu0 0.0
  %6821 = vmatprep.subr.mxu0 0.0
  %6822 = vmatpush1.msra.mxu0 0.0
  %6823 = vmatprep.subr.mxu0 0.0
  %6824 = vmatpush1.msra.mxu0 0.0
  %6825 = vmatprep.subr.mxu0 0.0
  %6826 = vmatpush1.msra.mxu0 0.0
  %6827 = vmatprep.subr.mxu0 0.0
  %6828 = vmatpush1.msra.mxu0 0.0
  %6829 = vmatprep.subr.mxu0 0.0
  %6830 = vmatpush1.msra.mxu0 0.0
  %6831 = vmatprep.subr.mxu0 0.0
  %6832 = vmatpush1.msra.mxu0 0.0
  %6833 = vmatprep.subr.mxu0 0.0
  %6834 = vmatpush1.msra.mxu0 0.0
  %6835 = vmatprep.subr.mxu0 0.0
  %6836 = vmatpush1.msra.mxu0 0.0
  %6837 = vmatprep.subr.mxu0 0.0
  %6838 = vmatpush1.msra.mxu0 0.0
  %6839 = vmatprep.subr.mxu0 0.0
  %6840 = vmatpush1.msra.mxu0 0.0
  %6841 = vmatprep.mubr.f32.mxu0 0.0
  %6842 = vmatmul.mubr.f32.gmra.mrb[0].mxu0 %v6754
  %v6843 = vpop.f32.mrb[0].mxu0
  %v6844 = vadd.f32 0.0, %v6843
  %v6845 = vpop.f32.mrb[0].mxu0
  %6846 = vmatprep.mubr.f32.mxu0 0.0
  %6847 = vmatmul.mubr.f32.gmra.mrb[0].mxu0 %v6757
  %v6848 = vpop.f32.mrb[0].mxu0
  %v6849 = vadd.f32 0.0, %v6848
  %v6850 = vpop.f32.mrb[0].mxu0
  %6851 = vmatprep.mubr.f32.mxu0 0.0
  %6852 = vmatmul.mubr.f32.gmra.mrb[0].mxu0 %v6760
  %v6853 = vpop.f32.mrb[0].mxu0
  %v6854 = vadd.f32 0.0, %v6853
  %v6855 = vpop.f32.mrb[0].mxu0
  %6856 = vmatprep.mubr.f32.mxu0 0.0
  %6857 = vmatmul.mubr.f32.gmra.mrb[0].mxu0 %v6763
  %v6858 = vpop.f32.mrb[0].mxu0
  %v6859 = vadd.f32 0.0, %v6858
  %v6860 = vpop.f32.mrb[0].mxu0
  %6861 = vmatprep.mubr.f32.mxu0 0.0
  %6862 = vmatmul.mubr.f32.gmra.mrb[0].mxu0 %v6766
  %v6863 = vpop.f32.mrb[0].mxu0
  %v6864 = vadd.f32 0.0, %v6863
  %v6865 = vpop.f32.mrb[0].mxu0
  %6866 = vmatprep.mubr.f32.mxu0 0.0
  %6867 = vmatmul.mubr.f32.gmra.mrb[0].mxu0 %v6769
  %v6868 = vpop.f32.mrb[0].mxu0
  %v6869 = vadd.f32 0.0, %v6868
  %v6870 = vpop.f32.mrb[0].mxu0
  %6871 = vmatprep.mubr.f32.mxu0 0.0
  %6872 = vmatmul.mubr.f32.gmra.mrb[0].mxu0 %v6772
  %v6873 = vpop.f32.mrb[0].mxu0
  %v6874 = vadd.f32 0.0, %v6873
  %v6875 = vpop.f32.mrb[0].mxu0
  %6876 = vmatprep.mubr.f32.mxu0 0.0
  %6877 = vmatmul.mubr.f32.gmra.mrb[0].mxu0 %v6775
  %v6878 = vpop.f32.mrb[0].mxu0
  %v6879 = vadd.f32 0.0, %v6878
  %v6880 = vpop.f32.mrb[0].mxu0
  %6881 = vdwg.mxu0
  %s6882 = scalar_lea.vmem %s4, 48
  %v6883 = vld [vmem:[%s6882] sm:$0xff]
  %v6885 = vsel %vm743, %v6844, 0
  %v6888 = vsel %vm743, %v6849, 0
  %v6891 = vsel %vm743, %v6854, 0
  %v6894 = vsel %vm743, %v6859, 0
  %v6897 = vsel %vm743, %v6864, 0
  %v6900 = vsel %vm743, %v6869, 0
  %v6903 = vsel %vm743, %v6874, 0
  %v6906 = vsel %vm743, %v6879, 0
  %6908 = vmatprep.subr.mxu0 0.0
  %6909 = vmatpush1.msra.mxu0 %v6883
  %6910 = vmatprep.subr.mxu0 0.0
  %6911 = vmatpush1.msra.mxu0 0.0
  %6912 = vmatprep.subr.mxu0 0.0
  %6913 = vmatpush1.msra.mxu0 0.0
  %6914 = vmatprep.subr.mxu0 0.0
  %6915 = vmatpush1.msra.mxu0 0.0
  %6916 = vmatprep.subr.mxu0 0.0
  %6917 = vmatpush1.msra.mxu0 0.0
  %6918 = vmatprep.subr.mxu0 0.0
  %6919 = vmatpush1.msra.mxu0 0.0
  %6920 = vmatprep.subr.mxu0 0.0
  %6921 = vmatpush1.msra.mxu0 0.0
  %6922 = vmatprep.subr.mxu0 0.0
  %6923 = vmatpush1.msra.mxu0 0.0
  %6924 = vmatprep.subr.mxu0 0.0
  %6925 = vmatpush1.msra.mxu0 0.0
  %6926 = vmatprep.subr.mxu0 0.0
  %6927 = vmatpush1.msra.mxu0 0.0
  %6928 = vmatprep.subr.mxu0 0.0
  %6929 = vmatpush1.msra.mxu0 0.0
  %6930 = vmatprep.subr.mxu0 0.0
  %6931 = vmatpush1.msra.mxu0 0.0
  %6932 = vmatprep.subr.mxu0 0.0
  %6933 = vmatpush1.msra.mxu0 0.0
  %6934 = vmatprep.subr.mxu0 0.0
  %6935 = vmatpush1.msra.mxu0 0.0
  %6936 = vmatprep.subr.mxu0 0.0
  %6937 = vmatpush1.msra.mxu0 0.0
  %6938 = vmatprep.subr.mxu0 0.0
  %6939 = vmatpush1.msra.mxu0 0.0
  %6940 = vmatprep.subr.mxu0 0.0
  %6941 = vmatpush1.msra.mxu0 0.0
  %6942 = vmatprep.subr.mxu0 0.0
  %6943 = vmatpush1.msra.mxu0 0.0
  %6944 = vmatprep.subr.mxu0 0.0
  %6945 = vmatpush1.msra.mxu0 0.0
  %6946 = vmatprep.subr.mxu0 0.0
  %6947 = vmatpush1.msra.mxu0 0.0
  %6948 = vmatprep.subr.mxu0 0.0
  %6949 = vmatpush1.msra.mxu0 0.0
  %6950 = vmatprep.subr.mxu0 0.0
  %6951 = vmatpush1.msra.mxu0 0.0
  %6952 = vmatprep.subr.mxu0 0.0
  %6953 = vmatpush1.msra.mxu0 0.0
  %6954 = vmatprep.subr.mxu0 0.0
  %6955 = vmatpush1.msra.mxu0 0.0
  %6956 = vmatprep.subr.mxu0 0.0
  %6957 = vmatpush1.msra.mxu0 0.0
  %6958 = vmatprep.subr.mxu0 0.0
  %6959 = vmatpush1.msra.mxu0 0.0
  %6960 = vmatprep.subr.mxu0 0.0
  %6961 = vmatpush1.msra.mxu0 0.0
  %6962 = vmatprep.subr.mxu0 0.0
  %6963 = vmatpush1.msra.mxu0 0.0
  %6964 = vmatprep.subr.mxu0 0.0
  %6965 = vmatpush1.msra.mxu0 0.0
  %6966 = vmatprep.subr.mxu0 0.0
  %6967 = vmatpush1.msra.mxu0 0.0
  %6968 = vmatprep.subr.mxu0 0.0
  %6969 = vmatpush1.msra.mxu0 0.0
  %6970 = vmatprep.subr.mxu0 0.0
  %6971 = vmatpush1.msra.mxu0 0.0
  %6972 = vmatprep.mubr.f32.mxu0 0.0
  %6973 = vmatmul.mubr.f32.gmra.mrb[0].mxu0 %v6885
  %v6974 = vpop.f32.mrb[0].mxu0
  %v6975 = vadd.f32 0.0, %v6974
  %v6976 = vpop.f32.mrb[0].mxu0
  %6977 = vmatprep.mubr.f32.mxu0 0.0
  %6978 = vmatmul.mubr.f32.gmra.mrb[0].mxu0 %v6888
  %v6979 = vpop.f32.mrb[0].mxu0
  %v6980 = vadd.f32 0.0, %v6979
  %v6981 = vpop.f32.mrb[0].mxu0
  %6982 = vmatprep.mubr.f32.mxu0 0.0
  %6983 = vmatmul.mubr.f32.gmra.mrb[0].mxu0 %v6891
  %v6984 = vpop.f32.mrb[0].mxu0
  %v6985 = vadd.f32 0.0, %v6984
  %v6986 = vpop.f32.mrb[0].mxu0
  %6987 = vmatprep.mubr.f32.mxu0 0.0
  %6988 = vmatmul.mubr.f32.gmra.mrb[0].mxu0 %v6894
  %v6989 = vpop.f32.mrb[0].mxu0
  %v6990 = vadd.f32 0.0, %v6989
  %v6991 = vpop.f32.mrb[0].mxu0
  %6992 = vmatprep.mubr.f32.mxu0 0.0
  %6993 = vmatmul.mubr.f32.gmra.mrb[0].mxu0 %v6897
  %v6994 = vpop.f32.mrb[0].mxu0
  %v6995 = vadd.f32 0.0, %v6994
  %v6996 = vpop.f32.mrb[0].mxu0
  %6997 = vmatprep.mubr.f32.mxu0 0.0
  %6998 = vmatmul.mubr.f32.gmra.mrb[0].mxu0 %v6900
  %v6999 = vpop.f32.mrb[0].mxu0
  %v7000 = vadd.f32 0.0, %v6999
  %v7001 = vpop.f32.mrb[0].mxu0
  %7002 = vmatprep.mubr.f32.mxu0 0.0
  %7003 = vmatmul.mubr.f32.gmra.mrb[0].mxu0 %v6903
  %v7004 = vpop.f32.mrb[0].mxu0
  %v7005 = vadd.f32 0.0, %v7004
  %v7006 = vpop.f32.mrb[0].mxu0
  %7007 = vmatprep.mubr.f32.mxu0 0.0
  %7008 = vmatmul.mubr.f32.gmra.mrb[0].mxu0 %v6906
  %v7009 = vpop.f32.mrb[0].mxu0
  %v7010 = vadd.f32 0.0, %v7009
  %v7011 = vpop.f32.mrb[0].mxu0
  %7012 = vdwg.mxu0
  %v7013 = vadd.f32 %v6120, %v6975
  %v7014 = vadd.f32 %v6125, %v6980
  %v7015 = vadd.f32 %v6130, %v6985
  %v7016 = vadd.f32 %v6135, %v6990
  %v7017 = vadd.f32 %v6140, %v6995
  %v7018 = vadd.f32 %v6145, %v7000
  %v7019 = vadd.f32 %v6150, %v7005
  %v7020 = vadd.f32 %v6155, %v7010
  %s7021 = scalar_lea.vmem %s2, 480
  %v7022 = vld [vmem:[%s7021] sm:$0xff]
  %v7023 = vld [vmem:[%s7021 + $0x8] sm:$0xff]
  %v7024 = vld [vmem:[%s7021 + $0x10] sm:$0xff]
  %v7025 = vld [vmem:[%s7021 + $0x18] sm:$0xff]
  %s7026 = scalar_lea.vmem %s3, 15
  %v7027 = vld [vmem:[%s7026] sm:$0x1]
  %v7029 = vlaneseq
  %v7030 = vshrl.u32 %v7029, 7
  %v7031 = vsub.s32 0, %v7030
  %v7032 = vrot.slane %v7027, %v7031
  %7034 = vmatprep.subr.mxu0 0.0
  %7035 = vmatpush1.msra.mxu0 %v7022
  %7036 = vmatprep.subr.mxu0 0.0
  %7037 = vmatpush1.msra.mxu0 %v7023
  %7038 = vmatprep.subr.mxu0 0.0
  %7039 = vmatpush1.msra.mxu0 %v7024
  %7040 = vmatprep.subr.mxu0 0.0
  %7041 = vmatpush1.msra.mxu0 %v7025
  %7042 = vmatprep.subr.mxu0 0.0
  %7043 = vmatpush1.msra.mxu0 0.0
  %7044 = vmatprep.subr.mxu0 0.0
  %7045 = vmatpush1.msra.mxu0 0.0
  %7046 = vmatprep.subr.mxu0 0.0
  %7047 = vmatpush1.msra.mxu0 0.0
  %7048 = vmatprep.subr.mxu0 0.0
  %7049 = vmatpush1.msra.mxu0 0.0
  %7050 = vmatprep.subr.mxu0 0.0
  %7051 = vmatpush1.msra.mxu0 0.0
  %7052 = vmatprep.subr.mxu0 0.0
  %7053 = vmatpush1.msra.mxu0 0.0
  %7054 = vmatprep.subr.mxu0 0.0
  %7055 = vmatpush1.msra.mxu0 0.0
  %7056 = vmatprep.subr.mxu0 0.0
  %7057 = vmatpush1.msra.mxu0 0.0
  %7058 = vmatprep.subr.mxu0 0.0
  %7059 = vmatpush1.msra.mxu0 0.0
  %7060 = vmatprep.subr.mxu0 0.0
  %7061 = vmatpush1.msra.mxu0 0.0
  %7062 = vmatprep.subr.mxu0 0.0
  %7063 = vmatpush1.msra.mxu0 0.0
  %7064 = vmatprep.subr.mxu0 0.0
  %7065 = vmatpush1.msra.mxu0 0.0
  %7066 = vmatprep.subr.mxu0 0.0
  %7067 = vmatpush1.msra.mxu0 0.0
  %7068 = vmatprep.subr.mxu0 0.0
  %7069 = vmatpush1.msra.mxu0 0.0
  %7070 = vmatprep.subr.mxu0 0.0
  %7071 = vmatpush1.msra.mxu0 0.0
  %7072 = vmatprep.subr.mxu0 0.0
  %7073 = vmatpush1.msra.mxu0 0.0
  %7074 = vmatprep.subr.mxu0 0.0
  %7075 = vmatpush1.msra.mxu0 0.0
  %7076 = vmatprep.subr.mxu0 0.0
  %7077 = vmatpush1.msra.mxu0 0.0
  %7078 = vmatprep.subr.mxu0 0.0
  %7079 = vmatpush1.msra.mxu0 0.0
  %7080 = vmatprep.subr.mxu0 0.0
  %7081 = vmatpush1.msra.mxu0 0.0
  %7082 = vmatprep.subr.mxu0 0.0
  %7083 = vmatpush1.msra.mxu0 0.0
  %7084 = vmatprep.subr.mxu0 0.0
  %7085 = vmatpush1.msra.mxu0 0.0
  %7086 = vmatprep.subr.mxu0 0.0
  %7087 = vmatpush1.msra.mxu0 0.0
  %7088 = vmatprep.subr.mxu0 0.0
  %7089 = vmatpush1.msra.mxu0 0.0
  %7090 = vmatprep.subr.mxu0 0.0
  %7091 = vmatpush1.msra.mxu0 0.0
  %7092 = vmatprep.subr.mxu0 0.0
  %7093 = vmatpush1.msra.mxu0 0.0
  %7094 = vmatprep.subr.mxu0 0.0
  %7095 = vmatpush1.msra.mxu0 0.0
  %7096 = vmatprep.subr.mxu0 0.0
  %7097 = vmatpush1.msra.mxu0 0.0
  %7098 = vmatprep.mubr.f32.mxu0 0.0
  %7099 = vmatmul.mubr.f32.gmra.mrb[0].mxu0 %v4438
  %v7100 = vpop.f32.mrb[0].mxu0
  %v7101 = vadd.f32 %v7032, %v7100
  %v7102 = vpop.f32.mrb[0].mxu0
  %7103 = vmatprep.mubr.f32.mxu0 0.0
  %7104 = vmatmul.mubr.f32.gmra.mrb[0].mxu0 %v4441
  %v7105 = vpop.f32.mrb[0].mxu0
  %v7106 = vadd.f32 %v7032, %v7105
  %v7107 = vpop.f32.mrb[0].mxu0
  %7108 = vmatprep.mubr.f32.mxu0 0.0
  %7109 = vmatmul.mubr.f32.gmra.mrb[0].mxu0 %v4444
  %v7110 = vpop.f32.mrb[0].mxu0
  %v7111 = vadd.f32 %v7032, %v7110
  %v7112 = vpop.f32.mrb[0].mxu0
  %7113 = vmatprep.mubr.f32.mxu0 0.0
  %7114 = vmatmul.mubr.f32.gmra.mrb[0].mxu0 %v4447
  %v7115 = vpop.f32.mrb[0].mxu0
  %v7116 = vadd.f32 %v7032, %v7115
  %v7117 = vpop.f32.mrb[0].mxu0
  %7118 = vmatprep.mubr.f32.mxu0 0.0
  %7119 = vmatmul.mubr.f32.gmra.mrb[0].mxu0 %v4450
  %v7120 = vpop.f32.mrb[0].mxu0
  %v7121 = vadd.f32 %v7032, %v7120
  %v7122 = vpop.f32.mrb[0].mxu0
  %7123 = vmatprep.mubr.f32.mxu0 0.0
  %7124 = vmatmul.mubr.f32.gmra.mrb[0].mxu0 %v4453
  %v7125 = vpop.f32.mrb[0].mxu0
  %v7126 = vadd.f32 %v7032, %v7125
  %v7127 = vpop.f32.mrb[0].mxu0
  %7128 = vmatprep.mubr.f32.mxu0 0.0
  %7129 = vmatmul.mubr.f32.gmra.mrb[0].mxu0 %v4456
  %v7130 = vpop.f32.mrb[0].mxu0
  %v7131 = vadd.f32 %v7032, %v7130
  %v7132 = vpop.f32.mrb[0].mxu0
  %7133 = vmatprep.mubr.f32.mxu0 0.0
  %7134 = vmatmul.mubr.f32.gmra.mrb[0].mxu0 %v4459
  %v7135 = vpop.f32.mrb[0].mxu0
  %v7136 = vadd.f32 %v7032, %v7135
  %v7137 = vpop.f32.mrb[0].mxu0
  %7138 = vdwg.mxu0
  %s7139 = scalar_lea.vmem %s2, 608
  %v7140 = vld [vmem:[%s7139] sm:$0xff]
  %v7141 = vld [vmem:[%s7139 + $0x8] sm:$0xff]
  %v7142 = vld [vmem:[%s7139 + $0x10] sm:$0xff]
  %v7143 = vld [vmem:[%s7139 + $0x18] sm:$0xff]
  %s7144 = scalar_lea.vmem %s3, 19
  %v7145 = vld [vmem:[%s7144] sm:$0x1]
  %v7147 = vlaneseq
  %v7148 = vshrl.u32 %v7147, 7
  %v7149 = vsub.s32 0, %v7148
  %v7150 = vrot.slane %v7145, %v7149
  %7152 = vmatprep.subr.mxu0 0.0
  %7153 = vmatpush1.msra.mxu0 %v7140
  %7154 = vmatprep.subr.mxu0 0.0
  %7155 = vmatpush1.msra.mxu0 %v7141
  %7156 = vmatprep.subr.mxu0 0.0
  %7157 = vmatpush1.msra.mxu0 %v7142
  %7158 = vmatprep.subr.mxu0 0.0
  %7159 = vmatpush1.msra.mxu0 %v7143
  %7160 = vmatprep.subr.mxu0 0.0
  %7161 = vmatpush1.msra.mxu0 0.0
  %7162 = vmatprep.subr.mxu0 0.0
  %7163 = vmatpush1.msra.mxu0 0.0
  %7164 = vmatprep.subr.mxu0 0.0
  %7165 = vmatpush1.msra.mxu0 0.0
  %7166 = vmatprep.subr.mxu0 0.0
  %7167 = vmatpush1.msra.mxu0 0.0
  %7168 = vmatprep.subr.mxu0 0.0
  %7169 = vmatpush1.msra.mxu0 0.0
  %7170 = vmatprep.subr.mxu0 0.0
  %7171 = vmatpush1.msra.mxu0 0.0
  %7172 = vmatprep.subr.mxu0 0.0
  %7173 = vmatpush1.msra.mxu0 0.0
  %7174 = vmatprep.subr.mxu0 0.0
  %7175 = vmatpush1.msra.mxu0 0.0
  %7176 = vmatprep.subr.mxu0 0.0
  %7177 = vmatpush1.msra.mxu0 0.0
  %7178 = vmatprep.subr.mxu0 0.0
  %7179 = vmatpush1.msra.mxu0 0.0
  %7180 = vmatprep.subr.mxu0 0.0
  %7181 = vmatpush1.msra.mxu0 0.0
  %7182 = vmatprep.subr.mxu0 0.0
  %7183 = vmatpush1.msra.mxu0 0.0
  %7184 = vmatprep.subr.mxu0 0.0
  %7185 = vmatpush1.msra.mxu0 0.0
  %7186 = vmatprep.subr.mxu0 0.0
  %7187 = vmatpush1.msra.mxu0 0.0
  %7188 = vmatprep.subr.mxu0 0.0
  %7189 = vmatpush1.msra.mxu0 0.0
  %7190 = vmatprep.subr.mxu0 0.0
  %7191 = vmatpush1.msra.mxu0 0.0
  %7192 = vmatprep.subr.mxu0 0.0
  %7193 = vmatpush1.msra.mxu0 0.0
  %7194 = vmatprep.subr.mxu0 0.0
  %7195 = vmatpush1.msra.mxu0 0.0
  %7196 = vmatprep.subr.mxu0 0.0
  %7197 = vmatpush1.msra.mxu0 0.0
  %7198 = vmatprep.subr.mxu0 0.0
  %7199 = vmatpush1.msra.mxu0 0.0
  %7200 = vmatprep.subr.mxu0 0.0
  %7201 = vmatpush1.msra.mxu0 0.0
  %7202 = vmatprep.subr.mxu0 0.0
  %7203 = vmatpush1.msra.mxu0 0.0
  %7204 = vmatprep.subr.mxu0 0.0
  %7205 = vmatpush1.msra.mxu0 0.0
  %7206 = vmatprep.subr.mxu0 0.0
  %7207 = vmatpush1.msra.mxu0 0.0
  %7208 = vmatprep.subr.mxu0 0.0
  %7209 = vmatpush1.msra.mxu0 0.0
  %7210 = vmatprep.subr.mxu0 0.0
  %7211 = vmatpush1.msra.mxu0 0.0
  %7212 = vmatprep.subr.mxu0 0.0
  %7213 = vmatpush1.msra.mxu0 0.0
  %7214 = vmatprep.subr.mxu0 0.0
  %7215 = vmatpush1.msra.mxu0 0.0
  %7216 = vmatprep.mubr.f32.mxu0 0.0
  %7217 = vmatmul.mubr.f32.gmra.mrb[0].mxu0 %v4438
  %v7218 = vpop.f32.mrb[0].mxu0
  %v7219 = vadd.f32 %v7150, %v7218
  %v7220 = vpop.f32.mrb[0].mxu0
  %7221 = vmatprep.mubr.f32.mxu0 0.0
  %7222 = vmatmul.mubr.f32.gmra.mrb[0].mxu0 %v4441
  %v7223 = vpop.f32.mrb[0].mxu0
  %v7224 = vadd.f32 %v7150, %v7223
  %v7225 = vpop.f32.mrb[0].mxu0
  %7226 = vmatprep.mubr.f32.mxu0 0.0
  %7227 = vmatmul.mubr.f32.gmra.mrb[0].mxu0 %v4444
  %v7228 = vpop.f32.mrb[0].mxu0
  %v7229 = vadd.f32 %v7150, %v7228
  %v7230 = vpop.f32.mrb[0].mxu0
  %7231 = vmatprep.mubr.f32.mxu0 0.0
  %7232 = vmatmul.mubr.f32.gmra.mrb[0].mxu0 %v4447
  %v7233 = vpop.f32.mrb[0].mxu0
  %v7234 = vadd.f32 %v7150, %v7233
  %v7235 = vpop.f32.mrb[0].mxu0
  %7236 = vmatprep.mubr.f32.mxu0 0.0
  %7237 = vmatmul.mubr.f32.gmra.mrb[0].mxu0 %v4450
  %v7238 = vpop.f32.mrb[0].mxu0
  %v7239 = vadd.f32 %v7150, %v7238
  %v7240 = vpop.f32.mrb[0].mxu0
  %7241 = vmatprep.mubr.f32.mxu0 0.0
  %7242 = vmatmul.mubr.f32.gmra.mrb[0].mxu0 %v4453
  %v7243 = vpop.f32.mrb[0].mxu0
  %v7244 = vadd.f32 %v7150, %v7243
  %v7245 = vpop.f32.mrb[0].mxu0
  %7246 = vmatprep.mubr.f32.mxu0 0.0
  %7247 = vmatmul.mubr.f32.gmra.mrb[0].mxu0 %v4456
  %v7248 = vpop.f32.mrb[0].mxu0
  %v7249 = vadd.f32 %v7150, %v7248
  %v7250 = vpop.f32.mrb[0].mxu0
  %7251 = vmatprep.mubr.f32.mxu0 0.0
  %7252 = vmatmul.mubr.f32.gmra.mrb[0].mxu0 %v4459
  %v7253 = vpop.f32.mrb[0].mxu0
  %v7254 = vadd.f32 %v7150, %v7253
  %v7255 = vpop.f32.mrb[0].mxu0
  %7256 = vdwg.mxu0
  %s7257 = scalar_lea.vmem %s2, 736
  %v7258 = vld [vmem:[%s7257] sm:$0xff]
  %v7259 = vld [vmem:[%s7257 + $0x8] sm:$0xff]
  %v7260 = vld [vmem:[%s7257 + $0x10] sm:$0xff]
  %v7261 = vld [vmem:[%s7257 + $0x18] sm:$0xff]
  %s7262 = scalar_lea.vmem %s3, 23
  %v7263 = vld [vmem:[%s7262] sm:$0x1]
  %v7265 = vlaneseq
  %v7266 = vshrl.u32 %v7265, 7
  %v7267 = vsub.s32 0, %v7266
  %v7268 = vrot.slane %v7263, %v7267
  %7270 = vmatprep.subr.mxu0 0.0
  %7271 = vmatpush1.msra.mxu0 %v7258
  %7272 = vmatprep.subr.mxu0 0.0
  %7273 = vmatpush1.msra.mxu0 %v7259
  %7274 = vmatprep.subr.mxu0 0.0
  %7275 = vmatpush1.msra.mxu0 %v7260
  %7276 = vmatprep.subr.mxu0 0.0
  %7277 = vmatpush1.msra.mxu0 %v7261
  %7278 = vmatprep.subr.mxu0 0.0
  %7279 = vmatpush1.msra.mxu0 0.0
  %7280 = vmatprep.subr.mxu0 0.0
  %7281 = vmatpush1.msra.mxu0 0.0
  %7282 = vmatprep.subr.mxu0 0.0
  %7283 = vmatpush1.msra.mxu0 0.0
  %7284 = vmatprep.subr.mxu0 0.0
  %7285 = vmatpush1.msra.mxu0 0.0
  %7286 = vmatprep.subr.mxu0 0.0
  %7287 = vmatpush1.msra.mxu0 0.0
  %7288 = vmatprep.subr.mxu0 0.0
  %7289 = vmatpush1.msra.mxu0 0.0
  %7290 = vmatprep.subr.mxu0 0.0
  %7291 = vmatpush1.msra.mxu0 0.0
  %7292 = vmatprep.subr.mxu0 0.0
  %7293 = vmatpush1.msra.mxu0 0.0
  %7294 = vmatprep.subr.mxu0 0.0
  %7295 = vmatpush1.msra.mxu0 0.0
  %7296 = vmatprep.subr.mxu0 0.0
  %7297 = vmatpush1.msra.mxu0 0.0
  %7298 = vmatprep.subr.mxu0 0.0
  %7299 = vmatpush1.msra.mxu0 0.0
  %7300 = vmatprep.subr.mxu0 0.0
  %7301 = vmatpush1.msra.mxu0 0.0
  %7302 = vmatprep.subr.mxu0 0.0
  %7303 = vmatpush1.msra.mxu0 0.0
  %7304 = vmatprep.subr.mxu0 0.0
  %7305 = vmatpush1.msra.mxu0 0.0
  %7306 = vmatprep.subr.mxu0 0.0
  %7307 = vmatpush1.msra.mxu0 0.0
  %7308 = vmatprep.subr.mxu0 0.0
  %7309 = vmatpush1.msra.mxu0 0.0
  %7310 = vmatprep.subr.mxu0 0.0
  %7311 = vmatpush1.msra.mxu0 0.0
  %7312 = vmatprep.subr.mxu0 0.0
  %7313 = vmatpush1.msra.mxu0 0.0
  %7314 = vmatprep.subr.mxu0 0.0
  %7315 = vmatpush1.msra.mxu0 0.0
  %7316 = vmatprep.subr.mxu0 0.0
  %7317 = vmatpush1.msra.mxu0 0.0
  %7318 = vmatprep.subr.mxu0 0.0
  %7319 = vmatpush1.msra.mxu0 0.0
  %7320 = vmatprep.subr.mxu0 0.0
  %7321 = vmatpush1.msra.mxu0 0.0
  %7322 = vmatprep.subr.mxu0 0.0
  %7323 = vmatpush1.msra.mxu0 0.0
  %7324 = vmatprep.subr.mxu0 0.0
  %7325 = vmatpush1.msra.mxu0 0.0
  %7326 = vmatprep.subr.mxu0 0.0
  %7327 = vmatpush1.msra.mxu0 0.0
  %7328 = vmatprep.subr.mxu0 0.0
  %7329 = vmatpush1.msra.mxu0 0.0
  %7330 = vmatprep.subr.mxu0 0.0
  %7331 = vmatpush1.msra.mxu0 0.0
  %7332 = vmatprep.subr.mxu0 0.0
  %7333 = vmatpush1.msra.mxu0 0.0
  %7334 = vmatprep.mubr.f32.mxu0 0.0
  %7335 = vmatmul.mubr.f32.gmra.mrb[0].mxu0 %v4438
  %v7336 = vpop.f32.mrb[0].mxu0
  %v7337 = vadd.f32 %v7268, %v7336
  %v7338 = vpop.f32.mrb[0].mxu0
  %7339 = vmatprep.mubr.f32.mxu0 0.0
  %7340 = vmatmul.mubr.f32.gmra.mrb[0].mxu0 %v4441
  %v7341 = vpop.f32.mrb[0].mxu0
  %v7342 = vadd.f32 %v7268, %v7341
  %v7343 = vpop.f32.mrb[0].mxu0
  %7344 = vmatprep.mubr.f32.mxu0 0.0
  %7345 = vmatmul.mubr.f32.gmra.mrb[0].mxu0 %v4444
  %v7346 = vpop.f32.mrb[0].mxu0
  %v7347 = vadd.f32 %v7268, %v7346
  %v7348 = vpop.f32.mrb[0].mxu0
  %7349 = vmatprep.mubr.f32.mxu0 0.0
  %7350 = vmatmul.mubr.f32.gmra.mrb[0].mxu0 %v4447
  %v7351 = vpop.f32.mrb[0].mxu0
  %v7352 = vadd.f32 %v7268, %v7351
  %v7353 = vpop.f32.mrb[0].mxu0
  %7354 = vmatprep.mubr.f32.mxu0 0.0
  %7355 = vmatmul.mubr.f32.gmra.mrb[0].mxu0 %v4450
  %v7356 = vpop.f32.mrb[0].mxu0
  %v7357 = vadd.f32 %v7268, %v7356
  %v7358 = vpop.f32.mrb[0].mxu0
  %7359 = vmatprep.mubr.f32.mxu0 0.0
  %7360 = vmatmul.mubr.f32.gmra.mrb[0].mxu0 %v4453
  %v7361 = vpop.f32.mrb[0].mxu0
  %v7362 = vadd.f32 %v7268, %v7361
  %v7363 = vpop.f32.mrb[0].mxu0
  %7364 = vmatprep.mubr.f32.mxu0 0.0
  %7365 = vmatmul.mubr.f32.gmra.mrb[0].mxu0 %v4456
  %v7366 = vpop.f32.mrb[0].mxu0
  %v7367 = vadd.f32 %v7268, %v7366
  %v7368 = vpop.f32.mrb[0].mxu0
  %7369 = vmatprep.mubr.f32.mxu0 0.0
  %7370 = vmatmul.mubr.f32.gmra.mrb[0].mxu0 %v4459
  %v7371 = vpop.f32.mrb[0].mxu0
  %v7372 = vadd.f32 %v7268, %v7371
  %v7373 = vpop.f32.mrb[0].mxu0
  %7374 = vdwg.mxu0
  %v7376 = vsel %vm743, %v7101, 0
  %v7379 = vsel %vm743, %v7106, 0
  %v7382 = vsel %vm743, %v7111, 0
  %v7385 = vsel %vm743, %v7116, 0
  %v7388 = vsel %vm743, %v7121, 0
  %v7391 = vsel %vm743, %v7126, 0
  %v7394 = vsel %vm743, %v7131, 0
  %v7397 = vsel %vm743, %v7136, 0
  %v7400 = vsel %vm743, %v7219, 0
  %v7403 = vsel %vm743, %v7224, 0
  %v7406 = vsel %vm743, %v7229, 0
  %v7409 = vsel %vm743, %v7234, 0
  %v7412 = vsel %vm743, %v7239, 0
  %v7415 = vsel %vm743, %v7244, 0
  %v7418 = vsel %vm743, %v7249, 0
  %v7421 = vsel %vm743, %v7254, 0
  %7423 = vmatprep.subr.mxu0 0.0
  %7424 = vmatpush1.xpose.msra.mxu0 %v7400
  %7425 = vmatprep.subr.mxu0 0.0
  %7426 = vmatpush1.xpose.msra.mxu0 %v7403
  %7427 = vmatprep.subr.mxu0 0.0
  %7428 = vmatpush1.xpose.msra.mxu0 %v7406
  %7429 = vmatprep.subr.mxu0 0.0
  %7430 = vmatpush1.xpose.msra.mxu0 %v7409
  %7431 = vmatprep.subr.mxu0 0.0
  %7432 = vmatpush1.xpose.msra.mxu0 %v7412
  %7433 = vmatprep.subr.mxu0 0.0
  %7434 = vmatpush1.xpose.msra.mxu0 %v7415
  %7435 = vmatprep.subr.mxu0 0.0
  %7436 = vmatpush1.xpose.msra.mxu0 %v7418
  %7437 = vmatprep.subr.mxu0 0.0
  %7438 = vmatpush1.xpose.msra.mxu0 %v7421
  %7439 = vmatprep.subr.mxu0 0.0
  %7440 = vmatpush1.xpose.msra.mxu0 0.0
  %7441 = vmatprep.subr.mxu0 0.0
  %7442 = vmatpush1.xpose.msra.mxu0 0.0
  %7443 = vmatprep.subr.mxu0 0.0
  %7444 = vmatpush1.xpose.msra.mxu0 0.0
  %7445 = vmatprep.subr.mxu0 0.0
  %7446 = vmatpush1.xpose.msra.mxu0 0.0
  %7447 = vmatprep.subr.mxu0 0.0
  %7448 = vmatpush1.xpose.msra.mxu0 0.0
  %7449 = vmatprep.subr.mxu0 0.0
  %7450 = vmatpush1.xpose.msra.mxu0 0.0
  %7451 = vmatprep.subr.mxu0 0.0
  %7452 = vmatpush1.xpose.msra.mxu0 0.0
  %7453 = vmatprep.subr.mxu0 0.0
  %7454 = vmatpush1.xpose.msra.mxu0 0.0
  %7455 = vmatprep.subr.mxu0 0.0
  %7456 = vmatpush1.xpose.msra.mxu0 0.0
  %7457 = vmatprep.subr.mxu0 0.0
  %7458 = vmatpush1.xpose.msra.mxu0 0.0
  %7459 = vmatprep.subr.mxu0 0.0
  %7460 = vmatpush1.xpose.msra.mxu0 0.0
  %7461 = vmatprep.subr.mxu0 0.0
  %7462 = vmatpush1.xpose.msra.mxu0 0.0
  %7463 = vmatprep.subr.mxu0 0.0
  %7464 = vmatpush1.xpose.msra.mxu0 0.0
  %7465 = vmatprep.subr.mxu0 0.0
  %7466 = vmatpush1.xpose.msra.mxu0 0.0
  %7467 = vmatprep.subr.mxu0 0.0
  %7468 = vmatpush1.xpose.msra.mxu0 0.0
  %7469 = vmatprep.subr.mxu0 0.0
  %7470 = vmatpush1.xpose.msra.mxu0 0.0
  %7471 = vmatprep.subr.mxu0 0.0
  %7472 = vmatpush1.xpose.msra.mxu0 0.0
  %7473 = vmatprep.subr.mxu0 0.0
  %7474 = vmatpush1.xpose.msra.mxu0 0.0
  %7475 = vmatprep.subr.mxu0 0.0
  %7476 = vmatpush1.xpose.msra.mxu0 0.0
  %7477 = vmatprep.subr.mxu0 0.0
  %7478 = vmatpush1.xpose.msra.mxu0 0.0
  %7479 = vmatprep.subr.mxu0 0.0
  %7480 = vmatpush1.xpose.msra.mxu0 0.0
  %7481 = vmatprep.subr.mxu0 0.0
  %7482 = vmatpush1.xpose.msra.mxu0 0.0
  %7483 = vmatprep.subr.mxu0 0.0
  %7484 = vmatpush1.xpose.msra.mxu0 0.0
  %7485 = vmatprep.subr.mxu0 0.0
  %7486 = vmatpush1.xpose.msra.mxu0 0.0
  %7487 = vmatprep.mubr.f32.mxu0 0.0
  %7488 = vmatmul.mubr.f32.gmra.mrb[0].mxu0 %v7376
  %v7489 = vpop.f32.mrb[0].mxu0
  %v7490 = vadd.f32 %v347, %v7489
  %v7491 = vpop.f32.mrb[0].mxu0
  %7492 = vmatprep.mubr.f32.mxu0 0.0
  %7493 = vmatmul.mubr.f32.gmra.mrb[0].mxu0 %v7379
  %v7494 = vpop.f32.mrb[0].mxu0
  %v7495 = vadd.f32 %v348, %v7494
  %v7496 = vpop.f32.mrb[0].mxu0
  %7497 = vmatprep.mubr.f32.mxu0 0.0
  %7498 = vmatmul.mubr.f32.gmra.mrb[0].mxu0 %v7382
  %v7499 = vpop.f32.mrb[0].mxu0
  %v7500 = vadd.f32 %v349, %v7499
  %v7501 = vpop.f32.mrb[0].mxu0
  %7502 = vmatprep.mubr.f32.mxu0 0.0
  %7503 = vmatmul.mubr.f32.gmra.mrb[0].mxu0 %v7385
  %v7504 = vpop.f32.mrb[0].mxu0
  %v7505 = vadd.f32 %v350, %v7504
  %v7506 = vpop.f32.mrb[0].mxu0
  %7507 = vmatprep.mubr.f32.mxu0 0.0
  %7508 = vmatmul.mubr.f32.gmra.mrb[0].mxu0 %v7388
  %v7509 = vpop.f32.mrb[0].mxu0
  %v7510 = vadd.f32 %v351, %v7509
  %v7511 = vpop.f32.mrb[0].mxu0
  %7512 = vmatprep.mubr.f32.mxu0 0.0
  %7513 = vmatmul.mubr.f32.gmra.mrb[0].mxu0 %v7391
  %v7514 = vpop.f32.mrb[0].mxu0
  %v7515 = vadd.f32 %v352, %v7514
  %v7516 = vpop.f32.mrb[0].mxu0
  %7517 = vmatprep.mubr.f32.mxu0 0.0
  %7518 = vmatmul.mubr.f32.gmra.mrb[0].mxu0 %v7394
  %v7519 = vpop.f32.mrb[0].mxu0
  %v7520 = vadd.f32 %v353, %v7519
  %v7521 = vpop.f32.mrb[0].mxu0
  %7522 = vmatprep.mubr.f32.mxu0 0.0
  %7523 = vmatmul.mubr.f32.gmra.mrb[0].mxu0 %v7397
  %v7524 = vpop.f32.mrb[0].mxu0
  %v7525 = vadd.f32 %v354, %v7524
  %v7526 = vpop.f32.mrb[0].mxu0
  %7527 = vdwg.mxu0
  %v7528 = vsel %vm897, %v7490, -inf
  %7529 = vmax.xlane.f32.xlu0 %v7528
  %v7530 = vpop.xlane.xlu0 %7529
  %v7531 = vsel %vm897, %v7495, -inf
  %7532 = vmax.xlane.f32.xlu0 %v7531
  %v7533 = vpop.xlane.xlu0 %7532
  %v7534 = vsel %vm897, %v7500, -inf
  %7535 = vmax.xlane.f32.xlu0 %v7534
  %v7536 = vpop.xlane.xlu0 %7535
  %v7537 = vsel %vm897, %v7505, -inf
  %7538 = vmax.xlane.f32.xlu0 %v7537
  %v7539 = vpop.xlane.xlu0 %7538
  %v7540 = vsel %vm897, %v7510, -inf
  %7541 = vmax.xlane.f32.xlu0 %v7540
  %v7542 = vpop.xlane.xlu0 %7541
  %v7543 = vsel %vm897, %v7515, -inf
  %7544 = vmax.xlane.f32.xlu0 %v7543
  %v7545 = vpop.xlane.xlu0 %7544
  %v7546 = vsel %vm897, %v7520, -inf
  %7547 = vmax.xlane.f32.xlu0 %v7546
  %v7548 = vpop.xlane.xlu0 %7547
  %v7549 = vsel %vm897, %v7525, -inf
  %7550 = vmax.xlane.f32.xlu0 %v7549
  %v7551 = vpop.xlane.xlu0 %7550
  %v7552 = vsub.f32 %v7490, %v7530
  %v7553 = vsub.f32 %v7495, %v7533
  %v7554 = vsub.f32 %v7500, %v7536
  %v7555 = vsub.f32 %v7505, %v7539
  %v7556 = vsub.f32 %v7510, %v7542
  %v7557 = vsub.f32 %v7515, %v7545
  %v7558 = vsub.f32 %v7520, %v7548
  %v7559 = vsub.f32 %v7525, %v7551
  %v7560 = vmul.f32 %v7552, 1.442695
  %v7561 = vpow.pop %v7560
  %v7562 = vmul.f32 %v7553, 1.442695
  %v7563 = vpow.pop %v7562
  %v7564 = vmul.f32 %v7554, 1.442695
  %v7565 = vpow.pop %v7564
  %v7566 = vmul.f32 %v7555, 1.442695
  %v7567 = vpow.pop %v7566
  %v7568 = vmul.f32 %v7556, 1.442695
  %v7569 = vpow.pop %v7568
  %v7570 = vmul.f32 %v7557, 1.442695
  %v7571 = vpow.pop %v7570
  %v7572 = vmul.f32 %v7558, 1.442695
  %v7573 = vpow.pop %v7572
  %v7574 = vmul.f32 %v7559, 1.442695
  %v7575 = vpow.pop %v7574
  %v7576 = vsel %vm897, %v7561, 0.0
  %7577 = vadd.xlane.f32.xlu0 %v7576
  %v7578 = vpop.xlane.xlu0 %7577
  %v7579 = vsel %vm897, %v7563, 0.0
  %7580 = vadd.xlane.f32.xlu0 %v7579
  %v7581 = vpop.xlane.xlu0 %7580
  %v7582 = vsel %vm897, %v7565, 0.0
  %7583 = vadd.xlane.f32.xlu0 %v7582
  %v7584 = vpop.xlane.xlu0 %7583
  %v7585 = vsel %vm897, %v7567, 0.0
  %7586 = vadd.xlane.f32.xlu0 %v7585
  %v7587 = vpop.xlane.xlu0 %7586
  %v7588 = vsel %vm897, %v7569, 0.0
  %7589 = vadd.xlane.f32.xlu0 %v7588
  %v7590 = vpop.xlane.xlu0 %7589
  %v7591 = vsel %vm897, %v7571, 0.0
  %7592 = vadd.xlane.f32.xlu0 %v7591
  %v7593 = vpop.xlane.xlu0 %7592
  %v7594 = vsel %vm897, %v7573, 0.0
  %7595 = vadd.xlane.f32.xlu0 %v7594
  %v7596 = vpop.xlane.xlu0 %7595
  %v7597 = vsel %vm897, %v7575, 0.0
  %7598 = vadd.xlane.f32.xlu0 %v7597
  %v7599 = vpop.xlane.xlu0 %7598
  %v7600 = vrcp.pop %v7578
  %v7601 = vmul.f32 %v7561, %v7600
  %v7602 = vrcp.pop %v7581
  %v7603 = vmul.f32 %v7563, %v7602
  %v7604 = vrcp.pop %v7584
  %v7605 = vmul.f32 %v7565, %v7604
  %v7606 = vrcp.pop %v7587
  %v7607 = vmul.f32 %v7567, %v7606
  %v7608 = vrcp.pop %v7590
  %v7609 = vmul.f32 %v7569, %v7608
  %v7610 = vrcp.pop %v7593
  %v7611 = vmul.f32 %v7571, %v7610
  %v7612 = vrcp.pop %v7596
  %v7613 = vmul.f32 %v7573, %v7612
  %v7614 = vrcp.pop %v7599
  %v7615 = vmul.f32 %v7575, %v7614
  %v7617 = vsel %vm897, %v7601, 0
  %v7620 = vsel %vm897, %v7603, 0
  %v7623 = vsel %vm897, %v7605, 0
  %v7626 = vsel %vm897, %v7607, 0
  %v7629 = vsel %vm897, %v7609, 0
  %v7632 = vsel %vm897, %v7611, 0
  %v7635 = vsel %vm897, %v7613, 0
  %v7638 = vsel %vm897, %v7615, 0
  %7640 = vmatprep.subr.mxu0 0.0
  %7641 = vmatpush1.msra.mxu0 %v7337
  %7642 = vmatprep.subr.mxu0 0.0
  %7643 = vmatpush1.msra.mxu0 %v7342
  %7644 = vmatprep.subr.mxu0 0.0
  %7645 = vmatpush1.msra.mxu0 %v7347
  %7646 = vmatprep.subr.mxu0 0.0
  %7647 = vmatpush1.msra.mxu0 %v7352
  %7648 = vmatprep.subr.mxu0 0.0
  %7649 = vmatpush1.msra.mxu0 %v7357
  %7650 = vmatprep.subr.mxu0 0.0
  %7651 = vmatpush1.msra.mxu0 %v7362
  %7652 = vmatprep.subr.mxu0 0.0
  %7653 = vmatpush1.msra.mxu0 %v7367
  %7654 = vmatprep.subr.mxu0 0.0
  %7655 = vmatpush1.msra.mxu0 %v7372
  %7656 = vmatprep.subr.mxu0 0.0
  %7657 = vmatpush1.msra.mxu0 0.0
  %7658 = vmatprep.subr.mxu0 0.0
  %7659 = vmatpush1.msra.mxu0 0.0
  %7660 = vmatprep.subr.mxu0 0.0
  %7661 = vmatpush1.msra.mxu0 0.0
  %7662 = vmatprep.subr.mxu0 0.0
  %7663 = vmatpush1.msra.mxu0 0.0
  %7664 = vmatprep.subr.mxu0 0.0
  %7665 = vmatpush1.msra.mxu0 0.0
  %7666 = vmatprep.subr.mxu0 0.0
  %7667 = vmatpush1.msra.mxu0 0.0
  %7668 = vmatprep.subr.mxu0 0.0
  %7669 = vmatpush1.msra.mxu0 0.0
  %7670 = vmatprep.subr.mxu0 0.0
  %7671 = vmatpush1.msra.mxu0 0.0
  %7672 = vmatprep.subr.mxu0 0.0
  %7673 = vmatpush1.msra.mxu0 0.0
  %7674 = vmatprep.subr.mxu0 0.0
  %7675 = vmatpush1.msra.mxu0 0.0
  %7676 = vmatprep.subr.mxu0 0.0
  %7677 = vmatpush1.msra.mxu0 0.0
  %7678 = vmatprep.subr.mxu0 0.0
  %7679 = vmatpush1.msra.mxu0 0.0
  %7680 = vmatprep.subr.mxu0 0.0
  %7681 = vmatpush1.msra.mxu0 0.0
  %7682 = vmatprep.subr.mxu0 0.0
  %7683 = vmatpush1.msra.mxu0 0.0
  %7684 = vmatprep.subr.mxu0 0.0
  %7685 = vmatpush1.msra.mxu0 0.0
  %7686 = vmatprep.subr.mxu0 0.0
  %7687 = vmatpush1.msra.mxu0 0.0
  %7688 = vmatprep.subr.mxu0 0.0
  %7689 = vmatpush1.msra.mxu0 0.0
  %7690 = vmatprep.subr.mxu0 0.0
  %7691 = vmatpush1.msra.mxu0 0.0
  %7692 = vmatprep.subr.mxu0 0.0
  %7693 = vmatpush1.msra.mxu0 0.0
  %7694 = vmatprep.subr.mxu0 0.0
  %7695 = vmatpush1.msra.mxu0 0.0
  %7696 = vmatprep.subr.mxu0 0.0
  %7697 = vmatpush1.msra.mxu0 0.0
  %7698 = vmatprep.subr.mxu0 0.0
  %7699 = vmatpush1.msra.mxu0 0.0
  %7700 = vmatprep.subr.mxu0 0.0
  %7701 = vmatpush1.msra.mxu0 0.0
  %7702 = vmatprep.subr.mxu0 0.0
  %7703 = vmatpush1.msra.mxu0 0.0
  %7704 = vmatprep.mubr.f32.mxu0 0.0
  %7705 = vmatmul.mubr.f32.gmra.mrb[0].mxu0 %v7617
  %v7706 = vpop.f32.mrb[0].mxu0
  %v7707 = vadd.f32 0.0, %v7706
  %v7708 = vpop.f32.mrb[0].mxu0
  %7709 = vmatprep.mubr.f32.mxu0 0.0
  %7710 = vmatmul.mubr.f32.gmra.mrb[0].mxu0 %v7620
  %v7711 = vpop.f32.mrb[0].mxu0
  %v7712 = vadd.f32 0.0, %v7711
  %v7713 = vpop.f32.mrb[0].mxu0
  %7714 = vmatprep.mubr.f32.mxu0 0.0
  %7715 = vmatmul.mubr.f32.gmra.mrb[0].mxu0 %v7623
  %v7716 = vpop.f32.mrb[0].mxu0
  %v7717 = vadd.f32 0.0, %v7716
  %v7718 = vpop.f32.mrb[0].mxu0
  %7719 = vmatprep.mubr.f32.mxu0 0.0
  %7720 = vmatmul.mubr.f32.gmra.mrb[0].mxu0 %v7626
  %v7721 = vpop.f32.mrb[0].mxu0
  %v7722 = vadd.f32 0.0, %v7721
  %v7723 = vpop.f32.mrb[0].mxu0
  %7724 = vmatprep.mubr.f32.mxu0 0.0
  %7725 = vmatmul.mubr.f32.gmra.mrb[0].mxu0 %v7629
  %v7726 = vpop.f32.mrb[0].mxu0
  %v7727 = vadd.f32 0.0, %v7726
  %v7728 = vpop.f32.mrb[0].mxu0
  %7729 = vmatprep.mubr.f32.mxu0 0.0
  %7730 = vmatmul.mubr.f32.gmra.mrb[0].mxu0 %v7632
  %v7731 = vpop.f32.mrb[0].mxu0
  %v7732 = vadd.f32 0.0, %v7731
  %v7733 = vpop.f32.mrb[0].mxu0
  %7734 = vmatprep.mubr.f32.mxu0 0.0
  %7735 = vmatmul.mubr.f32.gmra.mrb[0].mxu0 %v7635
  %v7736 = vpop.f32.mrb[0].mxu0
  %v7737 = vadd.f32 0.0, %v7736
  %v7738 = vpop.f32.mrb[0].mxu0
  %7739 = vmatprep.mubr.f32.mxu0 0.0
  %7740 = vmatmul.mubr.f32.gmra.mrb[0].mxu0 %v7638
  %v7741 = vpop.f32.mrb[0].mxu0
  %v7742 = vadd.f32 0.0, %v7741
  %v7743 = vpop.f32.mrb[0].mxu0
  %7744 = vdwg.mxu0
  %s7745 = scalar_lea.vmem %s4, 56
  %v7746 = vld [vmem:[%s7745] sm:$0xff]
  %v7748 = vsel %vm743, %v7707, 0
  %v7751 = vsel %vm743, %v7712, 0
  %v7754 = vsel %vm743, %v7717, 0
  %v7757 = vsel %vm743, %v7722, 0
  %v7760 = vsel %vm743, %v7727, 0
  %v7763 = vsel %vm743, %v7732, 0
  %v7766 = vsel %vm743, %v7737, 0
  %v7769 = vsel %vm743, %v7742, 0
  %7771 = vmatprep.subr.mxu0 0.0
  %7772 = vmatpush1.msra.mxu0 %v7746
  %7773 = vmatprep.subr.mxu0 0.0
  %7774 = vmatpush1.msra.mxu0 0.0
  %7775 = vmatprep.subr.mxu0 0.0
  %7776 = vmatpush1.msra.mxu0 0.0
  %7777 = vmatprep.subr.mxu0 0.0
  %7778 = vmatpush1.msra.mxu0 0.0
  %7779 = vmatprep.subr.mxu0 0.0
  %7780 = vmatpush1.msra.mxu0 0.0
  %7781 = vmatprep.subr.mxu0 0.0
  %7782 = vmatpush1.msra.mxu0 0.0
  %7783 = vmatprep.subr.mxu0 0.0
  %7784 = vmatpush1.msra.mxu0 0.0
  %7785 = vmatprep.subr.mxu0 0.0
  %7786 = vmatpush1.msra.mxu0 0.0
  %7787 = vmatprep.subr.mxu0 0.0
  %7788 = vmatpush1.msra.mxu0 0.0
  %7789 = vmatprep.subr.mxu0 0.0
  %7790 = vmatpush1.msra.mxu0 0.0
  %7791 = vmatprep.subr.mxu0 0.0
  %7792 = vmatpush1.msra.mxu0 0.0
  %7793 = vmatprep.subr.mxu0 0.0
  %7794 = vmatpush1.msra.mxu0 0.0
  %7795 = vmatprep.subr.mxu0 0.0
  %7796 = vmatpush1.msra.mxu0 0.0
  %7797 = vmatprep.subr.mxu0 0.0
  %7798 = vmatpush1.msra.mxu0 0.0
  %7799 = vmatprep.subr.mxu0 0.0
  %7800 = vmatpush1.msra.mxu0 0.0
  %7801 = vmatprep.subr.mxu0 0.0
  %7802 = vmatpush1.msra.mxu0 0.0
  %7803 = vmatprep.subr.mxu0 0.0
  %7804 = vmatpush1.msra.mxu0 0.0
  %7805 = vmatprep.subr.mxu0 0.0
  %7806 = vmatpush1.msra.mxu0 0.0
  %7807 = vmatprep.subr.mxu0 0.0
  %7808 = vmatpush1.msra.mxu0 0.0
  %7809 = vmatprep.subr.mxu0 0.0
  %7810 = vmatpush1.msra.mxu0 0.0
  %7811 = vmatprep.subr.mxu0 0.0
  %7812 = vmatpush1.msra.mxu0 0.0
  %7813 = vmatprep.subr.mxu0 0.0
  %7814 = vmatpush1.msra.mxu0 0.0
  %7815 = vmatprep.subr.mxu0 0.0
  %7816 = vmatpush1.msra.mxu0 0.0
  %7817 = vmatprep.subr.mxu0 0.0
  %7818 = vmatpush1.msra.mxu0 0.0
  %7819 = vmatprep.subr.mxu0 0.0
  %7820 = vmatpush1.msra.mxu0 0.0
  %7821 = vmatprep.subr.mxu0 0.0
  %7822 = vmatpush1.msra.mxu0 0.0
  %7823 = vmatprep.subr.mxu0 0.0
  %7824 = vmatpush1.msra.mxu0 0.0
  %7825 = vmatprep.subr.mxu0 0.0
  %7826 = vmatpush1.msra.mxu0 0.0
  %7827 = vmatprep.subr.mxu0 0.0
  %7828 = vmatpush1.msra.mxu0 0.0
  %7829 = vmatprep.subr.mxu0 0.0
  %7830 = vmatpush1.msra.mxu0 0.0
  %7831 = vmatprep.subr.mxu0 0.0
  %7832 = vmatpush1.msra.mxu0 0.0
  %7833 = vmatprep.subr.mxu0 0.0
  %7834 = vmatpush1.msra.mxu0 0.0
  %7835 = vmatprep.mubr.f32.mxu0 0.0
  %7836 = vmatmul.mubr.f32.gmra.mrb[0].mxu0 %v7748
  %v7837 = vpop.f32.mrb[0].mxu0
  %v7838 = vadd.f32 0.0, %v7837
  %v7839 = vpop.f32.mrb[0].mxu0
  %7840 = vmatprep.mubr.f32.mxu0 0.0
  %7841 = vmatmul.mubr.f32.gmra.mrb[0].mxu0 %v7751
  %v7842 = vpop.f32.mrb[0].mxu0
  %v7843 = vadd.f32 0.0, %v7842
  %v7844 = vpop.f32.mrb[0].mxu0
  %7845 = vmatprep.mubr.f32.mxu0 0.0
  %7846 = vmatmul.mubr.f32.gmra.mrb[0].mxu0 %v7754
  %v7847 = vpop.f32.mrb[0].mxu0
  %v7848 = vadd.f32 0.0, %v7847
  %v7849 = vpop.f32.mrb[0].mxu0
  %7850 = vmatprep.mubr.f32.mxu0 0.0
  %7851 = vmatmul.mubr.f32.gmra.mrb[0].mxu0 %v7757
  %v7852 = vpop.f32.mrb[0].mxu0
  %v7853 = vadd.f32 0.0, %v7852
  %v7854 = vpop.f32.mrb[0].mxu0
  %7855 = vmatprep.mubr.f32.mxu0 0.0
  %7856 = vmatmul.mubr.f32.gmra.mrb[0].mxu0 %v7760
  %v7857 = vpop.f32.mrb[0].mxu0
  %v7858 = vadd.f32 0.0, %v7857
  %v7859 = vpop.f32.mrb[0].mxu0
  %7860 = vmatprep.mubr.f32.mxu0 0.0
  %7861 = vmatmul.mubr.f32.gmra.mrb[0].mxu0 %v7763
  %v7862 = vpop.f32.mrb[0].mxu0
  %v7863 = vadd.f32 0.0, %v7862
  %v7864 = vpop.f32.mrb[0].mxu0
  %7865 = vmatprep.mubr.f32.mxu0 0.0
  %7866 = vmatmul.mubr.f32.gmra.mrb[0].mxu0 %v7766
  %v7867 = vpop.f32.mrb[0].mxu0
  %v7868 = vadd.f32 0.0, %v7867
  %v7869 = vpop.f32.mrb[0].mxu0
  %7870 = vmatprep.mubr.f32.mxu0 0.0
  %7871 = vmatmul.mubr.f32.gmra.mrb[0].mxu0 %v7769
  %v7872 = vpop.f32.mrb[0].mxu0
  %v7873 = vadd.f32 0.0, %v7872
  %v7874 = vpop.f32.mrb[0].mxu0
  %7875 = vdwg.mxu0
  %v7876 = vadd.f32 %v7013, %v7838
  %v7877 = vadd.f32 %v7014, %v7843
  %v7878 = vadd.f32 %v7015, %v7848
  %v7879 = vadd.f32 %v7016, %v7853
  %v7880 = vadd.f32 %v7017, %v7858
  %v7881 = vadd.f32 %v7018, %v7863
  %v7882 = vadd.f32 %v7019, %v7868
  %v7883 = vadd.f32 %v7020, %v7873
  %v7885 = vlaneseq
  %v7886 = vshrl.u32 %v7885, 7
  %v7887 = vsub.s32 0, %v7886
  %v7888 = vrot.slane %v4413, %v7887
  %v7890 = vadd.f32 %v7876, %v7888
  %v7891 = vadd.f32 %v7877, %v7888
  %v7892 = vadd.f32 %v7878, %v7888
  %v7893 = vadd.f32 %v7879, %v7888
  %v7894 = vadd.f32 %v7880, %v7888
  %v7895 = vadd.f32 %v7881, %v7888
  %v7896 = vadd.f32 %v7882, %v7888
  %v7897 = vadd.f32 %v7883, %v7888
  %v7898 = vadd.f32 %v4404, %v7890
  %v7899 = vadd.f32 %v4405, %v7891
  %v7900 = vadd.f32 %v4406, %v7892
  %v7901 = vadd.f32 %v4407, %v7893
  %v7902 = vadd.f32 %v4408, %v7894
  %v7903 = vadd.f32 %v4409, %v7895
  %v7904 = vadd.f32 %v4410, %v7896
  %v7905 = vadd.f32 %v4411, %v7897
  %v7906 = vsel %vm377, %v7898, 0.0
  %7907 = vadd.xlane.f32.xlu0 %v7906
  %v7908 = vpop.xlane.xlu0 %7907
  %v7909 = vsel %vm377, %v7899, 0.0
  %7910 = vadd.xlane.f32.xlu0 %v7909
  %v7911 = vpop.xlane.xlu0 %7910
  %v7912 = vsel %vm377, %v7900, 0.0
  %7913 = vadd.xlane.f32.xlu0 %v7912
  %v7914 = vpop.xlane.xlu0 %7913
  %v7915 = vsel %vm377, %v7901, 0.0
  %7916 = vadd.xlane.f32.xlu0 %v7915
  %v7917 = vpop.xlane.xlu0 %7916
  %v7918 = vsel %vm377, %v7902, 0.0
  %7919 = vadd.xlane.f32.xlu0 %v7918
  %v7920 = vpop.xlane.xlu0 %7919
  %v7921 = vsel %vm377, %v7903, 0.0
  %7922 = vadd.xlane.f32.xlu0 %v7921
  %v7923 = vpop.xlane.xlu0 %7922
  %v7924 = vsel %vm377, %v7904, 0.0
  %7925 = vadd.xlane.f32.xlu0 %v7924
  %v7926 = vpop.xlane.xlu0 %7925
  %v7927 = vsel %vm377, %v7905, 0.0
  %7928 = vadd.xlane.f32.xlu0 %v7927
  %v7929 = vpop.xlane.xlu0 %7928
  %v7930 = vmul.f32 %v7908, %v3872
  %v7931 = vmul.f32 %v7911, %v3872
  %v7932 = vmul.f32 %v7914, %v3872
  %v7933 = vmul.f32 %v7917, %v3872
  %v7934 = vmul.f32 %v7920, %v3872
  %v7935 = vmul.f32 %v7923, %v3872
  %v7936 = vmul.f32 %v7926, %v3872
  %v7937 = vmul.f32 %v7929, %v3872
  %v7938 = vsub.f32 %v7898, %v7930
  %v7939 = vsub.f32 %v7899, %v7931
  %v7940 = vsub.f32 %v7900, %v7932
  %v7941 = vsub.f32 %v7901, %v7933
  %v7942 = vsub.f32 %v7902, %v7934
  %v7943 = vsub.f32 %v7903, %v7935
  %v7944 = vsub.f32 %v7904, %v7936
  %v7945 = vsub.f32 %v7905, %v7937
  %v7946 = vmul.f32 %v7938, %v7938
  %v7947 = vmul.f32 %v7939, %v7939
  %v7948 = vmul.f32 %v7940, %v7940
  %v7949 = vmul.f32 %v7941, %v7941
  %v7950 = vmul.f32 %v7942, %v7942
  %v7951 = vmul.f32 %v7943, %v7943
  %v7952 = vmul.f32 %v7944, %v7944
  %v7953 = vmul.f32 %v7945, %v7945
  %v7954 = vsel %vm377, %v7946, 0.0
  %7955 = vadd.xlane.f32.xlu0 %v7954
  %v7956 = vpop.xlane.xlu0 %7955
  %v7957 = vsel %vm377, %v7947, 0.0
  %7958 = vadd.xlane.f32.xlu0 %v7957
  %v7959 = vpop.xlane.xlu0 %7958
  %v7960 = vsel %vm377, %v7948, 0.0
  %7961 = vadd.xlane.f32.xlu0 %v7960
  %v7962 = vpop.xlane.xlu0 %7961
  %v7963 = vsel %vm377, %v7949, 0.0
  %7964 = vadd.xlane.f32.xlu0 %v7963
  %v7965 = vpop.xlane.xlu0 %7964
  %v7966 = vsel %vm377, %v7950, 0.0
  %7967 = vadd.xlane.f32.xlu0 %v7966
  %v7968 = vpop.xlane.xlu0 %7967
  %v7969 = vsel %vm377, %v7951, 0.0
  %7970 = vadd.xlane.f32.xlu0 %v7969
  %v7971 = vpop.xlane.xlu0 %7970
  %v7972 = vsel %vm377, %v7952, 0.0
  %7973 = vadd.xlane.f32.xlu0 %v7972
  %v7974 = vpop.xlane.xlu0 %7973
  %v7975 = vsel %vm377, %v7953, 0.0
  %7976 = vadd.xlane.f32.xlu0 %v7975
  %v7977 = vpop.xlane.xlu0 %7976
  %v7978 = vmul.f32 %v7956, %v3872
  %v7979 = vmul.f32 %v7959, %v3872
  %v7980 = vmul.f32 %v7962, %v3872
  %v7981 = vmul.f32 %v7965, %v3872
  %v7982 = vmul.f32 %v7968, %v3872
  %v7983 = vmul.f32 %v7971, %v3872
  %v7984 = vmul.f32 %v7974, %v3872
  %v7985 = vmul.f32 %v7977, %v3872
  %v7986 = vadd.f32 %v7978, 1e-05
  %v7987 = vadd.f32 %v7979, 1e-05
  %v7988 = vadd.f32 %v7980, 1e-05
  %v7989 = vadd.f32 %v7981, 1e-05
  %v7990 = vadd.f32 %v7982, 1e-05
  %v7991 = vadd.f32 %v7983, 1e-05
  %v7992 = vadd.f32 %v7984, 1e-05
  %v7993 = vadd.f32 %v7985, 1e-05
  %v7994 = vrsqrt.pop %v7986
  %v7995 = vrsqrt.pop %v7987
  %v7996 = vrsqrt.pop %v7988
  %v7997 = vrsqrt.pop %v7989
  %v7998 = vrsqrt.pop %v7990
  %v7999 = vrsqrt.pop %v7991
  %v8000 = vrsqrt.pop %v7992
  %v8001 = vrsqrt.pop %v7993
  %v8002 = vmul.f32 %v7938, %v7994
  %v8003 = vmul.f32 %v7939, %v7995
  %v8004 = vmul.f32 %v7940, %v7996
  %v8005 = vmul.f32 %v7941, %v7997
  %v8006 = vmul.f32 %v7942, %v7998
  %v8007 = vmul.f32 %v7943, %v7999
  %v8008 = vmul.f32 %v7944, %v8000
  %v8009 = vmul.f32 %v7945, %v8001
  %v8011 = vlaneseq
  %v8012 = vshrl.u32 %v8011, 7
  %v8013 = vsub.s32 0, %v8012
  %v8014 = vrot.slane %v4417, %v8013
  %v8016 = vmul.f32 %v8002, %v8014
  %v8017 = vmul.f32 %v8003, %v8014
  %v8018 = vmul.f32 %v8004, %v8014
  %v8019 = vmul.f32 %v8005, %v8014
  %v8020 = vmul.f32 %v8006, %v8014
  %v8021 = vmul.f32 %v8007, %v8014
  %v8022 = vmul.f32 %v8008, %v8014
  %v8023 = vmul.f32 %v8009, %v8014
  %v8025 = vlaneseq
  %v8026 = vshrl.u32 %v8025, 7
  %v8027 = vsub.s32 0, %v8026
  %v8028 = vrot.slane %v4419, %v8027
  %v8030 = vadd.f32 %v8016, %v8028
  %v8031 = vadd.f32 %v8017, %v8028
  %v8032 = vadd.f32 %v8018, %v8028
  %v8033 = vadd.f32 %v8019, %v8028
  %v8034 = vadd.f32 %v8020, %v8028
  %v8035 = vadd.f32 %v8021, %v8028
  %v8036 = vadd.f32 %v8022, %v8028
  %v8037 = vadd.f32 %v8023, %v8028
  %s8038 = scalar_lea.vmem %s5, 32
  %v8039 = vld [vmem:[%s8038] sm:$0xff]
  %v8040 = vld [vmem:[%s8038 + $0x8] sm:$0xff]
  %v8041 = vld [vmem:[%s8038 + $0x10] sm:$0xff]
  %v8042 = vld [vmem:[%s8038 + $0x18] sm:$0xff]
  %s8043 = scalar_lea.vmem %s6, 1
  %v8044 = vld [vmem:[%s8043] sm:$0x1]
  %v8046 = vlaneseq
  %v8047 = vshrl.u32 %v8046, 7
  %v8048 = vsub.s32 0, %v8047
  %v8049 = vrot.slane %v8044, %v8048
  %v8052 = vsel %vm377, %v8030, 0
  %v8055 = vsel %vm377, %v8031, 0
  %v8058 = vsel %vm377, %v8032, 0
  %v8061 = vsel %vm377, %v8033, 0
  %v8064 = vsel %vm377, %v8034, 0
  %v8067 = vsel %vm377, %v8035, 0
  %v8070 = vsel %vm377, %v8036, 0
  %v8073 = vsel %vm377, %v8037, 0
  %8075 = vmatprep.subr.mxu0 0.0
  %8076 = vmatpush1.msra.mxu0 %v8039
  %8077 = vmatprep.subr.mxu0 0.0
  %8078 = vmatpush1.msra.mxu0 %v8040
  %8079 = vmatprep.subr.mxu0 0.0
  %8080 = vmatpush1.msra.mxu0 %v8041
  %8081 = vmatprep.subr.mxu0 0.0
  %8082 = vmatpush1.msra.mxu0 %v8042
  %8083 = vmatprep.subr.mxu0 0.0
  %8084 = vmatpush1.msra.mxu0 0.0
  %8085 = vmatprep.subr.mxu0 0.0
  %8086 = vmatpush1.msra.mxu0 0.0
  %8087 = vmatprep.subr.mxu0 0.0
  %8088 = vmatpush1.msra.mxu0 0.0
  %8089 = vmatprep.subr.mxu0 0.0
  %8090 = vmatpush1.msra.mxu0 0.0
  %8091 = vmatprep.subr.mxu0 0.0
  %8092 = vmatpush1.msra.mxu0 0.0
  %8093 = vmatprep.subr.mxu0 0.0
  %8094 = vmatpush1.msra.mxu0 0.0
  %8095 = vmatprep.subr.mxu0 0.0
  %8096 = vmatpush1.msra.mxu0 0.0
  %8097 = vmatprep.subr.mxu0 0.0
  %8098 = vmatpush1.msra.mxu0 0.0
  %8099 = vmatprep.subr.mxu0 0.0
  %8100 = vmatpush1.msra.mxu0 0.0
  %8101 = vmatprep.subr.mxu0 0.0
  %8102 = vmatpush1.msra.mxu0 0.0
  %8103 = vmatprep.subr.mxu0 0.0
  %8104 = vmatpush1.msra.mxu0 0.0
  %8105 = vmatprep.subr.mxu0 0.0
  %8106 = vmatpush1.msra.mxu0 0.0
  %8107 = vmatprep.subr.mxu0 0.0
  %8108 = vmatpush1.msra.mxu0 0.0
  %8109 = vmatprep.subr.mxu0 0.0
  %8110 = vmatpush1.msra.mxu0 0.0
  %8111 = vmatprep.subr.mxu0 0.0
  %8112 = vmatpush1.msra.mxu0 0.0
  %8113 = vmatprep.subr.mxu0 0.0
  %8114 = vmatpush1.msra.mxu0 0.0
  %8115 = vmatprep.subr.mxu0 0.0
  %8116 = vmatpush1.msra.mxu0 0.0
  %8117 = vmatprep.subr.mxu0 0.0
  %8118 = vmatpush1.msra.mxu0 0.0
  %8119 = vmatprep.subr.mxu0 0.0
  %8120 = vmatpush1.msra.mxu0 0.0
  %8121 = vmatprep.subr.mxu0 0.0
  %8122 = vmatpush1.msra.mxu0 0.0
  %8123 = vmatprep.subr.mxu0 0.0
  %8124 = vmatpush1.msra.mxu0 0.0
  %8125 = vmatprep.subr.mxu0 0.0
  %8126 = vmatpush1.msra.mxu0 0.0
  %8127 = vmatprep.subr.mxu0 0.0
  %8128 = vmatpush1.msra.mxu0 0.0
  %8129 = vmatprep.subr.mxu0 0.0
  %8130 = vmatpush1.msra.mxu0 0.0
  %8131 = vmatprep.subr.mxu0 0.0
  %8132 = vmatpush1.msra.mxu0 0.0
  %8133 = vmatprep.subr.mxu0 0.0
  %8134 = vmatpush1.msra.mxu0 0.0
  %8135 = vmatprep.subr.mxu0 0.0
  %8136 = vmatpush1.msra.mxu0 0.0
  %8137 = vmatprep.subr.mxu0 0.0
  %8138 = vmatpush1.msra.mxu0 0.0
  %8139 = vmatprep.mubr.f32.mxu0 0.0
  %8140 = vmatmul.mubr.f32.gmra.mrb[0].mxu0 %v8052
  %v8141 = vpop.f32.mrb[0].mxu0
  %v8142 = vadd.f32 %v8049, %v8141
  %v8143 = vpop.f32.mrb[0].mxu0
  %8144 = vmatprep.mubr.f32.mxu0 0.0
  %8145 = vmatmul.mubr.f32.gmra.mrb[0].mxu0 %v8055
  %v8146 = vpop.f32.mrb[0].mxu0
  %v8147 = vadd.f32 %v8049, %v8146
  %v8148 = vpop.f32.mrb[0].mxu0
  %8149 = vmatprep.mubr.f32.mxu0 0.0
  %8150 = vmatmul.mubr.f32.gmra.mrb[0].mxu0 %v8058
  %v8151 = vpop.f32.mrb[0].mxu0
  %v8152 = vadd.f32 %v8049, %v8151
  %v8153 = vpop.f32.mrb[0].mxu0
  %8154 = vmatprep.mubr.f32.mxu0 0.0
  %8155 = vmatmul.mubr.f32.gmra.mrb[0].mxu0 %v8061
  %v8156 = vpop.f32.mrb[0].mxu0
  %v8157 = vadd.f32 %v8049, %v8156
  %v8158 = vpop.f32.mrb[0].mxu0
  %8159 = vmatprep.mubr.f32.mxu0 0.0
  %8160 = vmatmul.mubr.f32.gmra.mrb[0].mxu0 %v8064
  %v8161 = vpop.f32.mrb[0].mxu0
  %v8162 = vadd.f32 %v8049, %v8161
  %v8163 = vpop.f32.mrb[0].mxu0
  %8164 = vmatprep.mubr.f32.mxu0 0.0
  %8165 = vmatmul.mubr.f32.gmra.mrb[0].mxu0 %v8067
  %v8166 = vpop.f32.mrb[0].mxu0
  %v8167 = vadd.f32 %v8049, %v8166
  %v8168 = vpop.f32.mrb[0].mxu0
  %8169 = vmatprep.mubr.f32.mxu0 0.0
  %8170 = vmatmul.mubr.f32.gmra.mrb[0].mxu0 %v8070
  %v8171 = vpop.f32.mrb[0].mxu0
  %v8172 = vadd.f32 %v8049, %v8171
  %v8173 = vpop.f32.mrb[0].mxu0
  %8174 = vmatprep.mubr.f32.mxu0 0.0
  %8175 = vmatmul.mubr.f32.gmra.mrb[0].mxu0 %v8073
  %v8176 = vpop.f32.mrb[0].mxu0
  %v8177 = vadd.f32 %v8049, %v8176
  %v8178 = vpop.f32.mrb[0].mxu0
  %8179 = vdwg.mxu0
  %v8180 = vmax.f32 %v8142, 0.0
  %v8181 = vmax.f32 %v8147, 0.0
  %v8182 = vmax.f32 %v8152, 0.0
  %v8183 = vmax.f32 %v8157, 0.0
  %v8184 = vmax.f32 %v8162, 0.0
  %v8185 = vmax.f32 %v8167, 0.0
  %v8186 = vmax.f32 %v8172, 0.0
  %v8187 = vmax.f32 %v8177, 0.0
  %s8188 = scalar_lea.vmem %s7, 64
  %v8189 = vld [vmem:[%s8188] sm:$0xff]
  %v8190 = vld [vmem:[%s8188 + $0x8] sm:$0xff]
  %v8191 = vld [vmem:[%s8188 + $0x10] sm:$0xff]
  %v8192 = vld [vmem:[%s8188 + $0x18] sm:$0xff]
  %v8193 = vld [vmem:[%s8188 + $0x20] sm:$0xff]
  %v8194 = vld [vmem:[%s8188 + $0x28] sm:$0xff]
  %v8195 = vld [vmem:[%s8188 + $0x30] sm:$0xff]
  %v8196 = vld [vmem:[%s8188 + $0x38] sm:$0xff]
  %v8198 = vlaneseq
  %v8199 = vshrl.u32 %v8198, 7
  %v8200 = vsub.s32 0, %v8199
  %v8201 = vrot.slane %v4415, %v8200
  %v8204 = vsel %vm897, %v8180, 0
  %v8207 = vsel %vm897, %v8181, 0
  %v8210 = vsel %vm897, %v8182, 0
  %v8213 = vsel %vm897, %v8183, 0
  %v8216 = vsel %vm897, %v8184, 0
  %v8219 = vsel %vm897, %v8185, 0
  %v8222 = vsel %vm897, %v8186, 0
  %v8225 = vsel %vm897, %v8187, 0
  %8227 = vmatprep.subr.mxu0 0.0
  %8228 = vmatpush1.msra.mxu0 %v8189
  %8229 = vmatprep.subr.mxu0 0.0
  %8230 = vmatpush1.msra.mxu0 %v8190
  %8231 = vmatprep.subr.mxu0 0.0
  %8232 = vmatpush1.msra.mxu0 %v8191
  %8233 = vmatprep.subr.mxu0 0.0
  %8234 = vmatpush1.msra.mxu0 %v8192
  %8235 = vmatprep.subr.mxu0 0.0
  %8236 = vmatpush1.msra.mxu0 %v8193
  %8237 = vmatprep.subr.mxu0 0.0
  %8238 = vmatpush1.msra.mxu0 %v8194
  %8239 = vmatprep.subr.mxu0 0.0
  %8240 = vmatpush1.msra.mxu0 %v8195
  %8241 = vmatprep.subr.mxu0 0.0
  %8242 = vmatpush1.msra.mxu0 %v8196
  %8243 = vmatprep.subr.mxu0 0.0
  %8244 = vmatpush1.msra.mxu0 0.0
  %8245 = vmatprep.subr.mxu0 0.0
  %8246 = vmatpush1.msra.mxu0 0.0
  %8247 = vmatprep.subr.mxu0 0.0
  %8248 = vmatpush1.msra.mxu0 0.0
  %8249 = vmatprep.subr.mxu0 0.0
  %8250 = vmatpush1.msra.mxu0 0.0
  %8251 = vmatprep.subr.mxu0 0.0
  %8252 = vmatpush1.msra.mxu0 0.0
  %8253 = vmatprep.subr.mxu0 0.0
  %8254 = vmatpush1.msra.mxu0 0.0
  %8255 = vmatprep.subr.mxu0 0.0
  %8256 = vmatpush1.msra.mxu0 0.0
  %8257 = vmatprep.subr.mxu0 0.0
  %8258 = vmatpush1.msra.mxu0 0.0
  %8259 = vmatprep.subr.mxu0 0.0
  %8260 = vmatpush1.msra.mxu0 0.0
  %8261 = vmatprep.subr.mxu0 0.0
  %8262 = vmatpush1.msra.mxu0 0.0
  %8263 = vmatprep.subr.mxu0 0.0
  %8264 = vmatpush1.msra.mxu0 0.0
  %8265 = vmatprep.subr.mxu0 0.0
  %8266 = vmatpush1.msra.mxu0 0.0
  %8267 = vmatprep.subr.mxu0 0.0
  %8268 = vmatpush1.msra.mxu0 0.0
  %8269 = vmatprep.subr.mxu0 0.0
  %8270 = vmatpush1.msra.mxu0 0.0
  %8271 = vmatprep.subr.mxu0 0.0
  %8272 = vmatpush1.msra.mxu0 0.0
  %8273 = vmatprep.subr.mxu0 0.0
  %8274 = vmatpush1.msra.mxu0 0.0
  %8275 = vmatprep.subr.mxu0 0.0
  %8276 = vmatpush1.msra.mxu0 0.0
  %8277 = vmatprep.subr.mxu0 0.0
  %8278 = vmatpush1.msra.mxu0 0.0
  %8279 = vmatprep.subr.mxu0 0.0
  %8280 = vmatpush1.msra.mxu0 0.0
  %8281 = vmatprep.subr.mxu0 0.0
  %8282 = vmatpush1.msra.mxu0 0.0
  %8283 = vmatprep.subr.mxu0 0.0
  %8284 = vmatpush1.msra.mxu0 0.0
  %8285 = vmatprep.subr.mxu0 0.0
  %8286 = vmatpush1.msra.mxu0 0.0
  %8287 = vmatprep.subr.mxu0 0.0
  %8288 = vmatpush1.msra.mxu0 0.0
  %8289 = vmatprep.subr.mxu0 0.0
  %8290 = vmatpush1.msra.mxu0 0.0
  %8291 = vmatprep.mubr.f32.mxu0 0.0
  %8292 = vmatmul.mubr.f32.gmra.mrb[0].mxu0 %v8204
  %v8293 = vpop.f32.mrb[0].mxu0
  %v8294 = vadd.f32 %v8201, %v8293
  %v8295 = vpop.f32.mrb[0].mxu0
  %8296 = vmatprep.mubr.f32.mxu0 0.0
  %8297 = vmatmul.mubr.f32.gmra.mrb[0].mxu0 %v8207
  %v8298 = vpop.f32.mrb[0].mxu0
  %v8299 = vadd.f32 %v8201, %v8298
  %v8300 = vpop.f32.mrb[0].mxu0
  %8301 = vmatprep.mubr.f32.mxu0 0.0
  %8302 = vmatmul.mubr.f32.gmra.mrb[0].mxu0 %v8210
  %v8303 = vpop.f32.mrb[0].mxu0
  %v8304 = vadd.f32 %v8201, %v8303
  %v8305 = vpop.f32.mrb[0].mxu0
  %8306 = vmatprep.mubr.f32.mxu0 0.0
  %8307 = vmatmul.mubr.f32.gmra.mrb[0].mxu0 %v8213
  %v8308 = vpop.f32.mrb[0].mxu0
  %v8309 = vadd.f32 %v8201, %v8308
  %v8310 = vpop.f32.mrb[0].mxu0
  %8311 = vmatprep.mubr.f32.mxu0 0.0
  %8312 = vmatmul.mubr.f32.gmra.mrb[0].mxu0 %v8216
  %v8313 = vpop.f32.mrb[0].mxu0
  %v8314 = vadd.f32 %v8201, %v8313
  %v8315 = vpop.f32.mrb[0].mxu0
  %8316 = vmatprep.mubr.f32.mxu0 0.0
  %8317 = vmatmul.mubr.f32.gmra.mrb[0].mxu0 %v8219
  %v8318 = vpop.f32.mrb[0].mxu0
  %v8319 = vadd.f32 %v8201, %v8318
  %v8320 = vpop.f32.mrb[0].mxu0
  %8321 = vmatprep.mubr.f32.mxu0 0.0
  %8322 = vmatmul.mubr.f32.gmra.mrb[0].mxu0 %v8222
  %v8323 = vpop.f32.mrb[0].mxu0
  %v8324 = vadd.f32 %v8201, %v8323
  %v8325 = vpop.f32.mrb[0].mxu0
  %8326 = vmatprep.mubr.f32.mxu0 0.0
  %8327 = vmatmul.mubr.f32.gmra.mrb[0].mxu0 %v8225
  %v8328 = vpop.f32.mrb[0].mxu0
  %v8329 = vadd.f32 %v8201, %v8328
  %v8330 = vpop.f32.mrb[0].mxu0
  %8331 = vdwg.mxu0
  %v8332 = vadd.f32 %v8030, %v8294
  %v8333 = vadd.f32 %v8031, %v8299
  %v8334 = vadd.f32 %v8032, %v8304
  %v8335 = vadd.f32 %v8033, %v8309
  %v8336 = vadd.f32 %v8034, %v8314
  %v8337 = vadd.f32 %v8035, %v8319
  %v8338 = vadd.f32 %v8036, %v8324
  %v8339 = vadd.f32 %v8037, %v8329
  %v8340 = vsel %vm377, %v8332, 0.0
  %8341 = vadd.xlane.f32.xlu0 %v8340
  %v8342 = vpop.xlane.xlu0 %8341
  %v8343 = vsel %vm377, %v8333, 0.0
  %8344 = vadd.xlane.f32.xlu0 %v8343
  %v8345 = vpop.xlane.xlu0 %8344
  %v8346 = vsel %vm377, %v8334, 0.0
  %8347 = vadd.xlane.f32.xlu0 %v8346
  %v8348 = vpop.xlane.xlu0 %8347
  %v8349 = vsel %vm377, %v8335, 0.0
  %8350 = vadd.xlane.f32.xlu0 %v8349
  %v8351 = vpop.xlane.xlu0 %8350
  %v8352 = vsel %vm377, %v8336, 0.0
  %8353 = vadd.xlane.f32.xlu0 %v8352
  %v8354 = vpop.xlane.xlu0 %8353
  %v8355 = vsel %vm377, %v8337, 0.0
  %8356 = vadd.xlane.f32.xlu0 %v8355
  %v8357 = vpop.xlane.xlu0 %8356
  %v8358 = vsel %vm377, %v8338, 0.0
  %8359 = vadd.xlane.f32.xlu0 %v8358
  %v8360 = vpop.xlane.xlu0 %8359
  %v8361 = vsel %vm377, %v8339, 0.0
  %8362 = vadd.xlane.f32.xlu0 %v8361
  %v8363 = vpop.xlane.xlu0 %8362
  %v8364 = vmul.f32 %v8342, %v3872
  %v8365 = vmul.f32 %v8345, %v3872
  %v8366 = vmul.f32 %v8348, %v3872
  %v8367 = vmul.f32 %v8351, %v3872
  %v8368 = vmul.f32 %v8354, %v3872
  %v8369 = vmul.f32 %v8357, %v3872
  %v8370 = vmul.f32 %v8360, %v3872
  %v8371 = vmul.f32 %v8363, %v3872
  %v8372 = vsub.f32 %v8332, %v8364
  %v8373 = vsub.f32 %v8333, %v8365
  %v8374 = vsub.f32 %v8334, %v8366
  %v8375 = vsub.f32 %v8335, %v8367
  %v8376 = vsub.f32 %v8336, %v8368
  %v8377 = vsub.f32 %v8337, %v8369
  %v8378 = vsub.f32 %v8338, %v8370
  %v8379 = vsub.f32 %v8339, %v8371
  %v8380 = vmul.f32 %v8372, %v8372
  %v8381 = vmul.f32 %v8373, %v8373
  %v8382 = vmul.f32 %v8374, %v8374
  %v8383 = vmul.f32 %v8375, %v8375
  %v8384 = vmul.f32 %v8376, %v8376
  %v8385 = vmul.f32 %v8377, %v8377
  %v8386 = vmul.f32 %v8378, %v8378
  %v8387 = vmul.f32 %v8379, %v8379
  %v8388 = vsel %vm377, %v8380, 0.0
  %8389 = vadd.xlane.f32.xlu0 %v8388
  %v8390 = vpop.xlane.xlu0 %8389
  %v8391 = vsel %vm377, %v8381, 0.0
  %8392 = vadd.xlane.f32.xlu0 %v8391
  %v8393 = vpop.xlane.xlu0 %8392
  %v8394 = vsel %vm377, %v8382, 0.0
  %8395 = vadd.xlane.f32.xlu0 %v8394
  %v8396 = vpop.xlane.xlu0 %8395
  %v8397 = vsel %vm377, %v8383, 0.0
  %8398 = vadd.xlane.f32.xlu0 %v8397
  %v8399 = vpop.xlane.xlu0 %8398
  %v8400 = vsel %vm377, %v8384, 0.0
  %8401 = vadd.xlane.f32.xlu0 %v8400
  %v8402 = vpop.xlane.xlu0 %8401
  %v8403 = vsel %vm377, %v8385, 0.0
  %8404 = vadd.xlane.f32.xlu0 %v8403
  %v8405 = vpop.xlane.xlu0 %8404
  %v8406 = vsel %vm377, %v8386, 0.0
  %8407 = vadd.xlane.f32.xlu0 %v8406
  %v8408 = vpop.xlane.xlu0 %8407
  %v8409 = vsel %vm377, %v8387, 0.0
  %8410 = vadd.xlane.f32.xlu0 %v8409
  %v8411 = vpop.xlane.xlu0 %8410
  %v8412 = vmul.f32 %v8390, %v3872
  %v8413 = vmul.f32 %v8393, %v3872
  %v8414 = vmul.f32 %v8396, %v3872
  %v8415 = vmul.f32 %v8399, %v3872
  %v8416 = vmul.f32 %v8402, %v3872
  %v8417 = vmul.f32 %v8405, %v3872
  %v8418 = vmul.f32 %v8408, %v3872
  %v8419 = vmul.f32 %v8411, %v3872
  %v8420 = vadd.f32 %v8412, 1e-05
  %v8421 = vadd.f32 %v8413, 1e-05
  %v8422 = vadd.f32 %v8414, 1e-05
  %v8423 = vadd.f32 %v8415, 1e-05
  %v8424 = vadd.f32 %v8416, 1e-05
  %v8425 = vadd.f32 %v8417, 1e-05
  %v8426 = vadd.f32 %v8418, 1e-05
  %v8427 = vadd.f32 %v8419, 1e-05
  %v8428 = vrsqrt.pop %v8420
  %v8429 = vrsqrt.pop %v8421
  %v8430 = vrsqrt.pop %v8422
  %v8431 = vrsqrt.pop %v8423
  %v8432 = vrsqrt.pop %v8424
  %v8433 = vrsqrt.pop %v8425
  %v8434 = vrsqrt.pop %v8426
  %v8435 = vrsqrt.pop %v8427
  %v8436 = vmul.f32 %v8372, %v8428
  %v8437 = vmul.f32 %v8373, %v8429
  %v8438 = vmul.f32 %v8374, %v8430
  %v8439 = vmul.f32 %v8375, %v8431
  %v8440 = vmul.f32 %v8376, %v8432
  %v8441 = vmul.f32 %v8377, %v8433
  %v8442 = vmul.f32 %v8378, %v8434
  %v8443 = vmul.f32 %v8379, %v8435
  %v8445 = vlaneseq
  %v8446 = vshrl.u32 %v8445, 7
  %v8447 = vsub.s32 0, %v8446
  %v8448 = vrot.slane %v4421, %v8447
  %v8450 = vmul.f32 %v8436, %v8448
  %v8451 = vmul.f32 %v8437, %v8448
  %v8452 = vmul.f32 %v8438, %v8448
  %v8453 = vmul.f32 %v8439, %v8448
  %v8454 = vmul.f32 %v8440, %v8448
  %v8455 = vmul.f32 %v8441, %v8448
  %v8456 = vmul.f32 %v8442, %v8448
  %v8457 = vmul.f32 %v8443, %v8448
  %v8459 = vlaneseq
  %v8460 = vshrl.u32 %v8459, 7
  %v8461 = vsub.s32 0, %v8460
  %v8462 = vrot.slane %v4423, %v8461
  %v8464 = vadd.f32 %v8450, %v8462
  %v8465 = vadd.f32 %v8451, %v8462
  %v8466 = vadd.f32 %v8452, %v8462
  %v8467 = vadd.f32 %v8453, %v8462
  %v8468 = vadd.f32 %v8454, %v8462
  %v8469 = vadd.f32 %v8455, %v8462
  %v8470 = vadd.f32 %v8456, %v8462
  %v8471 = vadd.f32 %v8457, %v8462
  %v8472 = vmul.f32 %v8464, 0.5
  %v8473 = vmul.f32 %v8465, 0.5
  %v8474 = vmul.f32 %v8466, 0.5
  %v8475 = vmul.f32 %v8467, 0.5
  %v8476 = vmul.f32 %v8468, 0.5
  %v8477 = vmul.f32 %v8469, 0.5
  %v8478 = vmul.f32 %v8470, 0.5
  %v8479 = vmul.f32 %v8471, 0.5
  %v8480 = vmul.f32 %v8464, 0.70710677
  %v8481 = vmul.f32 %v8465, 0.70710677
  %v8482 = vmul.f32 %v8466, 0.70710677
  %v8483 = vmul.f32 %v8467, 0.70710677
  %v8484 = vmul.f32 %v8468, 0.70710677
  %v8485 = vmul.f32 %v8469, 0.70710677
  %v8486 = vmul.f32 %v8470, 0.70710677
  %v8487 = vmul.f32 %v8471, 0.70710677
  %vm8488 = vcmp.lt.f32.partialorder %v8480, 0.0
  %vm8489 = vcmp.lt.f32.partialorder %v8481, 0.0
  %vm8490 = vcmp.lt.f32.partialorder %v8482, 0.0
  %vm8491 = vcmp.lt.f32.partialorder %v8483, 0.0
  %vm8492 = vcmp.lt.f32.partialorder %v8484, 0.0
  %vm8493 = vcmp.lt.f32.partialorder %v8485, 0.0
  %vm8494 = vcmp.lt.f32.partialorder %v8486, 0.0
  %vm8495 = vcmp.lt.f32.partialorder %v8487, 0.0
  %v8496 = vsel %vm8488, -1.0, 1.0
  %v8497 = vsel %vm8489, -1.0, 1.0
  %v8498 = vsel %vm8490, -1.0, 1.0
  %v8499 = vsel %vm8491, -1.0, 1.0
  %v8500 = vsel %vm8492, -1.0, 1.0
  %v8501 = vsel %vm8493, -1.0, 1.0
  %v8502 = vsel %vm8494, -1.0, 1.0
  %v8503 = vsel %vm8495, -1.0, 1.0
  %v8504 = vand.u32 2147483647, %v8480
  %v8505 = vand.u32 2147483647, %v8481
  %v8506 = vand.u32 2147483647, %v8482
  %v8507 = vand.u32 2147483647, %v8483
  %v8508 = vand.u32 2147483647, %v8484
  %v8509 = vand.u32 2147483647, %v8485
  %v8510 = vand.u32 2147483647, %v8486
  %v8511 = vand.u32 2147483647, %v8487
  %v8512 = vmul.f32 %v8504, 0.3275911
  %v8513 = vmul.f32 %v8505, 0.3275911
  %v8514 = vmul.f32 %v8506, 0.3275911
  %v8515 = vmul.f32 %v8507, 0.3275911
  %v8516 = vmul.f32 %v8508, 0.3275911
  %v8517 = vmul.f32 %v8509, 0.3275911
  %v8518 = vmul.f32 %v8510, 0.3275911
  %v8519 = vmul.f32 %v8511, 0.3275911
  %v8520 = vadd.f32 %v8512, 1.0
  %v8521 = vadd.f32 %v8513, 1.0
  %v8522 = vadd.f32 %v8514, 1.0
  %v8523 = vadd.f32 %v8515, 1.0
  %v8524 = vadd.f32 %v8516, 1.0
  %v8525 = vadd.f32 %v8517, 1.0
  %v8526 = vadd.f32 %v8518, 1.0
  %v8527 = vadd.f32 %v8519, 1.0
  %v8528 = vrcp.pop %v8520
  %v8529 = vmul.f32 1.0, %v8528
  %v8530 = vrcp.pop %v8521
  %v8531 = vmul.f32 1.0, %v8530
  %v8532 = vrcp.pop %v8522
  %v8533 = vmul.f32 1.0, %v8532
  %v8534 = vrcp.pop %v8523
  %v8535 = vmul.f32 1.0, %v8534
  %v8536 = vrcp.pop %v8524
  %v8537 = vmul.f32 1.0, %v8536
  %v8538 = vrcp.pop %v8525
  %v8539 = vmul.f32 1.0, %v8538
  %v8540 = vrcp.pop %v8526
  %v8541 = vmul.f32 1.0, %v8540
  %v8542 = vrcp.pop %v8527
  %v8543 = vmul.f32 1.0, %v8542
  %v8544 = vmul.f32 %v8529, 1.0614054
  %v8545 = vmul.f32 %v8531, 1.0614054
  %v8546 = vmul.f32 %v8533, 1.0614054
  %v8547 = vmul.f32 %v8535, 1.0614054
  %v8548 = vmul.f32 %v8537, 1.0614054
  %v8549 = vmul.f32 %v8539, 1.0614054
  %v8550 = vmul.f32 %v8541, 1.0614054
  %v8551 = vmul.f32 %v8543, 1.0614054
  %v8552 = vadd.f32 %v8544, -1.4531521
  %v8553 = vadd.f32 %v8545, -1.4531521
  %v8554 = vadd.f32 %v8546, -1.4531521
  %v8555 = vadd.f32 %v8547, -1.4531521
  %v8556 = vadd.f32 %v8548, -1.4531521
  %v8557 = vadd.f32 %v8549, -1.4531521
  %v8558 = vadd.f32 %v8550, -1.4531521
  %v8559 = vadd.f32 %v8551, -1.4531521
  %v8560 = vmul.f32 %v8529, %v8552
  %v8561 = vmul.f32 %v8531, %v8553
  %v8562 = vmul.f32 %v8533, %v8554
  %v8563 = vmul.f32 %v8535, %v8555
  %v8564 = vmul.f32 %v8537, %v8556
  %v8565 = vmul.f32 %v8539, %v8557
  %v8566 = vmul.f32 %v8541, %v8558
  %v8567 = vmul.f32 %v8543, %v8559
  %v8568 = vadd.f32 %v8560, 1.4214138
  %v8569 = vadd.f32 %v8561, 1.4214138
  %v8570 = vadd.f32 %v8562, 1.4214138
  %v8571 = vadd.f32 %v8563, 1.4214138
  %v8572 = vadd.f32 %v8564, 1.4214138
  %v8573 = vadd.f32 %v8565, 1.4214138
  %v8574 = vadd.f32 %v8566, 1.4214138
  %v8575 = vadd.f32 %v8567, 1.4214138
  %v8576 = vmul.f32 %v8529, %v8568
  %v8577 = vmul.f32 %v8531, %v8569
  %v8578 = vmul.f32 %v8533, %v8570
  %v8579 = vmul.f32 %v8535, %v8571
  %v8580 = vmul.f32 %v8537, %v8572
  %v8581 = vmul.f32 %v8539, %v8573
  %v8582 = vmul.f32 %v8541, %v8574
  %v8583 = vmul.f32 %v8543, %v8575
  %v8584 = vadd.f32 %v8576, -0.28449672
  %v8585 = vadd.f32 %v8577, -0.28449672
  %v8586 = vadd.f32 %v8578, -0.28449672
  %v8587 = vadd.f32 %v8579, -0.28449672
  %v8588 = vadd.f32 %v8580, -0.28449672
  %v8589 = vadd.f32 %v8581, -0.28449672
  %v8590 = vadd.f32 %v8582, -0.28449672
  %v8591 = vadd.f32 %v8583, -0.28449672
  %v8592 = vmul.f32 %v8529, %v8584
  %v8593 = vmul.f32 %v8531, %v8585
  %v8594 = vmul.f32 %v8533, %v8586
  %v8595 = vmul.f32 %v8535, %v8587
  %v8596 = vmul.f32 %v8537, %v8588
  %v8597 = vmul.f32 %v8539, %v8589
  %v8598 = vmul.f32 %v8541, %v8590
  %v8599 = vmul.f32 %v8543, %v8591
  %v8600 = vadd.f32 %v8592, 0.2548296
  %v8601 = vadd.f32 %v8593, 0.2548296
  %v8602 = vadd.f32 %v8594, 0.2548296
  %v8603 = vadd.f32 %v8595, 0.2548296
  %v8604 = vadd.f32 %v8596, 0.2548296
  %v8605 = vadd.f32 %v8597, 0.2548296
  %v8606 = vadd.f32 %v8598, 0.2548296
  %v8607 = vadd.f32 %v8599, 0.2548296
  %v8608 = vmul.f32 %v8529, %v8600
  %v8609 = vmul.f32 %v8531, %v8601
  %v8610 = vmul.f32 %v8533, %v8602
  %v8611 = vmul.f32 %v8535, %v8603
  %v8612 = vmul.f32 %v8537, %v8604
  %v8613 = vmul.f32 %v8539, %v8605
  %v8614 = vmul.f32 %v8541, %v8606
  %v8615 = vmul.f32 %v8543, %v8607
  %v8616 = vsub.f32 0.0, %v8504
  %v8617 = vsub.f32 0.0, %v8505
  %v8618 = vsub.f32 0.0, %v8506
  %v8619 = vsub.f32 0.0, %v8507
  %v8620 = vsub.f32 0.0, %v8508
  %v8621 = vsub.f32 0.0, %v8509
  %v8622 = vsub.f32 0.0, %v8510
  %v8623 = vsub.f32 0.0, %v8511
  %v8624 = vmul.f32 %v8616, %v8504
  %v8625 = vmul.f32 %v8617, %v8505
  %v8626 = vmul.f32 %v8618, %v8506
  %v8627 = vmul.f32 %v8619, %v8507
  %v8628 = vmul.f32 %v8620, %v8508
  %v8629 = vmul.f32 %v8621, %v8509
  %v8630 = vmul.f32 %v8622, %v8510
  %v8631 = vmul.f32 %v8623, %v8511
  %v8632 = vmul.f32 %v8624, 1.442695
  %v8633 = vpow.pop %v8632
  %v8634 = vmul.f32 %v8625, 1.442695
  %v8635 = vpow.pop %v8634
  %v8636 = vmul.f32 %v8626, 1.442695
  %v8637 = vpow.pop %v8636
  %v8638 = vmul.f32 %v8627, 1.442695
  %v8639 = vpow.pop %v8638
  %v8640 = vmul.f32 %v8628, 1.442695
  %v8641 = vpow.pop %v8640
  %v8642 = vmul.f32 %v8629, 1.442695
  %v8643 = vpow.pop %v8642
  %v8644 = vmul.f32 %v8630, 1.442695
  %v8645 = vpow.pop %v8644
  %v8646 = vmul.f32 %v8631, 1.442695
  %v8647 = vpow.pop %v8646
  %v8648 = vmul.f32 %v8608, %v8633
  %v8649 = vmul.f32 %v8609, %v8635
  %v8650 = vmul.f32 %v8610, %v8637
  %v8651 = vmul.f32 %v8611, %v8639
  %v8652 = vmul.f32 %v8612, %v8641
  %v8653 = vmul.f32 %v8613, %v8643
  %v8654 = vmul.f32 %v8614, %v8645
  %v8655 = vmul.f32 %v8615, %v8647
  %v8656 = vsub.f32 1.0, %v8648
  %v8657 = vsub.f32 1.0, %v8649
  %v8658 = vsub.f32 1.0, %v8650
  %v8659 = vsub.f32 1.0, %v8651
  %v8660 = vsub.f32 1.0, %v8652
  %v8661 = vsub.f32 1.0, %v8653
  %v8662 = vsub.f32 1.0, %v8654
  %v8663 = vsub.f32 1.0, %v8655
  %v8664 = vmul.f32 %v8496, %v8656
  %v8665 = vmul.f32 %v8497, %v8657
  %v8666 = vmul.f32 %v8498, %v8658
  %v8667 = vmul.f32 %v8499, %v8659
  %v8668 = vmul.f32 %v8500, %v8660
  %v8669 = vmul.f32 %v8501, %v8661
  %v8670 = vmul.f32 %v8502, %v8662
  %v8671 = vmul.f32 %v8503, %v8663
  %v8672 = vadd.f32 %v8664, 1.0
  %v8673 = vadd.f32 %v8665, 1.0
  %v8674 = vadd.f32 %v8666, 1.0
  %v8675 = vadd.f32 %v8667, 1.0
  %v8676 = vadd.f32 %v8668, 1.0
  %v8677 = vadd.f32 %v8669, 1.0
  %v8678 = vadd.f32 %v8670, 1.0
  %v8679 = vadd.f32 %v8671, 1.0
  %v8680 = vmul.f32 %v8472, %v8672
  %v8681 = vmul.f32 %v8473, %v8673
  %v8682 = vmul.f32 %v8474, %v8674
  %v8683 = vmul.f32 %v8475, %v8675
  %v8684 = vmul.f32 %v8476, %v8676
  %v8685 = vmul.f32 %v8477, %v8677
  %v8686 = vmul.f32 %v8478, %v8678
  %v8687 = vmul.f32 %v8479, %v8679
  %v8688 = vld [vmem:[%s9] sm:$0x1]
  %v8690 = vlaneseq
  %v8691 = vshrl.u32 %v8690, 7
  %v8692 = vsub.s32 0, %v8691
  %v8693 = vrot.slane %v8688, %v8692
  %v8695 = vmul.f32 %v8680, %v8693
  %v8696 = vmul.f32 %v8681, %v8693
  %v8697 = vmul.f32 %v8682, %v8693
  %v8698 = vmul.f32 %v8683, %v8693
  %v8699 = vmul.f32 %v8684, %v8693
  %v8700 = vmul.f32 %v8685, %v8693
  %v8701 = vmul.f32 %v8686, %v8693
  %v8702 = vmul.f32 %v8687, %v8693
  %v8703 = vsel %vm377, %v8695, 0.0
  %8704 = vadd.xlane.f32.xlu0 %v8703
  %v8705 = vpop.xlane.xlu0 %8704
  %v8706 = vsel %vm377, %v8696, 0.0
  %8707 = vadd.xlane.f32.xlu0 %v8706
  %v8708 = vpop.xlane.xlu0 %8707
  %v8709 = vsel %vm377, %v8697, 0.0
  %8710 = vadd.xlane.f32.xlu0 %v8709
  %v8711 = vpop.xlane.xlu0 %8710
  %v8712 = vsel %vm377, %v8698, 0.0
  %8713 = vadd.xlane.f32.xlu0 %v8712
  %v8714 = vpop.xlane.xlu0 %8713
  %v8715 = vsel %vm377, %v8699, 0.0
  %8716 = vadd.xlane.f32.xlu0 %v8715
  %v8717 = vpop.xlane.xlu0 %8716
  %v8718 = vsel %vm377, %v8700, 0.0
  %8719 = vadd.xlane.f32.xlu0 %v8718
  %v8720 = vpop.xlane.xlu0 %8719
  %v8721 = vsel %vm377, %v8701, 0.0
  %8722 = vadd.xlane.f32.xlu0 %v8721
  %v8723 = vpop.xlane.xlu0 %8722
  %v8724 = vsel %vm377, %v8702, 0.0
  %8725 = vadd.xlane.f32.xlu0 %v8724
  %v8726 = vpop.xlane.xlu0 %8725
  %v8727 = vld [vmem:[#allocation2] sm:$0x1]
  %v8729 = vlaneseq
  %v8730 = vshrl.u32 %v8729, 7
  %v8731 = vsub.s32 0, %v8730
  %v8732 = vrot.slane %v8727, %v8731
  %v8734 = vadd.f32 %v8705, %v8732
  %v8735 = vadd.f32 %v8708, %v8732
  %v8736 = vadd.f32 %v8711, %v8732
  %v8737 = vadd.f32 %v8714, %v8732
  %v8738 = vadd.f32 %v8717, %v8732
  %v8739 = vadd.f32 %v8720, %v8732
  %v8740 = vadd.f32 %v8723, %v8732
  %v8741 = vadd.f32 %v8726, %v8732
  %v8742 = vmul.f32 %v8734, 0.5
  %v8743 = vmul.f32 %v8735, 0.5
  %v8744 = vmul.f32 %v8736, 0.5
  %v8745 = vmul.f32 %v8737, 0.5
  %v8746 = vmul.f32 %v8738, 0.5
  %v8747 = vmul.f32 %v8739, 0.5
  %v8748 = vmul.f32 %v8740, 0.5
  %v8749 = vmul.f32 %v8741, 0.5
  %v8750 = vmul.f32 %v8734, 0.70710677
  %v8751 = vmul.f32 %v8735, 0.70710677
  %v8752 = vmul.f32 %v8736, 0.70710677
  %v8753 = vmul.f32 %v8737, 0.70710677
  %v8754 = vmul.f32 %v8738, 0.70710677
  %v8755 = vmul.f32 %v8739, 0.70710677
  %v8756 = vmul.f32 %v8740, 0.70710677
  %v8757 = vmul.f32 %v8741, 0.70710677
  %vm8758 = vcmp.lt.f32.partialorder %v8750, 0.0
  %vm8759 = vcmp.lt.f32.partialorder %v8751, 0.0
  %vm8760 = vcmp.lt.f32.partialorder %v8752, 0.0
  %vm8761 = vcmp.lt.f32.partialorder %v8753, 0.0
  %vm8762 = vcmp.lt.f32.partialorder %v8754, 0.0
  %vm8763 = vcmp.lt.f32.partialorder %v8755, 0.0
  %vm8764 = vcmp.lt.f32.partialorder %v8756, 0.0
  %vm8765 = vcmp.lt.f32.partialorder %v8757, 0.0
  %v8766 = vsel %vm8758, -1.0, 1.0
  %v8767 = vsel %vm8759, -1.0, 1.0
  %v8768 = vsel %vm8760, -1.0, 1.0
  %v8769 = vsel %vm8761, -1.0, 1.0
  %v8770 = vsel %vm8762, -1.0, 1.0
  %v8771 = vsel %vm8763, -1.0, 1.0
  %v8772 = vsel %vm8764, -1.0, 1.0
  %v8773 = vsel %vm8765, -1.0, 1.0
  %v8774 = vand.u32 2147483647, %v8750
  %v8775 = vand.u32 2147483647, %v8751
  %v8776 = vand.u32 2147483647, %v8752
  %v8777 = vand.u32 2147483647, %v8753
  %v8778 = vand.u32 2147483647, %v8754
  %v8779 = vand.u32 2147483647, %v8755
  %v8780 = vand.u32 2147483647, %v8756
  %v8781 = vand.u32 2147483647, %v8757
  %v8782 = vmul.f32 %v8774, 0.3275911
  %v8783 = vmul.f32 %v8775, 0.3275911
  %v8784 = vmul.f32 %v8776, 0.3275911
  %v8785 = vmul.f32 %v8777, 0.3275911
  %v8786 = vmul.f32 %v8778, 0.3275911
  %v8787 = vmul.f32 %v8779, 0.3275911
  %v8788 = vmul.f32 %v8780, 0.3275911
  %v8789 = vmul.f32 %v8781, 0.3275911
  %v8790 = vadd.f32 %v8782, 1.0
  %v8791 = vadd.f32 %v8783, 1.0
  %v8792 = vadd.f32 %v8784, 1.0
  %v8793 = vadd.f32 %v8785, 1.0
  %v8794 = vadd.f32 %v8786, 1.0
  %v8795 = vadd.f32 %v8787, 1.0
  %v8796 = vadd.f32 %v8788, 1.0
  %v8797 = vadd.f32 %v8789, 1.0
  %v8798 = vrcp.pop %v8790
  %v8799 = vmul.f32 1.0, %v8798
  %v8800 = vrcp.pop %v8791
  %v8801 = vmul.f32 1.0, %v8800
  %v8802 = vrcp.pop %v8792
  %v8803 = vmul.f32 1.0, %v8802
  %v8804 = vrcp.pop %v8793
  %v8805 = vmul.f32 1.0, %v8804
  %v8806 = vrcp.pop %v8794
  %v8807 = vmul.f32 1.0, %v8806
  %v8808 = vrcp.pop %v8795
  %v8809 = vmul.f32 1.0, %v8808
  %v8810 = vrcp.pop %v8796
  %v8811 = vmul.f32 1.0, %v8810
  %v8812 = vrcp.pop %v8797
  %v8813 = vmul.f32 1.0, %v8812
  %v8814 = vmul.f32 %v8799, 1.0614054
  %v8815 = vmul.f32 %v8801, 1.0614054
  %v8816 = vmul.f32 %v8803, 1.0614054
  %v8817 = vmul.f32 %v8805, 1.0614054
  %v8818 = vmul.f32 %v8807, 1.0614054
  %v8819 = vmul.f32 %v8809, 1.0614054
  %v8820 = vmul.f32 %v8811, 1.0614054
  %v8821 = vmul.f32 %v8813, 1.0614054
  %v8822 = vadd.f32 %v8814, -1.4531521
  %v8823 = vadd.f32 %v8815, -1.4531521
  %v8824 = vadd.f32 %v8816, -1.4531521
  %v8825 = vadd.f32 %v8817, -1.4531521
  %v8826 = vadd.f32 %v8818, -1.4531521
  %v8827 = vadd.f32 %v8819, -1.4531521
  %v8828 = vadd.f32 %v8820, -1.4531521
  %v8829 = vadd.f32 %v8821, -1.4531521
  %v8830 = vmul.f32 %v8799, %v8822
  %v8831 = vmul.f32 %v8801, %v8823
  %v8832 = vmul.f32 %v8803, %v8824
  %v8833 = vmul.f32 %v8805, %v8825
  %v8834 = vmul.f32 %v8807, %v8826
  %v8835 = vmul.f32 %v8809, %v8827
  %v8836 = vmul.f32 %v8811, %v8828
  %v8837 = vmul.f32 %v8813, %v8829
  %v8838 = vadd.f32 %v8830, 1.4214138
  %v8839 = vadd.f32 %v8831, 1.4214138
  %v8840 = vadd.f32 %v8832, 1.4214138
  %v8841 = vadd.f32 %v8833, 1.4214138
  %v8842 = vadd.f32 %v8834, 1.4214138
  %v8843 = vadd.f32 %v8835, 1.4214138
  %v8844 = vadd.f32 %v8836, 1.4214138
  %v8845 = vadd.f32 %v8837, 1.4214138
  %v8846 = vmul.f32 %v8799, %v8838
  %v8847 = vmul.f32 %v8801, %v8839
  %v8848 = vmul.f32 %v8803, %v8840
  %v8849 = vmul.f32 %v8805, %v8841
  %v8850 = vmul.f32 %v8807, %v8842
  %v8851 = vmul.f32 %v8809, %v8843
  %v8852 = vmul.f32 %v8811, %v8844
  %v8853 = vmul.f32 %v8813, %v8845
  %v8854 = vadd.f32 %v8846, -0.28449672
  %v8855 = vadd.f32 %v8847, -0.28449672
  %v8856 = vadd.f32 %v8848, -0.28449672
  %v8857 = vadd.f32 %v8849, -0.28449672
  %v8858 = vadd.f32 %v8850, -0.28449672
  %v8859 = vadd.f32 %v8851, -0.28449672
  %v8860 = vadd.f32 %v8852, -0.28449672
  %v8861 = vadd.f32 %v8853, -0.28449672
  %v8862 = vmul.f32 %v8799, %v8854
  %v8863 = vmul.f32 %v8801, %v8855
  %v8864 = vmul.f32 %v8803, %v8856
  %v8865 = vmul.f32 %v8805, %v8857
  %v8866 = vmul.f32 %v8807, %v8858
  %v8867 = vmul.f32 %v8809, %v8859
  %v8868 = vmul.f32 %v8811, %v8860
  %v8869 = vmul.f32 %v8813, %v8861
  %v8870 = vadd.f32 %v8862, 0.2548296
  %v8871 = vadd.f32 %v8863, 0.2548296
  %v8872 = vadd.f32 %v8864, 0.2548296
  %v8873 = vadd.f32 %v8865, 0.2548296
  %v8874 = vadd.f32 %v8866, 0.2548296
  %v8875 = vadd.f32 %v8867, 0.2548296
  %v8876 = vadd.f32 %v8868, 0.2548296
  %v8877 = vadd.f32 %v8869, 0.2548296
  %v8878 = vmul.f32 %v8799, %v8870
  %v8879 = vmul.f32 %v8801, %v8871
  %v8880 = vmul.f32 %v8803, %v8872
  %v8881 = vmul.f32 %v8805, %v8873
  %v8882 = vmul.f32 %v8807, %v8874
  %v8883 = vmul.f32 %v8809, %v8875
  %v8884 = vmul.f32 %v8811, %v8876
  %v8885 = vmul.f32 %v8813, %v8877
  %v8886 = vsub.f32 0.0, %v8774
  %v8887 = vsub.f32 0.0, %v8775
  %v8888 = vsub.f32 0.0, %v8776
  %v8889 = vsub.f32 0.0, %v8777
  %v8890 = vsub.f32 0.0, %v8778
  %v8891 = vsub.f32 0.0, %v8779
  %v8892 = vsub.f32 0.0, %v8780
  %v8893 = vsub.f32 0.0, %v8781
  %v8894 = vmul.f32 %v8886, %v8774
  %v8895 = vmul.f32 %v8887, %v8775
  %v8896 = vmul.f32 %v8888, %v8776
  %v8897 = vmul.f32 %v8889, %v8777
  %v8898 = vmul.f32 %v8890, %v8778
  %v8899 = vmul.f32 %v8891, %v8779
  %v8900 = vmul.f32 %v8892, %v8780
  %v8901 = vmul.f32 %v8893, %v8781
  %v8902 = vmul.f32 %v8894, 1.442695
  %v8903 = vpow.pop %v8902
  %v8904 = vmul.f32 %v8895, 1.442695
  %v8905 = vpow.pop %v8904
  %v8906 = vmul.f32 %v8896, 1.442695
  %v8907 = vpow.pop %v8906
  %v8908 = vmul.f32 %v8897, 1.442695
  %v8909 = vpow.pop %v8908
  %v8910 = vmul.f32 %v8898, 1.442695
  %v8911 = vpow.pop %v8910
  %v8912 = vmul.f32 %v8899, 1.442695
  %v8913 = vpow.pop %v8912
  %v8914 = vmul.f32 %v8900, 1.442695
  %v8915 = vpow.pop %v8914
  %v8916 = vmul.f32 %v8901, 1.442695
  %v8917 = vpow.pop %v8916
  %v8918 = vmul.f32 %v8878, %v8903
  %v8919 = vmul.f32 %v8879, %v8905
  %v8920 = vmul.f32 %v8880, %v8907
  %v8921 = vmul.f32 %v8881, %v8909
  %v8922 = vmul.f32 %v8882, %v8911
  %v8923 = vmul.f32 %v8883, %v8913
  %v8924 = vmul.f32 %v8884, %v8915
  %v8925 = vmul.f32 %v8885, %v8917
  %v8926 = vsub.f32 1.0, %v8918
  %v8927 = vsub.f32 1.0, %v8919
  %v8928 = vsub.f32 1.0, %v8920
  %v8929 = vsub.f32 1.0, %v8921
  %v8930 = vsub.f32 1.0, %v8922
  %v8931 = vsub.f32 1.0, %v8923
  %v8932 = vsub.f32 1.0, %v8924
  %v8933 = vsub.f32 1.0, %v8925
  %v8934 = vmul.f32 %v8766, %v8926
  %v8935 = vmul.f32 %v8767, %v8927
  %v8936 = vmul.f32 %v8768, %v8928
  %v8937 = vmul.f32 %v8769, %v8929
  %v8938 = vmul.f32 %v8770, %v8930
  %v8939 = vmul.f32 %v8771, %v8931
  %v8940 = vmul.f32 %v8772, %v8932
  %v8941 = vmul.f32 %v8773, %v8933
  %v8942 = vadd.f32 %v8934, 1.0
  %v8943 = vadd.f32 %v8935, 1.0
  %v8944 = vadd.f32 %v8936, 1.0
  %v8945 = vadd.f32 %v8937, 1.0
  %v8946 = vadd.f32 %v8938, 1.0
  %v8947 = vadd.f32 %v8939, 1.0
  %v8948 = vadd.f32 %v8940, 1.0
  %v8949 = vadd.f32 %v8941, 1.0
  %v8950 = vmul.f32 %v8742, %v8942
  %v8951 = vmul.f32 %v8743, %v8943
  %v8952 = vmul.f32 %v8744, %v8944
  %v8953 = vmul.f32 %v8745, %v8945
  %v8954 = vmul.f32 %v8746, %v8946
  %v8955 = vmul.f32 %v8747, %v8947
  %v8956 = vmul.f32 %v8748, %v8948
  %v8957 = vmul.f32 %v8749, %v8949
  %vm8958 = vcmp.eq.f32.partialorder %v293, %v326
  %vm8959 = vcmp.eq.f32.partialorder %v293, %v327
  %vm8960 = vcmp.eq.f32.partialorder %v293, %v328
  %vm8961 = vcmp.eq.f32.partialorder %v293, %v329
  %vm8962 = vcmp.eq.f32.partialorder %v293, %v330
  %vm8963 = vcmp.eq.f32.partialorder %v293, %v331
  %vm8964 = vcmp.eq.f32.partialorder %v293, %v332
  %vm8965 = vcmp.eq.f32.partialorder %v293, %v333
  %v8966 = vsel %vm8958, 1, 0
  %v8967 = vsel %vm8959, 1, 0
  %v8968 = vsel %vm8960, 1, 0
  %v8969 = vsel %vm8961, 1, 0
  %v8970 = vsel %vm8962, 1, 0
  %v8971 = vsel %vm8963, 1, 0
  %v8972 = vsel %vm8964, 1, 0
  %v8973 = vsel %vm8965, 1, 0
  %v8974 = vcvt.s32.f32 %v8966
  %v8975 = vcvt.s32.f32 %v8967
  %v8976 = vcvt.s32.f32 %v8968
  %v8977 = vcvt.s32.f32 %v8969
  %v8978 = vcvt.s32.f32 %v8970
  %v8979 = vcvt.s32.f32 %v8971
  %v8980 = vcvt.s32.f32 %v8972
  %v8981 = vcvt.s32.f32 %v8973
  %v8982 = vmul.u32 %v57, 8
  %v8983 = vsub.s32 %v55, %v8982
  %vm8984 = vcmp.ge.s32.totalorder %v8983, 0
  %vm8985 = vcmp.lt.s32.totalorder %v8983, 8
  %vm8986 = vmand %vm8984, %vm8985
  %v8987 = vsel %vm8986, 1, 0
  %v8988 = vcvt.s32.f32 %v8987
  %8990 = vset.pattern.permute.xlu0 0
  %8991 = vperm.xlu0 %8990, %v8950
  %v8992 = vpop.permute.xlu0 %8991
  %8995 = vset.pattern.permute.xlu0 0
  %8996 = vperm.xlu0 %8995, %v8951
  %v8997 = vpop.permute.xlu0 %8996
  %9000 = vset.pattern.permute.xlu0 0
  %9001 = vperm.xlu0 %9000, %v8952
  %v9002 = vpop.permute.xlu0 %9001
  %9005 = vset.pattern.permute.xlu0 0
  %9006 = vperm.xlu0 %9005, %v8953
  %v9007 = vpop.permute.xlu0 %9006
  %9010 = vset.pattern.permute.xlu0 0
  %9011 = vperm.xlu0 %9010, %v8954
  %v9012 = vpop.permute.xlu0 %9011
  %9015 = vset.pattern.permute.xlu0 0
  %9016 = vperm.xlu0 %9015, %v8955
  %v9017 = vpop.permute.xlu0 %9016
  %9020 = vset.pattern.permute.xlu0 0
  %9021 = vperm.xlu0 %9020, %v8956
  %v9022 = vpop.permute.xlu0 %9021
  %9025 = vset.pattern.permute.xlu0 0
  %9026 = vperm.xlu0 %9025, %v8957
  %v9027 = vpop.permute.xlu0 %9026
  %v9029 = vmul.f32 %v8992, %v8974
  %v9030 = vmul.f32 %v8997, %v8975
  %v9031 = vmul.f32 %v9002, %v8976
  %v9032 = vmul.f32 %v9007, %v8977
  %v9033 = vmul.f32 %v9012, %v8978
  %v9034 = vmul.f32 %v9017, %v8979
  %v9035 = vmul.f32 %v9022, %v8980
  %v9036 = vmul.f32 %v9027, %v8981
  %v9038 = vsel %vm897, %v8988, 0
  %9040 = vmatprep.subr.mxu0 0.0
  %9041 = vmatpush1.msra.mxu0 %v9029
  %9042 = vmatprep.subr.mxu0 0.0
  %9043 = vmatpush1.msra.mxu0 %v9030
  %9044 = vmatprep.subr.mxu0 0.0
  %9045 = vmatpush1.msra.mxu0 %v9031
  %9046 = vmatprep.subr.mxu0 0.0
  %9047 = vmatpush1.msra.mxu0 %v9032
  %9048 = vmatprep.subr.mxu0 0.0
  %9049 = vmatpush1.msra.mxu0 %v9033
  %9050 = vmatprep.subr.mxu0 0.0
  %9051 = vmatpush1.msra.mxu0 %v9034
  %9052 = vmatprep.subr.mxu0 0.0
  %9053 = vmatpush1.msra.mxu0 %v9035
  %9054 = vmatprep.subr.mxu0 0.0
  %9055 = vmatpush1.msra.mxu0 %v9036
  %9056 = vmatprep.subr.mxu0 0.0
  %9057 = vmatpush1.msra.mxu0 0.0
  %9058 = vmatprep.subr.mxu0 0.0
  %9059 = vmatpush1.msra.mxu0 0.0
  %9060 = vmatprep.subr.mxu0 0.0
  %9061 = vmatpush1.msra.mxu0 0.0
  %9062 = vmatprep.subr.mxu0 0.0
  %9063 = vmatpush1.msra.mxu0 0.0
  %9064 = vmatprep.subr.mxu0 0.0
  %9065 = vmatpush1.msra.mxu0 0.0
  %9066 = vmatprep.subr.mxu0 0.0
  %9067 = vmatpush1.msra.mxu0 0.0
  %9068 = vmatprep.subr.mxu0 0.0
  %9069 = vmatpush1.msra.mxu0 0.0
  %9070 = vmatprep.subr.mxu0 0.0
  %9071 = vmatpush1.msra.mxu0 0.0
  %9072 = vmatprep.subr.mxu0 0.0
  %9073 = vmatpush1.msra.mxu0 0.0
  %9074 = vmatprep.subr.mxu0 0.0
  %9075 = vmatpush1.msra.mxu0 0.0
  %9076 = vmatprep.subr.mxu0 0.0
  %9077 = vmatpush1.msra.mxu0 0.0
  %9078 = vmatprep.subr.mxu0 0.0
  %9079 = vmatpush1.msra.mxu0 0.0
  %9080 = vmatprep.subr.mxu0 0.0
  %9081 = vmatpush1.msra.mxu0 0.0
  %9082 = vmatprep.subr.mxu0 0.0
  %9083 = vmatpush1.msra.mxu0 0.0
  %9084 = vmatprep.subr.mxu0 0.0
  %9085 = vmatpush1.msra.mxu0 0.0
  %9086 = vmatprep.subr.mxu0 0.0
  %9087 = vmatpush1.msra.mxu0 0.0
  %9088 = vmatprep.subr.mxu0 0.0
  %9089 = vmatpush1.msra.mxu0 0.0
  %9090 = vmatprep.subr.mxu0 0.0
  %9091 = vmatpush1.msra.mxu0 0.0
  %9092 = vmatprep.subr.mxu0 0.0
  %9093 = vmatpush1.msra.mxu0 0.0
  %9094 = vmatprep.subr.mxu0 0.0
  %9095 = vmatpush1.msra.mxu0 0.0
  %9096 = vmatprep.subr.mxu0 0.0
  %9097 = vmatpush1.msra.mxu0 0.0
  %9098 = vmatprep.subr.mxu0 0.0
  %9099 = vmatpush1.msra.mxu0 0.0
  %9100 = vmatprep.subr.mxu0 0.0
  %9101 = vmatpush1.msra.mxu0 0.0
  %9102 = vmatprep.subr.mxu0 0.0
  %9103 = vmatpush1.msra.mxu0 0.0
  %9104 = vmatprep.mubr.f32.mxu0 0.0
  %9105 = vmatmul.mubr.f32.gmra.mrb[0].mxu0 %v9038
  %v9106 = vpop.f32.mrb[0].mxu0
  %v9107 = vadd.f32 0.0, %v9106
  %v9108 = vpop.f32.mrb[0].mxu0
  %9109 = vdwg.mxu0
  %v9110 = vld [vmem:[%s11] sm:$0xff]
  %v9111 = vld [vmem:[%s11 + $0x8] sm:$0xff]
  %v9112 = vld [vmem:[%s11 + $0x10] sm:$0xff]
  %v9113 = vld [vmem:[%s11 + $0x18] sm:$0xff]
  %v9114 = vld [vmem:[%s11 + $0x20] sm:$0xff]
  %v9115 = vld [vmem:[%s11 + $0x28] sm:$0xff]
  %v9116 = vld [vmem:[%s11 + $0x30] sm:$0xff]
  %v9117 = vld [vmem:[%s11 + $0x38] sm:$0xff]
  %v9118 = vld [vmem:[%s11 + $0x40] sm:$0xff]
  %v9119 = vld [vmem:[%s11 + $0x48] sm:$0xff]
  %v9120 = vld [vmem:[%s11 + $0x50] sm:$0xff]
  %v9121 = vld [vmem:[%s11 + $0x58] sm:$0xff]
  %v9122 = vld [vmem:[%s11 + $0x60] sm:$0xff]
  %v9123 = vld [vmem:[%s11 + $0x68] sm:$0xff]
  %v9124 = vld [vmem:[%s11 + $0x70] sm:$0xff]
  %v9125 = vld [vmem:[%s11 + $0x78] sm:$0xff]
  %v9126 = vld [vmem:[%s11 + $0x80] sm:$0xff]
  %v9127 = vld [vmem:[%s11 + $0x88] sm:$0xff]
  %v9128 = vld [vmem:[%s11 + $0x90] sm:$0xff]
  %v9129 = vld [vmem:[%s11 + $0x98] sm:$0xff]
  %v9130 = vld [vmem:[%s11 + $0xa0] sm:$0xff]
  %v9131 = vld [vmem:[%s11 + $0xa8] sm:$0xff]
  %v9132 = vld [vmem:[%s11 + $0xb0] sm:$0xff]
  %v9133 = vld [vmem:[%s11 + $0xb8] sm:$0xff]
  %v9134 = vld [vmem:[%s11 + $0xc0] sm:$0xff]
  %v9135 = vld [vmem:[%s11 + $0xc8] sm:$0xff]
  %v9136 = vld [vmem:[%s11 + $0xd0] sm:$0xff]
  %v9137 = vld [vmem:[%s11 + $0xd8] sm:$0xff]
  %v9138 = vld [vmem:[%s11 + $0xe0] sm:$0xff]
  %v9139 = vld [vmem:[%s11 + $0xe8] sm:$0xff]
  %v9140 = vld [vmem:[%s11 + $0xf0] sm:$0xff]
  %v9141 = vld [vmem:[%s11 + $0xf8] sm:$0xff]
  %v9142 = vld [vmem:[%s11 + $0x100] sm:$0xff]
  %v9143 = vld [vmem:[%s12] sm:$0xff]
  %v9144 = vld [vmem:[%s12 + $0x8] sm:$0xff]
  %v9145 = vld [vmem:[%s12 + $0x10] sm:$0xff]
  %v9146 = vld [vmem:[%s12 + $0x18] sm:$0xff]
  %v9147 = vld [vmem:[%s12 + $0x20] sm:$0x1]
  %v9153 = vlaneseq
  %v9154 = vshrl.u32 %v9153, 7
  %v9155 = vsub.s32 0, %v9154
  %v9156 = vrot.slane %v9143, %v9155
  %v9157 = vlaneseq
  %v9158 = vshrl.u32 %v9157, 7
  %v9159 = vsub.s32 1, %v9158
  %v9160 = vrot.slane %v9143, %v9159
  %v9161 = vlaneseq
  %v9162 = vshrl.u32 %v9161, 7
  %v9163 = vsub.s32 2, %v9162
  %v9164 = vrot.slane %v9143, %v9163
  %v9165 = vlaneseq
  %v9166 = vshrl.u32 %v9165, 7
  %v9167 = vsub.s32 3, %v9166
  %v9168 = vrot.slane %v9143, %v9167
  %v9169 = vlaneseq
  %v9170 = vshrl.u32 %v9169, 7
  %v9171 = vsub.s32 4, %v9170
  %v9172 = vrot.slane %v9143, %v9171
  %v9173 = vlaneseq
  %v9174 = vshrl.u32 %v9173, 7
  %v9175 = vsub.s32 5, %v9174
  %v9176 = vrot.slane %v9143, %v9175
  %v9177 = vlaneseq
  %v9178 = vshrl.u32 %v9177, 7
  %v9179 = vsub.s32 6, %v9178
  %v9180 = vrot.slane %v9143, %v9179
  %v9181 = vlaneseq
  %v9182 = vshrl.u32 %v9181, 7
  %v9183 = vsub.s32 7, %v9182
  %v9184 = vrot.slane %v9143, %v9183
  %v9185 = vlaneseq
  %v9186 = vshrl.u32 %v9185, 7
  %v9187 = vsub.s32 0, %v9186
  %v9188 = vrot.slane %v9144, %v9187
  %v9189 = vlaneseq
  %v9190 = vshrl.u32 %v9189, 7
  %v9191 = vsub.s32 1, %v9190
  %v9192 = vrot.slane %v9144, %v9191
  %v9193 = vlaneseq
  %v9194 = vshrl.u32 %v9193, 7
  %v9195 = vsub.s32 2, %v9194
  %v9196 = vrot.slane %v9144, %v9195
  %v9197 = vlaneseq
  %v9198 = vshrl.u32 %v9197, 7
  %v9199 = vsub.s32 3, %v9198
  %v9200 = vrot.slane %v9144, %v9199
  %v9201 = vlaneseq
  %v9202 = vshrl.u32 %v9201, 7
  %v9203 = vsub.s32 4, %v9202
  %v9204 = vrot.slane %v9144, %v9203
  %v9205 = vlaneseq
  %v9206 = vshrl.u32 %v9205, 7
  %v9207 = vsub.s32 5, %v9206
  %v9208 = vrot.slane %v9144, %v9207
  %v9209 = vlaneseq
  %v9210 = vshrl.u32 %v9209, 7
  %v9211 = vsub.s32 6, %v9210
  %v9212 = vrot.slane %v9144, %v9211
  %v9213 = vlaneseq
  %v9214 = vshrl.u32 %v9213, 7
  %v9215 = vsub.s32 7, %v9214
  %v9216 = vrot.slane %v9144, %v9215
  %v9217 = vlaneseq
  %v9218 = vshrl.u32 %v9217, 7
  %v9219 = vsub.s32 0, %v9218
  %v9220 = vrot.slane %v9145, %v9219
  %v9221 = vlaneseq
  %v9222 = vshrl.u32 %v9221, 7
  %v9223 = vsub.s32 1, %v9222
  %v9224 = vrot.slane %v9145, %v9223
  %v9225 = vlaneseq
  %v9226 = vshrl.u32 %v9225, 7
  %v9227 = vsub.s32 2, %v9226
  %v9228 = vrot.slane %v9145, %v9227
  %v9229 = vlaneseq
  %v9230 = vshrl.u32 %v9229, 7
  %v9231 = vsub.s32 3, %v9230
  %v9232 = vrot.slane %v9145, %v9231
  %v9233 = vlaneseq
  %v9234 = vshrl.u32 %v9233, 7
  %v9235 = vsub.s32 4, %v9234
  %v9236 = vrot.slane %v9145, %v9235
  %v9237 = vlaneseq
  %v9238 = vshrl.u32 %v9237, 7
  %v9239 = vsub.s32 5, %v9238
  %v9240 = vrot.slane %v9145, %v9239
  %v9241 = vlaneseq
  %v9242 = vshrl.u32 %v9241, 7
  %v9243 = vsub.s32 6, %v9242
  %v9244 = vrot.slane %v9145, %v9243
  %v9245 = vlaneseq
  %v9246 = vshrl.u32 %v9245, 7
  %v9247 = vsub.s32 7, %v9246
  %v9248 = vrot.slane %v9145, %v9247
  %v9249 = vlaneseq
  %v9250 = vshrl.u32 %v9249, 7
  %v9251 = vsub.s32 0, %v9250
  %v9252 = vrot.slane %v9146, %v9251
  %v9253 = vlaneseq
  %v9254 = vshrl.u32 %v9253, 7
  %v9255 = vsub.s32 1, %v9254
  %v9256 = vrot.slane %v9146, %v9255
  %v9257 = vlaneseq
  %v9258 = vshrl.u32 %v9257, 7
  %v9259 = vsub.s32 2, %v9258
  %v9260 = vrot.slane %v9146, %v9259
  %v9261 = vlaneseq
  %v9262 = vshrl.u32 %v9261, 7
  %v9263 = vsub.s32 3, %v9262
  %v9264 = vrot.slane %v9146, %v9263
  %v9265 = vlaneseq
  %v9266 = vshrl.u32 %v9265, 7
  %v9267 = vsub.s32 4, %v9266
  %v9268 = vrot.slane %v9146, %v9267
  %v9269 = vlaneseq
  %v9270 = vshrl.u32 %v9269, 7
  %v9271 = vsub.s32 5, %v9270
  %v9272 = vrot.slane %v9146, %v9271
  %v9273 = vlaneseq
  %v9274 = vshrl.u32 %v9273, 7
  %v9275 = vsub.s32 6, %v9274
  %v9276 = vrot.slane %v9146, %v9275
  %v9277 = vlaneseq
  %v9278 = vshrl.u32 %v9277, 7
  %v9279 = vsub.s32 7, %v9278
  %v9280 = vrot.slane %v9146, %v9279
  %v9281 = vlaneseq
  %v9282 = vshrl.u32 %v9281, 7
  %v9283 = vsub.s32 0, %v9282
  %v9284 = vrot.slane %v9147, %v9283
  %v9319 = vsel %vm743, %v9107, 0
  %9321 = vmatprep.subr.mxu0 %v9111
  %9322 = vmatpush1.msra.mxu0 %v9110
  %9323 = vmatprep.subr.mxu0 0.0
  %9324 = vmatpush1.msra.mxu0 0.0
  %9325 = vmatprep.subr.mxu0 0.0
  %9326 = vmatpush1.msra.mxu0 0.0
  %9327 = vmatprep.subr.mxu0 0.0
  %9328 = vmatpush1.msra.mxu0 0.0
  %9329 = vmatprep.subr.mxu0 0.0
  %9330 = vmatpush1.msra.mxu0 0.0
  %9331 = vmatprep.subr.mxu0 0.0
  %9332 = vmatpush1.msra.mxu0 0.0
  %9333 = vmatprep.subr.mxu0 0.0
  %9334 = vmatpush1.msra.mxu0 0.0
  %9335 = vmatprep.subr.mxu0 0.0
  %9336 = vmatpush1.msra.mxu0 0.0
  %9337 = vmatprep.subr.mxu0 0.0
  %9338 = vmatpush1.msra.mxu0 0.0
  %9339 = vmatprep.subr.mxu0 0.0
  %9340 = vmatpush1.msra.mxu0 0.0
  %9341 = vmatprep.subr.mxu0 0.0
  %9342 = vmatpush1.msra.mxu0 0.0
  %9343 = vmatprep.subr.mxu0 0.0
  %9344 = vmatpush1.msra.mxu0 0.0
  %9345 = vmatprep.subr.mxu0 0.0
  %9346 = vmatpush1.msra.mxu0 0.0
  %9347 = vmatprep.subr.mxu0 0.0
  %9348 = vmatpush1.msra.mxu0 0.0
  %9349 = vmatprep.subr.mxu0 0.0
  %9350 = vmatpush1.msra.mxu0 0.0
  %9351 = vmatprep.subr.mxu0 0.0
  %9352 = vmatpush1.msra.mxu0 0.0
  %9353 = vmatprep.subr.mxu0 0.0
  %9354 = vmatpush1.msra.mxu0 0.0
  %9355 = vmatprep.subr.mxu0 0.0
  %9356 = vmatpush1.msra.mxu0 0.0
  %9357 = vmatprep.subr.mxu0 0.0
  %9358 = vmatpush1.msra.mxu0 0.0
  %9359 = vmatprep.subr.mxu0 0.0
  %9360 = vmatpush1.msra.mxu0 0.0
  %9361 = vmatprep.subr.mxu0 0.0
  %9362 = vmatpush1.msra.mxu0 0.0
  %9363 = vmatprep.subr.mxu0 0.0
  %9364 = vmatpush1.msra.mxu0 0.0
  %9365 = vmatprep.subr.mxu0 0.0
  %9366 = vmatpush1.msra.mxu0 0.0
  %9367 = vmatprep.subr.mxu0 0.0
  %9368 = vmatpush1.msra.mxu0 0.0
  %9369 = vmatprep.subr.mxu0 0.0
  %9370 = vmatpush1.msra.mxu0 0.0
  %9371 = vmatprep.subr.mxu0 0.0
  %9372 = vmatpush1.msra.mxu0 0.0
  %9373 = vmatprep.subr.mxu0 0.0
  %9374 = vmatpush1.msra.mxu0 0.0
  %9375 = vmatprep.subr.mxu0 0.0
  %9376 = vmatpush1.msra.mxu0 0.0
  %9377 = vmatprep.subr.mxu0 0.0
  %9378 = vmatpush1.msra.mxu0 0.0
  %9379 = vmatprep.subr.mxu0 0.0
  %9380 = vmatpush1.msra.mxu0 0.0
  %9381 = vmatprep.subr.mxu0 0.0
  %9382 = vmatpush1.msra.mxu0 0.0
  %9383 = vmatprep.subr.mxu0 0.0
  %9384 = vmatpush1.msra.mxu0 0.0
  %9385 = vmatprep.mubr.f32.mxu0 0.0
  %9386 = vmatmul.mubr.f32.gmra.mrb[0].mxu0 %v9319
  %v9387 = vpop.f32.mrb[0].mxu0
  %v9388 = vadd.f32 %v9156, %v9387
  %v9389 = vpop.f32.mrb[0].mxu0
  %v9390 = vadd.f32 %v9160, %v9389
  %9391 = vdwg.mxu0
  %9392 = vmatprep.subr.mxu0 %v9113
  %9393 = vmatpush1.msra.mxu0 %v9112
  %9394 = vmatprep.subr.mxu0 0.0
  %9395 = vmatpush1.msra.mxu0 0.0
  %9396 = vmatprep.subr.mxu0 0.0
  %9397 = vmatpush1.msra.mxu0 0.0
  %9398 = vmatprep.subr.mxu0 0.0
  %9399 = vmatpush1.msra.mxu0 0.0
  %9400 = vmatprep.subr.mxu0 0.0
  %9401 = vmatpush1.msra.mxu0 0.0
  %9402 = vmatprep.subr.mxu0 0.0
  %9403 = vmatpush1.msra.mxu0 0.0
  %9404 = vmatprep.subr.mxu0 0.0
  %9405 = vmatpush1.msra.mxu0 0.0
  %9406 = vmatprep.subr.mxu0 0.0
  %9407 = vmatpush1.msra.mxu0 0.0
  %9408 = vmatprep.subr.mxu0 0.0
  %9409 = vmatpush1.msra.mxu0 0.0
  %9410 = vmatprep.subr.mxu0 0.0
  %9411 = vmatpush1.msra.mxu0 0.0
  %9412 = vmatprep.subr.mxu0 0.0
  %9413 = vmatpush1.msra.mxu0 0.0
  %9414 = vmatprep.subr.mxu0 0.0
  %9415 = vmatpush1.msra.mxu0 0.0
  %9416 = vmatprep.subr.mxu0 0.0
  %9417 = vmatpush1.msra.mxu0 0.0
  %9418 = vmatprep.subr.mxu0 0.0
  %9419 = vmatpush1.msra.mxu0 0.0
  %9420 = vmatprep.subr.mxu0 0.0
  %9421 = vmatpush1.msra.mxu0 0.0
  %9422 = vmatprep.subr.mxu0 0.0
  %9423 = vmatpush1.msra.mxu0 0.0
  %9424 = vmatprep.subr.mxu0 0.0
  %9425 = vmatpush1.msra.mxu0 0.0
  %9426 = vmatprep.subr.mxu0 0.0
  %9427 = vmatpush1.msra.mxu0 0.0
  %9428 = vmatprep.subr.mxu0 0.0
  %9429 = vmatpush1.msra.mxu0 0.0
  %9430 = vmatprep.subr.mxu0 0.0
  %9431 = vmatpush1.msra.mxu0 0.0
  %9432 = vmatprep.subr.mxu0 0.0
  %9433 = vmatpush1.msra.mxu0 0.0
  %9434 = vmatprep.subr.mxu0 0.0
  %9435 = vmatpush1.msra.mxu0 0.0
  %9436 = vmatprep.subr.mxu0 0.0
  %9437 = vmatpush1.msra.mxu0 0.0
  %9438 = vmatprep.subr.mxu0 0.0
  %9439 = vmatpush1.msra.mxu0 0.0
  %9440 = vmatprep.subr.mxu0 0.0
  %9441 = vmatpush1.msra.mxu0 0.0
  %9442 = vmatprep.subr.mxu0 0.0
  %9443 = vmatpush1.msra.mxu0 0.0
  %9444 = vmatprep.subr.mxu0 0.0
  %9445 = vmatpush1.msra.mxu0 0.0
  %9446 = vmatprep.subr.mxu0 0.0
  %9447 = vmatpush1.msra.mxu0 0.0
  %9448 = vmatprep.subr.mxu0 0.0
  %9449 = vmatpush1.msra.mxu0 0.0
  %9450 = vmatprep.subr.mxu0 0.0
  %9451 = vmatpush1.msra.mxu0 0.0
  %9452 = vmatprep.subr.mxu0 0.0
  %9453 = vmatpush1.msra.mxu0 0.0
  %9454 = vmatprep.subr.mxu0 0.0
  %9455 = vmatpush1.msra.mxu0 0.0
  %9456 = vmatprep.mubr.f32.mxu0 0.0
  %9457 = vmatmul.mubr.f32.gmra.mrb[0].mxu0 %v9319
  %v9458 = vpop.f32.mrb[0].mxu0
  %v9459 = vadd.f32 %v9164, %v9458
  %v9460 = vpop.f32.mrb[0].mxu0
  %v9461 = vadd.f32 %v9168, %v9460
  %9462 = vdwg.mxu0
  %9463 = vmatprep.subr.mxu0 %v9115
  %9464 = vmatpush1.msra.mxu0 %v9114
  %9465 = vmatprep.subr.mxu0 0.0
  %9466 = vmatpush1.msra.mxu0 0.0
  %9467 = vmatprep.subr.mxu0 0.0
  %9468 = vmatpush1.msra.mxu0 0.0
  %9469 = vmatprep.subr.mxu0 0.0
  %9470 = vmatpush1.msra.mxu0 0.0
  %9471 = vmatprep.subr.mxu0 0.0
  %9472 = vmatpush1.msra.mxu0 0.0
  %9473 = vmatprep.subr.mxu0 0.0
  %9474 = vmatpush1.msra.mxu0 0.0
  %9475 = vmatprep.subr.mxu0 0.0
  %9476 = vmatpush1.msra.mxu0 0.0
  %9477 = vmatprep.subr.mxu0 0.0
  %9478 = vmatpush1.msra.mxu0 0.0
  %9479 = vmatprep.subr.mxu0 0.0
  %9480 = vmatpush1.msra.mxu0 0.0
  %9481 = vmatprep.subr.mxu0 0.0
  %9482 = vmatpush1.msra.mxu0 0.0
  %9483 = vmatprep.subr.mxu0 0.0
  %9484 = vmatpush1.msra.mxu0 0.0
  %9485 = vmatprep.subr.mxu0 0.0
  %9486 = vmatpush1.msra.mxu0 0.0
  %9487 = vmatprep.subr.mxu0 0.0
  %9488 = vmatpush1.msra.mxu0 0.0
  %9489 = vmatprep.subr.mxu0 0.0
  %9490 = vmatpush1.msra.mxu0 0.0
  %9491 = vmatprep.subr.mxu0 0.0
  %9492 = vmatpush1.msra.mxu0 0.0
  %9493 = vmatprep.subr.mxu0 0.0
  %9494 = vmatpush1.msra.mxu0 0.0
  %9495 = vmatprep.subr.mxu0 0.0
  %9496 = vmatpush1.msra.mxu0 0.0
  %9497 = vmatprep.subr.mxu0 0.0
  %9498 = vmatpush1.msra.mxu0 0.0
  %9499 = vmatprep.subr.mxu0 0.0
  %9500 = vmatpush1.msra.mxu0 0.0
  %9501 = vmatprep.subr.mxu0 0.0
  %9502 = vmatpush1.msra.mxu0 0.0
  %9503 = vmatprep.subr.mxu0 0.0
  %9504 = vmatpush1.msra.mxu0 0.0
  %9505 = vmatprep.subr.mxu0 0.0
  %9506 = vmatpush1.msra.mxu0 0.0
  %9507 = vmatprep.subr.mxu0 0.0
  %9508 = vmatpush1.msra.mxu0 0.0
  %9509 = vmatprep.subr.mxu0 0.0
  %9510 = vmatpush1.msra.mxu0 0.0
  %9511 = vmatprep.subr.mxu0 0.0
  %9512 = vmatpush1.msra.mxu0 0.0
  %9513 = vmatprep.subr.mxu0 0.0
  %9514 = vmatpush1.msra.mxu0 0.0
  %9515 = vmatprep.subr.mxu0 0.0
  %9516 = vmatpush1.msra.mxu0 0.0
  %9517 = vmatprep.subr.mxu0 0.0
  %9518 = vmatpush1.msra.mxu0 0.0
  %9519 = vmatprep.subr.mxu0 0.0
  %9520 = vmatpush1.msra.mxu0 0.0
  %9521 = vmatprep.subr.mxu0 0.0
  %9522 = vmatpush1.msra.mxu0 0.0
  %9523 = vmatprep.subr.mxu0 0.0
  %9524 = vmatpush1.msra.mxu0 0.0
  %9525 = vmatprep.subr.mxu0 0.0
  %9526 = vmatpush1.msra.mxu0 0.0
  %9527 = vmatprep.mubr.f32.mxu0 0.0
  %9528 = vmatmul.mubr.f32.gmra.mrb[0].mxu0 %v9319
  %v9529 = vpop.f32.mrb[0].mxu0
  %v9530 = vadd.f32 %v9172, %v9529
  %v9531 = vpop.f32.mrb[0].mxu0
  %v9532 = vadd.f32 %v9176, %v9531
  %9533 = vdwg.mxu0
  %9534 = vmatprep.subr.mxu0 %v9117
  %9535 = vmatpush1.msra.mxu0 %v9116
  %9536 = vmatprep.subr.mxu0 0.0
  %9537 = vmatpush1.msra.mxu0 0.0
  %9538 = vmatprep.subr.mxu0 0.0
  %9539 = vmatpush1.msra.mxu0 0.0
  %9540 = vmatprep.subr.mxu0 0.0
  %9541 = vmatpush1.msra.mxu0 0.0
  %9542 = vmatprep.subr.mxu0 0.0
  %9543 = vmatpush1.msra.mxu0 0.0
  %9544 = vmatprep.subr.mxu0 0.0
  %9545 = vmatpush1.msra.mxu0 0.0
  %9546 = vmatprep.subr.mxu0 0.0
  %9547 = vmatpush1.msra.mxu0 0.0
  %9548 = vmatprep.subr.mxu0 0.0
  %9549 = vmatpush1.msra.mxu0 0.0
  %9550 = vmatprep.subr.mxu0 0.0
  %9551 = vmatpush1.msra.mxu0 0.0
  %9552 = vmatprep.subr.mxu0 0.0
  %9553 = vmatpush1.msra.mxu0 0.0
  %9554 = vmatprep.subr.mxu0 0.0
  %9555 = vmatpush1.msra.mxu0 0.0
  %9556 = vmatprep.subr.mxu0 0.0
  %9557 = vmatpush1.msra.mxu0 0.0
  %9558 = vmatprep.subr.mxu0 0.0
  %9559 = vmatpush1.msra.mxu0 0.0
  %9560 = vmatprep.subr.mxu0 0.0
  %9561 = vmatpush1.msra.mxu0 0.0
  %9562 = vmatprep.subr.mxu0 0.0
  %9563 = vmatpush1.msra.mxu0 0.0
  %9564 = vmatprep.subr.mxu0 0.0
  %9565 = vmatpush1.msra.mxu0 0.0
  %9566 = vmatprep.subr.mxu0 0.0
  %9567 = vmatpush1.msra.mxu0 0.0
  %9568 = vmatprep.subr.mxu0 0.0
  %9569 = vmatpush1.msra.mxu0 0.0
  %9570 = vmatprep.subr.mxu0 0.0
  %9571 = vmatpush1.msra.mxu0 0.0
  %9572 = vmatprep.subr.mxu0 0.0
  %9573 = vmatpush1.msra.mxu0 0.0
  %9574 = vmatprep.subr.mxu0 0.0
  %9575 = vmatpush1.msra.mxu0 0.0
  %9576 = vmatprep.subr.mxu0 0.0
  %9577 = vmatpush1.msra.mxu0 0.0
  %9578 = vmatprep.subr.mxu0 0.0
  %9579 = vmatpush1.msra.mxu0 0.0
  %9580 = vmatprep.subr.mxu0 0.0
  %9581 = vmatpush1.msra.mxu0 0.0
  %9582 = vmatprep.subr.mxu0 0.0
  %9583 = vmatpush1.msra.mxu0 0.0
  %9584 = vmatprep.subr.mxu0 0.0
  %9585 = vmatpush1.msra.mxu0 0.0
  %9586 = vmatprep.subr.mxu0 0.0
  %9587 = vmatpush1.msra.mxu0 0.0
  %9588 = vmatprep.subr.mxu0 0.0
  %9589 = vmatpush1.msra.mxu0 0.0
  %9590 = vmatprep.subr.mxu0 0.0
  %9591 = vmatpush1.msra.mxu0 0.0
  %9592 = vmatprep.subr.mxu0 0.0
  %9593 = vmatpush1.msra.mxu0 0.0
  %9594 = vmatprep.subr.mxu0 0.0
  %9595 = vmatpush1.msra.mxu0 0.0
  %9596 = vmatprep.subr.mxu0 0.0
  %9597 = vmatpush1.msra.mxu0 0.0
  %9598 = vmatprep.mubr.f32.mxu0 0.0
  %9599 = vmatmul.mubr.f32.gmra.mrb[0].mxu0 %v9319
  %v9600 = vpop.f32.mrb[0].mxu0
  %v9601 = vadd.f32 %v9180, %v9600
  %v9602 = vpop.f32.mrb[0].mxu0
  %v9603 = vadd.f32 %v9184, %v9602
  %9604 = vdwg.mxu0
  %9605 = vmatprep.subr.mxu0 %v9119
  %9606 = vmatpush1.msra.mxu0 %v9118
  %9607 = vmatprep.subr.mxu0 0.0
  %9608 = vmatpush1.msra.mxu0 0.0
  %9609 = vmatprep.subr.mxu0 0.0
  %9610 = vmatpush1.msra.mxu0 0.0
  %9611 = vmatprep.subr.mxu0 0.0
  %9612 = vmatpush1.msra.mxu0 0.0
  %9613 = vmatprep.subr.mxu0 0.0
  %9614 = vmatpush1.msra.mxu0 0.0
  %9615 = vmatprep.subr.mxu0 0.0
  %9616 = vmatpush1.msra.mxu0 0.0
  %9617 = vmatprep.subr.mxu0 0.0
  %9618 = vmatpush1.msra.mxu0 0.0
  %9619 = vmatprep.subr.mxu0 0.0
  %9620 = vmatpush1.msra.mxu0 0.0
  %9621 = vmatprep.subr.mxu0 0.0
  %9622 = vmatpush1.msra.mxu0 0.0
  %9623 = vmatprep.subr.mxu0 0.0
  %9624 = vmatpush1.msra.mxu0 0.0
  %9625 = vmatprep.subr.mxu0 0.0
  %9626 = vmatpush1.msra.mxu0 0.0
  %9627 = vmatprep.subr.mxu0 0.0
  %9628 = vmatpush1.msra.mxu0 0.0
  %9629 = vmatprep.subr.mxu0 0.0
  %9630 = vmatpush1.msra.mxu0 0.0
  %9631 = vmatprep.subr.mxu0 0.0
  %9632 = vmatpush1.msra.mxu0 0.0
  %9633 = vmatprep.subr.mxu0 0.0
  %9634 = vmatpush1.msra.mxu0 0.0
  %9635 = vmatprep.subr.mxu0 0.0
  %9636 = vmatpush1.msra.mxu0 0.0
  %9637 = vmatprep.subr.mxu0 0.0
  %9638 = vmatpush1.msra.mxu0 0.0
  %9639 = vmatprep.subr.mxu0 0.0
  %9640 = vmatpush1.msra.mxu0 0.0
  %9641 = vmatprep.subr.mxu0 0.0
  %9642 = vmatpush1.msra.mxu0 0.0
  %9643 = vmatprep.subr.mxu0 0.0
  %9644 = vmatpush1.msra.mxu0 0.0
  %9645 = vmatprep.subr.mxu0 0.0
  %9646 = vmatpush1.msra.mxu0 0.0
  %9647 = vmatprep.subr.mxu0 0.0
  %9648 = vmatpush1.msra.mxu0 0.0
  %9649 = vmatprep.subr.mxu0 0.0
  %9650 = vmatpush1.msra.mxu0 0.0
  %9651 = vmatprep.subr.mxu0 0.0
  %9652 = vmatpush1.msra.mxu0 0.0
  %9653 = vmatprep.subr.mxu0 0.0
  %9654 = vmatpush1.msra.mxu0 0.0
  %9655 = vmatprep.subr.mxu0 0.0
  %9656 = vmatpush1.msra.mxu0 0.0
  %9657 = vmatprep.subr.mxu0 0.0
  %9658 = vmatpush1.msra.mxu0 0.0
  %9659 = vmatprep.subr.mxu0 0.0
  %9660 = vmatpush1.msra.mxu0 0.0
  %9661 = vmatprep.subr.mxu0 0.0
  %9662 = vmatpush1.msra.mxu0 0.0
  %9663 = vmatprep.subr.mxu0 0.0
  %9664 = vmatpush1.msra.mxu0 0.0
  %9665 = vmatprep.subr.mxu0 0.0
  %9666 = vmatpush1.msra.mxu0 0.0
  %9667 = vmatprep.subr.mxu0 0.0
  %9668 = vmatpush1.msra.mxu0 0.0
  %9669 = vmatprep.mubr.f32.mxu0 0.0
  %9670 = vmatmul.mubr.f32.gmra.mrb[0].mxu0 %v9319
  %v9671 = vpop.f32.mrb[0].mxu0
  %v9672 = vadd.f32 %v9188, %v9671
  %v9673 = vpop.f32.mrb[0].mxu0
  %v9674 = vadd.f32 %v9192, %v9673
  %9675 = vdwg.mxu0
  %9676 = vmatprep.subr.mxu0 %v9121
  %9677 = vmatpush1.msra.mxu0 %v9120
  %9678 = vmatprep.subr.mxu0 0.0
  %9679 = vmatpush1.msra.mxu0 0.0
  %9680 = vmatprep.subr.mxu0 0.0
  %9681 = vmatpush1.msra.mxu0 0.0
  %9682 = vmatprep.subr.mxu0 0.0
  %9683 = vmatpush1.msra.mxu0 0.0
  %9684 = vmatprep.subr.mxu0 0.0
  %9685 = vmatpush1.msra.mxu0 0.0
  %9686 = vmatprep.subr.mxu0 0.0
  %9687 = vmatpush1.msra.mxu0 0.0
  %9688 = vmatprep.subr.mxu0 0.0
  %9689 = vmatpush1.msra.mxu0 0.0
  %9690 = vmatprep.subr.mxu0 0.0
  %9691 = vmatpush1.msra.mxu0 0.0
  %9692 = vmatprep.subr.mxu0 0.0
  %9693 = vmatpush1.msra.mxu0 0.0
  %9694 = vmatprep.subr.mxu0 0.0
  %9695 = vmatpush1.msra.mxu0 0.0
  %9696 = vmatprep.subr.mxu0 0.0
  %9697 = vmatpush1.msra.mxu0 0.0
  %9698 = vmatprep.subr.mxu0 0.0
  %9699 = vmatpush1.msra.mxu0 0.0
  %9700 = vmatprep.subr.mxu0 0.0
  %9701 = vmatpush1.msra.mxu0 0.0
  %9702 = vmatprep.subr.mxu0 0.0
  %9703 = vmatpush1.msra.mxu0 0.0
  %9704 = vmatprep.subr.mxu0 0.0
  %9705 = vmatpush1.msra.mxu0 0.0
  %9706 = vmatprep.subr.mxu0 0.0
  %9707 = vmatpush1.msra.mxu0 0.0
  %9708 = vmatprep.subr.mxu0 0.0
  %9709 = vmatpush1.msra.mxu0 0.0
  %9710 = vmatprep.subr.mxu0 0.0
  %9711 = vmatpush1.msra.mxu0 0.0
  %9712 = vmatprep.subr.mxu0 0.0
  %9713 = vmatpush1.msra.mxu0 0.0
  %9714 = vmatprep.subr.mxu0 0.0
  %9715 = vmatpush1.msra.mxu0 0.0
  %9716 = vmatprep.subr.mxu0 0.0
  %9717 = vmatpush1.msra.mxu0 0.0
  %9718 = vmatprep.subr.mxu0 0.0
  %9719 = vmatpush1.msra.mxu0 0.0
  %9720 = vmatprep.subr.mxu0 0.0
  %9721 = vmatpush1.msra.mxu0 0.0
  %9722 = vmatprep.subr.mxu0 0.0
  %9723 = vmatpush1.msra.mxu0 0.0
  %9724 = vmatprep.subr.mxu0 0.0
  %9725 = vmatpush1.msra.mxu0 0.0
  %9726 = vmatprep.subr.mxu0 0.0
  %9727 = vmatpush1.msra.mxu0 0.0
  %9728 = vmatprep.subr.mxu0 0.0
  %9729 = vmatpush1.msra.mxu0 0.0
  %9730 = vmatprep.subr.mxu0 0.0
  %9731 = vmatpush1.msra.mxu0 0.0
  %9732 = vmatprep.subr.mxu0 0.0
  %9733 = vmatpush1.msra.mxu0 0.0
  %9734 = vmatprep.subr.mxu0 0.0
  %9735 = vmatpush1.msra.mxu0 0.0
  %9736 = vmatprep.subr.mxu0 0.0
  %9737 = vmatpush1.msra.mxu0 0.0
  %9738 = vmatprep.subr.mxu0 0.0
  %9739 = vmatpush1.msra.mxu0 0.0
  %9740 = vmatprep.mubr.f32.mxu0 0.0
  %9741 = vmatmul.mubr.f32.gmra.mrb[0].mxu0 %v9319
  %v9742 = vpop.f32.mrb[0].mxu0
  %v9743 = vadd.f32 %v9196, %v9742
  %v9744 = vpop.f32.mrb[0].mxu0
  %v9745 = vadd.f32 %v9200, %v9744
  %9746 = vdwg.mxu0
  %9747 = vmatprep.subr.mxu0 %v9123
  %9748 = vmatpush1.msra.mxu0 %v9122
  %9749 = vmatprep.subr.mxu0 0.0
  %9750 = vmatpush1.msra.mxu0 0.0
  %9751 = vmatprep.subr.mxu0 0.0
  %9752 = vmatpush1.msra.mxu0 0.0
  %9753 = vmatprep.subr.mxu0 0.0
  %9754 = vmatpush1.msra.mxu0 0.0
  %9755 = vmatprep.subr.mxu0 0.0
  %9756 = vmatpush1.msra.mxu0 0.0
  %9757 = vmatprep.subr.mxu0 0.0
  %9758 = vmatpush1.msra.mxu0 0.0
  %9759 = vmatprep.subr.mxu0 0.0
  %9760 = vmatpush1.msra.mxu0 0.0
  %9761 = vmatprep.subr.mxu0 0.0
  %9762 = vmatpush1.msra.mxu0 0.0
  %9763 = vmatprep.subr.mxu0 0.0
  %9764 = vmatpush1.msra.mxu0 0.0
  %9765 = vmatprep.subr.mxu0 0.0
  %9766 = vmatpush1.msra.mxu0 0.0
  %9767 = vmatprep.subr.mxu0 0.0
  %9768 = vmatpush1.msra.mxu0 0.0
  %9769 = vmatprep.subr.mxu0 0.0
  %9770 = vmatpush1.msra.mxu0 0.0
  %9771 = vmatprep.subr.mxu0 0.0
  %9772 = vmatpush1.msra.mxu0 0.0
  %9773 = vmatprep.subr.mxu0 0.0
  %9774 = vmatpush1.msra.mxu0 0.0
  %9775 = vmatprep.subr.mxu0 0.0
  %9776 = vmatpush1.msra.mxu0 0.0
  %9777 = vmatprep.subr.mxu0 0.0
  %9778 = vmatpush1.msra.mxu0 0.0
  %9779 = vmatprep.subr.mxu0 0.0
  %9780 = vmatpush1.msra.mxu0 0.0
  %9781 = vmatprep.subr.mxu0 0.0
  %9782 = vmatpush1.msra.mxu0 0.0
  %9783 = vmatprep.subr.mxu0 0.0
  %9784 = vmatpush1.msra.mxu0 0.0
  %9785 = vmatprep.subr.mxu0 0.0
  %9786 = vmatpush1.msra.mxu0 0.0
  %9787 = vmatprep.subr.mxu0 0.0
  %9788 = vmatpush1.msra.mxu0 0.0
  %9789 = vmatprep.subr.mxu0 0.0
  %9790 = vmatpush1.msra.mxu0 0.0
  %9791 = vmatprep.subr.mxu0 0.0
  %9792 = vmatpush1.msra.mxu0 0.0
  %9793 = vmatprep.subr.mxu0 0.0
  %9794 = vmatpush1.msra.mxu0 0.0
  %9795 = vmatprep.subr.mxu0 0.0
  %9796 = vmatpush1.msra.mxu0 0.0
  %9797 = vmatprep.subr.mxu0 0.0
  %9798 = vmatpush1.msra.mxu0 0.0
  %9799 = vmatprep.subr.mxu0 0.0
  %9800 = vmatpush1.msra.mxu0 0.0
  %9801 = vmatprep.subr.mxu0 0.0
  %9802 = vmatpush1.msra.mxu0 0.0
  %9803 = vmatprep.subr.mxu0 0.0
  %9804 = vmatpush1.msra.mxu0 0.0
  %9805 = vmatprep.subr.mxu0 0.0
  %9806 = vmatpush1.msra.mxu0 0.0
  %9807 = vmatprep.subr.mxu0 0.0
  %9808 = vmatpush1.msra.mxu0 0.0
  %9809 = vmatprep.subr.mxu0 0.0
  %9810 = vmatpush1.msra.mxu0 0.0
  %9811 = vmatprep.mubr.f32.mxu0 0.0
  %9812 = vmatmul.mubr.f32.gmra.mrb[0].mxu0 %v9319
  %v9813 = vpop.f32.mrb[0].mxu0
  %v9814 = vadd.f32 %v9204, %v9813
  %v9815 = vpop.f32.mrb[0].mxu0
  %v9816 = vadd.f32 %v9208, %v9815
  %9817 = vdwg.mxu0
  %9818 = vmatprep.subr.mxu0 %v9125
  %9819 = vmatpush1.msra.mxu0 %v9124
  %9820 = vmatprep.subr.mxu0 0.0
  %9821 = vmatpush1.msra.mxu0 0.0
  %9822 = vmatprep.subr.mxu0 0.0
  %9823 = vmatpush1.msra.mxu0 0.0
  %9824 = vmatprep.subr.mxu0 0.0
  %9825 = vmatpush1.msra.mxu0 0.0
  %9826 = vmatprep.subr.mxu0 0.0
  %9827 = vmatpush1.msra.mxu0 0.0
  %9828 = vmatprep.subr.mxu0 0.0
  %9829 = vmatpush1.msra.mxu0 0.0
  %9830 = vmatprep.subr.mxu0 0.0
  %9831 = vmatpush1.msra.mxu0 0.0
  %9832 = vmatprep.subr.mxu0 0.0
  %9833 = vmatpush1.msra.mxu0 0.0
  %9834 = vmatprep.subr.mxu0 0.0
  %9835 = vmatpush1.msra.mxu0 0.0
  %9836 = vmatprep.subr.mxu0 0.0
  %9837 = vmatpush1.msra.mxu0 0.0
  %9838 = vmatprep.subr.mxu0 0.0
  %9839 = vmatpush1.msra.mxu0 0.0
  %9840 = vmatprep.subr.mxu0 0.0
  %9841 = vmatpush1.msra.mxu0 0.0
  %9842 = vmatprep.subr.mxu0 0.0
  %9843 = vmatpush1.msra.mxu0 0.0
  %9844 = vmatprep.subr.mxu0 0.0
  %9845 = vmatpush1.msra.mxu0 0.0
  %9846 = vmatprep.subr.mxu0 0.0
  %9847 = vmatpush1.msra.mxu0 0.0
  %9848 = vmatprep.subr.mxu0 0.0
  %9849 = vmatpush1.msra.mxu0 0.0
  %9850 = vmatprep.subr.mxu0 0.0
  %9851 = vmatpush1.msra.mxu0 0.0
  %9852 = vmatprep.subr.mxu0 0.0
  %9853 = vmatpush1.msra.mxu0 0.0
  %9854 = vmatprep.subr.mxu0 0.0
  %9855 = vmatpush1.msra.mxu0 0.0
  %9856 = vmatprep.subr.mxu0 0.0
  %9857 = vmatpush1.msra.mxu0 0.0
  %9858 = vmatprep.subr.mxu0 0.0
  %9859 = vmatpush1.msra.mxu0 0.0
  %9860 = vmatprep.subr.mxu0 0.0
  %9861 = vmatpush1.msra.mxu0 0.0
  %9862 = vmatprep.subr.mxu0 0.0
  %9863 = vmatpush1.msra.mxu0 0.0
  %9864 = vmatprep.subr.mxu0 0.0
  %9865 = vmatpush1.msra.mxu0 0.0
  %9866 = vmatprep.subr.mxu0 0.0
  %9867 = vmatpush1.msra.mxu0 0.0
  %9868 = vmatprep.subr.mxu0 0.0
  %9869 = vmatpush1.msra.mxu0 0.0
  %9870 = vmatprep.subr.mxu0 0.0
  %9871 = vmatpush1.msra.mxu0 0.0
  %9872 = vmatprep.subr.mxu0 0.0
  %9873 = vmatpush1.msra.mxu0 0.0
  %9874 = vmatprep.subr.mxu0 0.0
  %9875 = vmatpush1.msra.mxu0 0.0
  %9876 = vmatprep.subr.mxu0 0.0
  %9877 = vmatpush1.msra.mxu0 0.0
  %9878 = vmatprep.subr.mxu0 0.0
  %9879 = vmatpush1.msra.mxu0 0.0
  %9880 = vmatprep.subr.mxu0 0.0
  %9881 = vmatpush1.msra.mxu0 0.0
  %9882 = vmatprep.mubr.f32.mxu0 0.0
  %9883 = vmatmul.mubr.f32.gmra.mrb[0].mxu0 %v9319
  %v9884 = vpop.f32.mrb[0].mxu0
  %v9885 = vadd.f32 %v9212, %v9884
  %v9886 = vpop.f32.mrb[0].mxu0
  %v9887 = vadd.f32 %v9216, %v9886
  %9888 = vdwg.mxu0
  %9889 = vmatprep.subr.mxu0 %v9127
  %9890 = vmatpush1.msra.mxu0 %v9126
  %9891 = vmatprep.subr.mxu0 0.0
  %9892 = vmatpush1.msra.mxu0 0.0
  %9893 = vmatprep.subr.mxu0 0.0
  %9894 = vmatpush1.msra.mxu0 0.0
  %9895 = vmatprep.subr.mxu0 0.0
  %9896 = vmatpush1.msra.mxu0 0.0
  %9897 = vmatprep.subr.mxu0 0.0
  %9898 = vmatpush1.msra.mxu0 0.0
  %9899 = vmatprep.subr.mxu0 0.0
  %9900 = vmatpush1.msra.mxu0 0.0
  %9901 = vmatprep.subr.mxu0 0.0
  %9902 = vmatpush1.msra.mxu0 0.0
  %9903 = vmatprep.subr.mxu0 0.0
  %9904 = vmatpush1.msra.mxu0 0.0
  %9905 = vmatprep.subr.mxu0 0.0
  %9906 = vmatpush1.msra.mxu0 0.0
  %9907 = vmatprep.subr.mxu0 0.0
  %9908 = vmatpush1.msra.mxu0 0.0
  %9909 = vmatprep.subr.mxu0 0.0
  %9910 = vmatpush1.msra.mxu0 0.0
  %9911 = vmatprep.subr.mxu0 0.0
  %9912 = vmatpush1.msra.mxu0 0.0
  %9913 = vmatprep.subr.mxu0 0.0
  %9914 = vmatpush1.msra.mxu0 0.0
  %9915 = vmatprep.subr.mxu0 0.0
  %9916 = vmatpush1.msra.mxu0 0.0
  %9917 = vmatprep.subr.mxu0 0.0
  %9918 = vmatpush1.msra.mxu0 0.0
  %9919 = vmatprep.subr.mxu0 0.0
  %9920 = vmatpush1.msra.mxu0 0.0
  %9921 = vmatprep.subr.mxu0 0.0
  %9922 = vmatpush1.msra.mxu0 0.0
  %9923 = vmatprep.subr.mxu0 0.0
  %9924 = vmatpush1.msra.mxu0 0.0
  %9925 = vmatprep.subr.mxu0 0.0
  %9926 = vmatpush1.msra.mxu0 0.0
  %9927 = vmatprep.subr.mxu0 0.0
  %9928 = vmatpush1.msra.mxu0 0.0
  %9929 = vmatprep.subr.mxu0 0.0
  %9930 = vmatpush1.msra.mxu0 0.0
  %9931 = vmatprep.subr.mxu0 0.0
  %9932 = vmatpush1.msra.mxu0 0.0
  %9933 = vmatprep.subr.mxu0 0.0
  %9934 = vmatpush1.msra.mxu0 0.0
  %9935 = vmatprep.subr.mxu0 0.0
  %9936 = vmatpush1.msra.mxu0 0.0
  %9937 = vmatprep.subr.mxu0 0.0
  %9938 = vmatpush1.msra.mxu0 0.0
  %9939 = vmatprep.subr.mxu0 0.0
  %9940 = vmatpush1.msra.mxu0 0.0
  %9941 = vmatprep.subr.mxu0 0.0
  %9942 = vmatpush1.msra.mxu0 0.0
  %9943 = vmatprep.subr.mxu0 0.0
  %9944 = vmatpush1.msra.mxu0 0.0
  %9945 = vmatprep.subr.mxu0 0.0
  %9946 = vmatpush1.msra.mxu0 0.0
  %9947 = vmatprep.subr.mxu0 0.0
  %9948 = vmatpush1.msra.mxu0 0.0
  %9949 = vmatprep.subr.mxu0 0.0
  %9950 = vmatpush1.msra.mxu0 0.0
  %9951 = vmatprep.subr.mxu0 0.0
  %9952 = vmatpush1.msra.mxu0 0.0
  %9953 = vmatprep.mubr.f32.mxu0 0.0
  %9954 = vmatmul.mubr.f32.gmra.mrb[0].mxu0 %v9319
  %v9955 = vpop.f32.mrb[0].mxu0
  %v9956 = vadd.f32 %v9220, %v9955
  %v9957 = vpop.f32.mrb[0].mxu0
  %v9958 = vadd.f32 %v9224, %v9957
  %9959 = vdwg.mxu0
  %9960 = vmatprep.subr.mxu0 %v9129
  %9961 = vmatpush1.msra.mxu0 %v9128
  %9962 = vmatprep.subr.mxu0 0.0
  %9963 = vmatpush1.msra.mxu0 0.0
  %9964 = vmatprep.subr.mxu0 0.0
  %9965 = vmatpush1.msra.mxu0 0.0
  %9966 = vmatprep.subr.mxu0 0.0
  %9967 = vmatpush1.msra.mxu0 0.0
  %9968 = vmatprep.subr.mxu0 0.0
  %9969 = vmatpush1.msra.mxu0 0.0
  %9970 = vmatprep.subr.mxu0 0.0
  %9971 = vmatpush1.msra.mxu0 0.0
  %9972 = vmatprep.subr.mxu0 0.0
  %9973 = vmatpush1.msra.mxu0 0.0
  %9974 = vmatprep.subr.mxu0 0.0
  %9975 = vmatpush1.msra.mxu0 0.0
  %9976 = vmatprep.subr.mxu0 0.0
  %9977 = vmatpush1.msra.mxu0 0.0
  %9978 = vmatprep.subr.mxu0 0.0
  %9979 = vmatpush1.msra.mxu0 0.0
  %9980 = vmatprep.subr.mxu0 0.0
  %9981 = vmatpush1.msra.mxu0 0.0
  %9982 = vmatprep.subr.mxu0 0.0
  %9983 = vmatpush1.msra.mxu0 0.0
  %9984 = vmatprep.subr.mxu0 0.0
  %9985 = vmatpush1.msra.mxu0 0.0
  %9986 = vmatprep.subr.mxu0 0.0
  %9987 = vmatpush1.msra.mxu0 0.0
  %9988 = vmatprep.subr.mxu0 0.0
  %9989 = vmatpush1.msra.mxu0 0.0
  %9990 = vmatprep.subr.mxu0 0.0
  %9991 = vmatpush1.msra.mxu0 0.0
  %9992 = vmatprep.subr.mxu0 0.0
  %9993 = vmatpush1.msra.mxu0 0.0
  %9994 = vmatprep.subr.mxu0 0.0
  %9995 = vmatpush1.msra.mxu0 0.0
  %9996 = vmatprep.subr.mxu0 0.0
  %9997 = vmatpush1.msra.mxu0 0.0
  %9998 = vmatprep.subr.mxu0 0.0
  %9999 = vmatpush1.msra.mxu0 0.0
  %10000 = vmatprep.subr.mxu0 0.0
  %10001 = vmatpush1.msra.mxu0 0.0
  %10002 = vmatprep.subr.mxu0 0.0
  %10003 = vmatpush1.msra.mxu0 0.0
  %10004 = vmatprep.subr.mxu0 0.0
  %10005 = vmatpush1.msra.mxu0 0.0
  %10006 = vmatprep.subr.mxu0 0.0
  %10007 = vmatpush1.msra.mxu0 0.0
  %10008 = vmatprep.subr.mxu0 0.0
  %10009 = vmatpush1.msra.mxu0 0.0
  %10010 = vmatprep.subr.mxu0 0.0
  %10011 = vmatpush1.msra.mxu0 0.0
  %10012 = vmatprep.subr.mxu0 0.0
  %10013 = vmatpush1.msra.mxu0 0.0
  %10014 = vmatprep.subr.mxu0 0.0
  %10015 = vmatpush1.msra.mxu0 0.0
  %10016 = vmatprep.subr.mxu0 0.0
  %10017 = vmatpush1.msra.mxu0 0.0
  %10018 = vmatprep.subr.mxu0 0.0
  %10019 = vmatpush1.msra.mxu0 0.0
  %10020 = vmatprep.subr.mxu0 0.0
  %10021 = vmatpush1.msra.mxu0 0.0
  %10022 = vmatprep.subr.mxu0 0.0
  %10023 = vmatpush1.msra.mxu0 0.0
  %10024 = vmatprep.mubr.f32.mxu0 0.0
  %10025 = vmatmul.mubr.f32.gmra.mrb[0].mxu0 %v9319
  %v10026 = vpop.f32.mrb[0].mxu0
  %v10027 = vadd.f32 %v9228, %v10026
  %v10028 = vpop.f32.mrb[0].mxu0
  %v10029 = vadd.f32 %v9232, %v10028
  %10030 = vdwg.mxu0
  %10031 = vmatprep.subr.mxu0 %v9131
  %10032 = vmatpush1.msra.mxu0 %v9130
  %10033 = vmatprep.subr.mxu0 0.0
  %10034 = vmatpush1.msra.mxu0 0.0
  %10035 = vmatprep.subr.mxu0 0.0
  %10036 = vmatpush1.msra.mxu0 0.0
  %10037 = vmatprep.subr.mxu0 0.0
  %10038 = vmatpush1.msra.mxu0 0.0
  %10039 = vmatprep.subr.mxu0 0.0
  %10040 = vmatpush1.msra.mxu0 0.0
  %10041 = vmatprep.subr.mxu0 0.0
  %10042 = vmatpush1.msra.mxu0 0.0
  %10043 = vmatprep.subr.mxu0 0.0
  %10044 = vmatpush1.msra.mxu0 0.0
  %10045 = vmatprep.subr.mxu0 0.0
  %10046 = vmatpush1.msra.mxu0 0.0
  %10047 = vmatprep.subr.mxu0 0.0
  %10048 = vmatpush1.msra.mxu0 0.0
  %10049 = vmatprep.subr.mxu0 0.0
  %10050 = vmatpush1.msra.mxu0 0.0
  %10051 = vmatprep.subr.mxu0 0.0
  %10052 = vmatpush1.msra.mxu0 0.0
  %10053 = vmatprep.subr.mxu0 0.0
  %10054 = vmatpush1.msra.mxu0 0.0
  %10055 = vmatprep.subr.mxu0 0.0
  %10056 = vmatpush1.msra.mxu0 0.0
  %10057 = vmatprep.subr.mxu0 0.0
  %10058 = vmatpush1.msra.mxu0 0.0
  %10059 = vmatprep.subr.mxu0 0.0
  %10060 = vmatpush1.msra.mxu0 0.0
  %10061 = vmatprep.subr.mxu0 0.0
  %10062 = vmatpush1.msra.mxu0 0.0
  %10063 = vmatprep.subr.mxu0 0.0
  %10064 = vmatpush1.msra.mxu0 0.0
  %10065 = vmatprep.subr.mxu0 0.0
  %10066 = vmatpush1.msra.mxu0 0.0
  %10067 = vmatprep.subr.mxu0 0.0
  %10068 = vmatpush1.msra.mxu0 0.0
  %10069 = vmatprep.subr.mxu0 0.0
  %10070 = vmatpush1.msra.mxu0 0.0
  %10071 = vmatprep.subr.mxu0 0.0
  %10072 = vmatpush1.msra.mxu0 0.0
  %10073 = vmatprep.subr.mxu0 0.0
  %10074 = vmatpush1.msra.mxu0 0.0
  %10075 = vmatprep.subr.mxu0 0.0
  %10076 = vmatpush1.msra.mxu0 0.0
  %10077 = vmatprep.subr.mxu0 0.0
  %10078 = vmatpush1.msra.mxu0 0.0
  %10079 = vmatprep.subr.mxu0 0.0
  %10080 = vmatpush1.msra.mxu0 0.0
  %10081 = vmatprep.subr.mxu0 0.0
  %10082 = vmatpush1.msra.mxu0 0.0
  %10083 = vmatprep.subr.mxu0 0.0
  %10084 = vmatpush1.msra.mxu0 0.0
  %10085 = vmatprep.subr.mxu0 0.0
  %10086 = vmatpush1.msra.mxu0 0.0
  %10087 = vmatprep.subr.mxu0 0.0
  %10088 = vmatpush1.msra.mxu0 0.0
  %10089 = vmatprep.subr.mxu0 0.0
  %10090 = vmatpush1.msra.mxu0 0.0
  %10091 = vmatprep.subr.mxu0 0.0
  %10092 = vmatpush1.msra.mxu0 0.0
  %10093 = vmatprep.subr.mxu0 0.0
  %10094 = vmatpush1.msra.mxu0 0.0
  %10095 = vmatprep.mubr.f32.mxu0 0.0
  %10096 = vmatmul.mubr.f32.gmra.mrb[0].mxu0 %v9319
  %v10097 = vpop.f32.mrb[0].mxu0
  %v10098 = vadd.f32 %v9236, %v10097
  %v10099 = vpop.f32.mrb[0].mxu0
  %v10100 = vadd.f32 %v9240, %v10099
  %10101 = vdwg.mxu0
  %10102 = vmatprep.subr.mxu0 %v9133
  %10103 = vmatpush1.msra.mxu0 %v9132
  %10104 = vmatprep.subr.mxu0 0.0
  %10105 = vmatpush1.msra.mxu0 0.0
  %10106 = vmatprep.subr.mxu0 0.0
  %10107 = vmatpush1.msra.mxu0 0.0
  %10108 = vmatprep.subr.mxu0 0.0
  %10109 = vmatpush1.msra.mxu0 0.0
  %10110 = vmatprep.subr.mxu0 0.0
  %10111 = vmatpush1.msra.mxu0 0.0
  %10112 = vmatprep.subr.mxu0 0.0
  %10113 = vmatpush1.msra.mxu0 0.0
  %10114 = vmatprep.subr.mxu0 0.0
  %10115 = vmatpush1.msra.mxu0 0.0
  %10116 = vmatprep.subr.mxu0 0.0
  %10117 = vmatpush1.msra.mxu0 0.0
  %10118 = vmatprep.subr.mxu0 0.0
  %10119 = vmatpush1.msra.mxu0 0.0
  %10120 = vmatprep.subr.mxu0 0.0
  %10121 = vmatpush1.msra.mxu0 0.0
  %10122 = vmatprep.subr.mxu0 0.0
  %10123 = vmatpush1.msra.mxu0 0.0
  %10124 = vmatprep.subr.mxu0 0.0
  %10125 = vmatpush1.msra.mxu0 0.0
  %10126 = vmatprep.subr.mxu0 0.0
  %10127 = vmatpush1.msra.mxu0 0.0
  %10128 = vmatprep.subr.mxu0 0.0
  %10129 = vmatpush1.msra.mxu0 0.0
  %10130 = vmatprep.subr.mxu0 0.0
  %10131 = vmatpush1.msra.mxu0 0.0
  %10132 = vmatprep.subr.mxu0 0.0
  %10133 = vmatpush1.msra.mxu0 0.0
  %10134 = vmatprep.subr.mxu0 0.0
  %10135 = vmatpush1.msra.mxu0 0.0
  %10136 = vmatprep.subr.mxu0 0.0
  %10137 = vmatpush1.msra.mxu0 0.0
  %10138 = vmatprep.subr.mxu0 0.0
  %10139 = vmatpush1.msra.mxu0 0.0
  %10140 = vmatprep.subr.mxu0 0.0
  %10141 = vmatpush1.msra.mxu0 0.0
  %10142 = vmatprep.subr.mxu0 0.0
  %10143 = vmatpush1.msra.mxu0 0.0
  %10144 = vmatprep.subr.mxu0 0.0
  %10145 = vmatpush1.msra.mxu0 0.0
  %10146 = vmatprep.subr.mxu0 0.0
  %10147 = vmatpush1.msra.mxu0 0.0
  %10148 = vmatprep.subr.mxu0 0.0
  %10149 = vmatpush1.msra.mxu0 0.0
  %10150 = vmatprep.subr.mxu0 0.0
  %10151 = vmatpush1.msra.mxu0 0.0
  %10152 = vmatprep.subr.mxu0 0.0
  %10153 = vmatpush1.msra.mxu0 0.0
  %10154 = vmatprep.subr.mxu0 0.0
  %10155 = vmatpush1.msra.mxu0 0.0
  %10156 = vmatprep.subr.mxu0 0.0
  %10157 = vmatpush1.msra.mxu0 0.0
  %10158 = vmatprep.subr.mxu0 0.0
  %10159 = vmatpush1.msra.mxu0 0.0
  %10160 = vmatprep.subr.mxu0 0.0
  %10161 = vmatpush1.msra.mxu0 0.0
  %10162 = vmatprep.subr.mxu0 0.0
  %10163 = vmatpush1.msra.mxu0 0.0
  %10164 = vmatprep.subr.mxu0 0.0
  %10165 = vmatpush1.msra.mxu0 0.0
  %10166 = vmatprep.mubr.f32.mxu0 0.0
  %10167 = vmatmul.mubr.f32.gmra.mrb[0].mxu0 %v9319
  %v10168 = vpop.f32.mrb[0].mxu0
  %v10169 = vadd.f32 %v9244, %v10168
  %v10170 = vpop.f32.mrb[0].mxu0
  %v10171 = vadd.f32 %v9248, %v10170
  %10172 = vdwg.mxu0
  %10173 = vmatprep.subr.mxu0 %v9135
  %10174 = vmatpush1.msra.mxu0 %v9134
  %10175 = vmatprep.subr.mxu0 0.0
  %10176 = vmatpush1.msra.mxu0 0.0
  %10177 = vmatprep.subr.mxu0 0.0
  %10178 = vmatpush1.msra.mxu0 0.0
  %10179 = vmatprep.subr.mxu0 0.0
  %10180 = vmatpush1.msra.mxu0 0.0
  %10181 = vmatprep.subr.mxu0 0.0
  %10182 = vmatpush1.msra.mxu0 0.0
  %10183 = vmatprep.subr.mxu0 0.0
  %10184 = vmatpush1.msra.mxu0 0.0
  %10185 = vmatprep.subr.mxu0 0.0
  %10186 = vmatpush1.msra.mxu0 0.0
  %10187 = vmatprep.subr.mxu0 0.0
  %10188 = vmatpush1.msra.mxu0 0.0
  %10189 = vmatprep.subr.mxu0 0.0
  %10190 = vmatpush1.msra.mxu0 0.0
  %10191 = vmatprep.subr.mxu0 0.0
  %10192 = vmatpush1.msra.mxu0 0.0
  %10193 = vmatprep.subr.mxu0 0.0
  %10194 = vmatpush1.msra.mxu0 0.0
  %10195 = vmatprep.subr.mxu0 0.0
  %10196 = vmatpush1.msra.mxu0 0.0
  %10197 = vmatprep.subr.mxu0 0.0
  %10198 = vmatpush1.msra.mxu0 0.0
  %10199 = vmatprep.subr.mxu0 0.0
  %10200 = vmatpush1.msra.mxu0 0.0
  %10201 = vmatprep.subr.mxu0 0.0
  %10202 = vmatpush1.msra.mxu0 0.0
  %10203 = vmatprep.subr.mxu0 0.0
  %10204 = vmatpush1.msra.mxu0 0.0
  %10205 = vmatprep.subr.mxu0 0.0
  %10206 = vmatpush1.msra.mxu0 0.0
  %10207 = vmatprep.subr.mxu0 0.0
  %10208 = vmatpush1.msra.mxu0 0.0
  %10209 = vmatprep.subr.mxu0 0.0
  %10210 = vmatpush1.msra.mxu0 0.0
  %10211 = vmatprep.subr.mxu0 0.0
  %10212 = vmatpush1.msra.mxu0 0.0
  %10213 = vmatprep.subr.mxu0 0.0
  %10214 = vmatpush1.msra.mxu0 0.0
  %10215 = vmatprep.subr.mxu0 0.0
  %10216 = vmatpush1.msra.mxu0 0.0
  %10217 = vmatprep.subr.mxu0 0.0
  %10218 = vmatpush1.msra.mxu0 0.0
  %10219 = vmatprep.subr.mxu0 0.0
  %10220 = vmatpush1.msra.mxu0 0.0
  %10221 = vmatprep.subr.mxu0 0.0
  %10222 = vmatpush1.msra.mxu0 0.0
  %10223 = vmatprep.subr.mxu0 0.0
  %10224 = vmatpush1.msra.mxu0 0.0
  %10225 = vmatprep.subr.mxu0 0.0
  %10226 = vmatpush1.msra.mxu0 0.0
  %10227 = vmatprep.subr.mxu0 0.0
  %10228 = vmatpush1.msra.mxu0 0.0
  %10229 = vmatprep.subr.mxu0 0.0
  %10230 = vmatpush1.msra.mxu0 0.0
  %10231 = vmatprep.subr.mxu0 0.0
  %10232 = vmatpush1.msra.mxu0 0.0
  %10233 = vmatprep.subr.mxu0 0.0
  %10234 = vmatpush1.msra.mxu0 0.0
  %10235 = vmatprep.subr.mxu0 0.0
  %10236 = vmatpush1.msra.mxu0 0.0
  %10237 = vmatprep.mubr.f32.mxu0 0.0
  %10238 = vmatmul.mubr.f32.gmra.mrb[0].mxu0 %v9319
  %v10239 = vpop.f32.mrb[0].mxu0
  %v10240 = vadd.f32 %v9252, %v10239
  %v10241 = vpop.f32.mrb[0].mxu0
  %v10242 = vadd.f32 %v9256, %v10241
  %10243 = vdwg.mxu0
  %10244 = vmatprep.subr.mxu0 %v9137
  %10245 = vmatpush1.msra.mxu0 %v9136
  %10246 = vmatprep.subr.mxu0 0.0
  %10247 = vmatpush1.msra.mxu0 0.0
  %10248 = vmatprep.subr.mxu0 0.0
  %10249 = vmatpush1.msra.mxu0 0.0
  %10250 = vmatprep.subr.mxu0 0.0
  %10251 = vmatpush1.msra.mxu0 0.0
  %10252 = vmatprep.subr.mxu0 0.0
  %10253 = vmatpush1.msra.mxu0 0.0
  %10254 = vmatprep.subr.mxu0 0.0
  %10255 = vmatpush1.msra.mxu0 0.0
  %10256 = vmatprep.subr.mxu0 0.0
  %10257 = vmatpush1.msra.mxu0 0.0
  %10258 = vmatprep.subr.mxu0 0.0
  %10259 = vmatpush1.msra.mxu0 0.0
  %10260 = vmatprep.subr.mxu0 0.0
  %10261 = vmatpush1.msra.mxu0 0.0
  %10262 = vmatprep.subr.mxu0 0.0
  %10263 = vmatpush1.msra.mxu0 0.0
  %10264 = vmatprep.subr.mxu0 0.0
  %10265 = vmatpush1.msra.mxu0 0.0
  %10266 = vmatprep.subr.mxu0 0.0
  %10267 = vmatpush1.msra.mxu0 0.0
  %10268 = vmatprep.subr.mxu0 0.0
  %10269 = vmatpush1.msra.mxu0 0.0
  %10270 = vmatprep.subr.mxu0 0.0
  %10271 = vmatpush1.msra.mxu0 0.0
  %10272 = vmatprep.subr.mxu0 0.0
  %10273 = vmatpush1.msra.mxu0 0.0
  %10274 = vmatprep.subr.mxu0 0.0
  %10275 = vmatpush1.msra.mxu0 0.0
  %10276 = vmatprep.subr.mxu0 0.0
  %10277 = vmatpush1.msra.mxu0 0.0
  %10278 = vmatprep.subr.mxu0 0.0
  %10279 = vmatpush1.msra.mxu0 0.0
  %10280 = vmatprep.subr.mxu0 0.0
  %10281 = vmatpush1.msra.mxu0 0.0
  %10282 = vmatprep.subr.mxu0 0.0
  %10283 = vmatpush1.msra.mxu0 0.0
  %10284 = vmatprep.subr.mxu0 0.0
  %10285 = vmatpush1.msra.mxu0 0.0
  %10286 = vmatprep.subr.mxu0 0.0
  %10287 = vmatpush1.msra.mxu0 0.0
  %10288 = vmatprep.subr.mxu0 0.0
  %10289 = vmatpush1.msra.mxu0 0.0
  %10290 = vmatprep.subr.mxu0 0.0
  %10291 = vmatpush1.msra.mxu0 0.0
  %10292 = vmatprep.subr.mxu0 0.0
  %10293 = vmatpush1.msra.mxu0 0.0
  %10294 = vmatprep.subr.mxu0 0.0
  %10295 = vmatpush1.msra.mxu0 0.0
  %10296 = vmatprep.subr.mxu0 0.0
  %10297 = vmatpush1.msra.mxu0 0.0
  %10298 = vmatprep.subr.mxu0 0.0
  %10299 = vmatpush1.msra.mxu0 0.0
  %10300 = vmatprep.subr.mxu0 0.0
  %10301 = vmatpush1.msra.mxu0 0.0
  %10302 = vmatprep.subr.mxu0 0.0
  %10303 = vmatpush1.msra.mxu0 0.0
  %10304 = vmatprep.subr.mxu0 0.0
  %10305 = vmatpush1.msra.mxu0 0.0
  %10306 = vmatprep.subr.mxu0 0.0
  %10307 = vmatpush1.msra.mxu0 0.0
  %10308 = vmatprep.mubr.f32.mxu0 0.0
  %10309 = vmatmul.mubr.f32.gmra.mrb[0].mxu0 %v9319
  %v10310 = vpop.f32.mrb[0].mxu0
  %v10311 = vadd.f32 %v9260, %v10310
  %v10312 = vpop.f32.mrb[0].mxu0
  %v10313 = vadd.f32 %v9264, %v10312
  %10314 = vdwg.mxu0
  %10315 = vmatprep.subr.mxu0 %v9139
  %10316 = vmatpush1.msra.mxu0 %v9138
  %10317 = vmatprep.subr.mxu0 0.0
  %10318 = vmatpush1.msra.mxu0 0.0
  %10319 = vmatprep.subr.mxu0 0.0
  %10320 = vmatpush1.msra.mxu0 0.0
  %10321 = vmatprep.subr.mxu0 0.0
  %10322 = vmatpush1.msra.mxu0 0.0
  %10323 = vmatprep.subr.mxu0 0.0
  %10324 = vmatpush1.msra.mxu0 0.0
  %10325 = vmatprep.subr.mxu0 0.0
  %10326 = vmatpush1.msra.mxu0 0.0
  %10327 = vmatprep.subr.mxu0 0.0
  %10328 = vmatpush1.msra.mxu0 0.0
  %10329 = vmatprep.subr.mxu0 0.0
  %10330 = vmatpush1.msra.mxu0 0.0
  %10331 = vmatprep.subr.mxu0 0.0
  %10332 = vmatpush1.msra.mxu0 0.0
  %10333 = vmatprep.subr.mxu0 0.0
  %10334 = vmatpush1.msra.mxu0 0.0
  %10335 = vmatprep.subr.mxu0 0.0
  %10336 = vmatpush1.msra.mxu0 0.0
  %10337 = vmatprep.subr.mxu0 0.0
  %10338 = vmatpush1.msra.mxu0 0.0
  %10339 = vmatprep.subr.mxu0 0.0
  %10340 = vmatpush1.msra.mxu0 0.0
  %10341 = vmatprep.subr.mxu0 0.0
  %10342 = vmatpush1.msra.mxu0 0.0
  %10343 = vmatprep.subr.mxu0 0.0
  %10344 = vmatpush1.msra.mxu0 0.0
  %10345 = vmatprep.subr.mxu0 0.0
  %10346 = vmatpush1.msra.mxu0 0.0
  %10347 = vmatprep.subr.mxu0 0.0
  %10348 = vmatpush1.msra.mxu0 0.0
  %10349 = vmatprep.subr.mxu0 0.0
  %10350 = vmatpush1.msra.mxu0 0.0
  %10351 = vmatprep.subr.mxu0 0.0
  %10352 = vmatpush1.msra.mxu0 0.0
  %10353 = vmatprep.subr.mxu0 0.0
  %10354 = vmatpush1.msra.mxu0 0.0
  %10355 = vmatprep.subr.mxu0 0.0
  %10356 = vmatpush1.msra.mxu0 0.0
  %10357 = vmatprep.subr.mxu0 0.0
  %10358 = vmatpush1.msra.mxu0 0.0
  %10359 = vmatprep.subr.mxu0 0.0
  %10360 = vmatpush1.msra.mxu0 0.0
  %10361 = vmatprep.subr.mxu0 0.0
  %10362 = vmatpush1.msra.mxu0 0.0
  %10363 = vmatprep.subr.mxu0 0.0
  %10364 = vmatpush1.msra.mxu0 0.0
  %10365 = vmatprep.subr.mxu0 0.0
  %10366 = vmatpush1.msra.mxu0 0.0
  %10367 = vmatprep.subr.mxu0 0.0
  %10368 = vmatpush1.msra.mxu0 0.0
  %10369 = vmatprep.subr.mxu0 0.0
  %10370 = vmatpush1.msra.mxu0 0.0
  %10371 = vmatprep.subr.mxu0 0.0
  %10372 = vmatpush1.msra.mxu0 0.0
  %10373 = vmatprep.subr.mxu0 0.0
  %10374 = vmatpush1.msra.mxu0 0.0
  %10375 = vmatprep.subr.mxu0 0.0
  %10376 = vmatpush1.msra.mxu0 0.0
  %10377 = vmatprep.subr.mxu0 0.0
  %10378 = vmatpush1.msra.mxu0 0.0
  %10379 = vmatprep.mubr.f32.mxu0 0.0
  %10380 = vmatmul.mubr.f32.gmra.mrb[0].mxu0 %v9319
  %v10381 = vpop.f32.mrb[0].mxu0
  %v10382 = vadd.f32 %v9268, %v10381
  %v10383 = vpop.f32.mrb[0].mxu0
  %v10384 = vadd.f32 %v9272, %v10383
  %10385 = vdwg.mxu0
  %10386 = vmatprep.subr.mxu0 %v9141
  %10387 = vmatpush1.msra.mxu0 %v9140
  %10388 = vmatprep.subr.mxu0 0.0
  %10389 = vmatpush1.msra.mxu0 0.0
  %10390 = vmatprep.subr.mxu0 0.0
  %10391 = vmatpush1.msra.mxu0 0.0
  %10392 = vmatprep.subr.mxu0 0.0
  %10393 = vmatpush1.msra.mxu0 0.0
  %10394 = vmatprep.subr.mxu0 0.0
  %10395 = vmatpush1.msra.mxu0 0.0
  %10396 = vmatprep.subr.mxu0 0.0
  %10397 = vmatpush1.msra.mxu0 0.0
  %10398 = vmatprep.subr.mxu0 0.0
  %10399 = vmatpush1.msra.mxu0 0.0
  %10400 = vmatprep.subr.mxu0 0.0
  %10401 = vmatpush1.msra.mxu0 0.0
  %10402 = vmatprep.subr.mxu0 0.0
  %10403 = vmatpush1.msra.mxu0 0.0
  %10404 = vmatprep.subr.mxu0 0.0
  %10405 = vmatpush1.msra.mxu0 0.0
  %10406 = vmatprep.subr.mxu0 0.0
  %10407 = vmatpush1.msra.mxu0 0.0
  %10408 = vmatprep.subr.mxu0 0.0
  %10409 = vmatpush1.msra.mxu0 0.0
  %10410 = vmatprep.subr.mxu0 0.0
  %10411 = vmatpush1.msra.mxu0 0.0
  %10412 = vmatprep.subr.mxu0 0.0
  %10413 = vmatpush1.msra.mxu0 0.0
  %10414 = vmatprep.subr.mxu0 0.0
  %10415 = vmatpush1.msra.mxu0 0.0
  %10416 = vmatprep.subr.mxu0 0.0
  %10417 = vmatpush1.msra.mxu0 0.0
  %10418 = vmatprep.subr.mxu0 0.0
  %10419 = vmatpush1.msra.mxu0 0.0
  %10420 = vmatprep.subr.mxu0 0.0
  %10421 = vmatpush1.msra.mxu0 0.0
  %10422 = vmatprep.subr.mxu0 0.0
  %10423 = vmatpush1.msra.mxu0 0.0
  %10424 = vmatprep.subr.mxu0 0.0
  %10425 = vmatpush1.msra.mxu0 0.0
  %10426 = vmatprep.subr.mxu0 0.0
  %10427 = vmatpush1.msra.mxu0 0.0
  %10428 = vmatprep.subr.mxu0 0.0
  %10429 = vmatpush1.msra.mxu0 0.0
  %10430 = vmatprep.subr.mxu0 0.0
  %10431 = vmatpush1.msra.mxu0 0.0
  %10432 = vmatprep.subr.mxu0 0.0
  %10433 = vmatpush1.msra.mxu0 0.0
  %10434 = vmatprep.subr.mxu0 0.0
  %10435 = vmatpush1.msra.mxu0 0.0
  %10436 = vmatprep.subr.mxu0 0.0
  %10437 = vmatpush1.msra.mxu0 0.0
  %10438 = vmatprep.subr.mxu0 0.0
  %10439 = vmatpush1.msra.mxu0 0.0
  %10440 = vmatprep.subr.mxu0 0.0
  %10441 = vmatpush1.msra.mxu0 0.0
  %10442 = vmatprep.subr.mxu0 0.0
  %10443 = vmatpush1.msra.mxu0 0.0
  %10444 = vmatprep.subr.mxu0 0.0
  %10445 = vmatpush1.msra.mxu0 0.0
  %10446 = vmatprep.subr.mxu0 0.0
  %10447 = vmatpush1.msra.mxu0 0.0
  %10448 = vmatprep.subr.mxu0 0.0
  %10449 = vmatpush1.msra.mxu0 0.0
  %10450 = vmatprep.mubr.f32.mxu0 0.0
  %10451 = vmatmul.mubr.f32.gmra.mrb[0].mxu0 %v9319
  %v10452 = vpop.f32.mrb[0].mxu0
  %v10453 = vadd.f32 %v9276, %v10452
  %v10454 = vpop.f32.mrb[0].mxu0
  %v10455 = vadd.f32 %v9280, %v10454
  %10456 = vdwg.mxu0
  %10457 = vmatprep.subr.mxu0 0.0
  %10458 = vmatpush1.msra.mxu0 %v9142
  %10459 = vmatprep.subr.mxu0 0.0
  %10460 = vmatpush1.msra.mxu0 0.0
  %10461 = vmatprep.subr.mxu0 0.0
  %10462 = vmatpush1.msra.mxu0 0.0
  %10463 = vmatprep.subr.mxu0 0.0
  %10464 = vmatpush1.msra.mxu0 0.0
  %10465 = vmatprep.subr.mxu0 0.0
  %10466 = vmatpush1.msra.mxu0 0.0
  %10467 = vmatprep.subr.mxu0 0.0
  %10468 = vmatpush1.msra.mxu0 0.0
  %10469 = vmatprep.subr.mxu0 0.0
  %10470 = vmatpush1.msra.mxu0 0.0
  %10471 = vmatprep.subr.mxu0 0.0
  %10472 = vmatpush1.msra.mxu0 0.0
  %10473 = vmatprep.subr.mxu0 0.0
  %10474 = vmatpush1.msra.mxu0 0.0
  %10475 = vmatprep.subr.mxu0 0.0
  %10476 = vmatpush1.msra.mxu0 0.0
  %10477 = vmatprep.subr.mxu0 0.0
  %10478 = vmatpush1.msra.mxu0 0.0
  %10479 = vmatprep.subr.mxu0 0.0
  %10480 = vmatpush1.msra.mxu0 0.0
  %10481 = vmatprep.subr.mxu0 0.0
  %10482 = vmatpush1.msra.mxu0 0.0
  %10483 = vmatprep.subr.mxu0 0.0
  %10484 = vmatpush1.msra.mxu0 0.0
  %10485 = vmatprep.subr.mxu0 0.0
  %10486 = vmatpush1.msra.mxu0 0.0
  %10487 = vmatprep.subr.mxu0 0.0
  %10488 = vmatpush1.msra.mxu0 0.0
  %10489 = vmatprep.subr.mxu0 0.0
  %10490 = vmatpush1.msra.mxu0 0.0
  %10491 = vmatprep.subr.mxu0 0.0
  %10492 = vmatpush1.msra.mxu0 0.0
  %10493 = vmatprep.subr.mxu0 0.0
  %10494 = vmatpush1.msra.mxu0 0.0
  %10495 = vmatprep.subr.mxu0 0.0
  %10496 = vmatpush1.msra.mxu0 0.0
  %10497 = vmatprep.subr.mxu0 0.0
  %10498 = vmatpush1.msra.mxu0 0.0
  %10499 = vmatprep.subr.mxu0 0.0
  %10500 = vmatpush1.msra.mxu0 0.0
  %10501 = vmatprep.subr.mxu0 0.0
  %10502 = vmatpush1.msra.mxu0 0.0
  %10503 = vmatprep.subr.mxu0 0.0
  %10504 = vmatpush1.msra.mxu0 0.0
  %10505 = vmatprep.subr.mxu0 0.0
  %10506 = vmatpush1.msra.mxu0 0.0
  %10507 = vmatprep.subr.mxu0 0.0
  %10508 = vmatpush1.msra.mxu0 0.0
  %10509 = vmatprep.subr.mxu0 0.0
  %10510 = vmatpush1.msra.mxu0 0.0
  %10511 = vmatprep.subr.mxu0 0.0
  %10512 = vmatpush1.msra.mxu0 0.0
  %10513 = vmatprep.subr.mxu0 0.0
  %10514 = vmatpush1.msra.mxu0 0.0
  %10515 = vmatprep.subr.mxu0 0.0
  %10516 = vmatpush1.msra.mxu0 0.0
  %10517 = vmatprep.subr.mxu0 0.0
  %10518 = vmatpush1.msra.mxu0 0.0
  %10519 = vmatprep.subr.mxu0 0.0
  %10520 = vmatpush1.msra.mxu0 0.0
  %10521 = vmatprep.mubr.f32.mxu0 0.0
  %10522 = vmatmul.mubr.f32.gmra.mrb[0].mxu0 %v9319
  %v10523 = vpop.f32.mrb[0].mxu0
  %v10524 = vadd.f32 %v9284, %v10523
  %v10525 = vpop.f32.mrb[0].mxu0
  %10526 = vdwg.mxu0
  %v10527 = vmax.f32 %v9388, %v9530
  %v10528 = vmax.f32 %v9390, %v9532
  %v10529 = vmax.f32 %v9459, %v9601
  %v10530 = vmax.f32 %v9461, %v9603
  %v10531 = vmax.f32 %v10527, %v9672
  %v10532 = vmax.f32 %v10528, %v9674
  %v10533 = vmax.f32 %v10529, %v9743
  %v10534 = vmax.f32 %v10530, %v9745
  %v10535 = vmax.f32 %v10531, %v9814
  %v10536 = vmax.f32 %v10532, %v9816
  %v10537 = vmax.f32 %v10533, %v9885
  %v10538 = vmax.f32 %v10534, %v9887
  %v10539 = vmax.f32 %v10535, %v9956
  %v10540 = vmax.f32 %v10536, %v9958
  %v10541 = vmax.f32 %v10537, %v10027
  %v10542 = vmax.f32 %v10538, %v10029
  %v10543 = vmax.f32 %v10539, %v10098
  %v10544 = vmax.f32 %v10540, %v10100
  %v10545 = vmax.f32 %v10541, %v10169
  %v10546 = vmax.f32 %v10542, %v10171
  %v10547 = vmax.f32 %v10543, %v10240
  %v10548 = vmax.f32 %v10544, %v10242
  %v10549 = vmax.f32 %v10545, %v10311
  %v10550 = vmax.f32 %v10546, %v10313
  %v10551 = vmax.f32 %v10547, %v10382
  %v10552 = vmax.f32 %v10548, %v10384
  %v10553 = vmax.f32 %v10549, %v10453
  %v10554 = vmax.f32 %v10550, %v10455
  %v10555 = vmax.f32 %v10551, %v10552
  %v10556 = vmax.f32 %v10553, %v10554
  %v10557 = vmax.f32 %v10555, %v10556
  %10558 = vmax.xlane.f32.xlu0 %v10557
  %v10559 = vpop.xlane.xlu0 %10558
  %v10560 = vsub.f32 %v9388, %v10559
  %v10561 = vsub.f32 %v9390, %v10559
  %v10562 = vsub.f32 %v9459, %v10559
  %v10563 = vsub.f32 %v9461, %v10559
  %v10564 = vsub.f32 %v9530, %v10559
  %v10565 = vsub.f32 %v9532, %v10559
  %v10566 = vsub.f32 %v9601, %v10559
  %v10567 = vsub.f32 %v9603, %v10559
  %v10568 = vsub.f32 %v9672, %v10559
  %v10569 = vsub.f32 %v9674, %v10559
  %v10570 = vsub.f32 %v9743, %v10559
  %v10571 = vsub.f32 %v9745, %v10559
  %v10572 = vsub.f32 %v9814, %v10559
  %v10573 = vsub.f32 %v9816, %v10559
  %v10574 = vsub.f32 %v9885, %v10559
  %v10575 = vsub.f32 %v9887, %v10559
  %v10576 = vsub.f32 %v9956, %v10559
  %v10577 = vsub.f32 %v9958, %v10559
  %v10578 = vsub.f32 %v10027, %v10559
  %v10579 = vsub.f32 %v10029, %v10559
  %v10580 = vsub.f32 %v10098, %v10559
  %v10581 = vsub.f32 %v10100, %v10559
  %v10582 = vsub.f32 %v10169, %v10559
  %v10583 = vsub.f32 %v10171, %v10559
  %v10584 = vsub.f32 %v10240, %v10559
  %v10585 = vsub.f32 %v10242, %v10559
  %v10586 = vsub.f32 %v10311, %v10559
  %v10587 = vsub.f32 %v10313, %v10559
  %v10588 = vsub.f32 %v10382, %v10559
  %v10589 = vsub.f32 %v10384, %v10559
  %v10590 = vsub.f32 %v10453, %v10559
  %v10591 = vsub.f32 %v10455, %v10559
  %v10592 = vmul.f32 %v10560, 1.442695
  %v10593 = vpow.pop %v10592
  %v10594 = vmul.f32 %v10561, 1.442695
  %v10595 = vpow.pop %v10594
  %v10596 = vmul.f32 %v10562, 1.442695
  %v10597 = vpow.pop %v10596
  %v10598 = vmul.f32 %v10563, 1.442695
  %v10599 = vpow.pop %v10598
  %v10600 = vmul.f32 %v10564, 1.442695
  %v10601 = vpow.pop %v10600
  %v10602 = vmul.f32 %v10565, 1.442695
  %v10603 = vpow.pop %v10602
  %v10604 = vmul.f32 %v10566, 1.442695
  %v10605 = vpow.pop %v10604
  %v10606 = vmul.f32 %v10567, 1.442695
  %v10607 = vpow.pop %v10606
  %v10608 = vmul.f32 %v10568, 1.442695
  %v10609 = vpow.pop %v10608
  %v10610 = vmul.f32 %v10569, 1.442695
  %v10611 = vpow.pop %v10610
  %v10612 = vmul.f32 %v10570, 1.442695
  %v10613 = vpow.pop %v10612
  %v10614 = vmul.f32 %v10571, 1.442695
  %v10615 = vpow.pop %v10614
  %v10616 = vmul.f32 %v10572, 1.442695
  %v10617 = vpow.pop %v10616
  %v10618 = vmul.f32 %v10573, 1.442695
  %v10619 = vpow.pop %v10618
  %v10620 = vmul.f32 %v10574, 1.442695
  %v10621 = vpow.pop %v10620
  %v10622 = vmul.f32 %v10575, 1.442695
  %v10623 = vpow.pop %v10622
  %v10624 = vmul.f32 %v10576, 1.442695
  %v10625 = vpow.pop %v10624
  %v10626 = vmul.f32 %v10577, 1.442695
  %v10627 = vpow.pop %v10626
  %v10628 = vmul.f32 %v10578, 1.442695
  %v10629 = vpow.pop %v10628
  %v10630 = vmul.f32 %v10579, 1.442695
  %v10631 = vpow.pop %v10630
  %v10632 = vmul.f32 %v10580, 1.442695
  %v10633 = vpow.pop %v10632
  %v10634 = vmul.f32 %v10581, 1.442695
  %v10635 = vpow.pop %v10634
  %v10636 = vmul.f32 %v10582, 1.442695
  %v10637 = vpow.pop %v10636
  %v10638 = vmul.f32 %v10583, 1.442695
  %v10639 = vpow.pop %v10638
  %v10640 = vmul.f32 %v10584, 1.442695
  %v10641 = vpow.pop %v10640
  %v10642 = vmul.f32 %v10585, 1.442695
  %v10643 = vpow.pop %v10642
  %v10644 = vmul.f32 %v10586, 1.442695
  %v10645 = vpow.pop %v10644
  %v10646 = vmul.f32 %v10587, 1.442695
  %v10647 = vpow.pop %v10646
  %v10648 = vmul.f32 %v10588, 1.442695
  %v10649 = vpow.pop %v10648
  %v10650 = vmul.f32 %v10589, 1.442695
  %v10651 = vpow.pop %v10650
  %v10652 = vmul.f32 %v10590, 1.442695
  %v10653 = vpow.pop %v10652
  %v10654 = vmul.f32 %v10591, 1.442695
  %v10655 = vpow.pop %v10654
  %v10656 = vadd.f32 %v10593, %v10595
  %v10657 = vadd.f32 %v10656, %v10597
  %v10658 = vadd.f32 %v10657, %v10599
  %v10659 = vadd.f32 %v10658, %v10601
  %v10660 = vadd.f32 %v10659, %v10603
  %v10661 = vadd.f32 %v10660, %v10605
  %v10662 = vadd.f32 %v10661, %v10607
  %v10663 = vadd.f32 %v10662, %v10609
  %v10664 = vadd.f32 %v10663, %v10611
  %v10665 = vadd.f32 %v10664, %v10613
  %v10666 = vadd.f32 %v10665, %v10615
  %v10667 = vadd.f32 %v10666, %v10617
  %v10668 = vadd.f32 %v10667, %v10619
  %v10669 = vadd.f32 %v10668, %v10621
  %v10670 = vadd.f32 %v10669, %v10623
  %v10671 = vadd.f32 %v10670, %v10625
  %v10672 = vadd.f32 %v10671, %v10627
  %v10673 = vadd.f32 %v10672, %v10629
  %v10674 = vadd.f32 %v10673, %v10631
  %v10675 = vadd.f32 %v10674, %v10633
  %v10676 = vadd.f32 %v10675, %v10635
  %v10677 = vadd.f32 %v10676, %v10637
  %v10678 = vadd.f32 %v10677, %v10639
  %v10679 = vadd.f32 %v10678, %v10641
  %v10680 = vadd.f32 %v10679, %v10643
  %v10681 = vadd.f32 %v10680, %v10645
  %v10682 = vadd.f32 %v10681, %v10647
  %v10683 = vadd.f32 %v10682, %v10649
  %v10684 = vadd.f32 %v10683, %v10651
  %v10685 = vadd.f32 %v10684, %v10653
  %v10686 = vadd.f32 %v10685, %v10655
  %10687 = vadd.xlane.f32.xlu0 %v10686
  %v10688 = vpop.xlane.xlu0 %10687
  %v10689 = vrcp.pop %v10688
  %v10690 = vmul.f32 %v10593, %v10689
  %v10691 = vmul.f32 %v10595, %v10689
  %v10692 = vmul.f32 %v10597, %v10689
  %v10693 = vmul.f32 %v10599, %v10689
  %v10694 = vmul.f32 %v10601, %v10689
  %v10695 = vmul.f32 %v10603, %v10689
  %v10696 = vmul.f32 %v10605, %v10689
  %v10697 = vmul.f32 %v10607, %v10689
  %v10698 = vmul.f32 %v10609, %v10689
  %v10699 = vmul.f32 %v10611, %v10689
  %v10700 = vmul.f32 %v10613, %v10689
  %v10701 = vmul.f32 %v10615, %v10689
  %v10702 = vmul.f32 %v10617, %v10689
  %v10703 = vmul.f32 %v10619, %v10689
  %v10704 = vmul.f32 %v10621, %v10689
  %v10705 = vmul.f32 %v10623, %v10689
  %v10706 = vmul.f32 %v10625, %v10689
  %v10707 = vmul.f32 %v10627, %v10689
  %v10708 = vmul.f32 %v10629, %v10689
  %v10709 = vmul.f32 %v10631, %v10689
  %v10710 = vmul.f32 %v10633, %v10689
  %v10711 = vmul.f32 %v10635, %v10689
  %v10712 = vmul.f32 %v10637, %v10689
  %v10713 = vmul.f32 %v10639, %v10689
  %v10714 = vmul.f32 %v10641, %v10689
  %v10715 = vmul.f32 %v10643, %v10689
  %v10716 = vmul.f32 %v10645, %v10689
  %v10717 = vmul.f32 %v10647, %v10689
  %v10718 = vmul.f32 %v10649, %v10689
  %v10719 = vmul.f32 %v10651, %v10689
  %v10720 = vmul.f32 %v10653, %v10689
  %v10721 = vmul.f32 %v10655, %v10689
  %10722 = vst [vmem:[%s13] sm:$0xff] %v10690
  %10723 = vst [vmem:[%s13 + $0x8] sm:$0xff] %v10691
  %10724 = vst [vmem:[%s13 + $0x10] sm:$0xff] %v10692
  %10725 = vst [vmem:[%s13 + $0x18] sm:$0xff] %v10693
  %10726 = vst [vmem:[%s13 + $0x20] sm:$0xff] %v10694
  %10727 = vst [vmem:[%s13 + $0x28] sm:$0xff] %v10695
  %10728 = vst [vmem:[%s13 + $0x30] sm:$0xff] %v10696
  %10729 = vst [vmem:[%s13 + $0x38] sm:$0xff] %v10697
  %10730 = vst [vmem:[%s13 + $0x40] sm:$0xff] %v10698
  %10731 = vst [vmem:[%s13 + $0x48] sm:$0xff] %v10699
  %10732 = vst [vmem:[%s13 + $0x50] sm:$0xff] %v10700
  %10733 = vst [vmem:[%s13 + $0x58] sm:$0xff] %v10701
  %10734 = vst [vmem:[%s13 + $0x60] sm:$0xff] %v10702
  %10735 = vst [vmem:[%s13 + $0x68] sm:$0xff] %v10703
  %10736 = vst [vmem:[%s13 + $0x70] sm:$0xff] %v10704
  %10737 = vst [vmem:[%s13 + $0x78] sm:$0xff] %v10705
  %10738 = vst [vmem:[%s13 + $0x80] sm:$0xff] %v10706
  %10739 = vst [vmem:[%s13 + $0x88] sm:$0xff] %v10707
  %10740 = vst [vmem:[%s13 + $0x90] sm:$0xff] %v10708
  %10741 = vst [vmem:[%s13 + $0x98] sm:$0xff] %v10709
  %10742 = vst [vmem:[%s13 + $0xa0] sm:$0xff] %v10710
  %10743 = vst [vmem:[%s13 + $0xa8] sm:$0xff] %v10711
  %10744 = vst [vmem:[%s13 + $0xb0] sm:$0xff] %v10712
  %10745 = vst [vmem:[%s13 + $0xb8] sm:$0xff] %v10713
  %10746 = vst [vmem:[%s13 + $0xc0] sm:$0xff] %v10714
  %10747 = vst [vmem:[%s13 + $0xc8] sm:$0xff] %v10715
  %10748 = vst [vmem:[%s13 + $0xd0] sm:$0xff] %v10716
  %10749 = vst [vmem:[%s13 + $0xd8] sm:$0xff] %v10717
  %10750 = vst [vmem:[%s13 + $0xe0] sm:$0xff] %v10718
  %10751 = vst [vmem:[%s13 + $0xe8] sm:$0xff] %v10719
  %10752 = vst [vmem:[%s13 + $0xf0] sm:$0xff] %v10720
  %10753 = vst [vmem:[%s13 + $0xf8] sm:$0xff] %v10721
  %10754 = vmax.xlane.f32.xlu0 %v10524
  %v10755 = vpop.xlane.xlu0 %10754
  %v10756 = vsub.f32 %v10524, %v10755
  %v10757 = vmul.f32 %v10756, 1.442695
  %v10758 = vpow.pop %v10757
  %10759 = vadd.xlane.f32.xlu0 %v10758
  %v10760 = vpop.xlane.xlu0 %10759
  %v10761 = vrcp.pop %v10760
  %v10762 = vmul.f32 %v10758, %v10761
  %10763 = vst [vmem:[%s13 + $0x100] sm:$0xff] %v10762
  // Predicated region
  $region54: #{transformer_forward.1} parent=0 // pred_check
    _
  $region55: #{transformer_forward.1} parent=0 // pred_check_branch
    %10765 = sbr.rel (0) target = $region57
  $region56: #{transformer_forward.1} parent=0 // pred_region
    _
  $region57: #{transformer_forward.1} parent=0 // pred_fallthru
    _
  // Predicated region
  $region58: #{transformer_forward.1} parent=0 // pred_check
    _
  $region59: #{transformer_forward.1} parent=0 // pred_check_branch
    %10767 = sbr.rel (0) target = $region61
  $region60: #{transformer_forward.1} parent=0 // pred_region
    _
  $region61: #{transformer_forward.1} parent=0 // pred_fallthru
    _

</llo_original>
